<compile_context>
chip_gen: v7x
topology: tpu7x:2x2x1
jax: 0.10.0
libtpu: 0.0.40
codegen_flags: <defaults>
</compile_context>

<pallas_src>
import math

import jax
import jax.numpy as jnp
from jax.experimental import pallas as pl
from jax.experimental.pallas import tpu as pltpu

# ----------------------------- model config --------------------------------
EMBED = 16          # embed_size
HIDDEN = 32         # hidden_size (d_model of the encoder layers)
HEADS = 4           # head_size
HEAD_DIM = HIDDEN // HEADS
FFN = 128           # dim_feedforward (PyTorch default in the module: 128)
NUM_LAYERS = 2
SEQ = 8             # max_seq_len == seq so the key-padding mask matches
BATCH = 2
LN_EPS = 1e-5
NEG = -1e30         # additive mask value for padded keys (f32 path)


def _layernorm(x, w, b):
    mean = jnp.mean(x, axis=-1, keepdims=True)
    var = jnp.mean((x - mean) ** 2, axis=-1, keepdims=True)
    return (x - mean) * jax.lax.rsqrt(var + LN_EPS) * w + b


# ------------------------------ fused kernel --------------------------------
def fused_encoder_kernel(x_ref, mask_ref, pe_ref, ftw_ref, ftb_ref,
                         qw_ref, qb_ref, kw_ref, kb_ref, vw_ref, vb_ref,
                         ow_ref, ob_ref, ln1w_ref, ln1b_ref,
                         l1w_ref, l1b_ref, l2w_ref, l2b_ref,
                         ln2w_ref, ln2b_ref, o_ref):
    """ForwardTrans + PositionalEncoding + NUM_LAYERS post-norm encoder layers."""
    x = x_ref[...]                                   # (B*S, E)

    # ForwardTrans (Linear embed->hidden) + positional encoding (d = hidden, as the
    # module's PE.forward recomputes pe with d_model = x.size(2)).
    # TODO(synk): nn.Dropout omitted (eval/inference => identity).
    h = jnp.dot(x, ftw_ref[...], preferred_element_type=jnp.float32) + ftb_ref[...]
    h = h + pe_ref[...]                              # (B*S, D)

    mask = mask_ref[...]                             # (B, 1, S) additive key mask, f32

    for l in range(NUM_LAYERS):                      # static loop, stacked layer weights
        # ---------------- multi-head self attention -------------------------
        attn = jnp.zeros((BATCH * SEQ, HIDDEN), jnp.float32)
        for hd in range(HEADS):                      # static head loop, per-head weights
            qh = jnp.dot(h, qw_ref[l, hd], preferred_element_type=jnp.float32) + qb_ref[l, hd]
            kh = jnp.dot(h, kw_ref[l, hd], preferred_element_type=jnp.float32) + kb_ref[l, hd]
            vh = jnp.dot(h, vw_ref[l, hd], preferred_element_type=jnp.float32) + vb_ref[l, hd]
            # (B*S, Dh) -> (B, S, Dh): splits sublanes on a tile boundary only.
            q3 = qh.reshape(BATCH, SEQ, HEAD_DIM)
            k3 = kh.reshape(BATCH, SEQ, HEAD_DIM)
            v3 = vh.reshape(BATCH, SEQ, HEAD_DIM)
            # scores (B, Sq, Sk); 1/sqrt(head_dim) already folded into qw/qb.
            s = jnp.einsum('bqd,bkd->bqk', q3, k3, preferred_element_type=jnp.float32)
            s = s + mask                             # key-padding mask (broadcast over queries)
            s = s - jnp.max(s, axis=-1, keepdims=True)
            p = jnp.exp(s)
            # NOTE: a fully-masked row (len == 0) gives 0/0 = NaN, matching PyTorch.
            p = p * pl.reciprocal(jnp.sum(p, axis=-1, keepdims=True), approx=True)
            ctx = jnp.einsum('bqk,bkd->bqd', p, v3, preferred_element_type=jnp.float32)
            # Per-head slice of the output projection, accumulated: no head concat.
            attn = attn + jnp.dot(ctx.reshape(BATCH * SEQ, HEAD_DIM), ow_ref[l, hd],
                                  preferred_element_type=jnp.float32)
        attn = attn + ob_ref[l]
        # TODO(synk): attention/FFN dropouts omitted (eval/inference => identity).

        # ---------------- residual + layernorm 1 (post-norm) ----------------
        y = _layernorm(h + attn, ln1w_ref[l], ln1b_ref[l])

        # ---------------- feed-forward (relu) -------------------------------
        ff = jnp.maximum(
            jnp.dot(y, l1w_ref[l], preferred_element_type=jnp.float32) + l1b_ref[l], 0.0)
        z = jnp.dot(ff, l2w_ref[l], preferred_element_type=jnp.float32) + l2b_ref[l]

        # ---------------- residual + layernorm 2 ----------------------------
        h = _layernorm(y + z, ln2w_ref[l], ln2b_ref[l])

    o_ref[...] = h                                   # (B*S, D)


# ------------------------------ wrapper --------------------------------------
def transformer_encoder(params, x, lens):
    """x: (B, S, E); lens: (B,). Returns (B, S, HIDDEN)."""
    B, S, E = x.shape
    kp = prepare_params(params)                                  # host-side, one time
    pe = jnp.tile(positional_encoding(S, HIDDEN), (B, 1))        # (B*S, D)
    mask = key_padding_additive_mask(lens, S)                    # (B, 1, S)
    vmem = pl.BlockSpec(memory_space=pltpu.MemorySpace.VMEM)

    out = pl.pallas_call(
        fused_encoder_kernel,
        out_shape=jax.ShapeDtypeStruct((B * S, HIDDEN), jnp.float32),
        in_specs=[vmem] * 21,
        out_specs=vmem,
    )(x.reshape(B * S, E), mask, pe,
      kp["ft_w"], kp["ft_b"],
      kp["q_w"], kp["q_b"], kp["k_w"], kp["k_b"], kp["v_w"], kp["v_b"],
      kp["o_w"], kp["o_b"], kp["ln1_w"], kp["ln1_b"],
      kp["l1_w"], kp["l1_b"], kp["l2_w"], kp["l2_b"],
      kp["ln2_w"], kp["ln2_b"])
    # TODO(synk): BiliAttnReduction is not defined in the provided source; we take
    # the self_att_dim=None path and return the (batch, seq, hidden) sequence.
    return out.reshape(B, S, HIDDEN)


# ------------------------------ glue (plain JAX, host side) ------------------
def positional_encoding(seq, d):
    pos = jnp.arange(seq, dtype=jnp.float32)[:, None]
    div = jnp.exp(jnp.arange(0, d, 2, dtype=jnp.float32) * (-math.log(10000.0) / d))
    pe = jnp.zeros((seq, d), jnp.float32)
    pe = pe.at[:, 0::2].set(jnp.sin(pos * div))
    pe = pe.at[:, 1::2].set(jnp.cos(pos * div))
    return pe


def key_padding_additive_mask(lens, max_len):
    idx = jnp.arange(max_len)[None, :]
    pad = idx >= lens[:, None]                       # True where i >= len (padding)
    return jnp.where(pad, NEG, 0.0).astype(jnp.float32)[:, None, :]   # (B, 1, S)


def init_params(key):
    """Parameters in the PyTorch layout ((out, in) weights, fused in_proj)."""
    keys = jax.random.split(key, 2 + NUM_LAYERS)
    params = {
        "ft_w": 0.05 * jax.random.normal(keys[0], (HIDDEN, EMBED), jnp.float32),
        "ft_b": 0.01 * jax.random.normal(keys[1], (HIDDEN,), jnp.float32),
        "layers": [],
    }
    for l in range(NUM_LAYERS):
        ks = jax.random.split(keys[2 + l], 4)
        params["layers"].append(dict(
            in_w=0.05 * jax.random.normal(ks[0], (3 * HIDDEN, HIDDEN), jnp.float32),
            in_b=jnp.zeros((3 * HIDDEN,), jnp.float32),
            out_w=0.05 * jax.random.normal(ks[1], (HIDDEN, HIDDEN), jnp.float32),
            out_b=jnp.zeros((HIDDEN,), jnp.float32),
            ln1_w=jnp.ones((HIDDEN,), jnp.float32),
            ln1_b=jnp.zeros((HIDDEN,), jnp.float32),
            l1_w=0.05 * jax.random.normal(ks[2], (FFN, HIDDEN), jnp.float32),
            l1_b=jnp.zeros((FFN,), jnp.float32),
            l2_w=0.05 * jax.random.normal(ks[3], (HIDDEN, FFN), jnp.float32),
            l2_b=jnp.zeros((HIDDEN,), jnp.float32),
            ln2_w=jnp.ones((HIDDEN,), jnp.float32),
            ln2_b=jnp.zeros((HIDDEN,), jnp.float32),
        ))
    return params


def prepare_params(p):
    """One-time host prep: transpose weights to (in, out), split q/k/v/out per head,
    fold 1/sqrt(head_dim) into q, and stack the layer dimension."""
    scale = 1.0 / math.sqrt(HEAD_DIM)

    def split_w(in_w, idx, fold=1.0):
        w = in_w[idx * HIDDEN:(idx + 1) * HIDDEN]            # (D_out, D_in) torch layout
        wt = w.T * fold                                      # (D_in, D_out)
        return wt.reshape(HIDDEN, HEADS, HEAD_DIM).transpose(1, 0, 2)   # (H, D_in, Dh)

    def split_b(in_b, idx, fold=1.0):
        b = in_b[idx * HIDDEN:(idx + 1) * HIDDEN] * fold
        return b.reshape(HEADS, 1, HEAD_DIM)                 # (H, 1, Dh)

    stack = lambda fn: jnp.stack([fn(lyr) for lyr in p["layers"]])
    return {
        "ft_w": p["ft_w"].T,                                 # (E, D)
        "ft_b": p["ft_b"].reshape(1, HIDDEN),
        "q_w": stack(lambda l: split_w(l["in_w"], 0, scale)),  # (L, H, D, Dh), scale folded
        "q_b": stack(lambda l: split_b(l["in_b"], 0, scale)),  # (L, H, 1, Dh)
        "k_w": stack(lambda l: split_w(l["in_w"], 1)),
        "k_b": stack(lambda l: split_b(l["in_b"], 1)),
        "v_w": stack(lambda l: split_w(l["in_w"], 2)),
        "v_b": stack(lambda l: split_b(l["in_b"], 2)),
        "o_w": stack(lambda l: l["out_w"].T.reshape(HEADS, HEAD_DIM, HIDDEN)),  # (L, H, Dh, D)
        "o_b": stack(lambda l: l["out_b"].reshape(1, HIDDEN)),
        "ln1_w": stack(lambda l: l["ln1_w"].reshape(1, HIDDEN)),
        "ln1_b": stack(lambda l: l["ln1_b"].reshape(1, HIDDEN)),
        "l1_w": stack(lambda l: l["l1_w"].T),                # (L, D, FFN)
        "l1_b": stack(lambda l: l["l1_b"].reshape(1, FFN)),
        "l2_w": stack(lambda l: l["l2_w"].T),                # (L, FFN, D)
        "l2_b": stack(lambda l: l["l2_b"].reshape(1, HIDDEN)),
        "ln2_w": stack(lambda l: l["ln2_w"].reshape(1, HIDDEN)),
        "ln2_b": stack(lambda l: l["ln2_b"].reshape(1, HIDDEN)),
    }


if __name__ == "__main__":
    key = jax.random.PRNGKey(0)
    kx, kparam = jax.random.split(key)
    x = jax.random.normal(kx, (BATCH, SEQ, EMBED), jnp.float32)
    lens = jnp.array([SEQ, 5], dtype=jnp.int32)
    params = init_params(kparam)

    out = jax.block_until_ready(transformer_encoder(params, x, lens))

    assert out.shape == (BATCH, SEQ, HIDDEN), out.shape
    assert bool(jnp.all(jnp.isfinite(out)))
    print("KERNEL_OK")
</pallas_src>

<mosaic_0001>
module attributes {stable_mosaic.version = 11 : i64} {
  func.func @fused_encoder_kernel(%arg0: memref<16x16xf32, #tpu.memory_space<vmem>>, %arg1: memref<2x1x8xf32, #tpu.memory_space<vmem>>, %arg2: memref<16x32xf32, #tpu.memory_space<vmem>>, %arg3: memref<16x32xf32, #tpu.memory_space<vmem>>, %arg4: memref<1x32xf32, #tpu.memory_space<vmem>>, %arg5: memref<2x4x32x8xf32, #tpu.memory_space<vmem>>, %arg6: memref<2x4x1x8xf32, #tpu.memory_space<vmem>>, %arg7: memref<2x4x32x8xf32, #tpu.memory_space<vmem>>, %arg8: memref<2x4x1x8xf32, #tpu.memory_space<vmem>>, %arg9: memref<2x4x32x8xf32, #tpu.memory_space<vmem>>, %arg10: memref<2x4x1x8xf32, #tpu.memory_space<vmem>>, %arg11: memref<2x4x8x32xf32, #tpu.memory_space<vmem>>, %arg12: memref<2x1x32xf32, #tpu.memory_space<vmem>>, %arg13: memref<2x1x32xf32, #tpu.memory_space<vmem>>, %arg14: memref<2x1x32xf32, #tpu.memory_space<vmem>>, %arg15: memref<2x32x128xf32, #tpu.memory_space<vmem>>, %arg16: memref<2x1x128xf32, #tpu.memory_space<vmem>>, %arg17: memref<2x128x32xf32, #tpu.memory_space<vmem>>, %arg18: memref<2x1x32xf32, #tpu.memory_space<vmem>>, %arg19: memref<2x1x32xf32, #tpu.memory_space<vmem>>, %arg20: memref<2x1x32xf32, #tpu.memory_space<vmem>>, %arg21: memref<16x32xf32, #tpu.memory_space<vmem>>) attributes {dimension_semantics = [], scalar_prefetch = 0 : i64, scratch_operands = 0 : i64, tpu.core_type = #tpu.core_type<tc>} {
    %c0 = arith.constant 0 : index
    %c0_0 = arith.constant 0 : index
    %0 = vector.load %arg0[%c0, %c0_0] : memref<16x16xf32, #tpu.memory_space<vmem>>, vector<16x16xf32>
    %c0_1 = arith.constant 0 : index
    %c0_2 = arith.constant 0 : index
    %1 = vector.load %arg3[%c0_1, %c0_2] : memref<16x32xf32, #tpu.memory_space<vmem>>, vector<16x32xf32>
    %cst = arith.constant dense<0.000000e+00> : vector<16x32xf32>
    %2 = tpu.matmul %0, %1, %cst {dimension_numbers = #tpu.dot_dimension_numbers<[1], [0], [0], [1], [0, 0, 1, 1], [], []>} : vector<16x16xf32>, vector<16x32xf32>, vector<16x32xf32> -> vector<16x32xf32>
    %c0_3 = arith.constant 0 : index
    %c0_4 = arith.constant 0 : index
    %3 = vector.load %arg4[%c0_3, %c0_4] : memref<1x32xf32, #tpu.memory_space<vmem>>, vector<1x32xf32>
    %4 = vector.broadcast %3 : vector<1x32xf32> to vector<16x32xf32>
    %5 = arith.addf %2, %4 : vector<16x32xf32>
    %c0_5 = arith.constant 0 : index
    %c0_6 = arith.constant 0 : index
    %6 = vector.load %arg2[%c0_5, %c0_6] : memref<16x32xf32, #tpu.memory_space<vmem>>, vector<16x32xf32>
    %7 = arith.addf %5, %6 : vector<16x32xf32>
    %c0_7 = arith.constant 0 : index
    %c0_8 = arith.constant 0 : index
    %c0_9 = arith.constant 0 : index
    %8 = vector.load %arg1[%c0_7, %c0_8, %c0_9] : memref<2x1x8xf32, #tpu.memory_space<vmem>>, vector<2x1x8xf32>
    %cst_10 = arith.constant 0.000000e+00 : f32
    %9 = vector.broadcast %cst_10 : f32 to vector<16x32xf32>
    %c0_11 = arith.constant 0 : index
    %c0_12 = arith.constant 0 : index
    %c0_13 = arith.constant 0 : index
    %c0_14 = arith.constant 0 : index
    %10 = vector.load %arg5[%c0_11, %c0_12, %c0_13, %c0_14] : memref<2x4x32x8xf32, #tpu.memory_space<vmem>>, vector<1x1x32x8xf32>
    %11 = vector.shape_cast %10 : vector<1x1x32x8xf32> to vector<32x8xf32>
    %cst_15 = arith.constant dense<0.000000e+00> : vector<16x8xf32>
    %12 = tpu.matmul %7, %11, %cst_15 {dimension_numbers = #tpu.dot_dimension_numbers<[1], [0], [0], [1], [0, 0, 1, 1], [], []>} : vector<16x32xf32>, vector<32x8xf32>, vector<16x8xf32> -> vector<16x8xf32>
    %c0_16 = arith.constant 0 : index
    %c0_17 = arith.constant 0 : index
    %c0_18 = arith.constant 0 : index
    %c0_19 = arith.constant 0 : index
    %13 = vector.load %arg6[%c0_16, %c0_17, %c0_18, %c0_19] : memref<2x4x1x8xf32, #tpu.memory_space<vmem>>, vector<1x1x1x8xf32>
    %14 = vector.shape_cast %13 : vector<1x1x1x8xf32> to vector<1x8xf32>
    %15 = vector.broadcast %14 : vector<1x8xf32> to vector<16x8xf32>
    %16 = arith.addf %12, %15 : vector<16x8xf32>
    %c0_20 = arith.constant 0 : index
    %c0_21 = arith.constant 0 : index
    %c0_22 = arith.constant 0 : index
    %c0_23 = arith.constant 0 : index
    %17 = vector.load %arg7[%c0_20, %c0_21, %c0_22, %c0_23] : memref<2x4x32x8xf32, #tpu.memory_space<vmem>>, vector<1x1x32x8xf32>
    %18 = vector.shape_cast %17 : vector<1x1x32x8xf32> to vector<32x8xf32>
    %cst_24 = arith.constant dense<0.000000e+00> : vector<16x8xf32>
    %19 = tpu.matmul %7, %18, %cst_24 {dimension_numbers = #tpu.dot_dimension_numbers<[1], [0], [0], [1], [0, 0, 1, 1], [], []>} : vector<16x32xf32>, vector<32x8xf32>, vector<16x8xf32> -> vector<16x8xf32>
    %c0_25 = arith.constant 0 : index
    %c0_26 = arith.constant 0 : index
    %c0_27 = arith.constant 0 : index
    %c0_28 = arith.constant 0 : index
    %20 = vector.load %arg8[%c0_25, %c0_26, %c0_27, %c0_28] : memref<2x4x1x8xf32, #tpu.memory_space<vmem>>, vector<1x1x1x8xf32>
    %21 = vector.shape_cast %20 : vector<1x1x1x8xf32> to vector<1x8xf32>
    %22 = vector.broadcast %21 : vector<1x8xf32> to vector<16x8xf32>
    %23 = arith.addf %19, %22 : vector<16x8xf32>
    %c0_29 = arith.constant 0 : index
    %c0_30 = arith.constant 0 : index
    %c0_31 = arith.constant 0 : index
    %c0_32 = arith.constant 0 : index
    %24 = vector.load %arg9[%c0_29, %c0_30, %c0_31, %c0_32] : memref<2x4x32x8xf32, #tpu.memory_space<vmem>>, vector<1x1x32x8xf32>
    %25 = vector.shape_cast %24 : vector<1x1x32x8xf32> to vector<32x8xf32>
    %cst_33 = arith.constant dense<0.000000e+00> : vector<16x8xf32>
    %26 = tpu.matmul %7, %25, %cst_33 {dimension_numbers = #tpu.dot_dimension_numbers<[1], [0], [0], [1], [0, 0, 1, 1], [], []>} : vector<16x32xf32>, vector<32x8xf32>, vector<16x8xf32> -> vector<16x8xf32>
    %c0_34 = arith.constant 0 : index
    %c0_35 = arith.constant 0 : index
    %c0_36 = arith.constant 0 : index
    %c0_37 = arith.constant 0 : index
    %27 = vector.load %arg10[%c0_34, %c0_35, %c0_36, %c0_37] : memref<2x4x1x8xf32, #tpu.memory_space<vmem>>, vector<1x1x1x8xf32>
    %28 = vector.shape_cast %27 : vector<1x1x1x8xf32> to vector<1x8xf32>
    %29 = vector.broadcast %28 : vector<1x8xf32> to vector<16x8xf32>
    %30 = arith.addf %26, %29 : vector<16x8xf32>
    %31 = vector.shape_cast %16 : vector<16x8xf32> to vector<2x8x8xf32>
    %32 = vector.shape_cast %23 : vector<16x8xf32> to vector<2x8x8xf32>
    %33 = vector.shape_cast %30 : vector<16x8xf32> to vector<2x8x8xf32>
    "tpu.trace_start"() <{level = 10 : i32, message = "bqd,bkd->bqk"}> : () -> ()
    %cst_38 = arith.constant dense<0.000000e+00> : vector<2x8x8xf32>
    %34 = tpu.matmul %31, %32, %cst_38 {dimension_numbers = #tpu.dot_dimension_numbers<[2], [2], [1], [1], [0, 0, 0, 1, 1, 1], [0], [0]>} : vector<2x8x8xf32>, vector<2x8x8xf32>, vector<2x8x8xf32> -> vector<2x8x8xf32>
    "tpu.trace_stop"() : () -> ()
    %35 = vector.broadcast %8 : vector<2x1x8xf32> to vector<2x8x8xf32>
    %36 = arith.addf %34, %35 : vector<2x8x8xf32>
    %cst_39 = arith.constant dense<0xFF800000> : vector<2x8xf32>
    %37 = vector.multi_reduction <maximumf>, %36, %cst_39 [2] : vector<2x8x8xf32> to vector<2x8xf32>
    %38 = vector.shape_cast %37 : vector<2x8xf32> to vector<2x8x1xf32>
    %39 = vector.broadcast %38 : vector<2x8x1xf32> to vector<2x8x8xf32>
    %40 = arith.subf %36, %39 : vector<2x8x8xf32>
    %41 = math.exp %40 : vector<2x8x8xf32>
    %cst_40 = arith.constant dense<0.000000e+00> : vector<2x8xf32>
    %42 = vector.multi_reduction <add>, %41, %cst_40 [2] : vector<2x8x8xf32> to vector<2x8xf32>
    %43 = vector.shape_cast %42 : vector<2x8xf32> to vector<2x8x1xf32>
    %44 = tpu.reciprocal %43 {approx = true} : vector<2x8x1xf32> -> vector<2x8x1xf32>
    %45 = vector.broadcast %44 : vector<2x8x1xf32> to vector<2x8x8xf32>
    %46 = arith.mulf %41, %45 : vector<2x8x8xf32>
    "tpu.trace_start"() <{level = 10 : i32, message = "bqk,bkd->bqd"}> : () -> ()
    %cst_41 = arith.constant dense<0.000000e+00> : vector<2x8x8xf32>
    %47 = tpu.matmul %46, %33, %cst_41 {dimension_numbers = #tpu.dot_dimension_numbers<[2], [1], [1], [2], [0, 0, 0, 1, 1, 2], [0], [0]>} : vector<2x8x8xf32>, vector<2x8x8xf32>, vector<2x8x8xf32> -> vector<2x8x8xf32>
    "tpu.trace_stop"() : () -> ()
    %48 = vector.shape_cast %47 : vector<2x8x8xf32> to vector<16x8xf32>
    %c0_42 = arith.constant 0 : index
    %c0_43 = arith.constant 0 : index
    %c0_44 = arith.constant 0 : index
    %c0_45 = arith.constant 0 : index
    %49 = vector.load %arg11[%c0_42, %c0_43, %c0_44, %c0_45] : memref<2x4x8x32xf32, #tpu.memory_space<vmem>>, vector<1x1x8x32xf32>
    %50 = vector.shape_cast %49 : vector<1x1x8x32xf32> to vector<8x32xf32>
    %cst_46 = arith.constant dense<0.000000e+00> : vector<16x32xf32>
    %51 = tpu.matmul %48, %50, %cst_46 {dimension_numbers = #tpu.dot_dimension_numbers<[1], [0], [0], [1], [0, 0, 1, 1], [], []>} : vector<16x8xf32>, vector<8x32xf32>, vector<16x32xf32> -> vector<16x32xf32>
    %52 = arith.addf %9, %51 : vector<16x32xf32>
    %c0_47 = arith.constant 0 : index
    %c1 = arith.constant 1 : index
    %c0_48 = arith.constant 0 : index
    %c0_49 = arith.constant 0 : index
    %53 = vector.load %arg5[%c0_47, %c1, %c0_48, %c0_49] : memref<2x4x32x8xf32, #tpu.memory_space<vmem>>, vector<1x1x32x8xf32>
    %54 = vector.shape_cast %53 : vector<1x1x32x8xf32> to vector<32x8xf32>
    %cst_50 = arith.constant dense<0.000000e+00> : vector<16x8xf32>
    %55 = tpu.matmul %7, %54, %cst_50 {dimension_numbers = #tpu.dot_dimension_numbers<[1], [0], [0], [1], [0, 0, 1, 1], [], []>} : vector<16x32xf32>, vector<32x8xf32>, vector<16x8xf32> -> vector<16x8xf32>
    %c0_51 = arith.constant 0 : index
    %c1_52 = arith.constant 1 : index
    %c0_53 = arith.constant 0 : index
    %c0_54 = arith.constant 0 : index
    %56 = vector.load %arg6[%c0_51, %c1_52, %c0_53, %c0_54] : memref<2x4x1x8xf32, #tpu.memory_space<vmem>>, vector<1x1x1x8xf32>
    %57 = vector.shape_cast %56 : vector<1x1x1x8xf32> to vector<1x8xf32>
    %58 = vector.broadcast %57 : vector<1x8xf32> to vector<16x8xf32>
    %59 = arith.addf %55, %58 : vector<16x8xf32>
    %c0_55 = arith.constant 0 : index
    %c1_56 = arith.constant 1 : index
    %c0_57 = arith.constant 0 : index
    %c0_58 = arith.constant 0 : index
    %60 = vector.load %arg7[%c0_55, %c1_56, %c0_57, %c0_58] : memref<2x4x32x8xf32, #tpu.memory_space<vmem>>, vector<1x1x32x8xf32>
    %61 = vector.shape_cast %60 : vector<1x1x32x8xf32> to vector<32x8xf32>
    %cst_59 = arith.constant dense<0.000000e+00> : vector<16x8xf32>
    %62 = tpu.matmul %7, %61, %cst_59 {dimension_numbers = #tpu.dot_dimension_numbers<[1], [0], [0], [1], [0, 0, 1, 1], [], []>} : vector<16x32xf32>, vector<32x8xf32>, vector<16x8xf32> -> vector<16x8xf32>
    %c0_60 = arith.constant 0 : index
    %c1_61 = arith.constant 1 : index
    %c0_62 = arith.constant 0 : index
    %c0_63 = arith.constant 0 : index
    %63 = vector.load %arg8[%c0_60, %c1_61, %c0_62, %c0_63] : memref<2x4x1x8xf32, #tpu.memory_space<vmem>>, vector<1x1x1x8xf32>
    %64 = vector.shape_cast %63 : vector<1x1x1x8xf32> to vector<1x8xf32>
    %65 = vector.broadcast %64 : vector<1x8xf32> to vector<16x8xf32>
    %66 = arith.addf %62, %65 : vector<16x8xf32>
    %c0_64 = arith.constant 0 : index
    %c1_65 = arith.constant 1 : index
    %c0_66 = arith.constant 0 : index
    %c0_67 = arith.constant 0 : index
    %67 = vector.load %arg9[%c0_64, %c1_65, %c0_66, %c0_67] : memref<2x4x32x8xf32, #tpu.memory_space<vmem>>, vector<1x1x32x8xf32>
    %68 = vector.shape_cast %67 : vector<1x1x32x8xf32> to vector<32x8xf32>
    %cst_68 = arith.constant dense<0.000000e+00> : vector<16x8xf32>
    %69 = tpu.matmul %7, %68, %cst_68 {dimension_numbers = #tpu.dot_dimension_numbers<[1], [0], [0], [1], [0, 0, 1, 1], [], []>} : vector<16x32xf32>, vector<32x8xf32>, vector<16x8xf32> -> vector<16x8xf32>
    %c0_69 = arith.constant 0 : index
    %c1_70 = arith.constant 1 : index
    %c0_71 = arith.constant 0 : index
    %c0_72 = arith.constant 0 : index
    %70 = vector.load %arg10[%c0_69, %c1_70, %c0_71, %c0_72] : memref<2x4x1x8xf32, #tpu.memory_space<vmem>>, vector<1x1x1x8xf32>
    %71 = vector.shape_cast %70 : vector<1x1x1x8xf32> to vector<1x8xf32>
    %72 = vector.broadcast %71 : vector<1x8xf32> to vector<16x8xf32>
    %73 = arith.addf %69, %72 : vector<16x8xf32>
    %74 = vector.shape_cast %59 : vector<16x8xf32> to vector<2x8x8xf32>
    %75 = vector.shape_cast %66 : vector<16x8xf32> to vector<2x8x8xf32>
    %76 = vector.shape_cast %73 : vector<16x8xf32> to vector<2x8x8xf32>
    "tpu.trace_start"() <{level = 10 : i32, message = "bqd,bkd->bqk"}> : () -> ()
    %cst_73 = arith.constant dense<0.000000e+00> : vector<2x8x8xf32>
    %77 = tpu.matmul %74, %75, %cst_73 {dimension_numbers = #tpu.dot_dimension_numbers<[2], [2], [1], [1], [0, 0, 0, 1, 1, 1], [0], [0]>} : vector<2x8x8xf32>, vector<2x8x8xf32>, vector<2x8x8xf32> -> vector<2x8x8xf32>
    "tpu.trace_stop"() : () -> ()
    %78 = vector.broadcast %8 : vector<2x1x8xf32> to vector<2x8x8xf32>
    %79 = arith.addf %77, %78 : vector<2x8x8xf32>
    %cst_74 = arith.constant dense<0xFF800000> : vector<2x8xf32>
    %80 = vector.multi_reduction <maximumf>, %79, %cst_74 [2] : vector<2x8x8xf32> to vector<2x8xf32>
    %81 = vector.shape_cast %80 : vector<2x8xf32> to vector<2x8x1xf32>
    %82 = vector.broadcast %81 : vector<2x8x1xf32> to vector<2x8x8xf32>
    %83 = arith.subf %79, %82 : vector<2x8x8xf32>
    %84 = math.exp %83 : vector<2x8x8xf32>
    %cst_75 = arith.constant dense<0.000000e+00> : vector<2x8xf32>
    %85 = vector.multi_reduction <add>, %84, %cst_75 [2] : vector<2x8x8xf32> to vector<2x8xf32>
    %86 = vector.shape_cast %85 : vector<2x8xf32> to vector<2x8x1xf32>
    %87 = tpu.reciprocal %86 {approx = true} : vector<2x8x1xf32> -> vector<2x8x1xf32>
    %88 = vector.broadcast %87 : vector<2x8x1xf32> to vector<2x8x8xf32>
    %89 = arith.mulf %84, %88 : vector<2x8x8xf32>
    "tpu.trace_start"() <{level = 10 : i32, message = "bqk,bkd->bqd"}> : () -> ()
    %cst_76 = arith.constant dense<0.000000e+00> : vector<2x8x8xf32>
    %90 = tpu.matmul %89, %76, %cst_76 {dimension_numbers = #tpu.dot_dimension_numbers<[2], [1], [1], [2], [0, 0, 0, 1, 1, 2], [0], [0]>} : vector<2x8x8xf32>, vector<2x8x8xf32>, vector<2x8x8xf32> -> vector<2x8x8xf32>
    "tpu.trace_stop"() : () -> ()
    %91 = vector.shape_cast %90 : vector<2x8x8xf32> to vector<16x8xf32>
    %c0_77 = arith.constant 0 : index
    %c1_78 = arith.constant 1 : index
    %c0_79 = arith.constant 0 : index
    %c0_80 = arith.constant 0 : index
    %92 = vector.load %arg11[%c0_77, %c1_78, %c0_79, %c0_80] : memref<2x4x8x32xf32, #tpu.memory_space<vmem>>, vector<1x1x8x32xf32>
    %93 = vector.shape_cast %92 : vector<1x1x8x32xf32> to vector<8x32xf32>
    %cst_81 = arith.constant dense<0.000000e+00> : vector<16x32xf32>
    %94 = tpu.matmul %91, %93, %cst_81 {dimension_numbers = #tpu.dot_dimension_numbers<[1], [0], [0], [1], [0, 0, 1, 1], [], []>} : vector<16x8xf32>, vector<8x32xf32>, vector<16x32xf32> -> vector<16x32xf32>
    %95 = arith.addf %52, %94 : vector<16x32xf32>
    %c0_82 = arith.constant 0 : index
    %c2 = arith.constant 2 : index
    %c0_83 = arith.constant 0 : index
    %c0_84 = arith.constant 0 : index
    %96 = vector.load %arg5[%c0_82, %c2, %c0_83, %c0_84] : memref<2x4x32x8xf32, #tpu.memory_space<vmem>>, vector<1x1x32x8xf32>
    %97 = vector.shape_cast %96 : vector<1x1x32x8xf32> to vector<32x8xf32>
    %cst_85 = arith.constant dense<0.000000e+00> : vector<16x8xf32>
    %98 = tpu.matmul %7, %97, %cst_85 {dimension_numbers = #tpu.dot_dimension_numbers<[1], [0], [0], [1], [0, 0, 1, 1], [], []>} : vector<16x32xf32>, vector<32x8xf32>, vector<16x8xf32> -> vector<16x8xf32>
    %c0_86 = arith.constant 0 : index
    %c2_87 = arith.constant 2 : index
    %c0_88 = arith.constant 0 : index
    %c0_89 = arith.constant 0 : index
    %99 = vector.load %arg6[%c0_86, %c2_87, %c0_88, %c0_89] : memref<2x4x1x8xf32, #tpu.memory_space<vmem>>, vector<1x1x1x8xf32>
    %100 = vector.shape_cast %99 : vector<1x1x1x8xf32> to vector<1x8xf32>
    %101 = vector.broadcast %100 : vector<1x8xf32> to vector<16x8xf32>
    %102 = arith.addf %98, %101 : vector<16x8xf32>
    %c0_90 = arith.constant 0 : index
    %c2_91 = arith.constant 2 : index
    %c0_92 = arith.constant 0 : index
    %c0_93 = arith.constant 0 : index
    %103 = vector.load %arg7[%c0_90, %c2_91, %c0_92, %c0_93] : memref<2x4x32x8xf32, #tpu.memory_space<vmem>>, vector<1x1x32x8xf32>
    %104 = vector.shape_cast %103 : vector<1x1x32x8xf32> to vector<32x8xf32>
    %cst_94 = arith.constant dense<0.000000e+00> : vector<16x8xf32>
    %105 = tpu.matmul %7, %104, %cst_94 {dimension_numbers = #tpu.dot_dimension_numbers<[1], [0], [0], [1], [0, 0, 1, 1], [], []>} : vector<16x32xf32>, vector<32x8xf32>, vector<16x8xf32> -> vector<16x8xf32>
    %c0_95 = arith.constant 0 : index
    %c2_96 = arith.constant 2 : index
    %c0_97 = arith.constant 0 : index
    %c0_98 = arith.constant 0 : index
    %106 = vector.load %arg8[%c0_95, %c2_96, %c0_97, %c0_98] : memref<2x4x1x8xf32, #tpu.memory_space<vmem>>, vector<1x1x1x8xf32>
    %107 = vector.shape_cast %106 : vector<1x1x1x8xf32> to vector<1x8xf32>
    %108 = vector.broadcast %107 : vector<1x8xf32> to vector<16x8xf32>
    %109 = arith.addf %105, %108 : vector<16x8xf32>
    %c0_99 = arith.constant 0 : index
    %c2_100 = arith.constant 2 : index
    %c0_101 = arith.constant 0 : index
    %c0_102 = arith.constant 0 : index
    %110 = vector.load %arg9[%c0_99, %c2_100, %c0_101, %c0_102] : memref<2x4x32x8xf32, #tpu.memory_space<vmem>>, vector<1x1x32x8xf32>
    %111 = vector.shape_cast %110 : vector<1x1x32x8xf32> to vector<32x8xf32>
    %cst_103 = arith.constant dense<0.000000e+00> : vector<16x8xf32>
    %112 = tpu.matmul %7, %111, %cst_103 {dimension_numbers = #tpu.dot_dimension_numbers<[1], [0], [0], [1], [0, 0, 1, 1], [], []>} : vector<16x32xf32>, vector<32x8xf32>, vector<16x8xf32> -> vector<16x8xf32>
    %c0_104 = arith.constant 0 : index
    %c2_105 = arith.constant 2 : index
    %c0_106 = arith.constant 0 : index
    %c0_107 = arith.constant 0 : index
    %113 = vector.load %arg10[%c0_104, %c2_105, %c0_106, %c0_107] : memref<2x4x1x8xf32, #tpu.memory_space<vmem>>, vector<1x1x1x8xf32>
    %114 = vector.shape_cast %113 : vector<1x1x1x8xf32> to vector<1x8xf32>
    %115 = vector.broadcast %114 : vector<1x8xf32> to vector<16x8xf32>
    %116 = arith.addf %112, %115 : vector<16x8xf32>
    %117 = vector.shape_cast %102 : vector<16x8xf32> to vector<2x8x8xf32>
    %118 = vector.shape_cast %109 : vector<16x8xf32> to vector<2x8x8xf32>
    %119 = vector.shape_cast %116 : vector<16x8xf32> to vector<2x8x8xf32>
    "tpu.trace_start"() <{level = 10 : i32, message = "bqd,bkd->bqk"}> : () -> ()
    %cst_108 = arith.constant dense<0.000000e+00> : vector<2x8x8xf32>
    %120 = tpu.matmul %117, %118, %cst_108 {dimension_numbers = #tpu.dot_dimension_numbers<[2], [2], [1], [1], [0, 0, 0, 1, 1, 1], [0], [0]>} : vector<2x8x8xf32>, vector<2x8x8xf32>, vector<2x8x8xf32> -> vector<2x8x8xf32>
    "tpu.trace_stop"() : () -> ()
    %121 = vector.broadcast %8 : vector<2x1x8xf32> to vector<2x8x8xf32>
    %122 = arith.addf %120, %121 : vector<2x8x8xf32>
    %cst_109 = arith.constant dense<0xFF800000> : vector<2x8xf32>
    %123 = vector.multi_reduction <maximumf>, %122, %cst_109 [2] : vector<2x8x8xf32> to vector<2x8xf32>
    %124 = vector.shape_cast %123 : vector<2x8xf32> to vector<2x8x1xf32>
    %125 = vector.broadcast %124 : vector<2x8x1xf32> to vector<2x8x8xf32>
    %126 = arith.subf %122, %125 : vector<2x8x8xf32>
    %127 = math.exp %126 : vector<2x8x8xf32>
    %cst_110 = arith.constant dense<0.000000e+00> : vector<2x8xf32>
    %128 = vector.multi_reduction <add>, %127, %cst_110 [2] : vector<2x8x8xf32> to vector<2x8xf32>
    %129 = vector.shape_cast %128 : vector<2x8xf32> to vector<2x8x1xf32>
    %130 = tpu.reciprocal %129 {approx = true} : vector<2x8x1xf32> -> vector<2x8x1xf32>
    %131 = vector.broadcast %130 : vector<2x8x1xf32> to vector<2x8x8xf32>
    %132 = arith.mulf %127, %131 : vector<2x8x8xf32>
    "tpu.trace_start"() <{level = 10 : i32, message = "bqk,bkd->bqd"}> : () -> ()
    %cst_111 = arith.constant dense<0.000000e+00> : vector<2x8x8xf32>
    %133 = tpu.matmul %132, %119, %cst_111 {dimension_numbers = #tpu.dot_dimension_numbers<[2], [1], [1], [2], [0, 0, 0, 1, 1, 2], [0], [0]>} : vector<2x8x8xf32>, vector<2x8x8xf32>, vector<2x8x8xf32> -> vector<2x8x8xf32>
    "tpu.trace_stop"() : () -> ()
    %134 = vector.shape_cast %133 : vector<2x8x8xf32> to vector<16x8xf32>
    %c0_112 = arith.constant 0 : index
    %c2_113 = arith.constant 2 : index
    %c0_114 = arith.constant 0 : index
    %c0_115 = arith.constant 0 : index
    %135 = vector.load %arg11[%c0_112, %c2_113, %c0_114, %c0_115] : memref<2x4x8x32xf32, #tpu.memory_space<vmem>>, vector<1x1x8x32xf32>
    %136 = vector.shape_cast %135 : vector<1x1x8x32xf32> to vector<8x32xf32>
    %cst_116 = arith.constant dense<0.000000e+00> : vector<16x32xf32>
    %137 = tpu.matmul %134, %136, %cst_116 {dimension_numbers = #tpu.dot_dimension_numbers<[1], [0], [0], [1], [0, 0, 1, 1], [], []>} : vector<16x8xf32>, vector<8x32xf32>, vector<16x32xf32> -> vector<16x32xf32>
    %138 = arith.addf %95, %137 : vector<16x32xf32>
    %c0_117 = arith.constant 0 : index
    %c3 = arith.constant 3 : index
    %c0_118 = arith.constant 0 : index
    %c0_119 = arith.constant 0 : index
    %139 = vector.load %arg5[%c0_117, %c3, %c0_118, %c0_119] : memref<2x4x32x8xf32, #tpu.memory_space<vmem>>, vector<1x1x32x8xf32>
    %140 = vector.shape_cast %139 : vector<1x1x32x8xf32> to vector<32x8xf32>
    %cst_120 = arith.constant dense<0.000000e+00> : vector<16x8xf32>
    %141 = tpu.matmul %7, %140, %cst_120 {dimension_numbers = #tpu.dot_dimension_numbers<[1], [0], [0], [1], [0, 0, 1, 1], [], []>} : vector<16x32xf32>, vector<32x8xf32>, vector<16x8xf32> -> vector<16x8xf32>
    %c0_121 = arith.constant 0 : index
    %c3_122 = arith.constant 3 : index
    %c0_123 = arith.constant 0 : index
    %c0_124 = arith.constant 0 : index
    %142 = vector.load %arg6[%c0_121, %c3_122, %c0_123, %c0_124] : memref<2x4x1x8xf32, #tpu.memory_space<vmem>>, vector<1x1x1x8xf32>
    %143 = vector.shape_cast %142 : vector<1x1x1x8xf32> to vector<1x8xf32>
    %144 = vector.broadcast %143 : vector<1x8xf32> to vector<16x8xf32>
    %145 = arith.addf %141, %144 : vector<16x8xf32>
    %c0_125 = arith.constant 0 : index
    %c3_126 = arith.constant 3 : index
    %c0_127 = arith.constant 0 : index
    %c0_128 = arith.constant 0 : index
    %146 = vector.load %arg7[%c0_125, %c3_126, %c0_127, %c0_128] : memref<2x4x32x8xf32, #tpu.memory_space<vmem>>, vector<1x1x32x8xf32>
    %147 = vector.shape_cast %146 : vector<1x1x32x8xf32> to vector<32x8xf32>
    %cst_129 = arith.constant dense<0.000000e+00> : vector<16x8xf32>
    %148 = tpu.matmul %7, %147, %cst_129 {dimension_numbers = #tpu.dot_dimension_numbers<[1], [0], [0], [1], [0, 0, 1, 1], [], []>} : vector<16x32xf32>, vector<32x8xf32>, vector<16x8xf32> -> vector<16x8xf32>
    %c0_130 = arith.constant 0 : index
    %c3_131 = arith.constant 3 : index
    %c0_132 = arith.constant 0 : index
    %c0_133 = arith.constant 0 : index
    %149 = vector.load %arg8[%c0_130, %c3_131, %c0_132, %c0_133] : memref<2x4x1x8xf32, #tpu.memory_space<vmem>>, vector<1x1x1x8xf32>
    %150 = vector.shape_cast %149 : vector<1x1x1x8xf32> to vector<1x8xf32>
    %151 = vector.broadcast %150 : vector<1x8xf32> to vector<16x8xf32>
    %152 = arith.addf %148, %151 : vector<16x8xf32>
    %c0_134 = arith.constant 0 : index
    %c3_135 = arith.constant 3 : index
    %c0_136 = arith.constant 0 : index
    %c0_137 = arith.constant 0 : index
    %153 = vector.load %arg9[%c0_134, %c3_135, %c0_136, %c0_137] : memref<2x4x32x8xf32, #tpu.memory_space<vmem>>, vector<1x1x32x8xf32>
    %154 = vector.shape_cast %153 : vector<1x1x32x8xf32> to vector<32x8xf32>
    %cst_138 = arith.constant dense<0.000000e+00> : vector<16x8xf32>
    %155 = tpu.matmul %7, %154, %cst_138 {dimension_numbers = #tpu.dot_dimension_numbers<[1], [0], [0], [1], [0, 0, 1, 1], [], []>} : vector<16x32xf32>, vector<32x8xf32>, vector<16x8xf32> -> vector<16x8xf32>
    %c0_139 = arith.constant 0 : index
    %c3_140 = arith.constant 3 : index
    %c0_141 = arith.constant 0 : index
    %c0_142 = arith.constant 0 : index
    %156 = vector.load %arg10[%c0_139, %c3_140, %c0_141, %c0_142] : memref<2x4x1x8xf32, #tpu.memory_space<vmem>>, vector<1x1x1x8xf32>
    %157 = vector.shape_cast %156 : vector<1x1x1x8xf32> to vector<1x8xf32>
    %158 = vector.broadcast %157 : vector<1x8xf32> to vector<16x8xf32>
    %159 = arith.addf %155, %158 : vector<16x8xf32>
    %160 = vector.shape_cast %145 : vector<16x8xf32> to vector<2x8x8xf32>
    %161 = vector.shape_cast %152 : vector<16x8xf32> to vector<2x8x8xf32>
    %162 = vector.shape_cast %159 : vector<16x8xf32> to vector<2x8x8xf32>
    "tpu.trace_start"() <{level = 10 : i32, message = "bqd,bkd->bqk"}> : () -> ()
    %cst_143 = arith.constant dense<0.000000e+00> : vector<2x8x8xf32>
    %163 = tpu.matmul %160, %161, %cst_143 {dimension_numbers = #tpu.dot_dimension_numbers<[2], [2], [1], [1], [0, 0, 0, 1, 1, 1], [0], [0]>} : vector<2x8x8xf32>, vector<2x8x8xf32>, vector<2x8x8xf32> -> vector<2x8x8xf32>
    "tpu.trace_stop"() : () -> ()
    %164 = vector.broadcast %8 : vector<2x1x8xf32> to vector<2x8x8xf32>
    %165 = arith.addf %163, %164 : vector<2x8x8xf32>
    %cst_144 = arith.constant dense<0xFF800000> : vector<2x8xf32>
    %166 = vector.multi_reduction <maximumf>, %165, %cst_144 [2] : vector<2x8x8xf32> to vector<2x8xf32>
    %167 = vector.shape_cast %166 : vector<2x8xf32> to vector<2x8x1xf32>
    %168 = vector.broadcast %167 : vector<2x8x1xf32> to vector<2x8x8xf32>
    %169 = arith.subf %165, %168 : vector<2x8x8xf32>
    %170 = math.exp %169 : vector<2x8x8xf32>
    %cst_145 = arith.constant dense<0.000000e+00> : vector<2x8xf32>
    %171 = vector.multi_reduction <add>, %170, %cst_145 [2] : vector<2x8x8xf32> to vector<2x8xf32>
    %172 = vector.shape_cast %171 : vector<2x8xf32> to vector<2x8x1xf32>
    %173 = tpu.reciprocal %172 {approx = true} : vector<2x8x1xf32> -> vector<2x8x1xf32>
    %174 = vector.broadcast %173 : vector<2x8x1xf32> to vector<2x8x8xf32>
    %175 = arith.mulf %170, %174 : vector<2x8x8xf32>
    "tpu.trace_start"() <{level = 10 : i32, message = "bqk,bkd->bqd"}> : () -> ()
    %cst_146 = arith.constant dense<0.000000e+00> : vector<2x8x8xf32>
    %176 = tpu.matmul %175, %162, %cst_146 {dimension_numbers = #tpu.dot_dimension_numbers<[2], [1], [1], [2], [0, 0, 0, 1, 1, 2], [0], [0]>} : vector<2x8x8xf32>, vector<2x8x8xf32>, vector<2x8x8xf32> -> vector<2x8x8xf32>
    "tpu.trace_stop"() : () -> ()
    %177 = vector.shape_cast %176 : vector<2x8x8xf32> to vector<16x8xf32>
    %c0_147 = arith.constant 0 : index
    %c3_148 = arith.constant 3 : index
    %c0_149 = arith.constant 0 : index
    %c0_150 = arith.constant 0 : index
    %178 = vector.load %arg11[%c0_147, %c3_148, %c0_149, %c0_150] : memref<2x4x8x32xf32, #tpu.memory_space<vmem>>, vector<1x1x8x32xf32>
    %179 = vector.shape_cast %178 : vector<1x1x8x32xf32> to vector<8x32xf32>
    %cst_151 = arith.constant dense<0.000000e+00> : vector<16x32xf32>
    %180 = tpu.matmul %177, %179, %cst_151 {dimension_numbers = #tpu.dot_dimension_numbers<[1], [0], [0], [1], [0, 0, 1, 1], [], []>} : vector<16x8xf32>, vector<8x32xf32>, vector<16x32xf32> -> vector<16x32xf32>
    %181 = arith.addf %138, %180 : vector<16x32xf32>
    %c0_152 = arith.constant 0 : index
    %c0_153 = arith.constant 0 : index
    %c0_154 = arith.constant 0 : index
    %182 = vector.load %arg12[%c0_152, %c0_153, %c0_154] : memref<2x1x32xf32, #tpu.memory_space<vmem>>, vector<1x1x32xf32>
    %183 = vector.shape_cast %182 : vector<1x1x32xf32> to vector<1x32xf32>
    %184 = vector.broadcast %183 : vector<1x32xf32> to vector<16x32xf32>
    %185 = arith.addf %181, %184 : vector<16x32xf32>
    %186 = arith.addf %7, %185 : vector<16x32xf32>
    %c0_155 = arith.constant 0 : index
    %c0_156 = arith.constant 0 : index
    %c0_157 = arith.constant 0 : index
    %187 = vector.load %arg13[%c0_155, %c0_156, %c0_157] : memref<2x1x32xf32, #tpu.memory_space<vmem>>, vector<1x1x32xf32>
    %188 = vector.shape_cast %187 : vector<1x1x32xf32> to vector<1x32xf32>
    %c0_158 = arith.constant 0 : index
    %c0_159 = arith.constant 0 : index
    %c0_160 = arith.constant 0 : index
    %189 = vector.load %arg14[%c0_158, %c0_159, %c0_160] : memref<2x1x32xf32, #tpu.memory_space<vmem>>, vector<1x1x32xf32>
    %190 = vector.shape_cast %189 : vector<1x1x32xf32> to vector<1x32xf32>
    %cst_161 = arith.constant dense<0.000000e+00> : vector<16xf32>
    %191 = vector.multi_reduction <add>, %186, %cst_161 [1] : vector<16x32xf32> to vector<16xf32>
    %192 = vector.shape_cast %191 : vector<16xf32> to vector<16x1xf32>
    %cst_162 = arith.constant 3.200000e+01 : f32
    %193 = vector.broadcast %cst_162 : f32 to vector<16x1xf32>
    %194 = arith.divf %192, %193 : vector<16x1xf32>
    %195 = vector.broadcast %194 : vector<16x1xf32> to vector<16x32xf32>
    %196 = arith.subf %186, %195 : vector<16x32xf32>
    %197 = arith.mulf %196, %196 : vector<16x32xf32>
    %cst_163 = arith.constant dense<0.000000e+00> : vector<16xf32>
    %198 = vector.multi_reduction <add>, %197, %cst_163 [1] : vector<16x32xf32> to vector<16xf32>
    %199 = vector.shape_cast %198 : vector<16xf32> to vector<16x1xf32>
    %cst_164 = arith.constant 3.200000e+01 : f32
    %200 = vector.broadcast %cst_164 : f32 to vector<16x1xf32>
    %201 = arith.divf %199, %200 : vector<16x1xf32>
    %202 = vector.broadcast %194 : vector<16x1xf32> to vector<16x32xf32>
    %203 = arith.subf %186, %202 : vector<16x32xf32>
    %cst_165 = arith.constant 9.99999974E-6 : f32
    %204 = vector.broadcast %cst_165 : f32 to vector<16x1xf32>
    %205 = arith.addf %201, %204 : vector<16x1xf32>
    %206 = math.rsqrt %205 : vector<16x1xf32>
    %207 = vector.broadcast %206 : vector<16x1xf32> to vector<16x32xf32>
    %208 = arith.mulf %203, %207 : vector<16x32xf32>
    %209 = vector.broadcast %188 : vector<1x32xf32> to vector<16x32xf32>
    %210 = arith.mulf %208, %209 : vector<16x32xf32>
    %211 = vector.broadcast %190 : vector<1x32xf32> to vector<16x32xf32>
    %212 = arith.addf %210, %211 : vector<16x32xf32>
    %c0_166 = arith.constant 0 : index
    %c0_167 = arith.constant 0 : index
    %c0_168 = arith.constant 0 : index
    %213 = vector.load %arg15[%c0_166, %c0_167, %c0_168] : memref<2x32x128xf32, #tpu.memory_space<vmem>>, vector<1x32x128xf32>
    %214 = vector.shape_cast %213 : vector<1x32x128xf32> to vector<32x128xf32>
    %cst_169 = arith.constant dense<0.000000e+00> : vector<16x128xf32>
    %215 = tpu.matmul %212, %214, %cst_169 {dimension_numbers = #tpu.dot_dimension_numbers<[1], [0], [0], [1], [0, 0, 1, 1], [], []>} : vector<16x32xf32>, vector<32x128xf32>, vector<16x128xf32> -> vector<16x128xf32>
    %c0_170 = arith.constant 0 : index
    %c0_171 = arith.constant 0 : index
    %c0_172 = arith.constant 0 : index
    %216 = vector.load %arg16[%c0_170, %c0_171, %c0_172] : memref<2x1x128xf32, #tpu.memory_space<vmem>>, vector<1x1x128xf32>
    %217 = vector.shape_cast %216 : vector<1x1x128xf32> to vector<1x128xf32>
    %218 = vector.broadcast %217 : vector<1x128xf32> to vector<16x128xf32>
    %219 = arith.addf %215, %218 : vector<16x128xf32>
    %cst_173 = arith.constant 0.000000e+00 : f32
    %220 = vector.broadcast %cst_173 : f32 to vector<16x128xf32>
    %221 = arith.maximumf %219, %220 : vector<16x128xf32>
    %c0_174 = arith.constant 0 : index
    %c0_175 = arith.constant 0 : index
    %c0_176 = arith.constant 0 : index
    %222 = vector.load %arg17[%c0_174, %c0_175, %c0_176] : memref<2x128x32xf32, #tpu.memory_space<vmem>>, vector<1x128x32xf32>
    %223 = vector.shape_cast %222 : vector<1x128x32xf32> to vector<128x32xf32>
    %cst_177 = arith.constant dense<0.000000e+00> : vector<16x32xf32>
    %224 = tpu.matmul %221, %223, %cst_177 {dimension_numbers = #tpu.dot_dimension_numbers<[1], [0], [0], [1], [0, 0, 1, 1], [], []>} : vector<16x128xf32>, vector<128x32xf32>, vector<16x32xf32> -> vector<16x32xf32>
    %c0_178 = arith.constant 0 : index
    %c0_179 = arith.constant 0 : index
    %c0_180 = arith.constant 0 : index
    %225 = vector.load %arg18[%c0_178, %c0_179, %c0_180] : memref<2x1x32xf32, #tpu.memory_space<vmem>>, vector<1x1x32xf32>
    %226 = vector.shape_cast %225 : vector<1x1x32xf32> to vector<1x32xf32>
    %227 = vector.broadcast %226 : vector<1x32xf32> to vector<16x32xf32>
    %228 = arith.addf %224, %227 : vector<16x32xf32>
    %229 = arith.addf %212, %228 : vector<16x32xf32>
    %c0_181 = arith.constant 0 : index
    %c0_182 = arith.constant 0 : index
    %c0_183 = arith.constant 0 : index
    %230 = vector.load %arg19[%c0_181, %c0_182, %c0_183] : memref<2x1x32xf32, #tpu.memory_space<vmem>>, vector<1x1x32xf32>
    %231 = vector.shape_cast %230 : vector<1x1x32xf32> to vector<1x32xf32>
    %c0_184 = arith.constant 0 : index
    %c0_185 = arith.constant 0 : index
    %c0_186 = arith.constant 0 : index
    %232 = vector.load %arg20[%c0_184, %c0_185, %c0_186] : memref<2x1x32xf32, #tpu.memory_space<vmem>>, vector<1x1x32xf32>
    %233 = vector.shape_cast %232 : vector<1x1x32xf32> to vector<1x32xf32>
    %cst_187 = arith.constant dense<0.000000e+00> : vector<16xf32>
    %234 = vector.multi_reduction <add>, %229, %cst_187 [1] : vector<16x32xf32> to vector<16xf32>
    %235 = vector.shape_cast %234 : vector<16xf32> to vector<16x1xf32>
    %cst_188 = arith.constant 3.200000e+01 : f32
    %236 = vector.broadcast %cst_188 : f32 to vector<16x1xf32>
    %237 = arith.divf %235, %236 : vector<16x1xf32>
    %238 = vector.broadcast %237 : vector<16x1xf32> to vector<16x32xf32>
    %239 = arith.subf %229, %238 : vector<16x32xf32>
    %240 = arith.mulf %239, %239 : vector<16x32xf32>
    %cst_189 = arith.constant dense<0.000000e+00> : vector<16xf32>
    %241 = vector.multi_reduction <add>, %240, %cst_189 [1] : vector<16x32xf32> to vector<16xf32>
    %242 = vector.shape_cast %241 : vector<16xf32> to vector<16x1xf32>
    %cst_190 = arith.constant 3.200000e+01 : f32
    %243 = vector.broadcast %cst_190 : f32 to vector<16x1xf32>
    %244 = arith.divf %242, %243 : vector<16x1xf32>
    %245 = vector.broadcast %237 : vector<16x1xf32> to vector<16x32xf32>
    %246 = arith.subf %229, %245 : vector<16x32xf32>
    %cst_191 = arith.constant 9.99999974E-6 : f32
    %247 = vector.broadcast %cst_191 : f32 to vector<16x1xf32>
    %248 = arith.addf %244, %247 : vector<16x1xf32>
    %249 = math.rsqrt %248 : vector<16x1xf32>
    %250 = vector.broadcast %249 : vector<16x1xf32> to vector<16x32xf32>
    %251 = arith.mulf %246, %250 : vector<16x32xf32>
    %252 = vector.broadcast %231 : vector<1x32xf32> to vector<16x32xf32>
    %253 = arith.mulf %251, %252 : vector<16x32xf32>
    %254 = vector.broadcast %233 : vector<1x32xf32> to vector<16x32xf32>
    %255 = arith.addf %253, %254 : vector<16x32xf32>
    %cst_192 = arith.constant 0.000000e+00 : f32
    %256 = vector.broadcast %cst_192 : f32 to vector<16x32xf32>
    %c1_193 = arith.constant 1 : index
    %c0_194 = arith.constant 0 : index
    %c0_195 = arith.constant 0 : index
    %c0_196 = arith.constant 0 : index
    %257 = vector.load %arg5[%c1_193, %c0_194, %c0_195, %c0_196] : memref<2x4x32x8xf32, #tpu.memory_space<vmem>>, vector<1x1x32x8xf32>
    %258 = vector.shape_cast %257 : vector<1x1x32x8xf32> to vector<32x8xf32>
    %cst_197 = arith.constant dense<0.000000e+00> : vector<16x8xf32>
    %259 = tpu.matmul %255, %258, %cst_197 {dimension_numbers = #tpu.dot_dimension_numbers<[1], [0], [0], [1], [0, 0, 1, 1], [], []>} : vector<16x32xf32>, vector<32x8xf32>, vector<16x8xf32> -> vector<16x8xf32>
    %c1_198 = arith.constant 1 : index
    %c0_199 = arith.constant 0 : index
    %c0_200 = arith.constant 0 : index
    %c0_201 = arith.constant 0 : index
    %260 = vector.load %arg6[%c1_198, %c0_199, %c0_200, %c0_201] : memref<2x4x1x8xf32, #tpu.memory_space<vmem>>, vector<1x1x1x8xf32>
    %261 = vector.shape_cast %260 : vector<1x1x1x8xf32> to vector<1x8xf32>
    %262 = vector.broadcast %261 : vector<1x8xf32> to vector<16x8xf32>
    %263 = arith.addf %259, %262 : vector<16x8xf32>
    %c1_202 = arith.constant 1 : index
    %c0_203 = arith.constant 0 : index
    %c0_204 = arith.constant 0 : index
    %c0_205 = arith.constant 0 : index
    %264 = vector.load %arg7[%c1_202, %c0_203, %c0_204, %c0_205] : memref<2x4x32x8xf32, #tpu.memory_space<vmem>>, vector<1x1x32x8xf32>
    %265 = vector.shape_cast %264 : vector<1x1x32x8xf32> to vector<32x8xf32>
    %cst_206 = arith.constant dense<0.000000e+00> : vector<16x8xf32>
    %266 = tpu.matmul %255, %265, %cst_206 {dimension_numbers = #tpu.dot_dimension_numbers<[1], [0], [0], [1], [0, 0, 1, 1], [], []>} : vector<16x32xf32>, vector<32x8xf32>, vector<16x8xf32> -> vector<16x8xf32>
    %c1_207 = arith.constant 1 : index
    %c0_208 = arith.constant 0 : index
    %c0_209 = arith.constant 0 : index
    %c0_210 = arith.constant 0 : index
    %267 = vector.load %arg8[%c1_207, %c0_208, %c0_209, %c0_210] : memref<2x4x1x8xf32, #tpu.memory_space<vmem>>, vector<1x1x1x8xf32>
    %268 = vector.shape_cast %267 : vector<1x1x1x8xf32> to vector<1x8xf32>
    %269 = vector.broadcast %268 : vector<1x8xf32> to vector<16x8xf32>
    %270 = arith.addf %266, %269 : vector<16x8xf32>
    %c1_211 = arith.constant 1 : index
    %c0_212 = arith.constant 0 : index
    %c0_213 = arith.constant 0 : index
    %c0_214 = arith.constant 0 : index
    %271 = vector.load %arg9[%c1_211, %c0_212, %c0_213, %c0_214] : memref<2x4x32x8xf32, #tpu.memory_space<vmem>>, vector<1x1x32x8xf32>
    %272 = vector.shape_cast %271 : vector<1x1x32x8xf32> to vector<32x8xf32>
    %cst_215 = arith.constant dense<0.000000e+00> : vector<16x8xf32>
    %273 = tpu.matmul %255, %272, %cst_215 {dimension_numbers = #tpu.dot_dimension_numbers<[1], [0], [0], [1], [0, 0, 1, 1], [], []>} : vector<16x32xf32>, vector<32x8xf32>, vector<16x8xf32> -> vector<16x8xf32>
    %c1_216 = arith.constant 1 : index
    %c0_217 = arith.constant 0 : index
    %c0_218 = arith.constant 0 : index
    %c0_219 = arith.constant 0 : index
    %274 = vector.load %arg10[%c1_216, %c0_217, %c0_218, %c0_219] : memref<2x4x1x8xf32, #tpu.memory_space<vmem>>, vector<1x1x1x8xf32>
    %275 = vector.shape_cast %274 : vector<1x1x1x8xf32> to vector<1x8xf32>
    %276 = vector.broadcast %275 : vector<1x8xf32> to vector<16x8xf32>
    %277 = arith.addf %273, %276 : vector<16x8xf32>
    %278 = vector.shape_cast %263 : vector<16x8xf32> to vector<2x8x8xf32>
    %279 = vector.shape_cast %270 : vector<16x8xf32> to vector<2x8x8xf32>
    %280 = vector.shape_cast %277 : vector<16x8xf32> to vector<2x8x8xf32>
    "tpu.trace_start"() <{level = 10 : i32, message = "bqd,bkd->bqk"}> : () -> ()
    %cst_220 = arith.constant dense<0.000000e+00> : vector<2x8x8xf32>
    %281 = tpu.matmul %278, %279, %cst_220 {dimension_numbers = #tpu.dot_dimension_numbers<[2], [2], [1], [1], [0, 0, 0, 1, 1, 1], [0], [0]>} : vector<2x8x8xf32>, vector<2x8x8xf32>, vector<2x8x8xf32> -> vector<2x8x8xf32>
    "tpu.trace_stop"() : () -> ()
    %282 = vector.broadcast %8 : vector<2x1x8xf32> to vector<2x8x8xf32>
    %283 = arith.addf %281, %282 : vector<2x8x8xf32>
    %cst_221 = arith.constant dense<0xFF800000> : vector<2x8xf32>
    %284 = vector.multi_reduction <maximumf>, %283, %cst_221 [2] : vector<2x8x8xf32> to vector<2x8xf32>
    %285 = vector.shape_cast %284 : vector<2x8xf32> to vector<2x8x1xf32>
    %286 = vector.broadcast %285 : vector<2x8x1xf32> to vector<2x8x8xf32>
    %287 = arith.subf %283, %286 : vector<2x8x8xf32>
    %288 = math.exp %287 : vector<2x8x8xf32>
    %cst_222 = arith.constant dense<0.000000e+00> : vector<2x8xf32>
    %289 = vector.multi_reduction <add>, %288, %cst_222 [2] : vector<2x8x8xf32> to vector<2x8xf32>
    %290 = vector.shape_cast %289 : vector<2x8xf32> to vector<2x8x1xf32>
    %291 = tpu.reciprocal %290 {approx = true} : vector<2x8x1xf32> -> vector<2x8x1xf32>
    %292 = vector.broadcast %291 : vector<2x8x1xf32> to vector<2x8x8xf32>
    %293 = arith.mulf %288, %292 : vector<2x8x8xf32>
    "tpu.trace_start"() <{level = 10 : i32, message = "bqk,bkd->bqd"}> : () -> ()
    %cst_223 = arith.constant dense<0.000000e+00> : vector<2x8x8xf32>
    %294 = tpu.matmul %293, %280, %cst_223 {dimension_numbers = #tpu.dot_dimension_numbers<[2], [1], [1], [2], [0, 0, 0, 1, 1, 2], [0], [0]>} : vector<2x8x8xf32>, vector<2x8x8xf32>, vector<2x8x8xf32> -> vector<2x8x8xf32>
    "tpu.trace_stop"() : () -> ()
    %295 = vector.shape_cast %294 : vector<2x8x8xf32> to vector<16x8xf32>
    %c1_224 = arith.constant 1 : index
    %c0_225 = arith.constant 0 : index
    %c0_226 = arith.constant 0 : index
    %c0_227 = arith.constant 0 : index
    %296 = vector.load %arg11[%c1_224, %c0_225, %c0_226, %c0_227] : memref<2x4x8x32xf32, #tpu.memory_space<vmem>>, vector<1x1x8x32xf32>
    %297 = vector.shape_cast %296 : vector<1x1x8x32xf32> to vector<8x32xf32>
    %cst_228 = arith.constant dense<0.000000e+00> : vector<16x32xf32>
    %298 = tpu.matmul %295, %297, %cst_228 {dimension_numbers = #tpu.dot_dimension_numbers<[1], [0], [0], [1], [0, 0, 1, 1], [], []>} : vector<16x8xf32>, vector<8x32xf32>, vector<16x32xf32> -> vector<16x32xf32>
    %299 = arith.addf %256, %298 : vector<16x32xf32>
    %c1_229 = arith.constant 1 : index
    %c1_230 = arith.constant 1 : index
    %c0_231 = arith.constant 0 : index
    %c0_232 = arith.constant 0 : index
    %300 = vector.load %arg5[%c1_229, %c1_230, %c0_231, %c0_232] : memref<2x4x32x8xf32, #tpu.memory_space<vmem>>, vector<1x1x32x8xf32>
    %301 = vector.shape_cast %300 : vector<1x1x32x8xf32> to vector<32x8xf32>
    %cst_233 = arith.constant dense<0.000000e+00> : vector<16x8xf32>
    %302 = tpu.matmul %255, %301, %cst_233 {dimension_numbers = #tpu.dot_dimension_numbers<[1], [0], [0], [1], [0, 0, 1, 1], [], []>} : vector<16x32xf32>, vector<32x8xf32>, vector<16x8xf32> -> vector<16x8xf32>
    %c1_234 = arith.constant 1 : index
    %c1_235 = arith.constant 1 : index
    %c0_236 = arith.constant 0 : index
    %c0_237 = arith.constant 0 : index
    %303 = vector.load %arg6[%c1_234, %c1_235, %c0_236, %c0_237] : memref<2x4x1x8xf32, #tpu.memory_space<vmem>>, vector<1x1x1x8xf32>
    %304 = vector.shape_cast %303 : vector<1x1x1x8xf32> to vector<1x8xf32>
    %305 = vector.broadcast %304 : vector<1x8xf32> to vector<16x8xf32>
    %306 = arith.addf %302, %305 : vector<16x8xf32>
    %c1_238 = arith.constant 1 : index
    %c1_239 = arith.constant 1 : index
    %c0_240 = arith.constant 0 : index
    %c0_241 = arith.constant 0 : index
    %307 = vector.load %arg7[%c1_238, %c1_239, %c0_240, %c0_241] : memref<2x4x32x8xf32, #tpu.memory_space<vmem>>, vector<1x1x32x8xf32>
    %308 = vector.shape_cast %307 : vector<1x1x32x8xf32> to vector<32x8xf32>
    %cst_242 = arith.constant dense<0.000000e+00> : vector<16x8xf32>
    %309 = tpu.matmul %255, %308, %cst_242 {dimension_numbers = #tpu.dot_dimension_numbers<[1], [0], [0], [1], [0, 0, 1, 1], [], []>} : vector<16x32xf32>, vector<32x8xf32>, vector<16x8xf32> -> vector<16x8xf32>
    %c1_243 = arith.constant 1 : index
    %c1_244 = arith.constant 1 : index
    %c0_245 = arith.constant 0 : index
    %c0_246 = arith.constant 0 : index
    %310 = vector.load %arg8[%c1_243, %c1_244, %c0_245, %c0_246] : memref<2x4x1x8xf32, #tpu.memory_space<vmem>>, vector<1x1x1x8xf32>
    %311 = vector.shape_cast %310 : vector<1x1x1x8xf32> to vector<1x8xf32>
    %312 = vector.broadcast %311 : vector<1x8xf32> to vector<16x8xf32>
    %313 = arith.addf %309, %312 : vector<16x8xf32>
    %c1_247 = arith.constant 1 : index
    %c1_248 = arith.constant 1 : index
    %c0_249 = arith.constant 0 : index
    %c0_250 = arith.constant 0 : index
    %314 = vector.load %arg9[%c1_247, %c1_248, %c0_249, %c0_250] : memref<2x4x32x8xf32, #tpu.memory_space<vmem>>, vector<1x1x32x8xf32>
    %315 = vector.shape_cast %314 : vector<1x1x32x8xf32> to vector<32x8xf32>
    %cst_251 = arith.constant dense<0.000000e+00> : vector<16x8xf32>
    %316 = tpu.matmul %255, %315, %cst_251 {dimension_numbers = #tpu.dot_dimension_numbers<[1], [0], [0], [1], [0, 0, 1, 1], [], []>} : vector<16x32xf32>, vector<32x8xf32>, vector<16x8xf32> -> vector<16x8xf32>
    %c1_252 = arith.constant 1 : index
    %c1_253 = arith.constant 1 : index
    %c0_254 = arith.constant 0 : index
    %c0_255 = arith.constant 0 : index
    %317 = vector.load %arg10[%c1_252, %c1_253, %c0_254, %c0_255] : memref<2x4x1x8xf32, #tpu.memory_space<vmem>>, vector<1x1x1x8xf32>
    %318 = vector.shape_cast %317 : vector<1x1x1x8xf32> to vector<1x8xf32>
    %319 = vector.broadcast %318 : vector<1x8xf32> to vector<16x8xf32>
    %320 = arith.addf %316, %319 : vector<16x8xf32>
    %321 = vector.shape_cast %306 : vector<16x8xf32> to vector<2x8x8xf32>
    %322 = vector.shape_cast %313 : vector<16x8xf32> to vector<2x8x8xf32>
    %323 = vector.shape_cast %320 : vector<16x8xf32> to vector<2x8x8xf32>
    "tpu.trace_start"() <{level = 10 : i32, message = "bqd,bkd->bqk"}> : () -> ()
    %cst_256 = arith.constant dense<0.000000e+00> : vector<2x8x8xf32>
    %324 = tpu.matmul %321, %322, %cst_256 {dimension_numbers = #tpu.dot_dimension_numbers<[2], [2], [1], [1], [0, 0, 0, 1, 1, 1], [0], [0]>} : vector<2x8x8xf32>, vector<2x8x8xf32>, vector<2x8x8xf32> -> vector<2x8x8xf32>
    "tpu.trace_stop"() : () -> ()
    %325 = vector.broadcast %8 : vector<2x1x8xf32> to vector<2x8x8xf32>
    %326 = arith.addf %324, %325 : vector<2x8x8xf32>
    %cst_257 = arith.constant dense<0xFF800000> : vector<2x8xf32>
    %327 = vector.multi_reduction <maximumf>, %326, %cst_257 [2] : vector<2x8x8xf32> to vector<2x8xf32>
    %328 = vector.shape_cast %327 : vector<2x8xf32> to vector<2x8x1xf32>
    %329 = vector.broadcast %328 : vector<2x8x1xf32> to vector<2x8x8xf32>
    %330 = arith.subf %326, %329 : vector<2x8x8xf32>
    %331 = math.exp %330 : vector<2x8x8xf32>
    %cst_258 = arith.constant dense<0.000000e+00> : vector<2x8xf32>
    %332 = vector.multi_reduction <add>, %331, %cst_258 [2] : vector<2x8x8xf32> to vector<2x8xf32>
    %333 = vector.shape_cast %332 : vector<2x8xf32> to vector<2x8x1xf32>
    %334 = tpu.reciprocal %333 {approx = true} : vector<2x8x1xf32> -> vector<2x8x1xf32>
    %335 = vector.broadcast %334 : vector<2x8x1xf32> to vector<2x8x8xf32>
    %336 = arith.mulf %331, %335 : vector<2x8x8xf32>
    "tpu.trace_start"() <{level = 10 : i32, message = "bqk,bkd->bqd"}> : () -> ()
    %cst_259 = arith.constant dense<0.000000e+00> : vector<2x8x8xf32>
    %337 = tpu.matmul %336, %323, %cst_259 {dimension_numbers = #tpu.dot_dimension_numbers<[2], [1], [1], [2], [0, 0, 0, 1, 1, 2], [0], [0]>} : vector<2x8x8xf32>, vector<2x8x8xf32>, vector<2x8x8xf32> -> vector<2x8x8xf32>
    "tpu.trace_stop"() : () -> ()
    %338 = vector.shape_cast %337 : vector<2x8x8xf32> to vector<16x8xf32>
    %c1_260 = arith.constant 1 : index
    %c1_261 = arith.constant 1 : index
    %c0_262 = arith.constant 0 : index
    %c0_263 = arith.constant 0 : index
    %339 = vector.load %arg11[%c1_260, %c1_261, %c0_262, %c0_263] : memref<2x4x8x32xf32, #tpu.memory_space<vmem>>, vector<1x1x8x32xf32>
    %340 = vector.shape_cast %339 : vector<1x1x8x32xf32> to vector<8x32xf32>
    %cst_264 = arith.constant dense<0.000000e+00> : vector<16x32xf32>
    %341 = tpu.matmul %338, %340, %cst_264 {dimension_numbers = #tpu.dot_dimension_numbers<[1], [0], [0], [1], [0, 0, 1, 1], [], []>} : vector<16x8xf32>, vector<8x32xf32>, vector<16x32xf32> -> vector<16x32xf32>
    %342 = arith.addf %299, %341 : vector<16x32xf32>
    %c1_265 = arith.constant 1 : index
    %c2_266 = arith.constant 2 : index
    %c0_267 = arith.constant 0 : index
    %c0_268 = arith.constant 0 : index
    %343 = vector.load %arg5[%c1_265, %c2_266, %c0_267, %c0_268] : memref<2x4x32x8xf32, #tpu.memory_space<vmem>>, vector<1x1x32x8xf32>
    %344 = vector.shape_cast %343 : vector<1x1x32x8xf32> to vector<32x8xf32>
    %cst_269 = arith.constant dense<0.000000e+00> : vector<16x8xf32>
    %345 = tpu.matmul %255, %344, %cst_269 {dimension_numbers = #tpu.dot_dimension_numbers<[1], [0], [0], [1], [0, 0, 1, 1], [], []>} : vector<16x32xf32>, vector<32x8xf32>, vector<16x8xf32> -> vector<16x8xf32>
    %c1_270 = arith.constant 1 : index
    %c2_271 = arith.constant 2 : index
    %c0_272 = arith.constant 0 : index
    %c0_273 = arith.constant 0 : index
    %346 = vector.load %arg6[%c1_270, %c2_271, %c0_272, %c0_273] : memref<2x4x1x8xf32, #tpu.memory_space<vmem>>, vector<1x1x1x8xf32>
    %347 = vector.shape_cast %346 : vector<1x1x1x8xf32> to vector<1x8xf32>
    %348 = vector.broadcast %347 : vector<1x8xf32> to vector<16x8xf32>
    %349 = arith.addf %345, %348 : vector<16x8xf32>
    %c1_274 = arith.constant 1 : index
    %c2_275 = arith.constant 2 : index
    %c0_276 = arith.constant 0 : index
    %c0_277 = arith.constant 0 : index
    %350 = vector.load %arg7[%c1_274, %c2_275, %c0_276, %c0_277] : memref<2x4x32x8xf32, #tpu.memory_space<vmem>>, vector<1x1x32x8xf32>
    %351 = vector.shape_cast %350 : vector<1x1x32x8xf32> to vector<32x8xf32>
    %cst_278 = arith.constant dense<0.000000e+00> : vector<16x8xf32>
    %352 = tpu.matmul %255, %351, %cst_278 {dimension_numbers = #tpu.dot_dimension_numbers<[1], [0], [0], [1], [0, 0, 1, 1], [], []>} : vector<16x32xf32>, vector<32x8xf32>, vector<16x8xf32> -> vector<16x8xf32>
    %c1_279 = arith.constant 1 : index
    %c2_280 = arith.constant 2 : index
    %c0_281 = arith.constant 0 : index
    %c0_282 = arith.constant 0 : index
    %353 = vector.load %arg8[%c1_279, %c2_280, %c0_281, %c0_282] : memref<2x4x1x8xf32, #tpu.memory_space<vmem>>, vector<1x1x1x8xf32>
    %354 = vector.shape_cast %353 : vector<1x1x1x8xf32> to vector<1x8xf32>
    %355 = vector.broadcast %354 : vector<1x8xf32> to vector<16x8xf32>
    %356 = arith.addf %352, %355 : vector<16x8xf32>
    %c1_283 = arith.constant 1 : index
    %c2_284 = arith.constant 2 : index
    %c0_285 = arith.constant 0 : index
    %c0_286 = arith.constant 0 : index
    %357 = vector.load %arg9[%c1_283, %c2_284, %c0_285, %c0_286] : memref<2x4x32x8xf32, #tpu.memory_space<vmem>>, vector<1x1x32x8xf32>
    %358 = vector.shape_cast %357 : vector<1x1x32x8xf32> to vector<32x8xf32>
    %cst_287 = arith.constant dense<0.000000e+00> : vector<16x8xf32>
    %359 = tpu.matmul %255, %358, %cst_287 {dimension_numbers = #tpu.dot_dimension_numbers<[1], [0], [0], [1], [0, 0, 1, 1], [], []>} : vector<16x32xf32>, vector<32x8xf32>, vector<16x8xf32> -> vector<16x8xf32>
    %c1_288 = arith.constant 1 : index
    %c2_289 = arith.constant 2 : index
    %c0_290 = arith.constant 0 : index
    %c0_291 = arith.constant 0 : index
    %360 = vector.load %arg10[%c1_288, %c2_289, %c0_290, %c0_291] : memref<2x4x1x8xf32, #tpu.memory_space<vmem>>, vector<1x1x1x8xf32>
    %361 = vector.shape_cast %360 : vector<1x1x1x8xf32> to vector<1x8xf32>
    %362 = vector.broadcast %361 : vector<1x8xf32> to vector<16x8xf32>
    %363 = arith.addf %359, %362 : vector<16x8xf32>
    %364 = vector.shape_cast %349 : vector<16x8xf32> to vector<2x8x8xf32>
    %365 = vector.shape_cast %356 : vector<16x8xf32> to vector<2x8x8xf32>
    %366 = vector.shape_cast %363 : vector<16x8xf32> to vector<2x8x8xf32>
    "tpu.trace_start"() <{level = 10 : i32, message = "bqd,bkd->bqk"}> : () -> ()
    %cst_292 = arith.constant dense<0.000000e+00> : vector<2x8x8xf32>
    %367 = tpu.matmul %364, %365, %cst_292 {dimension_numbers = #tpu.dot_dimension_numbers<[2], [2], [1], [1], [0, 0, 0, 1, 1, 1], [0], [0]>} : vector<2x8x8xf32>, vector<2x8x8xf32>, vector<2x8x8xf32> -> vector<2x8x8xf32>
    "tpu.trace_stop"() : () -> ()
    %368 = vector.broadcast %8 : vector<2x1x8xf32> to vector<2x8x8xf32>
    %369 = arith.addf %367, %368 : vector<2x8x8xf32>
    %cst_293 = arith.constant dense<0xFF800000> : vector<2x8xf32>
    %370 = vector.multi_reduction <maximumf>, %369, %cst_293 [2] : vector<2x8x8xf32> to vector<2x8xf32>
    %371 = vector.shape_cast %370 : vector<2x8xf32> to vector<2x8x1xf32>
    %372 = vector.broadcast %371 : vector<2x8x1xf32> to vector<2x8x8xf32>
    %373 = arith.subf %369, %372 : vector<2x8x8xf32>
    %374 = math.exp %373 : vector<2x8x8xf32>
    %cst_294 = arith.constant dense<0.000000e+00> : vector<2x8xf32>
    %375 = vector.multi_reduction <add>, %374, %cst_294 [2] : vector<2x8x8xf32> to vector<2x8xf32>
    %376 = vector.shape_cast %375 : vector<2x8xf32> to vector<2x8x1xf32>
    %377 = tpu.reciprocal %376 {approx = true} : vector<2x8x1xf32> -> vector<2x8x1xf32>
    %378 = vector.broadcast %377 : vector<2x8x1xf32> to vector<2x8x8xf32>
    %379 = arith.mulf %374, %378 : vector<2x8x8xf32>
    "tpu.trace_start"() <{level = 10 : i32, message = "bqk,bkd->bqd"}> : () -> ()
    %cst_295 = arith.constant dense<0.000000e+00> : vector<2x8x8xf32>
    %380 = tpu.matmul %379, %366, %cst_295 {dimension_numbers = #tpu.dot_dimension_numbers<[2], [1], [1], [2], [0, 0, 0, 1, 1, 2], [0], [0]>} : vector<2x8x8xf32>, vector<2x8x8xf32>, vector<2x8x8xf32> -> vector<2x8x8xf32>
    "tpu.trace_stop"() : () -> ()
    %381 = vector.shape_cast %380 : vector<2x8x8xf32> to vector<16x8xf32>
    %c1_296 = arith.constant 1 : index
    %c2_297 = arith.constant 2 : index
    %c0_298 = arith.constant 0 : index
    %c0_299 = arith.constant 0 : index
    %382 = vector.load %arg11[%c1_296, %c2_297, %c0_298, %c0_299] : memref<2x4x8x32xf32, #tpu.memory_space<vmem>>, vector<1x1x8x32xf32>
    %383 = vector.shape_cast %382 : vector<1x1x8x32xf32> to vector<8x32xf32>
    %cst_300 = arith.constant dense<0.000000e+00> : vector<16x32xf32>
    %384 = tpu.matmul %381, %383, %cst_300 {dimension_numbers = #tpu.dot_dimension_numbers<[1], [0], [0], [1], [0, 0, 1, 1], [], []>} : vector<16x8xf32>, vector<8x32xf32>, vector<16x32xf32> -> vector<16x32xf32>
    %385 = arith.addf %342, %384 : vector<16x32xf32>
    %c1_301 = arith.constant 1 : index
    %c3_302 = arith.constant 3 : index
    %c0_303 = arith.constant 0 : index
    %c0_304 = arith.constant 0 : index
    %386 = vector.load %arg5[%c1_301, %c3_302, %c0_303, %c0_304] : memref<2x4x32x8xf32, #tpu.memory_space<vmem>>, vector<1x1x32x8xf32>
    %387 = vector.shape_cast %386 : vector<1x1x32x8xf32> to vector<32x8xf32>
    %cst_305 = arith.constant dense<0.000000e+00> : vector<16x8xf32>
    %388 = tpu.matmul %255, %387, %cst_305 {dimension_numbers = #tpu.dot_dimension_numbers<[1], [0], [0], [1], [0, 0, 1, 1], [], []>} : vector<16x32xf32>, vector<32x8xf32>, vector<16x8xf32> -> vector<16x8xf32>
    %c1_306 = arith.constant 1 : index
    %c3_307 = arith.constant 3 : index
    %c0_308 = arith.constant 0 : index
    %c0_309 = arith.constant 0 : index
    %389 = vector.load %arg6[%c1_306, %c3_307, %c0_308, %c0_309] : memref<2x4x1x8xf32, #tpu.memory_space<vmem>>, vector<1x1x1x8xf32>
    %390 = vector.shape_cast %389 : vector<1x1x1x8xf32> to vector<1x8xf32>
    %391 = vector.broadcast %390 : vector<1x8xf32> to vector<16x8xf32>
    %392 = arith.addf %388, %391 : vector<16x8xf32>
    %c1_310 = arith.constant 1 : index
    %c3_311 = arith.constant 3 : index
    %c0_312 = arith.constant 0 : index
    %c0_313 = arith.constant 0 : index
    %393 = vector.load %arg7[%c1_310, %c3_311, %c0_312, %c0_313] : memref<2x4x32x8xf32, #tpu.memory_space<vmem>>, vector<1x1x32x8xf32>
    %394 = vector.shape_cast %393 : vector<1x1x32x8xf32> to vector<32x8xf32>
    %cst_314 = arith.constant dense<0.000000e+00> : vector<16x8xf32>
    %395 = tpu.matmul %255, %394, %cst_314 {dimension_numbers = #tpu.dot_dimension_numbers<[1], [0], [0], [1], [0, 0, 1, 1], [], []>} : vector<16x32xf32>, vector<32x8xf32>, vector<16x8xf32> -> vector<16x8xf32>
    %c1_315 = arith.constant 1 : index
    %c3_316 = arith.constant 3 : index
    %c0_317 = arith.constant 0 : index
    %c0_318 = arith.constant 0 : index
    %396 = vector.load %arg8[%c1_315, %c3_316, %c0_317, %c0_318] : memref<2x4x1x8xf32, #tpu.memory_space<vmem>>, vector<1x1x1x8xf32>
    %397 = vector.shape_cast %396 : vector<1x1x1x8xf32> to vector<1x8xf32>
    %398 = vector.broadcast %397 : vector<1x8xf32> to vector<16x8xf32>
    %399 = arith.addf %395, %398 : vector<16x8xf32>
    %c1_319 = arith.constant 1 : index
    %c3_320 = arith.constant 3 : index
    %c0_321 = arith.constant 0 : index
    %c0_322 = arith.constant 0 : index
    %400 = vector.load %arg9[%c1_319, %c3_320, %c0_321, %c0_322] : memref<2x4x32x8xf32, #tpu.memory_space<vmem>>, vector<1x1x32x8xf32>
    %401 = vector.shape_cast %400 : vector<1x1x32x8xf32> to vector<32x8xf32>
    %cst_323 = arith.constant dense<0.000000e+00> : vector<16x8xf32>
    %402 = tpu.matmul %255, %401, %cst_323 {dimension_numbers = #tpu.dot_dimension_numbers<[1], [0], [0], [1], [0, 0, 1, 1], [], []>} : vector<16x32xf32>, vector<32x8xf32>, vector<16x8xf32> -> vector<16x8xf32>
    %c1_324 = arith.constant 1 : index
    %c3_325 = arith.constant 3 : index
    %c0_326 = arith.constant 0 : index
    %c0_327 = arith.constant 0 : index
    %403 = vector.load %arg10[%c1_324, %c3_325, %c0_326, %c0_327] : memref<2x4x1x8xf32, #tpu.memory_space<vmem>>, vector<1x1x1x8xf32>
    %404 = vector.shape_cast %403 : vector<1x1x1x8xf32> to vector<1x8xf32>
    %405 = vector.broadcast %404 : vector<1x8xf32> to vector<16x8xf32>
    %406 = arith.addf %402, %405 : vector<16x8xf32>
    %407 = vector.shape_cast %392 : vector<16x8xf32> to vector<2x8x8xf32>
    %408 = vector.shape_cast %399 : vector<16x8xf32> to vector<2x8x8xf32>
    %409 = vector.shape_cast %406 : vector<16x8xf32> to vector<2x8x8xf32>
    "tpu.trace_start"() <{level = 10 : i32, message = "bqd,bkd->bqk"}> : () -> ()
    %cst_328 = arith.constant dense<0.000000e+00> : vector<2x8x8xf32>
    %410 = tpu.matmul %407, %408, %cst_328 {dimension_numbers = #tpu.dot_dimension_numbers<[2], [2], [1], [1], [0, 0, 0, 1, 1, 1], [0], [0]>} : vector<2x8x8xf32>, vector<2x8x8xf32>, vector<2x8x8xf32> -> vector<2x8x8xf32>
    "tpu.trace_stop"() : () -> ()
    %411 = vector.broadcast %8 : vector<2x1x8xf32> to vector<2x8x8xf32>
    %412 = arith.addf %410, %411 : vector<2x8x8xf32>
    %cst_329 = arith.constant dense<0xFF800000> : vector<2x8xf32>
    %413 = vector.multi_reduction <maximumf>, %412, %cst_329 [2] : vector<2x8x8xf32> to vector<2x8xf32>
    %414 = vector.shape_cast %413 : vector<2x8xf32> to vector<2x8x1xf32>
    %415 = vector.broadcast %414 : vector<2x8x1xf32> to vector<2x8x8xf32>
    %416 = arith.subf %412, %415 : vector<2x8x8xf32>
    %417 = math.exp %416 : vector<2x8x8xf32>
    %cst_330 = arith.constant dense<0.000000e+00> : vector<2x8xf32>
    %418 = vector.multi_reduction <add>, %417, %cst_330 [2] : vector<2x8x8xf32> to vector<2x8xf32>
    %419 = vector.shape_cast %418 : vector<2x8xf32> to vector<2x8x1xf32>
    %420 = tpu.reciprocal %419 {approx = true} : vector<2x8x1xf32> -> vector<2x8x1xf32>
    %421 = vector.broadcast %420 : vector<2x8x1xf32> to vector<2x8x8xf32>
    %422 = arith.mulf %417, %421 : vector<2x8x8xf32>
    "tpu.trace_start"() <{level = 10 : i32, message = "bqk,bkd->bqd"}> : () -> ()
    %cst_331 = arith.constant dense<0.000000e+00> : vector<2x8x8xf32>
    %423 = tpu.matmul %422, %409, %cst_331 {dimension_numbers = #tpu.dot_dimension_numbers<[2], [1], [1], [2], [0, 0, 0, 1, 1, 2], [0], [0]>} : vector<2x8x8xf32>, vector<2x8x8xf32>, vector<2x8x8xf32> -> vector<2x8x8xf32>
    "tpu.trace_stop"() : () -> ()
    %424 = vector.shape_cast %423 : vector<2x8x8xf32> to vector<16x8xf32>
    %c1_332 = arith.constant 1 : index
    %c3_333 = arith.constant 3 : index
    %c0_334 = arith.constant 0 : index
    %c0_335 = arith.constant 0 : index
    %425 = vector.load %arg11[%c1_332, %c3_333, %c0_334, %c0_335] : memref<2x4x8x32xf32, #tpu.memory_space<vmem>>, vector<1x1x8x32xf32>
    %426 = vector.shape_cast %425 : vector<1x1x8x32xf32> to vector<8x32xf32>
    %cst_336 = arith.constant dense<0.000000e+00> : vector<16x32xf32>
    %427 = tpu.matmul %424, %426, %cst_336 {dimension_numbers = #tpu.dot_dimension_numbers<[1], [0], [0], [1], [0, 0, 1, 1], [], []>} : vector<16x8xf32>, vector<8x32xf32>, vector<16x32xf32> -> vector<16x32xf32>
    %428 = arith.addf %385, %427 : vector<16x32xf32>
    %c1_337 = arith.constant 1 : index
    %c0_338 = arith.constant 0 : index
    %c0_339 = arith.constant 0 : index
    %429 = vector.load %arg12[%c1_337, %c0_338, %c0_339] : memref<2x1x32xf32, #tpu.memory_space<vmem>>, vector<1x1x32xf32>
    %430 = vector.shape_cast %429 : vector<1x1x32xf32> to vector<1x32xf32>
    %431 = vector.broadcast %430 : vector<1x32xf32> to vector<16x32xf32>
    %432 = arith.addf %428, %431 : vector<16x32xf32>
    %433 = arith.addf %255, %432 : vector<16x32xf32>
    %c1_340 = arith.constant 1 : index
    %c0_341 = arith.constant 0 : index
    %c0_342 = arith.constant 0 : index
    %434 = vector.load %arg13[%c1_340, %c0_341, %c0_342] : memref<2x1x32xf32, #tpu.memory_space<vmem>>, vector<1x1x32xf32>
    %435 = vector.shape_cast %434 : vector<1x1x32xf32> to vector<1x32xf32>
    %c1_343 = arith.constant 1 : index
    %c0_344 = arith.constant 0 : index
    %c0_345 = arith.constant 0 : index
    %436 = vector.load %arg14[%c1_343, %c0_344, %c0_345] : memref<2x1x32xf32, #tpu.memory_space<vmem>>, vector<1x1x32xf32>
    %437 = vector.shape_cast %436 : vector<1x1x32xf32> to vector<1x32xf32>
    %cst_346 = arith.constant dense<0.000000e+00> : vector<16xf32>
    %438 = vector.multi_reduction <add>, %433, %cst_346 [1] : vector<16x32xf32> to vector<16xf32>
    %439 = vector.shape_cast %438 : vector<16xf32> to vector<16x1xf32>
    %cst_347 = arith.constant 3.200000e+01 : f32
    %440 = vector.broadcast %cst_347 : f32 to vector<16x1xf32>
    %441 = arith.divf %439, %440 : vector<16x1xf32>
    %442 = vector.broadcast %441 : vector<16x1xf32> to vector<16x32xf32>
    %443 = arith.subf %433, %442 : vector<16x32xf32>
    %444 = arith.mulf %443, %443 : vector<16x32xf32>
    %cst_348 = arith.constant dense<0.000000e+00> : vector<16xf32>
    %445 = vector.multi_reduction <add>, %444, %cst_348 [1] : vector<16x32xf32> to vector<16xf32>
    %446 = vector.shape_cast %445 : vector<16xf32> to vector<16x1xf32>
    %cst_349 = arith.constant 3.200000e+01 : f32
    %447 = vector.broadcast %cst_349 : f32 to vector<16x1xf32>
    %448 = arith.divf %446, %447 : vector<16x1xf32>
    %449 = vector.broadcast %441 : vector<16x1xf32> to vector<16x32xf32>
    %450 = arith.subf %433, %449 : vector<16x32xf32>
    %cst_350 = arith.constant 9.99999974E-6 : f32
    %451 = vector.broadcast %cst_350 : f32 to vector<16x1xf32>
    %452 = arith.addf %448, %451 : vector<16x1xf32>
    %453 = math.rsqrt %452 : vector<16x1xf32>
    %454 = vector.broadcast %453 : vector<16x1xf32> to vector<16x32xf32>
    %455 = arith.mulf %450, %454 : vector<16x32xf32>
    %456 = vector.broadcast %435 : vector<1x32xf32> to vector<16x32xf32>
    %457 = arith.mulf %455, %456 : vector<16x32xf32>
    %458 = vector.broadcast %437 : vector<1x32xf32> to vector<16x32xf32>
    %459 = arith.addf %457, %458 : vector<16x32xf32>
    %c1_351 = arith.constant 1 : index
    %c0_352 = arith.constant 0 : index
    %c0_353 = arith.constant 0 : index
    %460 = vector.load %arg15[%c1_351, %c0_352, %c0_353] : memref<2x32x128xf32, #tpu.memory_space<vmem>>, vector<1x32x128xf32>
    %461 = vector.shape_cast %460 : vector<1x32x128xf32> to vector<32x128xf32>
    %cst_354 = arith.constant dense<0.000000e+00> : vector<16x128xf32>
    %462 = tpu.matmul %459, %461, %cst_354 {dimension_numbers = #tpu.dot_dimension_numbers<[1], [0], [0], [1], [0, 0, 1, 1], [], []>} : vector<16x32xf32>, vector<32x128xf32>, vector<16x128xf32> -> vector<16x128xf32>
    %c1_355 = arith.constant 1 : index
    %c0_356 = arith.constant 0 : index
    %c0_357 = arith.constant 0 : index
    %463 = vector.load %arg16[%c1_355, %c0_356, %c0_357] : memref<2x1x128xf32, #tpu.memory_space<vmem>>, vector<1x1x128xf32>
    %464 = vector.shape_cast %463 : vector<1x1x128xf32> to vector<1x128xf32>
    %465 = vector.broadcast %464 : vector<1x128xf32> to vector<16x128xf32>
    %466 = arith.addf %462, %465 : vector<16x128xf32>
    %cst_358 = arith.constant 0.000000e+00 : f32
    %467 = vector.broadcast %cst_358 : f32 to vector<16x128xf32>
    %468 = arith.maximumf %466, %467 : vector<16x128xf32>
    %c1_359 = arith.constant 1 : index
    %c0_360 = arith.constant 0 : index
    %c0_361 = arith.constant 0 : index
    %469 = vector.load %arg17[%c1_359, %c0_360, %c0_361] : memref<2x128x32xf32, #tpu.memory_space<vmem>>, vector<1x128x32xf32>
    %470 = vector.shape_cast %469 : vector<1x128x32xf32> to vector<128x32xf32>
    %cst_362 = arith.constant dense<0.000000e+00> : vector<16x32xf32>
    %471 = tpu.matmul %468, %470, %cst_362 {dimension_numbers = #tpu.dot_dimension_numbers<[1], [0], [0], [1], [0, 0, 1, 1], [], []>} : vector<16x128xf32>, vector<128x32xf32>, vector<16x32xf32> -> vector<16x32xf32>
    %c1_363 = arith.constant 1 : index
    %c0_364 = arith.constant 0 : index
    %c0_365 = arith.constant 0 : index
    %472 = vector.load %arg18[%c1_363, %c0_364, %c0_365] : memref<2x1x32xf32, #tpu.memory_space<vmem>>, vector<1x1x32xf32>
    %473 = vector.shape_cast %472 : vector<1x1x32xf32> to vector<1x32xf32>
    %474 = vector.broadcast %473 : vector<1x32xf32> to vector<16x32xf32>
    %475 = arith.addf %471, %474 : vector<16x32xf32>
    %476 = arith.addf %459, %475 : vector<16x32xf32>
    %c1_366 = arith.constant 1 : index
    %c0_367 = arith.constant 0 : index
    %c0_368 = arith.constant 0 : index
    %477 = vector.load %arg19[%c1_366, %c0_367, %c0_368] : memref<2x1x32xf32, #tpu.memory_space<vmem>>, vector<1x1x32xf32>
    %478 = vector.shape_cast %477 : vector<1x1x32xf32> to vector<1x32xf32>
    %c1_369 = arith.constant 1 : index
    %c0_370 = arith.constant 0 : index
    %c0_371 = arith.constant 0 : index
    %479 = vector.load %arg20[%c1_369, %c0_370, %c0_371] : memref<2x1x32xf32, #tpu.memory_space<vmem>>, vector<1x1x32xf32>
    %480 = vector.shape_cast %479 : vector<1x1x32xf32> to vector<1x32xf32>
    %cst_372 = arith.constant dense<0.000000e+00> : vector<16xf32>
    %481 = vector.multi_reduction <add>, %476, %cst_372 [1] : vector<16x32xf32> to vector<16xf32>
    %482 = vector.shape_cast %481 : vector<16xf32> to vector<16x1xf32>
    %cst_373 = arith.constant 3.200000e+01 : f32
    %483 = vector.broadcast %cst_373 : f32 to vector<16x1xf32>
    %484 = arith.divf %482, %483 : vector<16x1xf32>
    %485 = vector.broadcast %484 : vector<16x1xf32> to vector<16x32xf32>
    %486 = arith.subf %476, %485 : vector<16x32xf32>
    %487 = arith.mulf %486, %486 : vector<16x32xf32>
    %cst_374 = arith.constant dense<0.000000e+00> : vector<16xf32>
    %488 = vector.multi_reduction <add>, %487, %cst_374 [1] : vector<16x32xf32> to vector<16xf32>
    %489 = vector.shape_cast %488 : vector<16xf32> to vector<16x1xf32>
    %cst_375 = arith.constant 3.200000e+01 : f32
    %490 = vector.broadcast %cst_375 : f32 to vector<16x1xf32>
    %491 = arith.divf %489, %490 : vector<16x1xf32>
    %492 = vector.broadcast %484 : vector<16x1xf32> to vector<16x32xf32>
    %493 = arith.subf %476, %492 : vector<16x32xf32>
    %cst_376 = arith.constant 9.99999974E-6 : f32
    %494 = vector.broadcast %cst_376 : f32 to vector<16x1xf32>
    %495 = arith.addf %491, %494 : vector<16x1xf32>
    %496 = math.rsqrt %495 : vector<16x1xf32>
    %497 = vector.broadcast %496 : vector<16x1xf32> to vector<16x32xf32>
    %498 = arith.mulf %493, %497 : vector<16x32xf32>
    %499 = vector.broadcast %478 : vector<1x32xf32> to vector<16x32xf32>
    %500 = arith.mulf %498, %499 : vector<16x32xf32>
    %501 = vector.broadcast %480 : vector<1x32xf32> to vector<16x32xf32>
    %502 = arith.addf %500, %501 : vector<16x32xf32>
    %c0_377 = arith.constant 0 : index
    %c0_378 = arith.constant 0 : index
    %503 = vector.load %arg21[%c0_377, %c0_378] : memref<16x32xf32, #tpu.memory_space<vmem>>, vector<16x32xf32>
    tpu.vector_store %arg21[%c0_377, %c0_378], %502 {strides = array<i32>} : memref<16x32xf32, #tpu.memory_space<vmem>>, vector<16x32xf32>,
    return
  }
}

</mosaic_0001>

<llo_original>
// kernel: tpu_custom_call.1
$region0: #{tpu_custom_call.1}
  #allocation0 [shape = 'u32[]', space=smem, size = 0x4, offset = 0x4, fixed_abs, tag = 'smem constant byte address 0x4 - core index']
  #allocation1 [shape = 'u32[144,128]{1,0:T(1,128)}', space=vmem, size = 0x12000, scoped, tag = 'internal scratch']
  %s0 = inlined_call_operand.vmem [shape: f32[16,16], index: 0, kind: input, shape index: {}]
  %s1 = inlined_call_operand.vmem [shape: f32[2,1,8], index: 1, kind: input, shape index: {}]
  %s2 = inlined_call_operand.vmem [shape: f32[16,32], index: 2, kind: input, shape index: {}]
  %s3 = inlined_call_operand.vmem [shape: f32[16,32], index: 3, kind: input, shape index: {}]
  %s4 = inlined_call_operand.vmem [shape: f32[1,32], index: 4, kind: input, shape index: {}]
  %s5 = inlined_call_operand.vmem [shape: f32[2,4,32,8], index: 5, kind: input, shape index: {}]
  %s6 = inlined_call_operand.vmem [shape: f32[2,4,1,8], index: 6, kind: input, shape index: {}]
  %s7 = inlined_call_operand.vmem [shape: f32[2,4,32,8], index: 7, kind: input, shape index: {}]
  %s8 = inlined_call_operand.vmem [shape: f32[2,4,1,8], index: 8, kind: input, shape index: {}]
  %s9 = inlined_call_operand.vmem [shape: f32[2,4,32,8], index: 9, kind: input, shape index: {}]
  %s10 = inlined_call_operand.vmem [shape: f32[2,4,1,8], index: 10, kind: input, shape index: {}]
  %s11 = inlined_call_operand.vmem [shape: f32[2,4,8,32], index: 11, kind: input, shape index: {}]
  %s12 = inlined_call_operand.vmem [shape: f32[2,1,32], index: 12, kind: input, shape index: {}]
  %s13 = inlined_call_operand.vmem [shape: f32[2,1,32], index: 13, kind: input, shape index: {}]
  %s14 = inlined_call_operand.vmem [shape: f32[2,1,32], index: 14, kind: input, shape index: {}]
  %s15 = inlined_call_operand.vmem [shape: f32[2,32,128], index: 15, kind: input, shape index: {}]
  %s16 = inlined_call_operand.vmem [shape: f32[2,1,128], index: 16, kind: input, shape index: {}]
  %s17 = inlined_call_operand.vmem [shape: f32[2,128,32], index: 17, kind: input, shape index: {}]
  %s18 = inlined_call_operand.vmem [shape: f32[2,1,32], index: 18, kind: input, shape index: {}]
  %s19 = inlined_call_operand.vmem [shape: f32[2,1,32], index: 19, kind: input, shape index: {}]
  %s20 = inlined_call_operand.vmem [shape: f32[2,1,32], index: 20, kind: input, shape index: {}]
  %s21 = inlined_call_operand.hbm [shape: f32[16,32], index: 21, kind: output, shape index: {}]
  %s22 = sld [smem:[#allocation0]]
  $region94: #{tpu_custom_call.1} parent=0
    _
  %s24 = ssub.s32 1, %s22
  %s25 = scalar_select 0, %s24, %s22
  $region1: #{tpu_custom_call.1} parent=0
    #allocation2 [shape = 'u8[8192]{0}', space=vmem, size = 0x2000, scoped, tag = 'output window, operand 0, single buffered']
    #allocation3 [shape = 's32[1]{0}', space=sflag, size = 0x4, scoped, tag = 'scoped memory for tpu_custom_call.1']
    %26 = vsyncpa [#allocation3], 0
    // Predicated region
    $region2: #{tpu_custom_call.1} parent=1 // pred_check
      _
    $region3: #{tpu_custom_call.1} parent=1 // pred_check_branch
      %28 = sbr.rel (0) target = $region5
    $region4: #{tpu_custom_call.1} parent=1 // pred_region
      _
    $region5: #{tpu_custom_call.1} parent=1 // pred_fallthru
      _
    // Predicated region
    $region6: #{tpu_custom_call.1} parent=1 // pred_check
      _
    $region7: #{tpu_custom_call.1} parent=1 // pred_check_branch
      %30 = sbr.rel (0) target = $region9
    $region8: #{tpu_custom_call.1} parent=1 // pred_region
      _
    $region9: #{tpu_custom_call.1} parent=1 // pred_fallthru
      _
    // Predicated region
    $region10: #{tpu_custom_call.1} parent=1 // pred_check
      _
    $region11: #{tpu_custom_call.1} parent=1 // pred_check_branch
      %32 = sbr.rel (0) target = $region13
    $region12: #{tpu_custom_call.1} parent=1 // pred_region
      _
    $region13: #{tpu_custom_call.1} parent=1 // pred_fallthru
      _
    // Predicated region
    $region14: #{tpu_custom_call.1} parent=1 // pred_check
      _
    $region15: #{tpu_custom_call.1} parent=1 // pred_check_branch
      %34 = sbr.rel (0) target = $region17
    $region16: #{tpu_custom_call.1} parent=1 // pred_region
      _
    $region17: #{tpu_custom_call.1} parent=1 // pred_fallthru
      _
    // Predicated region
    $region18: #{tpu_custom_call.1} parent=1 // pred_check
      _
    $region19: #{tpu_custom_call.1} parent=1 // pred_check_branch
      %36 = sbr.rel (0) target = $region21
    $region20: #{tpu_custom_call.1} parent=1 // pred_region
      _
    $region21: #{tpu_custom_call.1} parent=1 // pred_fallthru
      _
    // Predicated region
    $region22: #{tpu_custom_call.1} parent=1 // pred_check
      _
    $region23: #{tpu_custom_call.1} parent=1 // pred_check_branch
      %38 = sbr.rel (0) target = $region25
    $region24: #{tpu_custom_call.1} parent=1 // pred_region
      _
    $region25: #{tpu_custom_call.1} parent=1 // pred_fallthru
      _
    // Predicated region
    $region26: #{tpu_custom_call.1} parent=1 // pred_check
      _
    $region27: #{tpu_custom_call.1} parent=1 // pred_check_branch
      %40 = sbr.rel (0) target = $region29
    $region28: #{tpu_custom_call.1} parent=1 // pred_region
      _
    $region29: #{tpu_custom_call.1} parent=1 // pred_fallthru
      _
    // Predicated region
    $region30: #{tpu_custom_call.1} parent=1 // pred_check
      _
    $region31: #{tpu_custom_call.1} parent=1 // pred_check_branch
      %42 = sbr.rel (0) target = $region33
    $region32: #{tpu_custom_call.1} parent=1 // pred_region
      _
    $region33: #{tpu_custom_call.1} parent=1 // pred_fallthru
      _
    // Predicated region
    $region34: #{tpu_custom_call.1} parent=1 // pred_check
      _
    $region35: #{tpu_custom_call.1} parent=1 // pred_check_branch
      %44 = sbr.rel (0) target = $region37
    $region36: #{tpu_custom_call.1} parent=1 // pred_region
      _
    $region37: #{tpu_custom_call.1} parent=1 // pred_fallthru
      _
    // Predicated region
    $region38: #{tpu_custom_call.1} parent=1 // pred_check
      _
    $region39: #{tpu_custom_call.1} parent=1 // pred_check_branch
      %46 = sbr.rel (0) target = $region41
    $region40: #{tpu_custom_call.1} parent=1 // pred_region
      _
    $region41: #{tpu_custom_call.1} parent=1 // pred_fallthru
      _
    // Predicated region
    $region42: #{tpu_custom_call.1} parent=1 // pred_check
      _
    $region43: #{tpu_custom_call.1} parent=1 // pred_check_branch
      %48 = sbr.rel (0) target = $region45
    $region44: #{tpu_custom_call.1} parent=1 // pred_region
      _
    $region45: #{tpu_custom_call.1} parent=1 // pred_fallthru
      _
    // Predicated region
    $region46: #{tpu_custom_call.1} parent=1 // pred_check
      _
    $region47: #{tpu_custom_call.1} parent=1 // pred_check_branch
      %50 = sbr.rel (0) target = $region49
    $region48: #{tpu_custom_call.1} parent=1 // pred_region
      _
    $region49: #{tpu_custom_call.1} parent=1 // pred_fallthru
      _
    // Predicated region
    $region50: #{tpu_custom_call.1} parent=1 // pred_check
      _
    $region51: #{tpu_custom_call.1} parent=1 // pred_check_branch
      %52 = sbr.rel (0) target = $region53
    $region52: #{tpu_custom_call.1} parent=1 // pred_region
      _
    $region53: #{tpu_custom_call.1} parent=1 // pred_fallthru
      _
    // Predicated region
    $region54: #{tpu_custom_call.1} parent=1 // pred_check
      _
    $region55: #{tpu_custom_call.1} parent=1 // pred_check_branch
      %54 = sbr.rel (0) target = $region57
    $region56: #{tpu_custom_call.1} parent=1 // pred_region
      _
    $region57: #{tpu_custom_call.1} parent=1 // pred_fallthru
      _
    // Predicated region
    $region58: #{tpu_custom_call.1} parent=1 // pred_check
      _
    $region59: #{tpu_custom_call.1} parent=1 // pred_check_branch
      %56 = sbr.rel (0) target = $region61
    $region60: #{tpu_custom_call.1} parent=1 // pred_region
      _
    $region61: #{tpu_custom_call.1} parent=1 // pred_fallthru
      _
    // Predicated region
    $region62: #{tpu_custom_call.1} parent=1 // pred_check
      _
    $region63: #{tpu_custom_call.1} parent=1 // pred_check_branch
      %58 = sbr.rel (0) target = $region65
    $region64: #{tpu_custom_call.1} parent=1 // pred_region
      _
    $region65: #{tpu_custom_call.1} parent=1 // pred_fallthru
      _
    // Predicated region
    $region66: #{tpu_custom_call.1} parent=1 // pred_check
      _
    $region67: #{tpu_custom_call.1} parent=1 // pred_check_branch
      %60 = sbr.rel (0) target = $region69
    $region68: #{tpu_custom_call.1} parent=1 // pred_region
      _
    $region69: #{tpu_custom_call.1} parent=1 // pred_fallthru
      _
    // Predicated region
    $region70: #{tpu_custom_call.1} parent=1 // pred_check
      _
    $region71: #{tpu_custom_call.1} parent=1 // pred_check_branch
      %62 = sbr.rel (0) target = $region73
    $region72: #{tpu_custom_call.1} parent=1 // pred_region
      _
    $region73: #{tpu_custom_call.1} parent=1 // pred_fallthru
      _
    // Predicated region
    $region74: #{tpu_custom_call.1} parent=1 // pred_check
      _
    $region75: #{tpu_custom_call.1} parent=1 // pred_check_branch
      %64 = sbr.rel (0) target = $region77
    $region76: #{tpu_custom_call.1} parent=1 // pred_region
      _
    $region77: #{tpu_custom_call.1} parent=1 // pred_fallthru
      _
    // Predicated region
    $region78: #{tpu_custom_call.1} parent=1 // pred_check
      _
    $region79: #{tpu_custom_call.1} parent=1 // pred_check_branch
      %66 = sbr.rel (0) target = $region81
    $region80: #{tpu_custom_call.1} parent=1 // pred_region
      _
    $region81: #{tpu_custom_call.1} parent=1 // pred_fallthru
      _
    // Predicated region
    $region82: #{tpu_custom_call.1} parent=1 // pred_check
      _
    $region83: #{tpu_custom_call.1} parent=1 // pred_check_branch
      %68 = sbr.rel (0) target = $region85
    $region84: #{tpu_custom_call.1} parent=1 // pred_region
      _
    $region85: #{tpu_custom_call.1} parent=1 // pred_fallthru
      _
    %v69 = vld [vmem:[%s0] sm:$0xff]
    %v70 = vld [vmem:[%s0 + $0x8] sm:$0xff]
    %v71 = vld [vmem:[%s3] sm:$0xff]
    %v72 = vld [vmem:[%s3 + $0x8] sm:$0xff]
    %v73 = vld [vmem:[%s4] sm:$0x1]
    %v75 = vlaneseq
    %v76 = vshrl.u32 %v75, 7
    %v77 = vsub.s32 0, %v76
    %v78 = vrot.slane %v73, %v77
    %vm80 = vcmask 130048
    %v82 = vsel %vm80, %v69, 0
    %v85 = vsel %vm80, %v70, 0
    %87 = vmatprep.subr.mxu0 0.0
    %88 = vmatpush1.msra.mxu0 %v71
    %89 = vmatprep.subr.mxu0 0.0
    %90 = vmatpush1.msra.mxu0 %v72
    %91 = vmatprep.subr.mxu0 0.0
    %92 = vmatpush1.msra.mxu0 0.0
    %93 = vmatprep.subr.mxu0 0.0
    %94 = vmatpush1.msra.mxu0 0.0
    %95 = vmatprep.subr.mxu0 0.0
    %96 = vmatpush1.msra.mxu0 0.0
    %97 = vmatprep.subr.mxu0 0.0
    %98 = vmatpush1.msra.mxu0 0.0
    %99 = vmatprep.subr.mxu0 0.0
    %100 = vmatpush1.msra.mxu0 0.0
    %101 = vmatprep.subr.mxu0 0.0
    %102 = vmatpush1.msra.mxu0 0.0
    %103 = vmatprep.subr.mxu0 0.0
    %104 = vmatpush1.msra.mxu0 0.0
    %105 = vmatprep.subr.mxu0 0.0
    %106 = vmatpush1.msra.mxu0 0.0
    %107 = vmatprep.subr.mxu0 0.0
    %108 = vmatpush1.msra.mxu0 0.0
    %109 = vmatprep.subr.mxu0 0.0
    %110 = vmatpush1.msra.mxu0 0.0
    %111 = vmatprep.subr.mxu0 0.0
    %112 = vmatpush1.msra.mxu0 0.0
    %113 = vmatprep.subr.mxu0 0.0
    %114 = vmatpush1.msra.mxu0 0.0
    %115 = vmatprep.subr.mxu0 0.0
    %116 = vmatpush1.msra.mxu0 0.0
    %117 = vmatprep.subr.mxu0 0.0
    %118 = vmatpush1.msra.mxu0 0.0
    %119 = vmatprep.subr.mxu0 0.0
    %120 = vmatpush1.msra.mxu0 0.0
    %121 = vmatprep.subr.mxu0 0.0
    %122 = vmatpush1.msra.mxu0 0.0
    %123 = vmatprep.subr.mxu0 0.0
    %124 = vmatpush1.msra.mxu0 0.0
    %125 = vmatprep.subr.mxu0 0.0
    %126 = vmatpush1.msra.mxu0 0.0
    %127 = vmatprep.subr.mxu0 0.0
    %128 = vmatpush1.msra.mxu0 0.0
    %129 = vmatprep.subr.mxu0 0.0
    %130 = vmatpush1.msra.mxu0 0.0
    %131 = vmatprep.subr.mxu0 0.0
    %132 = vmatpush1.msra.mxu0 0.0
    %133 = vmatprep.subr.mxu0 0.0
    %134 = vmatpush1.msra.mxu0 0.0
    %135 = vmatprep.subr.mxu0 0.0
    %136 = vmatpush1.msra.mxu0 0.0
    %137 = vmatprep.subr.mxu0 0.0
    %138 = vmatpush1.msra.mxu0 0.0
    %139 = vmatprep.subr.mxu0 0.0
    %140 = vmatpush1.msra.mxu0 0.0
    %141 = vmatprep.subr.mxu0 0.0
    %142 = vmatpush1.msra.mxu0 0.0
    %143 = vmatprep.subr.mxu0 0.0
    %144 = vmatpush1.msra.mxu0 0.0
    %145 = vmatprep.subr.mxu0 0.0
    %146 = vmatpush1.msra.mxu0 0.0
    %147 = vmatprep.subr.mxu0 0.0
    %148 = vmatpush1.msra.mxu0 0.0
    %149 = vmatprep.subr.mxu0 0.0
    %150 = vmatpush1.msra.mxu0 0.0
    %151 = vmatprep.mubr.f32.mxu0 0.0
    %152 = vmatmul.mubr.f32.gmra.mrb[0].mxu0 %v82
    %v153 = vpop.f32.mrb[0].mxu0
    %v154 = vadd.f32 %v78, %v153
    %v155 = vpop.f32.mrb[0].mxu0
    %156 = vmatprep.mubr.f32.mxu0 0.0
    %157 = vmatmul.mubr.f32.gmra.mrb[0].mxu0 %v85
    %v158 = vpop.f32.mrb[0].mxu0
    %v159 = vadd.f32 %v78, %v158
    %v160 = vpop.f32.mrb[0].mxu0
    %161 = vdwg.mxu0
    %v162 = vld [vmem:[%s2] sm:$0xff]
    %v163 = vld [vmem:[%s2 + $0x8] sm:$0xff]
    %v164 = vadd.f32 %v154, %v162
    %v165 = vadd.f32 %v159, %v163
    %v166 = vld [vmem:[%s1] sm:$0x1]
    %v167 = vld [vmem:[%s1 + $0x1] sm:$0x1]
    %v168 = vld [vmem:[%s5] sm:$0xff]
    %v169 = vld [vmem:[%s5 + $0x8] sm:$0xff]
    %v170 = vld [vmem:[%s5 + $0x10] sm:$0xff]
    %v171 = vld [vmem:[%s5 + $0x18] sm:$0xff]
    %v172 = vld [vmem:[%s6] sm:$0x1]
    %v174 = vlaneseq
    %v175 = vshrl.u32 %v174, 7
    %v176 = vsub.s32 0, %v175
    %v177 = vrot.slane %v172, %v176
    %vm179 = vcmask 261120
    %v181 = vsel %vm179, %v164, 0
    %v184 = vsel %vm179, %v165, 0
    %186 = vmatprep.subr.mxu0 0.0
    %187 = vmatpush1.msra.mxu0 %v168
    %188 = vmatprep.subr.mxu0 0.0
    %189 = vmatpush1.msra.mxu0 %v169
    %190 = vmatprep.subr.mxu0 0.0
    %191 = vmatpush1.msra.mxu0 %v170
    %192 = vmatprep.subr.mxu0 0.0
    %193 = vmatpush1.msra.mxu0 %v171
    %194 = vmatprep.subr.mxu0 0.0
    %195 = vmatpush1.msra.mxu0 0.0
    %196 = vmatprep.subr.mxu0 0.0
    %197 = vmatpush1.msra.mxu0 0.0
    %198 = vmatprep.subr.mxu0 0.0
    %199 = vmatpush1.msra.mxu0 0.0
    %200 = vmatprep.subr.mxu0 0.0
    %201 = vmatpush1.msra.mxu0 0.0
    %202 = vmatprep.subr.mxu0 0.0
    %203 = vmatpush1.msra.mxu0 0.0
    %204 = vmatprep.subr.mxu0 0.0
    %205 = vmatpush1.msra.mxu0 0.0
    %206 = vmatprep.subr.mxu0 0.0
    %207 = vmatpush1.msra.mxu0 0.0
    %208 = vmatprep.subr.mxu0 0.0
    %209 = vmatpush1.msra.mxu0 0.0
    %210 = vmatprep.subr.mxu0 0.0
    %211 = vmatpush1.msra.mxu0 0.0
    %212 = vmatprep.subr.mxu0 0.0
    %213 = vmatpush1.msra.mxu0 0.0
    %214 = vmatprep.subr.mxu0 0.0
    %215 = vmatpush1.msra.mxu0 0.0
    %216 = vmatprep.subr.mxu0 0.0
    %217 = vmatpush1.msra.mxu0 0.0
    %218 = vmatprep.subr.mxu0 0.0
    %219 = vmatpush1.msra.mxu0 0.0
    %220 = vmatprep.subr.mxu0 0.0
    %221 = vmatpush1.msra.mxu0 0.0
    %222 = vmatprep.subr.mxu0 0.0
    %223 = vmatpush1.msra.mxu0 0.0
    %224 = vmatprep.subr.mxu0 0.0
    %225 = vmatpush1.msra.mxu0 0.0
    %226 = vmatprep.subr.mxu0 0.0
    %227 = vmatpush1.msra.mxu0 0.0
    %228 = vmatprep.subr.mxu0 0.0
    %229 = vmatpush1.msra.mxu0 0.0
    %230 = vmatprep.subr.mxu0 0.0
    %231 = vmatpush1.msra.mxu0 0.0
    %232 = vmatprep.subr.mxu0 0.0
    %233 = vmatpush1.msra.mxu0 0.0
    %234 = vmatprep.subr.mxu0 0.0
    %235 = vmatpush1.msra.mxu0 0.0
    %236 = vmatprep.subr.mxu0 0.0
    %237 = vmatpush1.msra.mxu0 0.0
    %238 = vmatprep.subr.mxu0 0.0
    %239 = vmatpush1.msra.mxu0 0.0
    %240 = vmatprep.subr.mxu0 0.0
    %241 = vmatpush1.msra.mxu0 0.0
    %242 = vmatprep.subr.mxu0 0.0
    %243 = vmatpush1.msra.mxu0 0.0
    %244 = vmatprep.subr.mxu0 0.0
    %245 = vmatpush1.msra.mxu0 0.0
    %246 = vmatprep.subr.mxu0 0.0
    %247 = vmatpush1.msra.mxu0 0.0
    %248 = vmatprep.subr.mxu0 0.0
    %249 = vmatpush1.msra.mxu0 0.0
    %250 = vmatprep.mubr.f32.mxu0 0.0
    %251 = vmatmul.mubr.f32.gmra.mrb[0].mxu0 %v181
    %v252 = vpop.f32.mrb[0].mxu0
    %v253 = vadd.f32 %v177, %v252
    %v254 = vpop.f32.mrb[0].mxu0
    %255 = vmatprep.mubr.f32.mxu0 0.0
    %256 = vmatmul.mubr.f32.gmra.mrb[0].mxu0 %v184
    %v257 = vpop.f32.mrb[0].mxu0
    %v258 = vadd.f32 %v177, %v257
    %v259 = vpop.f32.mrb[0].mxu0
    %260 = vdwg.mxu0
    %v261 = vld [vmem:[%s7] sm:$0xff]
    %v262 = vld [vmem:[%s7 + $0x8] sm:$0xff]
    %v263 = vld [vmem:[%s7 + $0x10] sm:$0xff]
    %v264 = vld [vmem:[%s7 + $0x18] sm:$0xff]
    %v265 = vld [vmem:[%s8] sm:$0x1]
    %v267 = vlaneseq
    %v268 = vshrl.u32 %v267, 7
    %v269 = vsub.s32 0, %v268
    %v270 = vrot.slane %v265, %v269
    %272 = vmatprep.subr.mxu0 0.0
    %273 = vmatpush1.msra.mxu0 %v261
    %274 = vmatprep.subr.mxu0 0.0
    %275 = vmatpush1.msra.mxu0 %v262
    %276 = vmatprep.subr.mxu0 0.0
    %277 = vmatpush1.msra.mxu0 %v263
    %278 = vmatprep.subr.mxu0 0.0
    %279 = vmatpush1.msra.mxu0 %v264
    %280 = vmatprep.subr.mxu0 0.0
    %281 = vmatpush1.msra.mxu0 0.0
    %282 = vmatprep.subr.mxu0 0.0
    %283 = vmatpush1.msra.mxu0 0.0
    %284 = vmatprep.subr.mxu0 0.0
    %285 = vmatpush1.msra.mxu0 0.0
    %286 = vmatprep.subr.mxu0 0.0
    %287 = vmatpush1.msra.mxu0 0.0
    %288 = vmatprep.subr.mxu0 0.0
    %289 = vmatpush1.msra.mxu0 0.0
    %290 = vmatprep.subr.mxu0 0.0
    %291 = vmatpush1.msra.mxu0 0.0
    %292 = vmatprep.subr.mxu0 0.0
    %293 = vmatpush1.msra.mxu0 0.0
    %294 = vmatprep.subr.mxu0 0.0
    %295 = vmatpush1.msra.mxu0 0.0
    %296 = vmatprep.subr.mxu0 0.0
    %297 = vmatpush1.msra.mxu0 0.0
    %298 = vmatprep.subr.mxu0 0.0
    %299 = vmatpush1.msra.mxu0 0.0
    %300 = vmatprep.subr.mxu0 0.0
    %301 = vmatpush1.msra.mxu0 0.0
    %302 = vmatprep.subr.mxu0 0.0
    %303 = vmatpush1.msra.mxu0 0.0
    %304 = vmatprep.subr.mxu0 0.0
    %305 = vmatpush1.msra.mxu0 0.0
    %306 = vmatprep.subr.mxu0 0.0
    %307 = vmatpush1.msra.mxu0 0.0
    %308 = vmatprep.subr.mxu0 0.0
    %309 = vmatpush1.msra.mxu0 0.0
    %310 = vmatprep.subr.mxu0 0.0
    %311 = vmatpush1.msra.mxu0 0.0
    %312 = vmatprep.subr.mxu0 0.0
    %313 = vmatpush1.msra.mxu0 0.0
    %314 = vmatprep.subr.mxu0 0.0
    %315 = vmatpush1.msra.mxu0 0.0
    %316 = vmatprep.subr.mxu0 0.0
    %317 = vmatpush1.msra.mxu0 0.0
    %318 = vmatprep.subr.mxu0 0.0
    %319 = vmatpush1.msra.mxu0 0.0
    %320 = vmatprep.subr.mxu0 0.0
    %321 = vmatpush1.msra.mxu0 0.0
    %322 = vmatprep.subr.mxu0 0.0
    %323 = vmatpush1.msra.mxu0 0.0
    %324 = vmatprep.subr.mxu0 0.0
    %325 = vmatpush1.msra.mxu0 0.0
    %326 = vmatprep.subr.mxu0 0.0
    %327 = vmatpush1.msra.mxu0 0.0
    %328 = vmatprep.subr.mxu0 0.0
    %329 = vmatpush1.msra.mxu0 0.0
    %330 = vmatprep.subr.mxu0 0.0
    %331 = vmatpush1.msra.mxu0 0.0
    %332 = vmatprep.subr.mxu0 0.0
    %333 = vmatpush1.msra.mxu0 0.0
    %334 = vmatprep.subr.mxu0 0.0
    %335 = vmatpush1.msra.mxu0 0.0
    %336 = vmatprep.mubr.f32.mxu0 0.0
    %337 = vmatmul.mubr.f32.gmra.mrb[0].mxu0 %v181
    %v338 = vpop.f32.mrb[0].mxu0
    %v339 = vadd.f32 %v270, %v338
    %v340 = vpop.f32.mrb[0].mxu0
    %341 = vmatprep.mubr.f32.mxu0 0.0
    %342 = vmatmul.mubr.f32.gmra.mrb[0].mxu0 %v184
    %v343 = vpop.f32.mrb[0].mxu0
    %v344 = vadd.f32 %v270, %v343
    %v345 = vpop.f32.mrb[0].mxu0
    %346 = vdwg.mxu0
    %v347 = vld [vmem:[%s9] sm:$0xff]
    %v348 = vld [vmem:[%s9 + $0x8] sm:$0xff]
    %v349 = vld [vmem:[%s9 + $0x10] sm:$0xff]
    %v350 = vld [vmem:[%s9 + $0x18] sm:$0xff]
    %v351 = vld [vmem:[%s10] sm:$0x1]
    %v353 = vlaneseq
    %v354 = vshrl.u32 %v353, 7
    %v355 = vsub.s32 0, %v354
    %v356 = vrot.slane %v351, %v355
    %358 = vmatprep.subr.mxu0 0.0
    %359 = vmatpush1.msra.mxu0 %v347
    %360 = vmatprep.subr.mxu0 0.0
    %361 = vmatpush1.msra.mxu0 %v348
    %362 = vmatprep.subr.mxu0 0.0
    %363 = vmatpush1.msra.mxu0 %v349
    %364 = vmatprep.subr.mxu0 0.0
    %365 = vmatpush1.msra.mxu0 %v350
    %366 = vmatprep.subr.mxu0 0.0
    %367 = vmatpush1.msra.mxu0 0.0
    %368 = vmatprep.subr.mxu0 0.0
    %369 = vmatpush1.msra.mxu0 0.0
    %370 = vmatprep.subr.mxu0 0.0
    %371 = vmatpush1.msra.mxu0 0.0
    %372 = vmatprep.subr.mxu0 0.0
    %373 = vmatpush1.msra.mxu0 0.0
    %374 = vmatprep.subr.mxu0 0.0
    %375 = vmatpush1.msra.mxu0 0.0
    %376 = vmatprep.subr.mxu0 0.0
    %377 = vmatpush1.msra.mxu0 0.0
    %378 = vmatprep.subr.mxu0 0.0
    %379 = vmatpush1.msra.mxu0 0.0
    %380 = vmatprep.subr.mxu0 0.0
    %381 = vmatpush1.msra.mxu0 0.0
    %382 = vmatprep.subr.mxu0 0.0
    %383 = vmatpush1.msra.mxu0 0.0
    %384 = vmatprep.subr.mxu0 0.0
    %385 = vmatpush1.msra.mxu0 0.0
    %386 = vmatprep.subr.mxu0 0.0
    %387 = vmatpush1.msra.mxu0 0.0
    %388 = vmatprep.subr.mxu0 0.0
    %389 = vmatpush1.msra.mxu0 0.0
    %390 = vmatprep.subr.mxu0 0.0
    %391 = vmatpush1.msra.mxu0 0.0
    %392 = vmatprep.subr.mxu0 0.0
    %393 = vmatpush1.msra.mxu0 0.0
    %394 = vmatprep.subr.mxu0 0.0
    %395 = vmatpush1.msra.mxu0 0.0
    %396 = vmatprep.subr.mxu0 0.0
    %397 = vmatpush1.msra.mxu0 0.0
    %398 = vmatprep.subr.mxu0 0.0
    %399 = vmatpush1.msra.mxu0 0.0
    %400 = vmatprep.subr.mxu0 0.0
    %401 = vmatpush1.msra.mxu0 0.0
    %402 = vmatprep.subr.mxu0 0.0
    %403 = vmatpush1.msra.mxu0 0.0
    %404 = vmatprep.subr.mxu0 0.0
    %405 = vmatpush1.msra.mxu0 0.0
    %406 = vmatprep.subr.mxu0 0.0
    %407 = vmatpush1.msra.mxu0 0.0
    %408 = vmatprep.subr.mxu0 0.0
    %409 = vmatpush1.msra.mxu0 0.0
    %410 = vmatprep.subr.mxu0 0.0
    %411 = vmatpush1.msra.mxu0 0.0
    %412 = vmatprep.subr.mxu0 0.0
    %413 = vmatpush1.msra.mxu0 0.0
    %414 = vmatprep.subr.mxu0 0.0
    %415 = vmatpush1.msra.mxu0 0.0
    %416 = vmatprep.subr.mxu0 0.0
    %417 = vmatpush1.msra.mxu0 0.0
    %418 = vmatprep.subr.mxu0 0.0
    %419 = vmatpush1.msra.mxu0 0.0
    %420 = vmatprep.subr.mxu0 0.0
    %421 = vmatpush1.msra.mxu0 0.0
    %422 = vmatprep.mubr.f32.mxu0 0.0
    %423 = vmatmul.mubr.f32.gmra.mrb[0].mxu0 %v181
    %v424 = vpop.f32.mrb[0].mxu0
    %v425 = vadd.f32 %v356, %v424
    %v426 = vpop.f32.mrb[0].mxu0
    %427 = vmatprep.mubr.f32.mxu0 0.0
    %428 = vmatmul.mubr.f32.gmra.mrb[0].mxu0 %v184
    %v429 = vpop.f32.mrb[0].mxu0
    %v430 = vadd.f32 %v356, %v429
    %v431 = vpop.f32.mrb[0].mxu0
    %432 = vdwg.mxu0
    %v435 = vlaneseq
    %v436 = vshrl.u32 %v435, 7
    %v437 = vsub.s32 0, %v436
    %v438 = vrot.slane %v166, %v437
    %v439 = vlaneseq
    %v440 = vshrl.u32 %v439, 7
    %v441 = vsub.s32 0, %v440
    %v442 = vrot.slane %v167, %v441
    %vm445 = vcmask 64512
    %v447 = vsel %vm445, %v253, 0
    %v450 = vsel %vm445, %v339, 0
    %452 = vmatprep.subr.mxu0 0.0
    %453 = vmatpush1.xpose.msra.mxu0 %v450
    %454 = vmatprep.subr.mxu0 0.0
    %455 = vmatpush1.xpose.msra.mxu0 0.0
    %456 = vmatprep.subr.mxu0 0.0
    %457 = vmatpush1.xpose.msra.mxu0 0.0
    %458 = vmatprep.subr.mxu0 0.0
    %459 = vmatpush1.xpose.msra.mxu0 0.0
    %460 = vmatprep.subr.mxu0 0.0
    %461 = vmatpush1.xpose.msra.mxu0 0.0
    %462 = vmatprep.subr.mxu0 0.0
    %463 = vmatpush1.xpose.msra.mxu0 0.0
    %464 = vmatprep.subr.mxu0 0.0
    %465 = vmatpush1.xpose.msra.mxu0 0.0
    %466 = vmatprep.subr.mxu0 0.0
    %467 = vmatpush1.xpose.msra.mxu0 0.0
    %468 = vmatprep.subr.mxu0 0.0
    %469 = vmatpush1.xpose.msra.mxu0 0.0
    %470 = vmatprep.subr.mxu0 0.0
    %471 = vmatpush1.xpose.msra.mxu0 0.0
    %472 = vmatprep.subr.mxu0 0.0
    %473 = vmatpush1.xpose.msra.mxu0 0.0
    %474 = vmatprep.subr.mxu0 0.0
    %475 = vmatpush1.xpose.msra.mxu0 0.0
    %476 = vmatprep.subr.mxu0 0.0
    %477 = vmatpush1.xpose.msra.mxu0 0.0
    %478 = vmatprep.subr.mxu0 0.0
    %479 = vmatpush1.xpose.msra.mxu0 0.0
    %480 = vmatprep.subr.mxu0 0.0
    %481 = vmatpush1.xpose.msra.mxu0 0.0
    %482 = vmatprep.subr.mxu0 0.0
    %483 = vmatpush1.xpose.msra.mxu0 0.0
    %484 = vmatprep.subr.mxu0 0.0
    %485 = vmatpush1.xpose.msra.mxu0 0.0
    %486 = vmatprep.subr.mxu0 0.0
    %487 = vmatpush1.xpose.msra.mxu0 0.0
    %488 = vmatprep.subr.mxu0 0.0
    %489 = vmatpush1.xpose.msra.mxu0 0.0
    %490 = vmatprep.subr.mxu0 0.0
    %491 = vmatpush1.xpose.msra.mxu0 0.0
    %492 = vmatprep.subr.mxu0 0.0
    %493 = vmatpush1.xpose.msra.mxu0 0.0
    %494 = vmatprep.subr.mxu0 0.0
    %495 = vmatpush1.xpose.msra.mxu0 0.0
    %496 = vmatprep.subr.mxu0 0.0
    %497 = vmatpush1.xpose.msra.mxu0 0.0
    %498 = vmatprep.subr.mxu0 0.0
    %499 = vmatpush1.xpose.msra.mxu0 0.0
    %500 = vmatprep.subr.mxu0 0.0
    %501 = vmatpush1.xpose.msra.mxu0 0.0
    %502 = vmatprep.subr.mxu0 0.0
    %503 = vmatpush1.xpose.msra.mxu0 0.0
    %504 = vmatprep.subr.mxu0 0.0
    %505 = vmatpush1.xpose.msra.mxu0 0.0
    %506 = vmatprep.subr.mxu0 0.0
    %507 = vmatpush1.xpose.msra.mxu0 0.0
    %508 = vmatprep.subr.mxu0 0.0
    %509 = vmatpush1.xpose.msra.mxu0 0.0
    %510 = vmatprep.subr.mxu0 0.0
    %511 = vmatpush1.xpose.msra.mxu0 0.0
    %512 = vmatprep.subr.mxu0 0.0
    %513 = vmatpush1.xpose.msra.mxu0 0.0
    %514 = vmatprep.subr.mxu0 0.0
    %515 = vmatpush1.xpose.msra.mxu0 0.0
    %516 = vmatprep.mubr.f32.mxu0 0.0
    %517 = vmatmul.mubr.f32.gmra.mrb[0].mxu0 %v447
    %v518 = vpop.f32.mrb[0].mxu0
    %v519 = vadd.f32 %v438, %v518
    %v520 = vpop.f32.mrb[0].mxu0
    %521 = vdwg.mxu0
    %v523 = vsel %vm445, %v258, 0
    %v526 = vsel %vm445, %v344, 0
    %528 = vmatprep.subr.mxu0 0.0
    %529 = vmatpush1.xpose.msra.mxu0 %v526
    %530 = vmatprep.subr.mxu0 0.0
    %531 = vmatpush1.xpose.msra.mxu0 0.0
    %532 = vmatprep.subr.mxu0 0.0
    %533 = vmatpush1.xpose.msra.mxu0 0.0
    %534 = vmatprep.subr.mxu0 0.0
    %535 = vmatpush1.xpose.msra.mxu0 0.0
    %536 = vmatprep.subr.mxu0 0.0
    %537 = vmatpush1.xpose.msra.mxu0 0.0
    %538 = vmatprep.subr.mxu0 0.0
    %539 = vmatpush1.xpose.msra.mxu0 0.0
    %540 = vmatprep.subr.mxu0 0.0
    %541 = vmatpush1.xpose.msra.mxu0 0.0
    %542 = vmatprep.subr.mxu0 0.0
    %543 = vmatpush1.xpose.msra.mxu0 0.0
    %544 = vmatprep.subr.mxu0 0.0
    %545 = vmatpush1.xpose.msra.mxu0 0.0
    %546 = vmatprep.subr.mxu0 0.0
    %547 = vmatpush1.xpose.msra.mxu0 0.0
    %548 = vmatprep.subr.mxu0 0.0
    %549 = vmatpush1.xpose.msra.mxu0 0.0
    %550 = vmatprep.subr.mxu0 0.0
    %551 = vmatpush1.xpose.msra.mxu0 0.0
    %552 = vmatprep.subr.mxu0 0.0
    %553 = vmatpush1.xpose.msra.mxu0 0.0
    %554 = vmatprep.subr.mxu0 0.0
    %555 = vmatpush1.xpose.msra.mxu0 0.0
    %556 = vmatprep.subr.mxu0 0.0
    %557 = vmatpush1.xpose.msra.mxu0 0.0
    %558 = vmatprep.subr.mxu0 0.0
    %559 = vmatpush1.xpose.msra.mxu0 0.0
    %560 = vmatprep.subr.mxu0 0.0
    %561 = vmatpush1.xpose.msra.mxu0 0.0
    %562 = vmatprep.subr.mxu0 0.0
    %563 = vmatpush1.xpose.msra.mxu0 0.0
    %564 = vmatprep.subr.mxu0 0.0
    %565 = vmatpush1.xpose.msra.mxu0 0.0
    %566 = vmatprep.subr.mxu0 0.0
    %567 = vmatpush1.xpose.msra.mxu0 0.0
    %568 = vmatprep.subr.mxu0 0.0
    %569 = vmatpush1.xpose.msra.mxu0 0.0
    %570 = vmatprep.subr.mxu0 0.0
    %571 = vmatpush1.xpose.msra.mxu0 0.0
    %572 = vmatprep.subr.mxu0 0.0
    %573 = vmatpush1.xpose.msra.mxu0 0.0
    %574 = vmatprep.subr.mxu0 0.0
    %575 = vmatpush1.xpose.msra.mxu0 0.0
    %576 = vmatprep.subr.mxu0 0.0
    %577 = vmatpush1.xpose.msra.mxu0 0.0
    %578 = vmatprep.subr.mxu0 0.0
    %579 = vmatpush1.xpose.msra.mxu0 0.0
    %580 = vmatprep.subr.mxu0 0.0
    %581 = vmatpush1.xpose.msra.mxu0 0.0
    %582 = vmatprep.subr.mxu0 0.0
    %583 = vmatpush1.xpose.msra.mxu0 0.0
    %584 = vmatprep.subr.mxu0 0.0
    %585 = vmatpush1.xpose.msra.mxu0 0.0
    %586 = vmatprep.subr.mxu0 0.0
    %587 = vmatpush1.xpose.msra.mxu0 0.0
    %588 = vmatprep.subr.mxu0 0.0
    %589 = vmatpush1.xpose.msra.mxu0 0.0
    %590 = vmatprep.subr.mxu0 0.0
    %591 = vmatpush1.xpose.msra.mxu0 0.0
    %592 = vmatprep.mubr.f32.mxu0 0.0
    %593 = vmatmul.mubr.f32.gmra.mrb[0].mxu0 %v523
    %v594 = vpop.f32.mrb[0].mxu0
    %v595 = vadd.f32 %v442, %v594
    %v596 = vpop.f32.mrb[0].mxu0
    %597 = vdwg.mxu0
    %v598 = vsel %vm445, %v519, -inf
    %599 = vmax.xlane.f32.xlu0 %v598
    %v600 = vpop.xlane.xlu0 %599
    %v601 = vsel %vm445, %v595, -inf
    %602 = vmax.xlane.f32.xlu0 %v601
    %v603 = vpop.xlane.xlu0 %602
    %v604 = vsub.f32 %v519, %v600
    %v605 = vsub.f32 %v595, %v603
    %v606 = vmul.f32 %v604, 1.442695
    %v607 = vpow.pop %v606
    %v608 = vmul.f32 %v605, 1.442695
    %v609 = vpow.pop %v608
    %v610 = vsel %vm445, %v607, 0.0
    %611 = vadd.xlane.f32.xlu0 %v610
    %v612 = vpop.xlane.xlu0 %611
    %v613 = vsel %vm445, %v609, 0.0
    %614 = vadd.xlane.f32.xlu0 %v613
    %v615 = vpop.xlane.xlu0 %614
    %v616 = vrcp.pop %v612
    %v617 = vrcp.pop %v615
    %v618 = vmul.f32 %v607, %v616
    %v619 = vmul.f32 %v609, %v617
    %v621 = vsel %vm445, %v618, 0
    %623 = vmatprep.subr.mxu0 0.0
    %624 = vmatpush1.msra.mxu0 %v425
    %625 = vmatprep.subr.mxu0 0.0
    %626 = vmatpush1.msra.mxu0 0.0
    %627 = vmatprep.subr.mxu0 0.0
    %628 = vmatpush1.msra.mxu0 0.0
    %629 = vmatprep.subr.mxu0 0.0
    %630 = vmatpush1.msra.mxu0 0.0
    %631 = vmatprep.subr.mxu0 0.0
    %632 = vmatpush1.msra.mxu0 0.0
    %633 = vmatprep.subr.mxu0 0.0
    %634 = vmatpush1.msra.mxu0 0.0
    %635 = vmatprep.subr.mxu0 0.0
    %636 = vmatpush1.msra.mxu0 0.0
    %637 = vmatprep.subr.mxu0 0.0
    %638 = vmatpush1.msra.mxu0 0.0
    %639 = vmatprep.subr.mxu0 0.0
    %640 = vmatpush1.msra.mxu0 0.0
    %641 = vmatprep.subr.mxu0 0.0
    %642 = vmatpush1.msra.mxu0 0.0
    %643 = vmatprep.subr.mxu0 0.0
    %644 = vmatpush1.msra.mxu0 0.0
    %645 = vmatprep.subr.mxu0 0.0
    %646 = vmatpush1.msra.mxu0 0.0
    %647 = vmatprep.subr.mxu0 0.0
    %648 = vmatpush1.msra.mxu0 0.0
    %649 = vmatprep.subr.mxu0 0.0
    %650 = vmatpush1.msra.mxu0 0.0
    %651 = vmatprep.subr.mxu0 0.0
    %652 = vmatpush1.msra.mxu0 0.0
    %653 = vmatprep.subr.mxu0 0.0
    %654 = vmatpush1.msra.mxu0 0.0
    %655 = vmatprep.subr.mxu0 0.0
    %656 = vmatpush1.msra.mxu0 0.0
    %657 = vmatprep.subr.mxu0 0.0
    %658 = vmatpush1.msra.mxu0 0.0
    %659 = vmatprep.subr.mxu0 0.0
    %660 = vmatpush1.msra.mxu0 0.0
    %661 = vmatprep.subr.mxu0 0.0
    %662 = vmatpush1.msra.mxu0 0.0
    %663 = vmatprep.subr.mxu0 0.0
    %664 = vmatpush1.msra.mxu0 0.0
    %665 = vmatprep.subr.mxu0 0.0
    %666 = vmatpush1.msra.mxu0 0.0
    %667 = vmatprep.subr.mxu0 0.0
    %668 = vmatpush1.msra.mxu0 0.0
    %669 = vmatprep.subr.mxu0 0.0
    %670 = vmatpush1.msra.mxu0 0.0
    %671 = vmatprep.subr.mxu0 0.0
    %672 = vmatpush1.msra.mxu0 0.0
    %673 = vmatprep.subr.mxu0 0.0
    %674 = vmatpush1.msra.mxu0 0.0
    %675 = vmatprep.subr.mxu0 0.0
    %676 = vmatpush1.msra.mxu0 0.0
    %677 = vmatprep.subr.mxu0 0.0
    %678 = vmatpush1.msra.mxu0 0.0
    %679 = vmatprep.subr.mxu0 0.0
    %680 = vmatpush1.msra.mxu0 0.0
    %681 = vmatprep.subr.mxu0 0.0
    %682 = vmatpush1.msra.mxu0 0.0
    %683 = vmatprep.subr.mxu0 0.0
    %684 = vmatpush1.msra.mxu0 0.0
    %685 = vmatprep.subr.mxu0 0.0
    %686 = vmatpush1.msra.mxu0 0.0
    %687 = vmatprep.mubr.f32.mxu0 0.0
    %688 = vmatmul.mubr.f32.gmra.mrb[0].mxu0 %v621
    %v689 = vpop.f32.mrb[0].mxu0
    %v690 = vadd.f32 0.0, %v689
    %v691 = vpop.f32.mrb[0].mxu0
    %692 = vdwg.mxu0
    %v694 = vsel %vm445, %v619, 0
    %696 = vmatprep.subr.mxu0 0.0
    %697 = vmatpush1.msra.mxu0 %v430
    %698 = vmatprep.subr.mxu0 0.0
    %699 = vmatpush1.msra.mxu0 0.0
    %700 = vmatprep.subr.mxu0 0.0
    %701 = vmatpush1.msra.mxu0 0.0
    %702 = vmatprep.subr.mxu0 0.0
    %703 = vmatpush1.msra.mxu0 0.0
    %704 = vmatprep.subr.mxu0 0.0
    %705 = vmatpush1.msra.mxu0 0.0
    %706 = vmatprep.subr.mxu0 0.0
    %707 = vmatpush1.msra.mxu0 0.0
    %708 = vmatprep.subr.mxu0 0.0
    %709 = vmatpush1.msra.mxu0 0.0
    %710 = vmatprep.subr.mxu0 0.0
    %711 = vmatpush1.msra.mxu0 0.0
    %712 = vmatprep.subr.mxu0 0.0
    %713 = vmatpush1.msra.mxu0 0.0
    %714 = vmatprep.subr.mxu0 0.0
    %715 = vmatpush1.msra.mxu0 0.0
    %716 = vmatprep.subr.mxu0 0.0
    %717 = vmatpush1.msra.mxu0 0.0
    %718 = vmatprep.subr.mxu0 0.0
    %719 = vmatpush1.msra.mxu0 0.0
    %720 = vmatprep.subr.mxu0 0.0
    %721 = vmatpush1.msra.mxu0 0.0
    %722 = vmatprep.subr.mxu0 0.0
    %723 = vmatpush1.msra.mxu0 0.0
    %724 = vmatprep.subr.mxu0 0.0
    %725 = vmatpush1.msra.mxu0 0.0
    %726 = vmatprep.subr.mxu0 0.0
    %727 = vmatpush1.msra.mxu0 0.0
    %728 = vmatprep.subr.mxu0 0.0
    %729 = vmatpush1.msra.mxu0 0.0
    %730 = vmatprep.subr.mxu0 0.0
    %731 = vmatpush1.msra.mxu0 0.0
    %732 = vmatprep.subr.mxu0 0.0
    %733 = vmatpush1.msra.mxu0 0.0
    %734 = vmatprep.subr.mxu0 0.0
    %735 = vmatpush1.msra.mxu0 0.0
    %736 = vmatprep.subr.mxu0 0.0
    %737 = vmatpush1.msra.mxu0 0.0
    %738 = vmatprep.subr.mxu0 0.0
    %739 = vmatpush1.msra.mxu0 0.0
    %740 = vmatprep.subr.mxu0 0.0
    %741 = vmatpush1.msra.mxu0 0.0
    %742 = vmatprep.subr.mxu0 0.0
    %743 = vmatpush1.msra.mxu0 0.0
    %744 = vmatprep.subr.mxu0 0.0
    %745 = vmatpush1.msra.mxu0 0.0
    %746 = vmatprep.subr.mxu0 0.0
    %747 = vmatpush1.msra.mxu0 0.0
    %748 = vmatprep.subr.mxu0 0.0
    %749 = vmatpush1.msra.mxu0 0.0
    %750 = vmatprep.subr.mxu0 0.0
    %751 = vmatpush1.msra.mxu0 0.0
    %752 = vmatprep.subr.mxu0 0.0
    %753 = vmatpush1.msra.mxu0 0.0
    %754 = vmatprep.subr.mxu0 0.0
    %755 = vmatpush1.msra.mxu0 0.0
    %756 = vmatprep.subr.mxu0 0.0
    %757 = vmatpush1.msra.mxu0 0.0
    %758 = vmatprep.subr.mxu0 0.0
    %759 = vmatpush1.msra.mxu0 0.0
    %760 = vmatprep.mubr.f32.mxu0 0.0
    %761 = vmatmul.mubr.f32.gmra.mrb[0].mxu0 %v694
    %v762 = vpop.f32.mrb[0].mxu0
    %v763 = vadd.f32 0.0, %v762
    %v764 = vpop.f32.mrb[0].mxu0
    %765 = vdwg.mxu0
    %v766 = vld [vmem:[%s11] sm:$0xff]
    %s767 = scalar_lea.vmem %s5, 32
    %v768 = vld [vmem:[%s767] sm:$0xff]
    %v769 = vld [vmem:[%s767 + $0x8] sm:$0xff]
    %v770 = vld [vmem:[%s767 + $0x10] sm:$0xff]
    %v771 = vld [vmem:[%s767 + $0x18] sm:$0xff]
    %s772 = scalar_lea.vmem %s6, 1
    %v773 = vld [vmem:[%s772] sm:$0x1]
    %v775 = vlaneseq
    %v776 = vshrl.u32 %v775, 7
    %v777 = vsub.s32 0, %v776
    %v778 = vrot.slane %v773, %v777
    %780 = vmatprep.subr.mxu0 0.0
    %781 = vmatpush1.msra.mxu0 %v768
    %782 = vmatprep.subr.mxu0 0.0
    %783 = vmatpush1.msra.mxu0 %v769
    %784 = vmatprep.subr.mxu0 0.0
    %785 = vmatpush1.msra.mxu0 %v770
    %786 = vmatprep.subr.mxu0 0.0
    %787 = vmatpush1.msra.mxu0 %v771
    %788 = vmatprep.subr.mxu0 0.0
    %789 = vmatpush1.msra.mxu0 0.0
    %790 = vmatprep.subr.mxu0 0.0
    %791 = vmatpush1.msra.mxu0 0.0
    %792 = vmatprep.subr.mxu0 0.0
    %793 = vmatpush1.msra.mxu0 0.0
    %794 = vmatprep.subr.mxu0 0.0
    %795 = vmatpush1.msra.mxu0 0.0
    %796 = vmatprep.subr.mxu0 0.0
    %797 = vmatpush1.msra.mxu0 0.0
    %798 = vmatprep.subr.mxu0 0.0
    %799 = vmatpush1.msra.mxu0 0.0
    %800 = vmatprep.subr.mxu0 0.0
    %801 = vmatpush1.msra.mxu0 0.0
    %802 = vmatprep.subr.mxu0 0.0
    %803 = vmatpush1.msra.mxu0 0.0
    %804 = vmatprep.subr.mxu0 0.0
    %805 = vmatpush1.msra.mxu0 0.0
    %806 = vmatprep.subr.mxu0 0.0
    %807 = vmatpush1.msra.mxu0 0.0
    %808 = vmatprep.subr.mxu0 0.0
    %809 = vmatpush1.msra.mxu0 0.0
    %810 = vmatprep.subr.mxu0 0.0
    %811 = vmatpush1.msra.mxu0 0.0
    %812 = vmatprep.subr.mxu0 0.0
    %813 = vmatpush1.msra.mxu0 0.0
    %814 = vmatprep.subr.mxu0 0.0
    %815 = vmatpush1.msra.mxu0 0.0
    %816 = vmatprep.subr.mxu0 0.0
    %817 = vmatpush1.msra.mxu0 0.0
    %818 = vmatprep.subr.mxu0 0.0
    %819 = vmatpush1.msra.mxu0 0.0
    %820 = vmatprep.subr.mxu0 0.0
    %821 = vmatpush1.msra.mxu0 0.0
    %822 = vmatprep.subr.mxu0 0.0
    %823 = vmatpush1.msra.mxu0 0.0
    %824 = vmatprep.subr.mxu0 0.0
    %825 = vmatpush1.msra.mxu0 0.0
    %826 = vmatprep.subr.mxu0 0.0
    %827 = vmatpush1.msra.mxu0 0.0
    %828 = vmatprep.subr.mxu0 0.0
    %829 = vmatpush1.msra.mxu0 0.0
    %830 = vmatprep.subr.mxu0 0.0
    %831 = vmatpush1.msra.mxu0 0.0
    %832 = vmatprep.subr.mxu0 0.0
    %833 = vmatpush1.msra.mxu0 0.0
    %834 = vmatprep.subr.mxu0 0.0
    %835 = vmatpush1.msra.mxu0 0.0
    %836 = vmatprep.subr.mxu0 0.0
    %837 = vmatpush1.msra.mxu0 0.0
    %838 = vmatprep.subr.mxu0 0.0
    %839 = vmatpush1.msra.mxu0 0.0
    %840 = vmatprep.subr.mxu0 0.0
    %841 = vmatpush1.msra.mxu0 0.0
    %842 = vmatprep.subr.mxu0 0.0
    %843 = vmatpush1.msra.mxu0 0.0
    %844 = vmatprep.mubr.f32.mxu0 0.0
    %845 = vmatmul.mubr.f32.gmra.mrb[0].mxu0 %v181
    %v846 = vpop.f32.mrb[0].mxu0
    %v847 = vadd.f32 %v778, %v846
    %v848 = vpop.f32.mrb[0].mxu0
    %849 = vmatprep.mubr.f32.mxu0 0.0
    %850 = vmatmul.mubr.f32.gmra.mrb[0].mxu0 %v184
    %v851 = vpop.f32.mrb[0].mxu0
    %v852 = vadd.f32 %v778, %v851
    %v853 = vpop.f32.mrb[0].mxu0
    %854 = vdwg.mxu0
    %s855 = scalar_lea.vmem %s7, 32
    %v856 = vld [vmem:[%s855] sm:$0xff]
    %v857 = vld [vmem:[%s855 + $0x8] sm:$0xff]
    %v858 = vld [vmem:[%s855 + $0x10] sm:$0xff]
    %v859 = vld [vmem:[%s855 + $0x18] sm:$0xff]
    %s860 = scalar_lea.vmem %s8, 1
    %v861 = vld [vmem:[%s860] sm:$0x1]
    %v863 = vlaneseq
    %v864 = vshrl.u32 %v863, 7
    %v865 = vsub.s32 0, %v864
    %v866 = vrot.slane %v861, %v865
    %868 = vmatprep.subr.mxu0 0.0
    %869 = vmatpush1.msra.mxu0 %v856
    %870 = vmatprep.subr.mxu0 0.0
    %871 = vmatpush1.msra.mxu0 %v857
    %872 = vmatprep.subr.mxu0 0.0
    %873 = vmatpush1.msra.mxu0 %v858
    %874 = vmatprep.subr.mxu0 0.0
    %875 = vmatpush1.msra.mxu0 %v859
    %876 = vmatprep.subr.mxu0 0.0
    %877 = vmatpush1.msra.mxu0 0.0
    %878 = vmatprep.subr.mxu0 0.0
    %879 = vmatpush1.msra.mxu0 0.0
    %880 = vmatprep.subr.mxu0 0.0
    %881 = vmatpush1.msra.mxu0 0.0
    %882 = vmatprep.subr.mxu0 0.0
    %883 = vmatpush1.msra.mxu0 0.0
    %884 = vmatprep.subr.mxu0 0.0
    %885 = vmatpush1.msra.mxu0 0.0
    %886 = vmatprep.subr.mxu0 0.0
    %887 = vmatpush1.msra.mxu0 0.0
    %888 = vmatprep.subr.mxu0 0.0
    %889 = vmatpush1.msra.mxu0 0.0
    %890 = vmatprep.subr.mxu0 0.0
    %891 = vmatpush1.msra.mxu0 0.0
    %892 = vmatprep.subr.mxu0 0.0
    %893 = vmatpush1.msra.mxu0 0.0
    %894 = vmatprep.subr.mxu0 0.0
    %895 = vmatpush1.msra.mxu0 0.0
    %896 = vmatprep.subr.mxu0 0.0
    %897 = vmatpush1.msra.mxu0 0.0
    %898 = vmatprep.subr.mxu0 0.0
    %899 = vmatpush1.msra.mxu0 0.0
    %900 = vmatprep.subr.mxu0 0.0
    %901 = vmatpush1.msra.mxu0 0.0
    %902 = vmatprep.subr.mxu0 0.0
    %903 = vmatpush1.msra.mxu0 0.0
    %904 = vmatprep.subr.mxu0 0.0
    %905 = vmatpush1.msra.mxu0 0.0
    %906 = vmatprep.subr.mxu0 0.0
    %907 = vmatpush1.msra.mxu0 0.0
    %908 = vmatprep.subr.mxu0 0.0
    %909 = vmatpush1.msra.mxu0 0.0
    %910 = vmatprep.subr.mxu0 0.0
    %911 = vmatpush1.msra.mxu0 0.0
    %912 = vmatprep.subr.mxu0 0.0
    %913 = vmatpush1.msra.mxu0 0.0
    %914 = vmatprep.subr.mxu0 0.0
    %915 = vmatpush1.msra.mxu0 0.0
    %916 = vmatprep.subr.mxu0 0.0
    %917 = vmatpush1.msra.mxu0 0.0
    %918 = vmatprep.subr.mxu0 0.0
    %919 = vmatpush1.msra.mxu0 0.0
    %920 = vmatprep.subr.mxu0 0.0
    %921 = vmatpush1.msra.mxu0 0.0
    %922 = vmatprep.subr.mxu0 0.0
    %923 = vmatpush1.msra.mxu0 0.0
    %924 = vmatprep.subr.mxu0 0.0
    %925 = vmatpush1.msra.mxu0 0.0
    %926 = vmatprep.subr.mxu0 0.0
    %927 = vmatpush1.msra.mxu0 0.0
    %928 = vmatprep.subr.mxu0 0.0
    %929 = vmatpush1.msra.mxu0 0.0
    %930 = vmatprep.subr.mxu0 0.0
    %931 = vmatpush1.msra.mxu0 0.0
    %932 = vmatprep.mubr.f32.mxu0 0.0
    %933 = vmatmul.mubr.f32.gmra.mrb[0].mxu0 %v181
    %v934 = vpop.f32.mrb[0].mxu0
    %v935 = vadd.f32 %v866, %v934
    %v936 = vpop.f32.mrb[0].mxu0
    %937 = vmatprep.mubr.f32.mxu0 0.0
    %938 = vmatmul.mubr.f32.gmra.mrb[0].mxu0 %v184
    %v939 = vpop.f32.mrb[0].mxu0
    %v940 = vadd.f32 %v866, %v939
    %v941 = vpop.f32.mrb[0].mxu0
    %942 = vdwg.mxu0
    %s943 = scalar_lea.vmem %s9, 32
    %v944 = vld [vmem:[%s943] sm:$0xff]
    %v945 = vld [vmem:[%s943 + $0x8] sm:$0xff]
    %v946 = vld [vmem:[%s943 + $0x10] sm:$0xff]
    %v947 = vld [vmem:[%s943 + $0x18] sm:$0xff]
    %s948 = scalar_lea.vmem %s10, 1
    %v949 = vld [vmem:[%s948] sm:$0x1]
    %v951 = vlaneseq
    %v952 = vshrl.u32 %v951, 7
    %v953 = vsub.s32 0, %v952
    %v954 = vrot.slane %v949, %v953
    %956 = vmatprep.subr.mxu0 0.0
    %957 = vmatpush1.msra.mxu0 %v944
    %958 = vmatprep.subr.mxu0 0.0
    %959 = vmatpush1.msra.mxu0 %v945
    %960 = vmatprep.subr.mxu0 0.0
    %961 = vmatpush1.msra.mxu0 %v946
    %962 = vmatprep.subr.mxu0 0.0
    %963 = vmatpush1.msra.mxu0 %v947
    %964 = vmatprep.subr.mxu0 0.0
    %965 = vmatpush1.msra.mxu0 0.0
    %966 = vmatprep.subr.mxu0 0.0
    %967 = vmatpush1.msra.mxu0 0.0
    %968 = vmatprep.subr.mxu0 0.0
    %969 = vmatpush1.msra.mxu0 0.0
    %970 = vmatprep.subr.mxu0 0.0
    %971 = vmatpush1.msra.mxu0 0.0
    %972 = vmatprep.subr.mxu0 0.0
    %973 = vmatpush1.msra.mxu0 0.0
    %974 = vmatprep.subr.mxu0 0.0
    %975 = vmatpush1.msra.mxu0 0.0
    %976 = vmatprep.subr.mxu0 0.0
    %977 = vmatpush1.msra.mxu0 0.0
    %978 = vmatprep.subr.mxu0 0.0
    %979 = vmatpush1.msra.mxu0 0.0
    %980 = vmatprep.subr.mxu0 0.0
    %981 = vmatpush1.msra.mxu0 0.0
    %982 = vmatprep.subr.mxu0 0.0
    %983 = vmatpush1.msra.mxu0 0.0
    %984 = vmatprep.subr.mxu0 0.0
    %985 = vmatpush1.msra.mxu0 0.0
    %986 = vmatprep.subr.mxu0 0.0
    %987 = vmatpush1.msra.mxu0 0.0
    %988 = vmatprep.subr.mxu0 0.0
    %989 = vmatpush1.msra.mxu0 0.0
    %990 = vmatprep.subr.mxu0 0.0
    %991 = vmatpush1.msra.mxu0 0.0
    %992 = vmatprep.subr.mxu0 0.0
    %993 = vmatpush1.msra.mxu0 0.0
    %994 = vmatprep.subr.mxu0 0.0
    %995 = vmatpush1.msra.mxu0 0.0
    %996 = vmatprep.subr.mxu0 0.0
    %997 = vmatpush1.msra.mxu0 0.0
    %998 = vmatprep.subr.mxu0 0.0
    %999 = vmatpush1.msra.mxu0 0.0
    %1000 = vmatprep.subr.mxu0 0.0
    %1001 = vmatpush1.msra.mxu0 0.0
    %1002 = vmatprep.subr.mxu0 0.0
    %1003 = vmatpush1.msra.mxu0 0.0
    %1004 = vmatprep.subr.mxu0 0.0
    %1005 = vmatpush1.msra.mxu0 0.0
    %1006 = vmatprep.subr.mxu0 0.0
    %1007 = vmatpush1.msra.mxu0 0.0
    %1008 = vmatprep.subr.mxu0 0.0
    %1009 = vmatpush1.msra.mxu0 0.0
    %1010 = vmatprep.subr.mxu0 0.0
    %1011 = vmatpush1.msra.mxu0 0.0
    %1012 = vmatprep.subr.mxu0 0.0
    %1013 = vmatpush1.msra.mxu0 0.0
    %1014 = vmatprep.subr.mxu0 0.0
    %1015 = vmatpush1.msra.mxu0 0.0
    %1016 = vmatprep.subr.mxu0 0.0
    %1017 = vmatpush1.msra.mxu0 0.0
    %1018 = vmatprep.subr.mxu0 0.0
    %1019 = vmatpush1.msra.mxu0 0.0
    %1020 = vmatprep.mubr.f32.mxu0 0.0
    %1021 = vmatmul.mubr.f32.gmra.mrb[0].mxu0 %v181
    %v1022 = vpop.f32.mrb[0].mxu0
    %v1023 = vadd.f32 %v954, %v1022
    %v1024 = vpop.f32.mrb[0].mxu0
    %1025 = vmatprep.mubr.f32.mxu0 0.0
    %1026 = vmatmul.mubr.f32.gmra.mrb[0].mxu0 %v184
    %v1027 = vpop.f32.mrb[0].mxu0
    %v1028 = vadd.f32 %v954, %v1027
    %v1029 = vpop.f32.mrb[0].mxu0
    %1030 = vdwg.mxu0
    %v1032 = vsel %vm445, %v847, 0
    %v1035 = vsel %vm445, %v935, 0
    %1037 = vmatprep.subr.mxu0 0.0
    %1038 = vmatpush1.xpose.msra.mxu0 %v1035
    %1039 = vmatprep.subr.mxu0 0.0
    %1040 = vmatpush1.xpose.msra.mxu0 0.0
    %1041 = vmatprep.subr.mxu0 0.0
    %1042 = vmatpush1.xpose.msra.mxu0 0.0
    %1043 = vmatprep.subr.mxu0 0.0
    %1044 = vmatpush1.xpose.msra.mxu0 0.0
    %1045 = vmatprep.subr.mxu0 0.0
    %1046 = vmatpush1.xpose.msra.mxu0 0.0
    %1047 = vmatprep.subr.mxu0 0.0
    %1048 = vmatpush1.xpose.msra.mxu0 0.0
    %1049 = vmatprep.subr.mxu0 0.0
    %1050 = vmatpush1.xpose.msra.mxu0 0.0
    %1051 = vmatprep.subr.mxu0 0.0
    %1052 = vmatpush1.xpose.msra.mxu0 0.0
    %1053 = vmatprep.subr.mxu0 0.0
    %1054 = vmatpush1.xpose.msra.mxu0 0.0
    %1055 = vmatprep.subr.mxu0 0.0
    %1056 = vmatpush1.xpose.msra.mxu0 0.0
    %1057 = vmatprep.subr.mxu0 0.0
    %1058 = vmatpush1.xpose.msra.mxu0 0.0
    %1059 = vmatprep.subr.mxu0 0.0
    %1060 = vmatpush1.xpose.msra.mxu0 0.0
    %1061 = vmatprep.subr.mxu0 0.0
    %1062 = vmatpush1.xpose.msra.mxu0 0.0
    %1063 = vmatprep.subr.mxu0 0.0
    %1064 = vmatpush1.xpose.msra.mxu0 0.0
    %1065 = vmatprep.subr.mxu0 0.0
    %1066 = vmatpush1.xpose.msra.mxu0 0.0
    %1067 = vmatprep.subr.mxu0 0.0
    %1068 = vmatpush1.xpose.msra.mxu0 0.0
    %1069 = vmatprep.subr.mxu0 0.0
    %1070 = vmatpush1.xpose.msra.mxu0 0.0
    %1071 = vmatprep.subr.mxu0 0.0
    %1072 = vmatpush1.xpose.msra.mxu0 0.0
    %1073 = vmatprep.subr.mxu0 0.0
    %1074 = vmatpush1.xpose.msra.mxu0 0.0
    %1075 = vmatprep.subr.mxu0 0.0
    %1076 = vmatpush1.xpose.msra.mxu0 0.0
    %1077 = vmatprep.subr.mxu0 0.0
    %1078 = vmatpush1.xpose.msra.mxu0 0.0
    %1079 = vmatprep.subr.mxu0 0.0
    %1080 = vmatpush1.xpose.msra.mxu0 0.0
    %1081 = vmatprep.subr.mxu0 0.0
    %1082 = vmatpush1.xpose.msra.mxu0 0.0
    %1083 = vmatprep.subr.mxu0 0.0
    %1084 = vmatpush1.xpose.msra.mxu0 0.0
    %1085 = vmatprep.subr.mxu0 0.0
    %1086 = vmatpush1.xpose.msra.mxu0 0.0
    %1087 = vmatprep.subr.mxu0 0.0
    %1088 = vmatpush1.xpose.msra.mxu0 0.0
    %1089 = vmatprep.subr.mxu0 0.0
    %1090 = vmatpush1.xpose.msra.mxu0 0.0
    %1091 = vmatprep.subr.mxu0 0.0
    %1092 = vmatpush1.xpose.msra.mxu0 0.0
    %1093 = vmatprep.subr.mxu0 0.0
    %1094 = vmatpush1.xpose.msra.mxu0 0.0
    %1095 = vmatprep.subr.mxu0 0.0
    %1096 = vmatpush1.xpose.msra.mxu0 0.0
    %1097 = vmatprep.subr.mxu0 0.0
    %1098 = vmatpush1.xpose.msra.mxu0 0.0
    %1099 = vmatprep.subr.mxu0 0.0
    %1100 = vmatpush1.xpose.msra.mxu0 0.0
    %1101 = vmatprep.mubr.f32.mxu0 0.0
    %1102 = vmatmul.mubr.f32.gmra.mrb[0].mxu0 %v1032
    %v1103 = vpop.f32.mrb[0].mxu0
    %v1104 = vadd.f32 %v438, %v1103
    %v1105 = vpop.f32.mrb[0].mxu0
    %1106 = vdwg.mxu0
    %v1108 = vsel %vm445, %v852, 0
    %v1111 = vsel %vm445, %v940, 0
    %1113 = vmatprep.subr.mxu0 0.0
    %1114 = vmatpush1.xpose.msra.mxu0 %v1111
    %1115 = vmatprep.subr.mxu0 0.0
    %1116 = vmatpush1.xpose.msra.mxu0 0.0
    %1117 = vmatprep.subr.mxu0 0.0
    %1118 = vmatpush1.xpose.msra.mxu0 0.0
    %1119 = vmatprep.subr.mxu0 0.0
    %1120 = vmatpush1.xpose.msra.mxu0 0.0
    %1121 = vmatprep.subr.mxu0 0.0
    %1122 = vmatpush1.xpose.msra.mxu0 0.0
    %1123 = vmatprep.subr.mxu0 0.0
    %1124 = vmatpush1.xpose.msra.mxu0 0.0
    %1125 = vmatprep.subr.mxu0 0.0
    %1126 = vmatpush1.xpose.msra.mxu0 0.0
    %1127 = vmatprep.subr.mxu0 0.0
    %1128 = vmatpush1.xpose.msra.mxu0 0.0
    %1129 = vmatprep.subr.mxu0 0.0
    %1130 = vmatpush1.xpose.msra.mxu0 0.0
    %1131 = vmatprep.subr.mxu0 0.0
    %1132 = vmatpush1.xpose.msra.mxu0 0.0
    %1133 = vmatprep.subr.mxu0 0.0
    %1134 = vmatpush1.xpose.msra.mxu0 0.0
    %1135 = vmatprep.subr.mxu0 0.0
    %1136 = vmatpush1.xpose.msra.mxu0 0.0
    %1137 = vmatprep.subr.mxu0 0.0
    %1138 = vmatpush1.xpose.msra.mxu0 0.0
    %1139 = vmatprep.subr.mxu0 0.0
    %1140 = vmatpush1.xpose.msra.mxu0 0.0
    %1141 = vmatprep.subr.mxu0 0.0
    %1142 = vmatpush1.xpose.msra.mxu0 0.0
    %1143 = vmatprep.subr.mxu0 0.0
    %1144 = vmatpush1.xpose.msra.mxu0 0.0
    %1145 = vmatprep.subr.mxu0 0.0
    %1146 = vmatpush1.xpose.msra.mxu0 0.0
    %1147 = vmatprep.subr.mxu0 0.0
    %1148 = vmatpush1.xpose.msra.mxu0 0.0
    %1149 = vmatprep.subr.mxu0 0.0
    %1150 = vmatpush1.xpose.msra.mxu0 0.0
    %1151 = vmatprep.subr.mxu0 0.0
    %1152 = vmatpush1.xpose.msra.mxu0 0.0
    %1153 = vmatprep.subr.mxu0 0.0
    %1154 = vmatpush1.xpose.msra.mxu0 0.0
    %1155 = vmatprep.subr.mxu0 0.0
    %1156 = vmatpush1.xpose.msra.mxu0 0.0
    %1157 = vmatprep.subr.mxu0 0.0
    %1158 = vmatpush1.xpose.msra.mxu0 0.0
    %1159 = vmatprep.subr.mxu0 0.0
    %1160 = vmatpush1.xpose.msra.mxu0 0.0
    %1161 = vmatprep.subr.mxu0 0.0
    %1162 = vmatpush1.xpose.msra.mxu0 0.0
    %1163 = vmatprep.subr.mxu0 0.0
    %1164 = vmatpush1.xpose.msra.mxu0 0.0
    %1165 = vmatprep.subr.mxu0 0.0
    %1166 = vmatpush1.xpose.msra.mxu0 0.0
    %1167 = vmatprep.subr.mxu0 0.0
    %1168 = vmatpush1.xpose.msra.mxu0 0.0
    %1169 = vmatprep.subr.mxu0 0.0
    %1170 = vmatpush1.xpose.msra.mxu0 0.0
    %1171 = vmatprep.subr.mxu0 0.0
    %1172 = vmatpush1.xpose.msra.mxu0 0.0
    %1173 = vmatprep.subr.mxu0 0.0
    %1174 = vmatpush1.xpose.msra.mxu0 0.0
    %1175 = vmatprep.subr.mxu0 0.0
    %1176 = vmatpush1.xpose.msra.mxu0 0.0
    %1177 = vmatprep.mubr.f32.mxu0 0.0
    %1178 = vmatmul.mubr.f32.gmra.mrb[0].mxu0 %v1108
    %v1179 = vpop.f32.mrb[0].mxu0
    %v1180 = vadd.f32 %v442, %v1179
    %v1181 = vpop.f32.mrb[0].mxu0
    %1182 = vdwg.mxu0
    %v1183 = vsel %vm445, %v1104, -inf
    %1184 = vmax.xlane.f32.xlu0 %v1183
    %v1185 = vpop.xlane.xlu0 %1184
    %v1186 = vsel %vm445, %v1180, -inf
    %1187 = vmax.xlane.f32.xlu0 %v1186
    %v1188 = vpop.xlane.xlu0 %1187
    %v1189 = vsub.f32 %v1104, %v1185
    %v1190 = vsub.f32 %v1180, %v1188
    %v1191 = vmul.f32 %v1189, 1.442695
    %v1192 = vpow.pop %v1191
    %v1193 = vmul.f32 %v1190, 1.442695
    %v1194 = vpow.pop %v1193
    %v1195 = vsel %vm445, %v1192, 0.0
    %1196 = vadd.xlane.f32.xlu0 %v1195
    %v1197 = vpop.xlane.xlu0 %1196
    %v1198 = vsel %vm445, %v1194, 0.0
    %1199 = vadd.xlane.f32.xlu0 %v1198
    %v1200 = vpop.xlane.xlu0 %1199
    %v1201 = vrcp.pop %v1197
    %v1202 = vrcp.pop %v1200
    %v1203 = vmul.f32 %v1192, %v1201
    %v1204 = vmul.f32 %v1194, %v1202
    %v1206 = vsel %vm445, %v1203, 0
    %1208 = vmatprep.subr.mxu0 0.0
    %1209 = vmatpush1.msra.mxu0 %v1023
    %1210 = vmatprep.subr.mxu0 0.0
    %1211 = vmatpush1.msra.mxu0 0.0
    %1212 = vmatprep.subr.mxu0 0.0
    %1213 = vmatpush1.msra.mxu0 0.0
    %1214 = vmatprep.subr.mxu0 0.0
    %1215 = vmatpush1.msra.mxu0 0.0
    %1216 = vmatprep.subr.mxu0 0.0
    %1217 = vmatpush1.msra.mxu0 0.0
    %1218 = vmatprep.subr.mxu0 0.0
    %1219 = vmatpush1.msra.mxu0 0.0
    %1220 = vmatprep.subr.mxu0 0.0
    %1221 = vmatpush1.msra.mxu0 0.0
    %1222 = vmatprep.subr.mxu0 0.0
    %1223 = vmatpush1.msra.mxu0 0.0
    %1224 = vmatprep.subr.mxu0 0.0
    %1225 = vmatpush1.msra.mxu0 0.0
    %1226 = vmatprep.subr.mxu0 0.0
    %1227 = vmatpush1.msra.mxu0 0.0
    %1228 = vmatprep.subr.mxu0 0.0
    %1229 = vmatpush1.msra.mxu0 0.0
    %1230 = vmatprep.subr.mxu0 0.0
    %1231 = vmatpush1.msra.mxu0 0.0
    %1232 = vmatprep.subr.mxu0 0.0
    %1233 = vmatpush1.msra.mxu0 0.0
    %1234 = vmatprep.subr.mxu0 0.0
    %1235 = vmatpush1.msra.mxu0 0.0
    %1236 = vmatprep.subr.mxu0 0.0
    %1237 = vmatpush1.msra.mxu0 0.0
    %1238 = vmatprep.subr.mxu0 0.0
    %1239 = vmatpush1.msra.mxu0 0.0
    %1240 = vmatprep.subr.mxu0 0.0
    %1241 = vmatpush1.msra.mxu0 0.0
    %1242 = vmatprep.subr.mxu0 0.0
    %1243 = vmatpush1.msra.mxu0 0.0
    %1244 = vmatprep.subr.mxu0 0.0
    %1245 = vmatpush1.msra.mxu0 0.0
    %1246 = vmatprep.subr.mxu0 0.0
    %1247 = vmatpush1.msra.mxu0 0.0
    %1248 = vmatprep.subr.mxu0 0.0
    %1249 = vmatpush1.msra.mxu0 0.0
    %1250 = vmatprep.subr.mxu0 0.0
    %1251 = vmatpush1.msra.mxu0 0.0
    %1252 = vmatprep.subr.mxu0 0.0
    %1253 = vmatpush1.msra.mxu0 0.0
    %1254 = vmatprep.subr.mxu0 0.0
    %1255 = vmatpush1.msra.mxu0 0.0
    %1256 = vmatprep.subr.mxu0 0.0
    %1257 = vmatpush1.msra.mxu0 0.0
    %1258 = vmatprep.subr.mxu0 0.0
    %1259 = vmatpush1.msra.mxu0 0.0
    %1260 = vmatprep.subr.mxu0 0.0
    %1261 = vmatpush1.msra.mxu0 0.0
    %1262 = vmatprep.subr.mxu0 0.0
    %1263 = vmatpush1.msra.mxu0 0.0
    %1264 = vmatprep.subr.mxu0 0.0
    %1265 = vmatpush1.msra.mxu0 0.0
    %1266 = vmatprep.subr.mxu0 0.0
    %1267 = vmatpush1.msra.mxu0 0.0
    %1268 = vmatprep.subr.mxu0 0.0
    %1269 = vmatpush1.msra.mxu0 0.0
    %1270 = vmatprep.subr.mxu0 0.0
    %1271 = vmatpush1.msra.mxu0 0.0
    %1272 = vmatprep.mubr.f32.mxu0 0.0
    %1273 = vmatmul.mubr.f32.gmra.mrb[0].mxu0 %v1206
    %v1274 = vpop.f32.mrb[0].mxu0
    %v1275 = vadd.f32 0.0, %v1274
    %v1276 = vpop.f32.mrb[0].mxu0
    %1277 = vdwg.mxu0
    %v1279 = vsel %vm445, %v1204, 0
    %1281 = vmatprep.subr.mxu0 0.0
    %1282 = vmatpush1.msra.mxu0 %v1028
    %1283 = vmatprep.subr.mxu0 0.0
    %1284 = vmatpush1.msra.mxu0 0.0
    %1285 = vmatprep.subr.mxu0 0.0
    %1286 = vmatpush1.msra.mxu0 0.0
    %1287 = vmatprep.subr.mxu0 0.0
    %1288 = vmatpush1.msra.mxu0 0.0
    %1289 = vmatprep.subr.mxu0 0.0
    %1290 = vmatpush1.msra.mxu0 0.0
    %1291 = vmatprep.subr.mxu0 0.0
    %1292 = vmatpush1.msra.mxu0 0.0
    %1293 = vmatprep.subr.mxu0 0.0
    %1294 = vmatpush1.msra.mxu0 0.0
    %1295 = vmatprep.subr.mxu0 0.0
    %1296 = vmatpush1.msra.mxu0 0.0
    %1297 = vmatprep.subr.mxu0 0.0
    %1298 = vmatpush1.msra.mxu0 0.0
    %1299 = vmatprep.subr.mxu0 0.0
    %1300 = vmatpush1.msra.mxu0 0.0
    %1301 = vmatprep.subr.mxu0 0.0
    %1302 = vmatpush1.msra.mxu0 0.0
    %1303 = vmatprep.subr.mxu0 0.0
    %1304 = vmatpush1.msra.mxu0 0.0
    %1305 = vmatprep.subr.mxu0 0.0
    %1306 = vmatpush1.msra.mxu0 0.0
    %1307 = vmatprep.subr.mxu0 0.0
    %1308 = vmatpush1.msra.mxu0 0.0
    %1309 = vmatprep.subr.mxu0 0.0
    %1310 = vmatpush1.msra.mxu0 0.0
    %1311 = vmatprep.subr.mxu0 0.0
    %1312 = vmatpush1.msra.mxu0 0.0
    %1313 = vmatprep.subr.mxu0 0.0
    %1314 = vmatpush1.msra.mxu0 0.0
    %1315 = vmatprep.subr.mxu0 0.0
    %1316 = vmatpush1.msra.mxu0 0.0
    %1317 = vmatprep.subr.mxu0 0.0
    %1318 = vmatpush1.msra.mxu0 0.0
    %1319 = vmatprep.subr.mxu0 0.0
    %1320 = vmatpush1.msra.mxu0 0.0
    %1321 = vmatprep.subr.mxu0 0.0
    %1322 = vmatpush1.msra.mxu0 0.0
    %1323 = vmatprep.subr.mxu0 0.0
    %1324 = vmatpush1.msra.mxu0 0.0
    %1325 = vmatprep.subr.mxu0 0.0
    %1326 = vmatpush1.msra.mxu0 0.0
    %1327 = vmatprep.subr.mxu0 0.0
    %1328 = vmatpush1.msra.mxu0 0.0
    %1329 = vmatprep.subr.mxu0 0.0
    %1330 = vmatpush1.msra.mxu0 0.0
    %1331 = vmatprep.subr.mxu0 0.0
    %1332 = vmatpush1.msra.mxu0 0.0
    %1333 = vmatprep.subr.mxu0 0.0
    %1334 = vmatpush1.msra.mxu0 0.0
    %1335 = vmatprep.subr.mxu0 0.0
    %1336 = vmatpush1.msra.mxu0 0.0
    %1337 = vmatprep.subr.mxu0 0.0
    %1338 = vmatpush1.msra.mxu0 0.0
    %1339 = vmatprep.subr.mxu0 0.0
    %1340 = vmatpush1.msra.mxu0 0.0
    %1341 = vmatprep.subr.mxu0 0.0
    %1342 = vmatpush1.msra.mxu0 0.0
    %1343 = vmatprep.subr.mxu0 0.0
    %1344 = vmatpush1.msra.mxu0 0.0
    %1345 = vmatprep.mubr.f32.mxu0 0.0
    %1346 = vmatmul.mubr.f32.gmra.mrb[0].mxu0 %v1279
    %v1347 = vpop.f32.mrb[0].mxu0
    %v1348 = vadd.f32 0.0, %v1347
    %v1349 = vpop.f32.mrb[0].mxu0
    %1350 = vdwg.mxu0
    %s1351 = scalar_lea.vmem %s11, 8
    %v1352 = vld [vmem:[%s1351] sm:$0xff]
    %v1354 = vsel %vm445, %v1275, 0
    %v1357 = vsel %vm445, %v1348, 0
    %1359 = vmatprep.subr.mxu0 0.0
    %1360 = vmatpush1.msra.mxu0 %v1352
    %1361 = vmatprep.subr.mxu0 0.0
    %1362 = vmatpush1.msra.mxu0 0.0
    %1363 = vmatprep.subr.mxu0 0.0
    %1364 = vmatpush1.msra.mxu0 0.0
    %1365 = vmatprep.subr.mxu0 0.0
    %1366 = vmatpush1.msra.mxu0 0.0
    %1367 = vmatprep.subr.mxu0 0.0
    %1368 = vmatpush1.msra.mxu0 0.0
    %1369 = vmatprep.subr.mxu0 0.0
    %1370 = vmatpush1.msra.mxu0 0.0
    %1371 = vmatprep.subr.mxu0 0.0
    %1372 = vmatpush1.msra.mxu0 0.0
    %1373 = vmatprep.subr.mxu0 0.0
    %1374 = vmatpush1.msra.mxu0 0.0
    %1375 = vmatprep.subr.mxu0 0.0
    %1376 = vmatpush1.msra.mxu0 0.0
    %1377 = vmatprep.subr.mxu0 0.0
    %1378 = vmatpush1.msra.mxu0 0.0
    %1379 = vmatprep.subr.mxu0 0.0
    %1380 = vmatpush1.msra.mxu0 0.0
    %1381 = vmatprep.subr.mxu0 0.0
    %1382 = vmatpush1.msra.mxu0 0.0
    %1383 = vmatprep.subr.mxu0 0.0
    %1384 = vmatpush1.msra.mxu0 0.0
    %1385 = vmatprep.subr.mxu0 0.0
    %1386 = vmatpush1.msra.mxu0 0.0
    %1387 = vmatprep.subr.mxu0 0.0
    %1388 = vmatpush1.msra.mxu0 0.0
    %1389 = vmatprep.subr.mxu0 0.0
    %1390 = vmatpush1.msra.mxu0 0.0
    %1391 = vmatprep.subr.mxu0 0.0
    %1392 = vmatpush1.msra.mxu0 0.0
    %1393 = vmatprep.subr.mxu0 0.0
    %1394 = vmatpush1.msra.mxu0 0.0
    %1395 = vmatprep.subr.mxu0 0.0
    %1396 = vmatpush1.msra.mxu0 0.0
    %1397 = vmatprep.subr.mxu0 0.0
    %1398 = vmatpush1.msra.mxu0 0.0
    %1399 = vmatprep.subr.mxu0 0.0
    %1400 = vmatpush1.msra.mxu0 0.0
    %1401 = vmatprep.subr.mxu0 0.0
    %1402 = vmatpush1.msra.mxu0 0.0
    %1403 = vmatprep.subr.mxu0 0.0
    %1404 = vmatpush1.msra.mxu0 0.0
    %1405 = vmatprep.subr.mxu0 0.0
    %1406 = vmatpush1.msra.mxu0 0.0
    %1407 = vmatprep.subr.mxu0 0.0
    %1408 = vmatpush1.msra.mxu0 0.0
    %1409 = vmatprep.subr.mxu0 0.0
    %1410 = vmatpush1.msra.mxu0 0.0
    %1411 = vmatprep.subr.mxu0 0.0
    %1412 = vmatpush1.msra.mxu0 0.0
    %1413 = vmatprep.subr.mxu0 0.0
    %1414 = vmatpush1.msra.mxu0 0.0
    %1415 = vmatprep.subr.mxu0 0.0
    %1416 = vmatpush1.msra.mxu0 0.0
    %1417 = vmatprep.subr.mxu0 0.0
    %1418 = vmatpush1.msra.mxu0 0.0
    %1419 = vmatprep.subr.mxu0 0.0
    %1420 = vmatpush1.msra.mxu0 0.0
    %1421 = vmatprep.subr.mxu0 0.0
    %1422 = vmatpush1.msra.mxu0 0.0
    %1423 = vmatprep.mubr.f32.mxu0 0.0
    %1424 = vmatmul.mubr.f32.gmra.mrb[0].mxu0 %v1354
    %v1425 = vpop.f32.mrb[0].mxu0
    %v1426 = vadd.f32 0.0, %v1425
    %v1427 = vpop.f32.mrb[0].mxu0
    %1428 = vmatprep.mubr.f32.mxu0 0.0
    %1429 = vmatmul.mubr.f32.gmra.mrb[0].mxu0 %v1357
    %v1430 = vpop.f32.mrb[0].mxu0
    %v1431 = vadd.f32 0.0, %v1430
    %v1432 = vpop.f32.mrb[0].mxu0
    %1433 = vdwg.mxu0
    %v1435 = vsel %vm445, %v690, 0
    %v1438 = vsel %vm445, %v763, 0
    %1440 = vmatprep.subr.mxu0 0.0
    %1441 = vmatpush1.msra.mxu0 %v766
    %1442 = vmatprep.subr.mxu0 0.0
    %1443 = vmatpush1.msra.mxu0 0.0
    %1444 = vmatprep.subr.mxu0 0.0
    %1445 = vmatpush1.msra.mxu0 0.0
    %1446 = vmatprep.subr.mxu0 0.0
    %1447 = vmatpush1.msra.mxu0 0.0
    %1448 = vmatprep.subr.mxu0 0.0
    %1449 = vmatpush1.msra.mxu0 0.0
    %1450 = vmatprep.subr.mxu0 0.0
    %1451 = vmatpush1.msra.mxu0 0.0
    %1452 = vmatprep.subr.mxu0 0.0
    %1453 = vmatpush1.msra.mxu0 0.0
    %1454 = vmatprep.subr.mxu0 0.0
    %1455 = vmatpush1.msra.mxu0 0.0
    %1456 = vmatprep.subr.mxu0 0.0
    %1457 = vmatpush1.msra.mxu0 0.0
    %1458 = vmatprep.subr.mxu0 0.0
    %1459 = vmatpush1.msra.mxu0 0.0
    %1460 = vmatprep.subr.mxu0 0.0
    %1461 = vmatpush1.msra.mxu0 0.0
    %1462 = vmatprep.subr.mxu0 0.0
    %1463 = vmatpush1.msra.mxu0 0.0
    %1464 = vmatprep.subr.mxu0 0.0
    %1465 = vmatpush1.msra.mxu0 0.0
    %1466 = vmatprep.subr.mxu0 0.0
    %1467 = vmatpush1.msra.mxu0 0.0
    %1468 = vmatprep.subr.mxu0 0.0
    %1469 = vmatpush1.msra.mxu0 0.0
    %1470 = vmatprep.subr.mxu0 0.0
    %1471 = vmatpush1.msra.mxu0 0.0
    %1472 = vmatprep.subr.mxu0 0.0
    %1473 = vmatpush1.msra.mxu0 0.0
    %1474 = vmatprep.subr.mxu0 0.0
    %1475 = vmatpush1.msra.mxu0 0.0
    %1476 = vmatprep.subr.mxu0 0.0
    %1477 = vmatpush1.msra.mxu0 0.0
    %1478 = vmatprep.subr.mxu0 0.0
    %1479 = vmatpush1.msra.mxu0 0.0
    %1480 = vmatprep.subr.mxu0 0.0
    %1481 = vmatpush1.msra.mxu0 0.0
    %1482 = vmatprep.subr.mxu0 0.0
    %1483 = vmatpush1.msra.mxu0 0.0
    %1484 = vmatprep.subr.mxu0 0.0
    %1485 = vmatpush1.msra.mxu0 0.0
    %1486 = vmatprep.subr.mxu0 0.0
    %1487 = vmatpush1.msra.mxu0 0.0
    %1488 = vmatprep.subr.mxu0 0.0
    %1489 = vmatpush1.msra.mxu0 0.0
    %1490 = vmatprep.subr.mxu0 0.0
    %1491 = vmatpush1.msra.mxu0 0.0
    %1492 = vmatprep.subr.mxu0 0.0
    %1493 = vmatpush1.msra.mxu0 0.0
    %1494 = vmatprep.subr.mxu0 0.0
    %1495 = vmatpush1.msra.mxu0 0.0
    %1496 = vmatprep.subr.mxu0 0.0
    %1497 = vmatpush1.msra.mxu0 0.0
    %1498 = vmatprep.subr.mxu0 0.0
    %1499 = vmatpush1.msra.mxu0 0.0
    %1500 = vmatprep.subr.mxu0 0.0
    %1501 = vmatpush1.msra.mxu0 0.0
    %1502 = vmatprep.subr.mxu0 0.0
    %1503 = vmatpush1.msra.mxu0 0.0
    %1504 = vmatprep.mubr.f32.mxu0 0.0
    %1505 = vmatmul.mubr.f32.gmra.mrb[0].mxu0 %v1435
    %v1506 = vpop.f32.mrb[0].mxu0
    %v1507 = vadd.f32 %v1426, %v1506
    %v1508 = vpop.f32.mrb[0].mxu0
    %1509 = vmatprep.mubr.f32.mxu0 0.0
    %1510 = vmatmul.mubr.f32.gmra.mrb[0].mxu0 %v1438
    %v1511 = vpop.f32.mrb[0].mxu0
    %v1512 = vadd.f32 %v1431, %v1511
    %v1513 = vpop.f32.mrb[0].mxu0
    %1514 = vdwg.mxu0
    %s1515 = scalar_lea.vmem %s5, 64
    %v1516 = vld [vmem:[%s1515] sm:$0xff]
    %v1517 = vld [vmem:[%s1515 + $0x8] sm:$0xff]
    %v1518 = vld [vmem:[%s1515 + $0x10] sm:$0xff]
    %v1519 = vld [vmem:[%s1515 + $0x18] sm:$0xff]
    %s1520 = scalar_lea.vmem %s6, 2
    %v1521 = vld [vmem:[%s1520] sm:$0x1]
    %v1523 = vlaneseq
    %v1524 = vshrl.u32 %v1523, 7
    %v1525 = vsub.s32 0, %v1524
    %v1526 = vrot.slane %v1521, %v1525
    %1528 = vmatprep.subr.mxu0 0.0
    %1529 = vmatpush1.msra.mxu0 %v1516
    %1530 = vmatprep.subr.mxu0 0.0
    %1531 = vmatpush1.msra.mxu0 %v1517
    %1532 = vmatprep.subr.mxu0 0.0
    %1533 = vmatpush1.msra.mxu0 %v1518
    %1534 = vmatprep.subr.mxu0 0.0
    %1535 = vmatpush1.msra.mxu0 %v1519
    %1536 = vmatprep.subr.mxu0 0.0
    %1537 = vmatpush1.msra.mxu0 0.0
    %1538 = vmatprep.subr.mxu0 0.0
    %1539 = vmatpush1.msra.mxu0 0.0
    %1540 = vmatprep.subr.mxu0 0.0
    %1541 = vmatpush1.msra.mxu0 0.0
    %1542 = vmatprep.subr.mxu0 0.0
    %1543 = vmatpush1.msra.mxu0 0.0
    %1544 = vmatprep.subr.mxu0 0.0
    %1545 = vmatpush1.msra.mxu0 0.0
    %1546 = vmatprep.subr.mxu0 0.0
    %1547 = vmatpush1.msra.mxu0 0.0
    %1548 = vmatprep.subr.mxu0 0.0
    %1549 = vmatpush1.msra.mxu0 0.0
    %1550 = vmatprep.subr.mxu0 0.0
    %1551 = vmatpush1.msra.mxu0 0.0
    %1552 = vmatprep.subr.mxu0 0.0
    %1553 = vmatpush1.msra.mxu0 0.0
    %1554 = vmatprep.subr.mxu0 0.0
    %1555 = vmatpush1.msra.mxu0 0.0
    %1556 = vmatprep.subr.mxu0 0.0
    %1557 = vmatpush1.msra.mxu0 0.0
    %1558 = vmatprep.subr.mxu0 0.0
    %1559 = vmatpush1.msra.mxu0 0.0
    %1560 = vmatprep.subr.mxu0 0.0
    %1561 = vmatpush1.msra.mxu0 0.0
    %1562 = vmatprep.subr.mxu0 0.0
    %1563 = vmatpush1.msra.mxu0 0.0
    %1564 = vmatprep.subr.mxu0 0.0
    %1565 = vmatpush1.msra.mxu0 0.0
    %1566 = vmatprep.subr.mxu0 0.0
    %1567 = vmatpush1.msra.mxu0 0.0
    %1568 = vmatprep.subr.mxu0 0.0
    %1569 = vmatpush1.msra.mxu0 0.0
    %1570 = vmatprep.subr.mxu0 0.0
    %1571 = vmatpush1.msra.mxu0 0.0
    %1572 = vmatprep.subr.mxu0 0.0
    %1573 = vmatpush1.msra.mxu0 0.0
    %1574 = vmatprep.subr.mxu0 0.0
    %1575 = vmatpush1.msra.mxu0 0.0
    %1576 = vmatprep.subr.mxu0 0.0
    %1577 = vmatpush1.msra.mxu0 0.0
    %1578 = vmatprep.subr.mxu0 0.0
    %1579 = vmatpush1.msra.mxu0 0.0
    %1580 = vmatprep.subr.mxu0 0.0
    %1581 = vmatpush1.msra.mxu0 0.0
    %1582 = vmatprep.subr.mxu0 0.0
    %1583 = vmatpush1.msra.mxu0 0.0
    %1584 = vmatprep.subr.mxu0 0.0
    %1585 = vmatpush1.msra.mxu0 0.0
    %1586 = vmatprep.subr.mxu0 0.0
    %1587 = vmatpush1.msra.mxu0 0.0
    %1588 = vmatprep.subr.mxu0 0.0
    %1589 = vmatpush1.msra.mxu0 0.0
    %1590 = vmatprep.subr.mxu0 0.0
    %1591 = vmatpush1.msra.mxu0 0.0
    %1592 = vmatprep.mubr.f32.mxu0 0.0
    %1593 = vmatmul.mubr.f32.gmra.mrb[0].mxu0 %v181
    %v1594 = vpop.f32.mrb[0].mxu0
    %v1595 = vadd.f32 %v1526, %v1594
    %v1596 = vpop.f32.mrb[0].mxu0
    %1597 = vmatprep.mubr.f32.mxu0 0.0
    %1598 = vmatmul.mubr.f32.gmra.mrb[0].mxu0 %v184
    %v1599 = vpop.f32.mrb[0].mxu0
    %v1600 = vadd.f32 %v1526, %v1599
    %v1601 = vpop.f32.mrb[0].mxu0
    %1602 = vdwg.mxu0
    %s1603 = scalar_lea.vmem %s7, 64
    %v1604 = vld [vmem:[%s1603] sm:$0xff]
    %v1605 = vld [vmem:[%s1603 + $0x8] sm:$0xff]
    %v1606 = vld [vmem:[%s1603 + $0x10] sm:$0xff]
    %v1607 = vld [vmem:[%s1603 + $0x18] sm:$0xff]
    %s1608 = scalar_lea.vmem %s8, 2
    %v1609 = vld [vmem:[%s1608] sm:$0x1]
    %v1611 = vlaneseq
    %v1612 = vshrl.u32 %v1611, 7
    %v1613 = vsub.s32 0, %v1612
    %v1614 = vrot.slane %v1609, %v1613
    %1616 = vmatprep.subr.mxu0 0.0
    %1617 = vmatpush1.msra.mxu0 %v1604
    %1618 = vmatprep.subr.mxu0 0.0
    %1619 = vmatpush1.msra.mxu0 %v1605
    %1620 = vmatprep.subr.mxu0 0.0
    %1621 = vmatpush1.msra.mxu0 %v1606
    %1622 = vmatprep.subr.mxu0 0.0
    %1623 = vmatpush1.msra.mxu0 %v1607
    %1624 = vmatprep.subr.mxu0 0.0
    %1625 = vmatpush1.msra.mxu0 0.0
    %1626 = vmatprep.subr.mxu0 0.0
    %1627 = vmatpush1.msra.mxu0 0.0
    %1628 = vmatprep.subr.mxu0 0.0
    %1629 = vmatpush1.msra.mxu0 0.0
    %1630 = vmatprep.subr.mxu0 0.0
    %1631 = vmatpush1.msra.mxu0 0.0
    %1632 = vmatprep.subr.mxu0 0.0
    %1633 = vmatpush1.msra.mxu0 0.0
    %1634 = vmatprep.subr.mxu0 0.0
    %1635 = vmatpush1.msra.mxu0 0.0
    %1636 = vmatprep.subr.mxu0 0.0
    %1637 = vmatpush1.msra.mxu0 0.0
    %1638 = vmatprep.subr.mxu0 0.0
    %1639 = vmatpush1.msra.mxu0 0.0
    %1640 = vmatprep.subr.mxu0 0.0
    %1641 = vmatpush1.msra.mxu0 0.0
    %1642 = vmatprep.subr.mxu0 0.0
    %1643 = vmatpush1.msra.mxu0 0.0
    %1644 = vmatprep.subr.mxu0 0.0
    %1645 = vmatpush1.msra.mxu0 0.0
    %1646 = vmatprep.subr.mxu0 0.0
    %1647 = vmatpush1.msra.mxu0 0.0
    %1648 = vmatprep.subr.mxu0 0.0
    %1649 = vmatpush1.msra.mxu0 0.0
    %1650 = vmatprep.subr.mxu0 0.0
    %1651 = vmatpush1.msra.mxu0 0.0
    %1652 = vmatprep.subr.mxu0 0.0
    %1653 = vmatpush1.msra.mxu0 0.0
    %1654 = vmatprep.subr.mxu0 0.0
    %1655 = vmatpush1.msra.mxu0 0.0
    %1656 = vmatprep.subr.mxu0 0.0
    %1657 = vmatpush1.msra.mxu0 0.0
    %1658 = vmatprep.subr.mxu0 0.0
    %1659 = vmatpush1.msra.mxu0 0.0
    %1660 = vmatprep.subr.mxu0 0.0
    %1661 = vmatpush1.msra.mxu0 0.0
    %1662 = vmatprep.subr.mxu0 0.0
    %1663 = vmatpush1.msra.mxu0 0.0
    %1664 = vmatprep.subr.mxu0 0.0
    %1665 = vmatpush1.msra.mxu0 0.0
    %1666 = vmatprep.subr.mxu0 0.0
    %1667 = vmatpush1.msra.mxu0 0.0
    %1668 = vmatprep.subr.mxu0 0.0
    %1669 = vmatpush1.msra.mxu0 0.0
    %1670 = vmatprep.subr.mxu0 0.0
    %1671 = vmatpush1.msra.mxu0 0.0
    %1672 = vmatprep.subr.mxu0 0.0
    %1673 = vmatpush1.msra.mxu0 0.0
    %1674 = vmatprep.subr.mxu0 0.0
    %1675 = vmatpush1.msra.mxu0 0.0
    %1676 = vmatprep.subr.mxu0 0.0
    %1677 = vmatpush1.msra.mxu0 0.0
    %1678 = vmatprep.subr.mxu0 0.0
    %1679 = vmatpush1.msra.mxu0 0.0
    %1680 = vmatprep.mubr.f32.mxu0 0.0
    %1681 = vmatmul.mubr.f32.gmra.mrb[0].mxu0 %v181
    %v1682 = vpop.f32.mrb[0].mxu0
    %v1683 = vadd.f32 %v1614, %v1682
    %v1684 = vpop.f32.mrb[0].mxu0
    %1685 = vmatprep.mubr.f32.mxu0 0.0
    %1686 = vmatmul.mubr.f32.gmra.mrb[0].mxu0 %v184
    %v1687 = vpop.f32.mrb[0].mxu0
    %v1688 = vadd.f32 %v1614, %v1687
    %v1689 = vpop.f32.mrb[0].mxu0
    %1690 = vdwg.mxu0
    %s1691 = scalar_lea.vmem %s9, 64
    %v1692 = vld [vmem:[%s1691] sm:$0xff]
    %v1693 = vld [vmem:[%s1691 + $0x8] sm:$0xff]
    %v1694 = vld [vmem:[%s1691 + $0x10] sm:$0xff]
    %v1695 = vld [vmem:[%s1691 + $0x18] sm:$0xff]
    %s1696 = scalar_lea.vmem %s10, 2
    %v1697 = vld [vmem:[%s1696] sm:$0x1]
    %v1699 = vlaneseq
    %v1700 = vshrl.u32 %v1699, 7
    %v1701 = vsub.s32 0, %v1700
    %v1702 = vrot.slane %v1697, %v1701
    %1704 = vmatprep.subr.mxu0 0.0
    %1705 = vmatpush1.msra.mxu0 %v1692
    %1706 = vmatprep.subr.mxu0 0.0
    %1707 = vmatpush1.msra.mxu0 %v1693
    %1708 = vmatprep.subr.mxu0 0.0
    %1709 = vmatpush1.msra.mxu0 %v1694
    %1710 = vmatprep.subr.mxu0 0.0
    %1711 = vmatpush1.msra.mxu0 %v1695
    %1712 = vmatprep.subr.mxu0 0.0
    %1713 = vmatpush1.msra.mxu0 0.0
    %1714 = vmatprep.subr.mxu0 0.0
    %1715 = vmatpush1.msra.mxu0 0.0
    %1716 = vmatprep.subr.mxu0 0.0
    %1717 = vmatpush1.msra.mxu0 0.0
    %1718 = vmatprep.subr.mxu0 0.0
    %1719 = vmatpush1.msra.mxu0 0.0
    %1720 = vmatprep.subr.mxu0 0.0
    %1721 = vmatpush1.msra.mxu0 0.0
    %1722 = vmatprep.subr.mxu0 0.0
    %1723 = vmatpush1.msra.mxu0 0.0
    %1724 = vmatprep.subr.mxu0 0.0
    %1725 = vmatpush1.msra.mxu0 0.0
    %1726 = vmatprep.subr.mxu0 0.0
    %1727 = vmatpush1.msra.mxu0 0.0
    %1728 = vmatprep.subr.mxu0 0.0
    %1729 = vmatpush1.msra.mxu0 0.0
    %1730 = vmatprep.subr.mxu0 0.0
    %1731 = vmatpush1.msra.mxu0 0.0
    %1732 = vmatprep.subr.mxu0 0.0
    %1733 = vmatpush1.msra.mxu0 0.0
    %1734 = vmatprep.subr.mxu0 0.0
    %1735 = vmatpush1.msra.mxu0 0.0
    %1736 = vmatprep.subr.mxu0 0.0
    %1737 = vmatpush1.msra.mxu0 0.0
    %1738 = vmatprep.subr.mxu0 0.0
    %1739 = vmatpush1.msra.mxu0 0.0
    %1740 = vmatprep.subr.mxu0 0.0
    %1741 = vmatpush1.msra.mxu0 0.0
    %1742 = vmatprep.subr.mxu0 0.0
    %1743 = vmatpush1.msra.mxu0 0.0
    %1744 = vmatprep.subr.mxu0 0.0
    %1745 = vmatpush1.msra.mxu0 0.0
    %1746 = vmatprep.subr.mxu0 0.0
    %1747 = vmatpush1.msra.mxu0 0.0
    %1748 = vmatprep.subr.mxu0 0.0
    %1749 = vmatpush1.msra.mxu0 0.0
    %1750 = vmatprep.subr.mxu0 0.0
    %1751 = vmatpush1.msra.mxu0 0.0
    %1752 = vmatprep.subr.mxu0 0.0
    %1753 = vmatpush1.msra.mxu0 0.0
    %1754 = vmatprep.subr.mxu0 0.0
    %1755 = vmatpush1.msra.mxu0 0.0
    %1756 = vmatprep.subr.mxu0 0.0
    %1757 = vmatpush1.msra.mxu0 0.0
    %1758 = vmatprep.subr.mxu0 0.0
    %1759 = vmatpush1.msra.mxu0 0.0
    %1760 = vmatprep.subr.mxu0 0.0
    %1761 = vmatpush1.msra.mxu0 0.0
    %1762 = vmatprep.subr.mxu0 0.0
    %1763 = vmatpush1.msra.mxu0 0.0
    %1764 = vmatprep.subr.mxu0 0.0
    %1765 = vmatpush1.msra.mxu0 0.0
    %1766 = vmatprep.subr.mxu0 0.0
    %1767 = vmatpush1.msra.mxu0 0.0
    %1768 = vmatprep.mubr.f32.mxu0 0.0
    %1769 = vmatmul.mubr.f32.gmra.mrb[0].mxu0 %v181
    %v1770 = vpop.f32.mrb[0].mxu0
    %v1771 = vadd.f32 %v1702, %v1770
    %v1772 = vpop.f32.mrb[0].mxu0
    %1773 = vmatprep.mubr.f32.mxu0 0.0
    %1774 = vmatmul.mubr.f32.gmra.mrb[0].mxu0 %v184
    %v1775 = vpop.f32.mrb[0].mxu0
    %v1776 = vadd.f32 %v1702, %v1775
    %v1777 = vpop.f32.mrb[0].mxu0
    %1778 = vdwg.mxu0
    %v1780 = vsel %vm445, %v1595, 0
    %v1783 = vsel %vm445, %v1683, 0
    %1785 = vmatprep.subr.mxu0 0.0
    %1786 = vmatpush1.xpose.msra.mxu0 %v1783
    %1787 = vmatprep.subr.mxu0 0.0
    %1788 = vmatpush1.xpose.msra.mxu0 0.0
    %1789 = vmatprep.subr.mxu0 0.0
    %1790 = vmatpush1.xpose.msra.mxu0 0.0
    %1791 = vmatprep.subr.mxu0 0.0
    %1792 = vmatpush1.xpose.msra.mxu0 0.0
    %1793 = vmatprep.subr.mxu0 0.0
    %1794 = vmatpush1.xpose.msra.mxu0 0.0
    %1795 = vmatprep.subr.mxu0 0.0
    %1796 = vmatpush1.xpose.msra.mxu0 0.0
    %1797 = vmatprep.subr.mxu0 0.0
    %1798 = vmatpush1.xpose.msra.mxu0 0.0
    %1799 = vmatprep.subr.mxu0 0.0
    %1800 = vmatpush1.xpose.msra.mxu0 0.0
    %1801 = vmatprep.subr.mxu0 0.0
    %1802 = vmatpush1.xpose.msra.mxu0 0.0
    %1803 = vmatprep.subr.mxu0 0.0
    %1804 = vmatpush1.xpose.msra.mxu0 0.0
    %1805 = vmatprep.subr.mxu0 0.0
    %1806 = vmatpush1.xpose.msra.mxu0 0.0
    %1807 = vmatprep.subr.mxu0 0.0
    %1808 = vmatpush1.xpose.msra.mxu0 0.0
    %1809 = vmatprep.subr.mxu0 0.0
    %1810 = vmatpush1.xpose.msra.mxu0 0.0
    %1811 = vmatprep.subr.mxu0 0.0
    %1812 = vmatpush1.xpose.msra.mxu0 0.0
    %1813 = vmatprep.subr.mxu0 0.0
    %1814 = vmatpush1.xpose.msra.mxu0 0.0
    %1815 = vmatprep.subr.mxu0 0.0
    %1816 = vmatpush1.xpose.msra.mxu0 0.0
    %1817 = vmatprep.subr.mxu0 0.0
    %1818 = vmatpush1.xpose.msra.mxu0 0.0
    %1819 = vmatprep.subr.mxu0 0.0
    %1820 = vmatpush1.xpose.msra.mxu0 0.0
    %1821 = vmatprep.subr.mxu0 0.0
    %1822 = vmatpush1.xpose.msra.mxu0 0.0
    %1823 = vmatprep.subr.mxu0 0.0
    %1824 = vmatpush1.xpose.msra.mxu0 0.0
    %1825 = vmatprep.subr.mxu0 0.0
    %1826 = vmatpush1.xpose.msra.mxu0 0.0
    %1827 = vmatprep.subr.mxu0 0.0
    %1828 = vmatpush1.xpose.msra.mxu0 0.0
    %1829 = vmatprep.subr.mxu0 0.0
    %1830 = vmatpush1.xpose.msra.mxu0 0.0
    %1831 = vmatprep.subr.mxu0 0.0
    %1832 = vmatpush1.xpose.msra.mxu0 0.0
    %1833 = vmatprep.subr.mxu0 0.0
    %1834 = vmatpush1.xpose.msra.mxu0 0.0
    %1835 = vmatprep.subr.mxu0 0.0
    %1836 = vmatpush1.xpose.msra.mxu0 0.0
    %1837 = vmatprep.subr.mxu0 0.0
    %1838 = vmatpush1.xpose.msra.mxu0 0.0
    %1839 = vmatprep.subr.mxu0 0.0
    %1840 = vmatpush1.xpose.msra.mxu0 0.0
    %1841 = vmatprep.subr.mxu0 0.0
    %1842 = vmatpush1.xpose.msra.mxu0 0.0
    %1843 = vmatprep.subr.mxu0 0.0
    %1844 = vmatpush1.xpose.msra.mxu0 0.0
    %1845 = vmatprep.subr.mxu0 0.0
    %1846 = vmatpush1.xpose.msra.mxu0 0.0
    %1847 = vmatprep.subr.mxu0 0.0
    %1848 = vmatpush1.xpose.msra.mxu0 0.0
    %1849 = vmatprep.mubr.f32.mxu0 0.0
    %1850 = vmatmul.mubr.f32.gmra.mrb[0].mxu0 %v1780
    %v1851 = vpop.f32.mrb[0].mxu0
    %v1852 = vadd.f32 %v438, %v1851
    %v1853 = vpop.f32.mrb[0].mxu0
    %1854 = vdwg.mxu0
    %v1856 = vsel %vm445, %v1600, 0
    %v1859 = vsel %vm445, %v1688, 0
    %1861 = vmatprep.subr.mxu0 0.0
    %1862 = vmatpush1.xpose.msra.mxu0 %v1859
    %1863 = vmatprep.subr.mxu0 0.0
    %1864 = vmatpush1.xpose.msra.mxu0 0.0
    %1865 = vmatprep.subr.mxu0 0.0
    %1866 = vmatpush1.xpose.msra.mxu0 0.0
    %1867 = vmatprep.subr.mxu0 0.0
    %1868 = vmatpush1.xpose.msra.mxu0 0.0
    %1869 = vmatprep.subr.mxu0 0.0
    %1870 = vmatpush1.xpose.msra.mxu0 0.0
    %1871 = vmatprep.subr.mxu0 0.0
    %1872 = vmatpush1.xpose.msra.mxu0 0.0
    %1873 = vmatprep.subr.mxu0 0.0
    %1874 = vmatpush1.xpose.msra.mxu0 0.0
    %1875 = vmatprep.subr.mxu0 0.0
    %1876 = vmatpush1.xpose.msra.mxu0 0.0
    %1877 = vmatprep.subr.mxu0 0.0
    %1878 = vmatpush1.xpose.msra.mxu0 0.0
    %1879 = vmatprep.subr.mxu0 0.0
    %1880 = vmatpush1.xpose.msra.mxu0 0.0
    %1881 = vmatprep.subr.mxu0 0.0
    %1882 = vmatpush1.xpose.msra.mxu0 0.0
    %1883 = vmatprep.subr.mxu0 0.0
    %1884 = vmatpush1.xpose.msra.mxu0 0.0
    %1885 = vmatprep.subr.mxu0 0.0
    %1886 = vmatpush1.xpose.msra.mxu0 0.0
    %1887 = vmatprep.subr.mxu0 0.0
    %1888 = vmatpush1.xpose.msra.mxu0 0.0
    %1889 = vmatprep.subr.mxu0 0.0
    %1890 = vmatpush1.xpose.msra.mxu0 0.0
    %1891 = vmatprep.subr.mxu0 0.0
    %1892 = vmatpush1.xpose.msra.mxu0 0.0
    %1893 = vmatprep.subr.mxu0 0.0
    %1894 = vmatpush1.xpose.msra.mxu0 0.0
    %1895 = vmatprep.subr.mxu0 0.0
    %1896 = vmatpush1.xpose.msra.mxu0 0.0
    %1897 = vmatprep.subr.mxu0 0.0
    %1898 = vmatpush1.xpose.msra.mxu0 0.0
    %1899 = vmatprep.subr.mxu0 0.0
    %1900 = vmatpush1.xpose.msra.mxu0 0.0
    %1901 = vmatprep.subr.mxu0 0.0
    %1902 = vmatpush1.xpose.msra.mxu0 0.0
    %1903 = vmatprep.subr.mxu0 0.0
    %1904 = vmatpush1.xpose.msra.mxu0 0.0
    %1905 = vmatprep.subr.mxu0 0.0
    %1906 = vmatpush1.xpose.msra.mxu0 0.0
    %1907 = vmatprep.subr.mxu0 0.0
    %1908 = vmatpush1.xpose.msra.mxu0 0.0
    %1909 = vmatprep.subr.mxu0 0.0
    %1910 = vmatpush1.xpose.msra.mxu0 0.0
    %1911 = vmatprep.subr.mxu0 0.0
    %1912 = vmatpush1.xpose.msra.mxu0 0.0
    %1913 = vmatprep.subr.mxu0 0.0
    %1914 = vmatpush1.xpose.msra.mxu0 0.0
    %1915 = vmatprep.subr.mxu0 0.0
    %1916 = vmatpush1.xpose.msra.mxu0 0.0
    %1917 = vmatprep.subr.mxu0 0.0
    %1918 = vmatpush1.xpose.msra.mxu0 0.0
    %1919 = vmatprep.subr.mxu0 0.0
    %1920 = vmatpush1.xpose.msra.mxu0 0.0
    %1921 = vmatprep.subr.mxu0 0.0
    %1922 = vmatpush1.xpose.msra.mxu0 0.0
    %1923 = vmatprep.subr.mxu0 0.0
    %1924 = vmatpush1.xpose.msra.mxu0 0.0
    %1925 = vmatprep.mubr.f32.mxu0 0.0
    %1926 = vmatmul.mubr.f32.gmra.mrb[0].mxu0 %v1856
    %v1927 = vpop.f32.mrb[0].mxu0
    %v1928 = vadd.f32 %v442, %v1927
    %v1929 = vpop.f32.mrb[0].mxu0
    %1930 = vdwg.mxu0
    %v1931 = vsel %vm445, %v1852, -inf
    %1932 = vmax.xlane.f32.xlu0 %v1931
    %v1933 = vpop.xlane.xlu0 %1932
    %v1934 = vsel %vm445, %v1928, -inf
    %1935 = vmax.xlane.f32.xlu0 %v1934
    %v1936 = vpop.xlane.xlu0 %1935
    %v1937 = vsub.f32 %v1852, %v1933
    %v1938 = vsub.f32 %v1928, %v1936
    %v1939 = vmul.f32 %v1937, 1.442695
    %v1940 = vpow.pop %v1939
    %v1941 = vmul.f32 %v1938, 1.442695
    %v1942 = vpow.pop %v1941
    %v1943 = vsel %vm445, %v1940, 0.0
    %1944 = vadd.xlane.f32.xlu0 %v1943
    %v1945 = vpop.xlane.xlu0 %1944
    %v1946 = vsel %vm445, %v1942, 0.0
    %1947 = vadd.xlane.f32.xlu0 %v1946
    %v1948 = vpop.xlane.xlu0 %1947
    %v1949 = vrcp.pop %v1945
    %v1950 = vrcp.pop %v1948
    %v1951 = vmul.f32 %v1940, %v1949
    %v1952 = vmul.f32 %v1942, %v1950
    %v1954 = vsel %vm445, %v1951, 0
    %1956 = vmatprep.subr.mxu0 0.0
    %1957 = vmatpush1.msra.mxu0 %v1771
    %1958 = vmatprep.subr.mxu0 0.0
    %1959 = vmatpush1.msra.mxu0 0.0
    %1960 = vmatprep.subr.mxu0 0.0
    %1961 = vmatpush1.msra.mxu0 0.0
    %1962 = vmatprep.subr.mxu0 0.0
    %1963 = vmatpush1.msra.mxu0 0.0
    %1964 = vmatprep.subr.mxu0 0.0
    %1965 = vmatpush1.msra.mxu0 0.0
    %1966 = vmatprep.subr.mxu0 0.0
    %1967 = vmatpush1.msra.mxu0 0.0
    %1968 = vmatprep.subr.mxu0 0.0
    %1969 = vmatpush1.msra.mxu0 0.0
    %1970 = vmatprep.subr.mxu0 0.0
    %1971 = vmatpush1.msra.mxu0 0.0
    %1972 = vmatprep.subr.mxu0 0.0
    %1973 = vmatpush1.msra.mxu0 0.0
    %1974 = vmatprep.subr.mxu0 0.0
    %1975 = vmatpush1.msra.mxu0 0.0
    %1976 = vmatprep.subr.mxu0 0.0
    %1977 = vmatpush1.msra.mxu0 0.0
    %1978 = vmatprep.subr.mxu0 0.0
    %1979 = vmatpush1.msra.mxu0 0.0
    %1980 = vmatprep.subr.mxu0 0.0
    %1981 = vmatpush1.msra.mxu0 0.0
    %1982 = vmatprep.subr.mxu0 0.0
    %1983 = vmatpush1.msra.mxu0 0.0
    %1984 = vmatprep.subr.mxu0 0.0
    %1985 = vmatpush1.msra.mxu0 0.0
    %1986 = vmatprep.subr.mxu0 0.0
    %1987 = vmatpush1.msra.mxu0 0.0
    %1988 = vmatprep.subr.mxu0 0.0
    %1989 = vmatpush1.msra.mxu0 0.0
    %1990 = vmatprep.subr.mxu0 0.0
    %1991 = vmatpush1.msra.mxu0 0.0
    %1992 = vmatprep.subr.mxu0 0.0
    %1993 = vmatpush1.msra.mxu0 0.0
    %1994 = vmatprep.subr.mxu0 0.0
    %1995 = vmatpush1.msra.mxu0 0.0
    %1996 = vmatprep.subr.mxu0 0.0
    %1997 = vmatpush1.msra.mxu0 0.0
    %1998 = vmatprep.subr.mxu0 0.0
    %1999 = vmatpush1.msra.mxu0 0.0
    %2000 = vmatprep.subr.mxu0 0.0
    %2001 = vmatpush1.msra.mxu0 0.0
    %2002 = vmatprep.subr.mxu0 0.0
    %2003 = vmatpush1.msra.mxu0 0.0
    %2004 = vmatprep.subr.mxu0 0.0
    %2005 = vmatpush1.msra.mxu0 0.0
    %2006 = vmatprep.subr.mxu0 0.0
    %2007 = vmatpush1.msra.mxu0 0.0
    %2008 = vmatprep.subr.mxu0 0.0
    %2009 = vmatpush1.msra.mxu0 0.0
    %2010 = vmatprep.subr.mxu0 0.0
    %2011 = vmatpush1.msra.mxu0 0.0
    %2012 = vmatprep.subr.mxu0 0.0
    %2013 = vmatpush1.msra.mxu0 0.0
    %2014 = vmatprep.subr.mxu0 0.0
    %2015 = vmatpush1.msra.mxu0 0.0
    %2016 = vmatprep.subr.mxu0 0.0
    %2017 = vmatpush1.msra.mxu0 0.0
    %2018 = vmatprep.subr.mxu0 0.0
    %2019 = vmatpush1.msra.mxu0 0.0
    %2020 = vmatprep.mubr.f32.mxu0 0.0
    %2021 = vmatmul.mubr.f32.gmra.mrb[0].mxu0 %v1954
    %v2022 = vpop.f32.mrb[0].mxu0
    %v2023 = vadd.f32 0.0, %v2022
    %v2024 = vpop.f32.mrb[0].mxu0
    %2025 = vdwg.mxu0
    %v2027 = vsel %vm445, %v1952, 0
    %2029 = vmatprep.subr.mxu0 0.0
    %2030 = vmatpush1.msra.mxu0 %v1776
    %2031 = vmatprep.subr.mxu0 0.0
    %2032 = vmatpush1.msra.mxu0 0.0
    %2033 = vmatprep.subr.mxu0 0.0
    %2034 = vmatpush1.msra.mxu0 0.0
    %2035 = vmatprep.subr.mxu0 0.0
    %2036 = vmatpush1.msra.mxu0 0.0
    %2037 = vmatprep.subr.mxu0 0.0
    %2038 = vmatpush1.msra.mxu0 0.0
    %2039 = vmatprep.subr.mxu0 0.0
    %2040 = vmatpush1.msra.mxu0 0.0
    %2041 = vmatprep.subr.mxu0 0.0
    %2042 = vmatpush1.msra.mxu0 0.0
    %2043 = vmatprep.subr.mxu0 0.0
    %2044 = vmatpush1.msra.mxu0 0.0
    %2045 = vmatprep.subr.mxu0 0.0
    %2046 = vmatpush1.msra.mxu0 0.0
    %2047 = vmatprep.subr.mxu0 0.0
    %2048 = vmatpush1.msra.mxu0 0.0
    %2049 = vmatprep.subr.mxu0 0.0
    %2050 = vmatpush1.msra.mxu0 0.0
    %2051 = vmatprep.subr.mxu0 0.0
    %2052 = vmatpush1.msra.mxu0 0.0
    %2053 = vmatprep.subr.mxu0 0.0
    %2054 = vmatpush1.msra.mxu0 0.0
    %2055 = vmatprep.subr.mxu0 0.0
    %2056 = vmatpush1.msra.mxu0 0.0
    %2057 = vmatprep.subr.mxu0 0.0
    %2058 = vmatpush1.msra.mxu0 0.0
    %2059 = vmatprep.subr.mxu0 0.0
    %2060 = vmatpush1.msra.mxu0 0.0
    %2061 = vmatprep.subr.mxu0 0.0
    %2062 = vmatpush1.msra.mxu0 0.0
    %2063 = vmatprep.subr.mxu0 0.0
    %2064 = vmatpush1.msra.mxu0 0.0
    %2065 = vmatprep.subr.mxu0 0.0
    %2066 = vmatpush1.msra.mxu0 0.0
    %2067 = vmatprep.subr.mxu0 0.0
    %2068 = vmatpush1.msra.mxu0 0.0
    %2069 = vmatprep.subr.mxu0 0.0
    %2070 = vmatpush1.msra.mxu0 0.0
    %2071 = vmatprep.subr.mxu0 0.0
    %2072 = vmatpush1.msra.mxu0 0.0
    %2073 = vmatprep.subr.mxu0 0.0
    %2074 = vmatpush1.msra.mxu0 0.0
    %2075 = vmatprep.subr.mxu0 0.0
    %2076 = vmatpush1.msra.mxu0 0.0
    %2077 = vmatprep.subr.mxu0 0.0
    %2078 = vmatpush1.msra.mxu0 0.0
    %2079 = vmatprep.subr.mxu0 0.0
    %2080 = vmatpush1.msra.mxu0 0.0
    %2081 = vmatprep.subr.mxu0 0.0
    %2082 = vmatpush1.msra.mxu0 0.0
    %2083 = vmatprep.subr.mxu0 0.0
    %2084 = vmatpush1.msra.mxu0 0.0
    %2085 = vmatprep.subr.mxu0 0.0
    %2086 = vmatpush1.msra.mxu0 0.0
    %2087 = vmatprep.subr.mxu0 0.0
    %2088 = vmatpush1.msra.mxu0 0.0
    %2089 = vmatprep.subr.mxu0 0.0
    %2090 = vmatpush1.msra.mxu0 0.0
    %2091 = vmatprep.subr.mxu0 0.0
    %2092 = vmatpush1.msra.mxu0 0.0
    %2093 = vmatprep.mubr.f32.mxu0 0.0
    %2094 = vmatmul.mubr.f32.gmra.mrb[0].mxu0 %v2027
    %v2095 = vpop.f32.mrb[0].mxu0
    %v2096 = vadd.f32 0.0, %v2095
    %v2097 = vpop.f32.mrb[0].mxu0
    %2098 = vdwg.mxu0
    %s2099 = scalar_lea.vmem %s11, 16
    %v2100 = vld [vmem:[%s2099] sm:$0xff]
    %v2102 = vsel %vm445, %v2023, 0
    %v2105 = vsel %vm445, %v2096, 0
    %2107 = vmatprep.subr.mxu0 0.0
    %2108 = vmatpush1.msra.mxu0 %v2100
    %2109 = vmatprep.subr.mxu0 0.0
    %2110 = vmatpush1.msra.mxu0 0.0
    %2111 = vmatprep.subr.mxu0 0.0
    %2112 = vmatpush1.msra.mxu0 0.0
    %2113 = vmatprep.subr.mxu0 0.0
    %2114 = vmatpush1.msra.mxu0 0.0
    %2115 = vmatprep.subr.mxu0 0.0
    %2116 = vmatpush1.msra.mxu0 0.0
    %2117 = vmatprep.subr.mxu0 0.0
    %2118 = vmatpush1.msra.mxu0 0.0
    %2119 = vmatprep.subr.mxu0 0.0
    %2120 = vmatpush1.msra.mxu0 0.0
    %2121 = vmatprep.subr.mxu0 0.0
    %2122 = vmatpush1.msra.mxu0 0.0
    %2123 = vmatprep.subr.mxu0 0.0
    %2124 = vmatpush1.msra.mxu0 0.0
    %2125 = vmatprep.subr.mxu0 0.0
    %2126 = vmatpush1.msra.mxu0 0.0
    %2127 = vmatprep.subr.mxu0 0.0
    %2128 = vmatpush1.msra.mxu0 0.0
    %2129 = vmatprep.subr.mxu0 0.0
    %2130 = vmatpush1.msra.mxu0 0.0
    %2131 = vmatprep.subr.mxu0 0.0
    %2132 = vmatpush1.msra.mxu0 0.0
    %2133 = vmatprep.subr.mxu0 0.0
    %2134 = vmatpush1.msra.mxu0 0.0
    %2135 = vmatprep.subr.mxu0 0.0
    %2136 = vmatpush1.msra.mxu0 0.0
    %2137 = vmatprep.subr.mxu0 0.0
    %2138 = vmatpush1.msra.mxu0 0.0
    %2139 = vmatprep.subr.mxu0 0.0
    %2140 = vmatpush1.msra.mxu0 0.0
    %2141 = vmatprep.subr.mxu0 0.0
    %2142 = vmatpush1.msra.mxu0 0.0
    %2143 = vmatprep.subr.mxu0 0.0
    %2144 = vmatpush1.msra.mxu0 0.0
    %2145 = vmatprep.subr.mxu0 0.0
    %2146 = vmatpush1.msra.mxu0 0.0
    %2147 = vmatprep.subr.mxu0 0.0
    %2148 = vmatpush1.msra.mxu0 0.0
    %2149 = vmatprep.subr.mxu0 0.0
    %2150 = vmatpush1.msra.mxu0 0.0
    %2151 = vmatprep.subr.mxu0 0.0
    %2152 = vmatpush1.msra.mxu0 0.0
    %2153 = vmatprep.subr.mxu0 0.0
    %2154 = vmatpush1.msra.mxu0 0.0
    %2155 = vmatprep.subr.mxu0 0.0
    %2156 = vmatpush1.msra.mxu0 0.0
    %2157 = vmatprep.subr.mxu0 0.0
    %2158 = vmatpush1.msra.mxu0 0.0
    %2159 = vmatprep.subr.mxu0 0.0
    %2160 = vmatpush1.msra.mxu0 0.0
    %2161 = vmatprep.subr.mxu0 0.0
    %2162 = vmatpush1.msra.mxu0 0.0
    %2163 = vmatprep.subr.mxu0 0.0
    %2164 = vmatpush1.msra.mxu0 0.0
    %2165 = vmatprep.subr.mxu0 0.0
    %2166 = vmatpush1.msra.mxu0 0.0
    %2167 = vmatprep.subr.mxu0 0.0
    %2168 = vmatpush1.msra.mxu0 0.0
    %2169 = vmatprep.subr.mxu0 0.0
    %2170 = vmatpush1.msra.mxu0 0.0
    %2171 = vmatprep.mubr.f32.mxu0 0.0
    %2172 = vmatmul.mubr.f32.gmra.mrb[0].mxu0 %v2102
    %v2173 = vpop.f32.mrb[0].mxu0
    %v2174 = vadd.f32 0.0, %v2173
    %v2175 = vpop.f32.mrb[0].mxu0
    %2176 = vmatprep.mubr.f32.mxu0 0.0
    %2177 = vmatmul.mubr.f32.gmra.mrb[0].mxu0 %v2105
    %v2178 = vpop.f32.mrb[0].mxu0
    %v2179 = vadd.f32 0.0, %v2178
    %v2180 = vpop.f32.mrb[0].mxu0
    %2181 = vdwg.mxu0
    %v2182 = vadd.f32 %v1507, %v2174
    %v2183 = vadd.f32 %v1512, %v2179
    %s2184 = scalar_lea.vmem %s5, 96
    %v2185 = vld [vmem:[%s2184] sm:$0xff]
    %v2186 = vld [vmem:[%s2184 + $0x8] sm:$0xff]
    %v2187 = vld [vmem:[%s2184 + $0x10] sm:$0xff]
    %v2188 = vld [vmem:[%s2184 + $0x18] sm:$0xff]
    %s2189 = scalar_lea.vmem %s6, 3
    %v2190 = vld [vmem:[%s2189] sm:$0x1]
    %v2192 = vlaneseq
    %v2193 = vshrl.u32 %v2192, 7
    %v2194 = vsub.s32 0, %v2193
    %v2195 = vrot.slane %v2190, %v2194
    %2197 = vmatprep.subr.mxu0 0.0
    %2198 = vmatpush1.msra.mxu0 %v2185
    %2199 = vmatprep.subr.mxu0 0.0
    %2200 = vmatpush1.msra.mxu0 %v2186
    %2201 = vmatprep.subr.mxu0 0.0
    %2202 = vmatpush1.msra.mxu0 %v2187
    %2203 = vmatprep.subr.mxu0 0.0
    %2204 = vmatpush1.msra.mxu0 %v2188
    %2205 = vmatprep.subr.mxu0 0.0
    %2206 = vmatpush1.msra.mxu0 0.0
    %2207 = vmatprep.subr.mxu0 0.0
    %2208 = vmatpush1.msra.mxu0 0.0
    %2209 = vmatprep.subr.mxu0 0.0
    %2210 = vmatpush1.msra.mxu0 0.0
    %2211 = vmatprep.subr.mxu0 0.0
    %2212 = vmatpush1.msra.mxu0 0.0
    %2213 = vmatprep.subr.mxu0 0.0
    %2214 = vmatpush1.msra.mxu0 0.0
    %2215 = vmatprep.subr.mxu0 0.0
    %2216 = vmatpush1.msra.mxu0 0.0
    %2217 = vmatprep.subr.mxu0 0.0
    %2218 = vmatpush1.msra.mxu0 0.0
    %2219 = vmatprep.subr.mxu0 0.0
    %2220 = vmatpush1.msra.mxu0 0.0
    %2221 = vmatprep.subr.mxu0 0.0
    %2222 = vmatpush1.msra.mxu0 0.0
    %2223 = vmatprep.subr.mxu0 0.0
    %2224 = vmatpush1.msra.mxu0 0.0
    %2225 = vmatprep.subr.mxu0 0.0
    %2226 = vmatpush1.msra.mxu0 0.0
    %2227 = vmatprep.subr.mxu0 0.0
    %2228 = vmatpush1.msra.mxu0 0.0
    %2229 = vmatprep.subr.mxu0 0.0
    %2230 = vmatpush1.msra.mxu0 0.0
    %2231 = vmatprep.subr.mxu0 0.0
    %2232 = vmatpush1.msra.mxu0 0.0
    %2233 = vmatprep.subr.mxu0 0.0
    %2234 = vmatpush1.msra.mxu0 0.0
    %2235 = vmatprep.subr.mxu0 0.0
    %2236 = vmatpush1.msra.mxu0 0.0
    %2237 = vmatprep.subr.mxu0 0.0
    %2238 = vmatpush1.msra.mxu0 0.0
    %2239 = vmatprep.subr.mxu0 0.0
    %2240 = vmatpush1.msra.mxu0 0.0
    %2241 = vmatprep.subr.mxu0 0.0
    %2242 = vmatpush1.msra.mxu0 0.0
    %2243 = vmatprep.subr.mxu0 0.0
    %2244 = vmatpush1.msra.mxu0 0.0
    %2245 = vmatprep.subr.mxu0 0.0
    %2246 = vmatpush1.msra.mxu0 0.0
    %2247 = vmatprep.subr.mxu0 0.0
    %2248 = vmatpush1.msra.mxu0 0.0
    %2249 = vmatprep.subr.mxu0 0.0
    %2250 = vmatpush1.msra.mxu0 0.0
    %2251 = vmatprep.subr.mxu0 0.0
    %2252 = vmatpush1.msra.mxu0 0.0
    %2253 = vmatprep.subr.mxu0 0.0
    %2254 = vmatpush1.msra.mxu0 0.0
    %2255 = vmatprep.subr.mxu0 0.0
    %2256 = vmatpush1.msra.mxu0 0.0
    %2257 = vmatprep.subr.mxu0 0.0
    %2258 = vmatpush1.msra.mxu0 0.0
    %2259 = vmatprep.subr.mxu0 0.0
    %2260 = vmatpush1.msra.mxu0 0.0
    %2261 = vmatprep.mubr.f32.mxu0 0.0
    %2262 = vmatmul.mubr.f32.gmra.mrb[0].mxu0 %v181
    %v2263 = vpop.f32.mrb[0].mxu0
    %v2264 = vadd.f32 %v2195, %v2263
    %v2265 = vpop.f32.mrb[0].mxu0
    %2266 = vmatprep.mubr.f32.mxu0 0.0
    %2267 = vmatmul.mubr.f32.gmra.mrb[0].mxu0 %v184
    %v2268 = vpop.f32.mrb[0].mxu0
    %v2269 = vadd.f32 %v2195, %v2268
    %v2270 = vpop.f32.mrb[0].mxu0
    %2271 = vdwg.mxu0
    %s2272 = scalar_lea.vmem %s7, 96
    %v2273 = vld [vmem:[%s2272] sm:$0xff]
    %v2274 = vld [vmem:[%s2272 + $0x8] sm:$0xff]
    %v2275 = vld [vmem:[%s2272 + $0x10] sm:$0xff]
    %v2276 = vld [vmem:[%s2272 + $0x18] sm:$0xff]
    %s2277 = scalar_lea.vmem %s8, 3
    %v2278 = vld [vmem:[%s2277] sm:$0x1]
    %v2280 = vlaneseq
    %v2281 = vshrl.u32 %v2280, 7
    %v2282 = vsub.s32 0, %v2281
    %v2283 = vrot.slane %v2278, %v2282
    %2285 = vmatprep.subr.mxu0 0.0
    %2286 = vmatpush1.msra.mxu0 %v2273
    %2287 = vmatprep.subr.mxu0 0.0
    %2288 = vmatpush1.msra.mxu0 %v2274
    %2289 = vmatprep.subr.mxu0 0.0
    %2290 = vmatpush1.msra.mxu0 %v2275
    %2291 = vmatprep.subr.mxu0 0.0
    %2292 = vmatpush1.msra.mxu0 %v2276
    %2293 = vmatprep.subr.mxu0 0.0
    %2294 = vmatpush1.msra.mxu0 0.0
    %2295 = vmatprep.subr.mxu0 0.0
    %2296 = vmatpush1.msra.mxu0 0.0
    %2297 = vmatprep.subr.mxu0 0.0
    %2298 = vmatpush1.msra.mxu0 0.0
    %2299 = vmatprep.subr.mxu0 0.0
    %2300 = vmatpush1.msra.mxu0 0.0
    %2301 = vmatprep.subr.mxu0 0.0
    %2302 = vmatpush1.msra.mxu0 0.0
    %2303 = vmatprep.subr.mxu0 0.0
    %2304 = vmatpush1.msra.mxu0 0.0
    %2305 = vmatprep.subr.mxu0 0.0
    %2306 = vmatpush1.msra.mxu0 0.0
    %2307 = vmatprep.subr.mxu0 0.0
    %2308 = vmatpush1.msra.mxu0 0.0
    %2309 = vmatprep.subr.mxu0 0.0
    %2310 = vmatpush1.msra.mxu0 0.0
    %2311 = vmatprep.subr.mxu0 0.0
    %2312 = vmatpush1.msra.mxu0 0.0
    %2313 = vmatprep.subr.mxu0 0.0
    %2314 = vmatpush1.msra.mxu0 0.0
    %2315 = vmatprep.subr.mxu0 0.0
    %2316 = vmatpush1.msra.mxu0 0.0
    %2317 = vmatprep.subr.mxu0 0.0
    %2318 = vmatpush1.msra.mxu0 0.0
    %2319 = vmatprep.subr.mxu0 0.0
    %2320 = vmatpush1.msra.mxu0 0.0
    %2321 = vmatprep.subr.mxu0 0.0
    %2322 = vmatpush1.msra.mxu0 0.0
    %2323 = vmatprep.subr.mxu0 0.0
    %2324 = vmatpush1.msra.mxu0 0.0
    %2325 = vmatprep.subr.mxu0 0.0
    %2326 = vmatpush1.msra.mxu0 0.0
    %2327 = vmatprep.subr.mxu0 0.0
    %2328 = vmatpush1.msra.mxu0 0.0
    %2329 = vmatprep.subr.mxu0 0.0
    %2330 = vmatpush1.msra.mxu0 0.0
    %2331 = vmatprep.subr.mxu0 0.0
    %2332 = vmatpush1.msra.mxu0 0.0
    %2333 = vmatprep.subr.mxu0 0.0
    %2334 = vmatpush1.msra.mxu0 0.0
    %2335 = vmatprep.subr.mxu0 0.0
    %2336 = vmatpush1.msra.mxu0 0.0
    %2337 = vmatprep.subr.mxu0 0.0
    %2338 = vmatpush1.msra.mxu0 0.0
    %2339 = vmatprep.subr.mxu0 0.0
    %2340 = vmatpush1.msra.mxu0 0.0
    %2341 = vmatprep.subr.mxu0 0.0
    %2342 = vmatpush1.msra.mxu0 0.0
    %2343 = vmatprep.subr.mxu0 0.0
    %2344 = vmatpush1.msra.mxu0 0.0
    %2345 = vmatprep.subr.mxu0 0.0
    %2346 = vmatpush1.msra.mxu0 0.0
    %2347 = vmatprep.subr.mxu0 0.0
    %2348 = vmatpush1.msra.mxu0 0.0
    %2349 = vmatprep.mubr.f32.mxu0 0.0
    %2350 = vmatmul.mubr.f32.gmra.mrb[0].mxu0 %v181
    %v2351 = vpop.f32.mrb[0].mxu0
    %v2352 = vadd.f32 %v2283, %v2351
    %v2353 = vpop.f32.mrb[0].mxu0
    %2354 = vmatprep.mubr.f32.mxu0 0.0
    %2355 = vmatmul.mubr.f32.gmra.mrb[0].mxu0 %v184
    %v2356 = vpop.f32.mrb[0].mxu0
    %v2357 = vadd.f32 %v2283, %v2356
    %v2358 = vpop.f32.mrb[0].mxu0
    %2359 = vdwg.mxu0
    %s2360 = scalar_lea.vmem %s9, 96
    %v2361 = vld [vmem:[%s2360] sm:$0xff]
    %v2362 = vld [vmem:[%s2360 + $0x8] sm:$0xff]
    %v2363 = vld [vmem:[%s2360 + $0x10] sm:$0xff]
    %v2364 = vld [vmem:[%s2360 + $0x18] sm:$0xff]
    %s2365 = scalar_lea.vmem %s10, 3
    %v2366 = vld [vmem:[%s2365] sm:$0x1]
    %v2368 = vlaneseq
    %v2369 = vshrl.u32 %v2368, 7
    %v2370 = vsub.s32 0, %v2369
    %v2371 = vrot.slane %v2366, %v2370
    %2373 = vmatprep.subr.mxu0 0.0
    %2374 = vmatpush1.msra.mxu0 %v2361
    %2375 = vmatprep.subr.mxu0 0.0
    %2376 = vmatpush1.msra.mxu0 %v2362
    %2377 = vmatprep.subr.mxu0 0.0
    %2378 = vmatpush1.msra.mxu0 %v2363
    %2379 = vmatprep.subr.mxu0 0.0
    %2380 = vmatpush1.msra.mxu0 %v2364
    %2381 = vmatprep.subr.mxu0 0.0
    %2382 = vmatpush1.msra.mxu0 0.0
    %2383 = vmatprep.subr.mxu0 0.0
    %2384 = vmatpush1.msra.mxu0 0.0
    %2385 = vmatprep.subr.mxu0 0.0
    %2386 = vmatpush1.msra.mxu0 0.0
    %2387 = vmatprep.subr.mxu0 0.0
    %2388 = vmatpush1.msra.mxu0 0.0
    %2389 = vmatprep.subr.mxu0 0.0
    %2390 = vmatpush1.msra.mxu0 0.0
    %2391 = vmatprep.subr.mxu0 0.0
    %2392 = vmatpush1.msra.mxu0 0.0
    %2393 = vmatprep.subr.mxu0 0.0
    %2394 = vmatpush1.msra.mxu0 0.0
    %2395 = vmatprep.subr.mxu0 0.0
    %2396 = vmatpush1.msra.mxu0 0.0
    %2397 = vmatprep.subr.mxu0 0.0
    %2398 = vmatpush1.msra.mxu0 0.0
    %2399 = vmatprep.subr.mxu0 0.0
    %2400 = vmatpush1.msra.mxu0 0.0
    %2401 = vmatprep.subr.mxu0 0.0
    %2402 = vmatpush1.msra.mxu0 0.0
    %2403 = vmatprep.subr.mxu0 0.0
    %2404 = vmatpush1.msra.mxu0 0.0
    %2405 = vmatprep.subr.mxu0 0.0
    %2406 = vmatpush1.msra.mxu0 0.0
    %2407 = vmatprep.subr.mxu0 0.0
    %2408 = vmatpush1.msra.mxu0 0.0
    %2409 = vmatprep.subr.mxu0 0.0
    %2410 = vmatpush1.msra.mxu0 0.0
    %2411 = vmatprep.subr.mxu0 0.0
    %2412 = vmatpush1.msra.mxu0 0.0
    %2413 = vmatprep.subr.mxu0 0.0
    %2414 = vmatpush1.msra.mxu0 0.0
    %2415 = vmatprep.subr.mxu0 0.0
    %2416 = vmatpush1.msra.mxu0 0.0
    %2417 = vmatprep.subr.mxu0 0.0
    %2418 = vmatpush1.msra.mxu0 0.0
    %2419 = vmatprep.subr.mxu0 0.0
    %2420 = vmatpush1.msra.mxu0 0.0
    %2421 = vmatprep.subr.mxu0 0.0
    %2422 = vmatpush1.msra.mxu0 0.0
    %2423 = vmatprep.subr.mxu0 0.0
    %2424 = vmatpush1.msra.mxu0 0.0
    %2425 = vmatprep.subr.mxu0 0.0
    %2426 = vmatpush1.msra.mxu0 0.0
    %2427 = vmatprep.subr.mxu0 0.0
    %2428 = vmatpush1.msra.mxu0 0.0
    %2429 = vmatprep.subr.mxu0 0.0
    %2430 = vmatpush1.msra.mxu0 0.0
    %2431 = vmatprep.subr.mxu0 0.0
    %2432 = vmatpush1.msra.mxu0 0.0
    %2433 = vmatprep.subr.mxu0 0.0
    %2434 = vmatpush1.msra.mxu0 0.0
    %2435 = vmatprep.subr.mxu0 0.0
    %2436 = vmatpush1.msra.mxu0 0.0
    %2437 = vmatprep.mubr.f32.mxu0 0.0
    %2438 = vmatmul.mubr.f32.gmra.mrb[0].mxu0 %v181
    %v2439 = vpop.f32.mrb[0].mxu0
    %v2440 = vadd.f32 %v2371, %v2439
    %v2441 = vpop.f32.mrb[0].mxu0
    %2442 = vmatprep.mubr.f32.mxu0 0.0
    %2443 = vmatmul.mubr.f32.gmra.mrb[0].mxu0 %v184
    %v2444 = vpop.f32.mrb[0].mxu0
    %v2445 = vadd.f32 %v2371, %v2444
    %v2446 = vpop.f32.mrb[0].mxu0
    %2447 = vdwg.mxu0
    %v2449 = vsel %vm445, %v2264, 0
    %v2452 = vsel %vm445, %v2352, 0
    %2454 = vmatprep.subr.mxu0 0.0
    %2455 = vmatpush1.xpose.msra.mxu0 %v2452
    %2456 = vmatprep.subr.mxu0 0.0
    %2457 = vmatpush1.xpose.msra.mxu0 0.0
    %2458 = vmatprep.subr.mxu0 0.0
    %2459 = vmatpush1.xpose.msra.mxu0 0.0
    %2460 = vmatprep.subr.mxu0 0.0
    %2461 = vmatpush1.xpose.msra.mxu0 0.0
    %2462 = vmatprep.subr.mxu0 0.0
    %2463 = vmatpush1.xpose.msra.mxu0 0.0
    %2464 = vmatprep.subr.mxu0 0.0
    %2465 = vmatpush1.xpose.msra.mxu0 0.0
    %2466 = vmatprep.subr.mxu0 0.0
    %2467 = vmatpush1.xpose.msra.mxu0 0.0
    %2468 = vmatprep.subr.mxu0 0.0
    %2469 = vmatpush1.xpose.msra.mxu0 0.0
    %2470 = vmatprep.subr.mxu0 0.0
    %2471 = vmatpush1.xpose.msra.mxu0 0.0
    %2472 = vmatprep.subr.mxu0 0.0
    %2473 = vmatpush1.xpose.msra.mxu0 0.0
    %2474 = vmatprep.subr.mxu0 0.0
    %2475 = vmatpush1.xpose.msra.mxu0 0.0
    %2476 = vmatprep.subr.mxu0 0.0
    %2477 = vmatpush1.xpose.msra.mxu0 0.0
    %2478 = vmatprep.subr.mxu0 0.0
    %2479 = vmatpush1.xpose.msra.mxu0 0.0
    %2480 = vmatprep.subr.mxu0 0.0
    %2481 = vmatpush1.xpose.msra.mxu0 0.0
    %2482 = vmatprep.subr.mxu0 0.0
    %2483 = vmatpush1.xpose.msra.mxu0 0.0
    %2484 = vmatprep.subr.mxu0 0.0
    %2485 = vmatpush1.xpose.msra.mxu0 0.0
    %2486 = vmatprep.subr.mxu0 0.0
    %2487 = vmatpush1.xpose.msra.mxu0 0.0
    %2488 = vmatprep.subr.mxu0 0.0
    %2489 = vmatpush1.xpose.msra.mxu0 0.0
    %2490 = vmatprep.subr.mxu0 0.0
    %2491 = vmatpush1.xpose.msra.mxu0 0.0
    %2492 = vmatprep.subr.mxu0 0.0
    %2493 = vmatpush1.xpose.msra.mxu0 0.0
    %2494 = vmatprep.subr.mxu0 0.0
    %2495 = vmatpush1.xpose.msra.mxu0 0.0
    %2496 = vmatprep.subr.mxu0 0.0
    %2497 = vmatpush1.xpose.msra.mxu0 0.0
    %2498 = vmatprep.subr.mxu0 0.0
    %2499 = vmatpush1.xpose.msra.mxu0 0.0
    %2500 = vmatprep.subr.mxu0 0.0
    %2501 = vmatpush1.xpose.msra.mxu0 0.0
    %2502 = vmatprep.subr.mxu0 0.0
    %2503 = vmatpush1.xpose.msra.mxu0 0.0
    %2504 = vmatprep.subr.mxu0 0.0
    %2505 = vmatpush1.xpose.msra.mxu0 0.0
    %2506 = vmatprep.subr.mxu0 0.0
    %2507 = vmatpush1.xpose.msra.mxu0 0.0
    %2508 = vmatprep.subr.mxu0 0.0
    %2509 = vmatpush1.xpose.msra.mxu0 0.0
    %2510 = vmatprep.subr.mxu0 0.0
    %2511 = vmatpush1.xpose.msra.mxu0 0.0
    %2512 = vmatprep.subr.mxu0 0.0
    %2513 = vmatpush1.xpose.msra.mxu0 0.0
    %2514 = vmatprep.subr.mxu0 0.0
    %2515 = vmatpush1.xpose.msra.mxu0 0.0
    %2516 = vmatprep.subr.mxu0 0.0
    %2517 = vmatpush1.xpose.msra.mxu0 0.0
    %2518 = vmatprep.mubr.f32.mxu0 0.0
    %2519 = vmatmul.mubr.f32.gmra.mrb[0].mxu0 %v2449
    %v2520 = vpop.f32.mrb[0].mxu0
    %v2521 = vadd.f32 %v438, %v2520
    %v2522 = vpop.f32.mrb[0].mxu0
    %2523 = vdwg.mxu0
    %v2525 = vsel %vm445, %v2269, 0
    %v2528 = vsel %vm445, %v2357, 0
    %2530 = vmatprep.subr.mxu0 0.0
    %2531 = vmatpush1.xpose.msra.mxu0 %v2528
    %2532 = vmatprep.subr.mxu0 0.0
    %2533 = vmatpush1.xpose.msra.mxu0 0.0
    %2534 = vmatprep.subr.mxu0 0.0
    %2535 = vmatpush1.xpose.msra.mxu0 0.0
    %2536 = vmatprep.subr.mxu0 0.0
    %2537 = vmatpush1.xpose.msra.mxu0 0.0
    %2538 = vmatprep.subr.mxu0 0.0
    %2539 = vmatpush1.xpose.msra.mxu0 0.0
    %2540 = vmatprep.subr.mxu0 0.0
    %2541 = vmatpush1.xpose.msra.mxu0 0.0
    %2542 = vmatprep.subr.mxu0 0.0
    %2543 = vmatpush1.xpose.msra.mxu0 0.0
    %2544 = vmatprep.subr.mxu0 0.0
    %2545 = vmatpush1.xpose.msra.mxu0 0.0
    %2546 = vmatprep.subr.mxu0 0.0
    %2547 = vmatpush1.xpose.msra.mxu0 0.0
    %2548 = vmatprep.subr.mxu0 0.0
    %2549 = vmatpush1.xpose.msra.mxu0 0.0
    %2550 = vmatprep.subr.mxu0 0.0
    %2551 = vmatpush1.xpose.msra.mxu0 0.0
    %2552 = vmatprep.subr.mxu0 0.0
    %2553 = vmatpush1.xpose.msra.mxu0 0.0
    %2554 = vmatprep.subr.mxu0 0.0
    %2555 = vmatpush1.xpose.msra.mxu0 0.0
    %2556 = vmatprep.subr.mxu0 0.0
    %2557 = vmatpush1.xpose.msra.mxu0 0.0
    %2558 = vmatprep.subr.mxu0 0.0
    %2559 = vmatpush1.xpose.msra.mxu0 0.0
    %2560 = vmatprep.subr.mxu0 0.0
    %2561 = vmatpush1.xpose.msra.mxu0 0.0
    %2562 = vmatprep.subr.mxu0 0.0
    %2563 = vmatpush1.xpose.msra.mxu0 0.0
    %2564 = vmatprep.subr.mxu0 0.0
    %2565 = vmatpush1.xpose.msra.mxu0 0.0
    %2566 = vmatprep.subr.mxu0 0.0
    %2567 = vmatpush1.xpose.msra.mxu0 0.0
    %2568 = vmatprep.subr.mxu0 0.0
    %2569 = vmatpush1.xpose.msra.mxu0 0.0
    %2570 = vmatprep.subr.mxu0 0.0
    %2571 = vmatpush1.xpose.msra.mxu0 0.0
    %2572 = vmatprep.subr.mxu0 0.0
    %2573 = vmatpush1.xpose.msra.mxu0 0.0
    %2574 = vmatprep.subr.mxu0 0.0
    %2575 = vmatpush1.xpose.msra.mxu0 0.0
    %2576 = vmatprep.subr.mxu0 0.0
    %2577 = vmatpush1.xpose.msra.mxu0 0.0
    %2578 = vmatprep.subr.mxu0 0.0
    %2579 = vmatpush1.xpose.msra.mxu0 0.0
    %2580 = vmatprep.subr.mxu0 0.0
    %2581 = vmatpush1.xpose.msra.mxu0 0.0
    %2582 = vmatprep.subr.mxu0 0.0
    %2583 = vmatpush1.xpose.msra.mxu0 0.0
    %2584 = vmatprep.subr.mxu0 0.0
    %2585 = vmatpush1.xpose.msra.mxu0 0.0
    %2586 = vmatprep.subr.mxu0 0.0
    %2587 = vmatpush1.xpose.msra.mxu0 0.0
    %2588 = vmatprep.subr.mxu0 0.0
    %2589 = vmatpush1.xpose.msra.mxu0 0.0
    %2590 = vmatprep.subr.mxu0 0.0
    %2591 = vmatpush1.xpose.msra.mxu0 0.0
    %2592 = vmatprep.subr.mxu0 0.0
    %2593 = vmatpush1.xpose.msra.mxu0 0.0
    %2594 = vmatprep.mubr.f32.mxu0 0.0
    %2595 = vmatmul.mubr.f32.gmra.mrb[0].mxu0 %v2525
    %v2596 = vpop.f32.mrb[0].mxu0
    %v2597 = vadd.f32 %v442, %v2596
    %v2598 = vpop.f32.mrb[0].mxu0
    %2599 = vdwg.mxu0
    %v2600 = vsel %vm445, %v2521, -inf
    %2601 = vmax.xlane.f32.xlu0 %v2600
    %v2602 = vpop.xlane.xlu0 %2601
    %v2603 = vsel %vm445, %v2597, -inf
    %2604 = vmax.xlane.f32.xlu0 %v2603
    %v2605 = vpop.xlane.xlu0 %2604
    %v2606 = vsub.f32 %v2521, %v2602
    %v2607 = vsub.f32 %v2597, %v2605
    %v2608 = vmul.f32 %v2606, 1.442695
    %v2609 = vpow.pop %v2608
    %v2610 = vmul.f32 %v2607, 1.442695
    %v2611 = vpow.pop %v2610
    %v2612 = vsel %vm445, %v2609, 0.0
    %2613 = vadd.xlane.f32.xlu0 %v2612
    %v2614 = vpop.xlane.xlu0 %2613
    %v2615 = vsel %vm445, %v2611, 0.0
    %2616 = vadd.xlane.f32.xlu0 %v2615
    %v2617 = vpop.xlane.xlu0 %2616
    %v2618 = vrcp.pop %v2614
    %v2619 = vrcp.pop %v2617
    %v2620 = vmul.f32 %v2609, %v2618
    %v2621 = vmul.f32 %v2611, %v2619
    %v2623 = vsel %vm445, %v2620, 0
    %2625 = vmatprep.subr.mxu0 0.0
    %2626 = vmatpush1.msra.mxu0 %v2440
    %2627 = vmatprep.subr.mxu0 0.0
    %2628 = vmatpush1.msra.mxu0 0.0
    %2629 = vmatprep.subr.mxu0 0.0
    %2630 = vmatpush1.msra.mxu0 0.0
    %2631 = vmatprep.subr.mxu0 0.0
    %2632 = vmatpush1.msra.mxu0 0.0
    %2633 = vmatprep.subr.mxu0 0.0
    %2634 = vmatpush1.msra.mxu0 0.0
    %2635 = vmatprep.subr.mxu0 0.0
    %2636 = vmatpush1.msra.mxu0 0.0
    %2637 = vmatprep.subr.mxu0 0.0
    %2638 = vmatpush1.msra.mxu0 0.0
    %2639 = vmatprep.subr.mxu0 0.0
    %2640 = vmatpush1.msra.mxu0 0.0
    %2641 = vmatprep.subr.mxu0 0.0
    %2642 = vmatpush1.msra.mxu0 0.0
    %2643 = vmatprep.subr.mxu0 0.0
    %2644 = vmatpush1.msra.mxu0 0.0
    %2645 = vmatprep.subr.mxu0 0.0
    %2646 = vmatpush1.msra.mxu0 0.0
    %2647 = vmatprep.subr.mxu0 0.0
    %2648 = vmatpush1.msra.mxu0 0.0
    %2649 = vmatprep.subr.mxu0 0.0
    %2650 = vmatpush1.msra.mxu0 0.0
    %2651 = vmatprep.subr.mxu0 0.0
    %2652 = vmatpush1.msra.mxu0 0.0
    %2653 = vmatprep.subr.mxu0 0.0
    %2654 = vmatpush1.msra.mxu0 0.0
    %2655 = vmatprep.subr.mxu0 0.0
    %2656 = vmatpush1.msra.mxu0 0.0
    %2657 = vmatprep.subr.mxu0 0.0
    %2658 = vmatpush1.msra.mxu0 0.0
    %2659 = vmatprep.subr.mxu0 0.0
    %2660 = vmatpush1.msra.mxu0 0.0
    %2661 = vmatprep.subr.mxu0 0.0
    %2662 = vmatpush1.msra.mxu0 0.0
    %2663 = vmatprep.subr.mxu0 0.0
    %2664 = vmatpush1.msra.mxu0 0.0
    %2665 = vmatprep.subr.mxu0 0.0
    %2666 = vmatpush1.msra.mxu0 0.0
    %2667 = vmatprep.subr.mxu0 0.0
    %2668 = vmatpush1.msra.mxu0 0.0
    %2669 = vmatprep.subr.mxu0 0.0
    %2670 = vmatpush1.msra.mxu0 0.0
    %2671 = vmatprep.subr.mxu0 0.0
    %2672 = vmatpush1.msra.mxu0 0.0
    %2673 = vmatprep.subr.mxu0 0.0
    %2674 = vmatpush1.msra.mxu0 0.0
    %2675 = vmatprep.subr.mxu0 0.0
    %2676 = vmatpush1.msra.mxu0 0.0
    %2677 = vmatprep.subr.mxu0 0.0
    %2678 = vmatpush1.msra.mxu0 0.0
    %2679 = vmatprep.subr.mxu0 0.0
    %2680 = vmatpush1.msra.mxu0 0.0
    %2681 = vmatprep.subr.mxu0 0.0
    %2682 = vmatpush1.msra.mxu0 0.0
    %2683 = vmatprep.subr.mxu0 0.0
    %2684 = vmatpush1.msra.mxu0 0.0
    %2685 = vmatprep.subr.mxu0 0.0
    %2686 = vmatpush1.msra.mxu0 0.0
    %2687 = vmatprep.subr.mxu0 0.0
    %2688 = vmatpush1.msra.mxu0 0.0
    %2689 = vmatprep.mubr.f32.mxu0 0.0
    %2690 = vmatmul.mubr.f32.gmra.mrb[0].mxu0 %v2623
    %v2691 = vpop.f32.mrb[0].mxu0
    %v2692 = vadd.f32 0.0, %v2691
    %v2693 = vpop.f32.mrb[0].mxu0
    %2694 = vdwg.mxu0
    %v2696 = vsel %vm445, %v2621, 0
    %2698 = vmatprep.subr.mxu0 0.0
    %2699 = vmatpush1.msra.mxu0 %v2445
    %2700 = vmatprep.subr.mxu0 0.0
    %2701 = vmatpush1.msra.mxu0 0.0
    %2702 = vmatprep.subr.mxu0 0.0
    %2703 = vmatpush1.msra.mxu0 0.0
    %2704 = vmatprep.subr.mxu0 0.0
    %2705 = vmatpush1.msra.mxu0 0.0
    %2706 = vmatprep.subr.mxu0 0.0
    %2707 = vmatpush1.msra.mxu0 0.0
    %2708 = vmatprep.subr.mxu0 0.0
    %2709 = vmatpush1.msra.mxu0 0.0
    %2710 = vmatprep.subr.mxu0 0.0
    %2711 = vmatpush1.msra.mxu0 0.0
    %2712 = vmatprep.subr.mxu0 0.0
    %2713 = vmatpush1.msra.mxu0 0.0
    %2714 = vmatprep.subr.mxu0 0.0
    %2715 = vmatpush1.msra.mxu0 0.0
    %2716 = vmatprep.subr.mxu0 0.0
    %2717 = vmatpush1.msra.mxu0 0.0
    %2718 = vmatprep.subr.mxu0 0.0
    %2719 = vmatpush1.msra.mxu0 0.0
    %2720 = vmatprep.subr.mxu0 0.0
    %2721 = vmatpush1.msra.mxu0 0.0
    %2722 = vmatprep.subr.mxu0 0.0
    %2723 = vmatpush1.msra.mxu0 0.0
    %2724 = vmatprep.subr.mxu0 0.0
    %2725 = vmatpush1.msra.mxu0 0.0
    %2726 = vmatprep.subr.mxu0 0.0
    %2727 = vmatpush1.msra.mxu0 0.0
    %2728 = vmatprep.subr.mxu0 0.0
    %2729 = vmatpush1.msra.mxu0 0.0
    %2730 = vmatprep.subr.mxu0 0.0
    %2731 = vmatpush1.msra.mxu0 0.0
    %2732 = vmatprep.subr.mxu0 0.0
    %2733 = vmatpush1.msra.mxu0 0.0
    %2734 = vmatprep.subr.mxu0 0.0
    %2735 = vmatpush1.msra.mxu0 0.0
    %2736 = vmatprep.subr.mxu0 0.0
    %2737 = vmatpush1.msra.mxu0 0.0
    %2738 = vmatprep.subr.mxu0 0.0
    %2739 = vmatpush1.msra.mxu0 0.0
    %2740 = vmatprep.subr.mxu0 0.0
    %2741 = vmatpush1.msra.mxu0 0.0
    %2742 = vmatprep.subr.mxu0 0.0
    %2743 = vmatpush1.msra.mxu0 0.0
    %2744 = vmatprep.subr.mxu0 0.0
    %2745 = vmatpush1.msra.mxu0 0.0
    %2746 = vmatprep.subr.mxu0 0.0
    %2747 = vmatpush1.msra.mxu0 0.0
    %2748 = vmatprep.subr.mxu0 0.0
    %2749 = vmatpush1.msra.mxu0 0.0
    %2750 = vmatprep.subr.mxu0 0.0
    %2751 = vmatpush1.msra.mxu0 0.0
    %2752 = vmatprep.subr.mxu0 0.0
    %2753 = vmatpush1.msra.mxu0 0.0
    %2754 = vmatprep.subr.mxu0 0.0
    %2755 = vmatpush1.msra.mxu0 0.0
    %2756 = vmatprep.subr.mxu0 0.0
    %2757 = vmatpush1.msra.mxu0 0.0
    %2758 = vmatprep.subr.mxu0 0.0
    %2759 = vmatpush1.msra.mxu0 0.0
    %2760 = vmatprep.subr.mxu0 0.0
    %2761 = vmatpush1.msra.mxu0 0.0
    %2762 = vmatprep.mubr.f32.mxu0 0.0
    %2763 = vmatmul.mubr.f32.gmra.mrb[0].mxu0 %v2696
    %v2764 = vpop.f32.mrb[0].mxu0
    %v2765 = vadd.f32 0.0, %v2764
    %v2766 = vpop.f32.mrb[0].mxu0
    %2767 = vdwg.mxu0
    %s2768 = scalar_lea.vmem %s11, 24
    %v2769 = vld [vmem:[%s2768] sm:$0xff]
    %v2771 = vsel %vm445, %v2692, 0
    %v2774 = vsel %vm445, %v2765, 0
    %2776 = vmatprep.subr.mxu0 0.0
    %2777 = vmatpush1.msra.mxu0 %v2769
    %2778 = vmatprep.subr.mxu0 0.0
    %2779 = vmatpush1.msra.mxu0 0.0
    %2780 = vmatprep.subr.mxu0 0.0
    %2781 = vmatpush1.msra.mxu0 0.0
    %2782 = vmatprep.subr.mxu0 0.0
    %2783 = vmatpush1.msra.mxu0 0.0
    %2784 = vmatprep.subr.mxu0 0.0
    %2785 = vmatpush1.msra.mxu0 0.0
    %2786 = vmatprep.subr.mxu0 0.0
    %2787 = vmatpush1.msra.mxu0 0.0
    %2788 = vmatprep.subr.mxu0 0.0
    %2789 = vmatpush1.msra.mxu0 0.0
    %2790 = vmatprep.subr.mxu0 0.0
    %2791 = vmatpush1.msra.mxu0 0.0
    %2792 = vmatprep.subr.mxu0 0.0
    %2793 = vmatpush1.msra.mxu0 0.0
    %2794 = vmatprep.subr.mxu0 0.0
    %2795 = vmatpush1.msra.mxu0 0.0
    %2796 = vmatprep.subr.mxu0 0.0
    %2797 = vmatpush1.msra.mxu0 0.0
    %2798 = vmatprep.subr.mxu0 0.0
    %2799 = vmatpush1.msra.mxu0 0.0
    %2800 = vmatprep.subr.mxu0 0.0
    %2801 = vmatpush1.msra.mxu0 0.0
    %2802 = vmatprep.subr.mxu0 0.0
    %2803 = vmatpush1.msra.mxu0 0.0
    %2804 = vmatprep.subr.mxu0 0.0
    %2805 = vmatpush1.msra.mxu0 0.0
    %2806 = vmatprep.subr.mxu0 0.0
    %2807 = vmatpush1.msra.mxu0 0.0
    %2808 = vmatprep.subr.mxu0 0.0
    %2809 = vmatpush1.msra.mxu0 0.0
    %2810 = vmatprep.subr.mxu0 0.0
    %2811 = vmatpush1.msra.mxu0 0.0
    %2812 = vmatprep.subr.mxu0 0.0
    %2813 = vmatpush1.msra.mxu0 0.0
    %2814 = vmatprep.subr.mxu0 0.0
    %2815 = vmatpush1.msra.mxu0 0.0
    %2816 = vmatprep.subr.mxu0 0.0
    %2817 = vmatpush1.msra.mxu0 0.0
    %2818 = vmatprep.subr.mxu0 0.0
    %2819 = vmatpush1.msra.mxu0 0.0
    %2820 = vmatprep.subr.mxu0 0.0
    %2821 = vmatpush1.msra.mxu0 0.0
    %2822 = vmatprep.subr.mxu0 0.0
    %2823 = vmatpush1.msra.mxu0 0.0
    %2824 = vmatprep.subr.mxu0 0.0
    %2825 = vmatpush1.msra.mxu0 0.0
    %2826 = vmatprep.subr.mxu0 0.0
    %2827 = vmatpush1.msra.mxu0 0.0
    %2828 = vmatprep.subr.mxu0 0.0
    %2829 = vmatpush1.msra.mxu0 0.0
    %2830 = vmatprep.subr.mxu0 0.0
    %2831 = vmatpush1.msra.mxu0 0.0
    %2832 = vmatprep.subr.mxu0 0.0
    %2833 = vmatpush1.msra.mxu0 0.0
    %2834 = vmatprep.subr.mxu0 0.0
    %2835 = vmatpush1.msra.mxu0 0.0
    %2836 = vmatprep.subr.mxu0 0.0
    %2837 = vmatpush1.msra.mxu0 0.0
    %2838 = vmatprep.subr.mxu0 0.0
    %2839 = vmatpush1.msra.mxu0 0.0
    %2840 = vmatprep.mubr.f32.mxu0 0.0
    %2841 = vmatmul.mubr.f32.gmra.mrb[0].mxu0 %v2771
    %v2842 = vpop.f32.mrb[0].mxu0
    %v2843 = vadd.f32 0.0, %v2842
    %v2844 = vpop.f32.mrb[0].mxu0
    %2845 = vmatprep.mubr.f32.mxu0 0.0
    %2846 = vmatmul.mubr.f32.gmra.mrb[0].mxu0 %v2774
    %v2847 = vpop.f32.mrb[0].mxu0
    %v2848 = vadd.f32 0.0, %v2847
    %v2849 = vpop.f32.mrb[0].mxu0
    %2850 = vdwg.mxu0
    %v2851 = vadd.f32 %v2182, %v2843
    %v2852 = vadd.f32 %v2183, %v2848
    %v2853 = vld [vmem:[%s12] sm:$0x1]
    %v2855 = vlaneseq
    %v2856 = vshrl.u32 %v2855, 7
    %v2857 = vsub.s32 0, %v2856
    %v2858 = vrot.slane %v2853, %v2857
    %v2860 = vadd.f32 %v2851, %v2858
    %v2861 = vadd.f32 %v2852, %v2858
    %v2862 = vadd.f32 %v164, %v2860
    %v2863 = vadd.f32 %v165, %v2861
    %v2864 = vld [vmem:[%s13] sm:$0x1]
    %v2865 = vld [vmem:[%s14] sm:$0x1]
    %v2866 = vsel %vm179, %v2862, 0.0
    %2867 = vadd.xlane.f32.xlu0 %v2866
    %v2868 = vpop.xlane.xlu0 %2867
    %v2869 = vsel %vm179, %v2863, 0.0
    %2870 = vadd.xlane.f32.xlu0 %v2869
    %v2871 = vpop.xlane.xlu0 %2870
    %v2872 = vrcp.pop 32.0
    %v2873 = vmul.f32 %v2868, %v2872
    %v2874 = vmul.f32 %v2871, %v2872
    %v2875 = vsub.f32 %v2862, %v2873
    %v2876 = vsub.f32 %v2863, %v2874
    %v2877 = vmul.f32 %v2875, %v2875
    %v2878 = vmul.f32 %v2876, %v2876
    %v2879 = vsel %vm179, %v2877, 0.0
    %2880 = vadd.xlane.f32.xlu0 %v2879
    %v2881 = vpop.xlane.xlu0 %2880
    %v2882 = vsel %vm179, %v2878, 0.0
    %2883 = vadd.xlane.f32.xlu0 %v2882
    %v2884 = vpop.xlane.xlu0 %2883
    %v2885 = vmul.f32 %v2881, %v2872
    %v2886 = vmul.f32 %v2884, %v2872
    %v2887 = vadd.f32 %v2885, 1e-05
    %v2888 = vadd.f32 %v2886, 1e-05
    %v2889 = vrsqrt.pop %v2887
    %v2890 = vrsqrt.pop %v2888
    %v2891 = vmul.f32 %v2875, %v2889
    %v2892 = vmul.f32 %v2876, %v2890
    %v2894 = vlaneseq
    %v2895 = vshrl.u32 %v2894, 7
    %v2896 = vsub.s32 0, %v2895
    %v2897 = vrot.slane %v2864, %v2896
    %v2899 = vmul.f32 %v2891, %v2897
    %v2900 = vmul.f32 %v2892, %v2897
    %v2902 = vlaneseq
    %v2903 = vshrl.u32 %v2902, 7
    %v2904 = vsub.s32 0, %v2903
    %v2905 = vrot.slane %v2865, %v2904
    %v2907 = vadd.f32 %v2899, %v2905
    %v2908 = vadd.f32 %v2900, %v2905
    %v2909 = vld [vmem:[%s15] sm:$0xff]
    %v2910 = vld [vmem:[%s15 + $0x8] sm:$0xff]
    %v2911 = vld [vmem:[%s15 + $0x10] sm:$0xff]
    %v2912 = vld [vmem:[%s15 + $0x18] sm:$0xff]
    %v2913 = vld [vmem:[%s16] sm:$0x1]
    %v2915 = vlaneseq
    %v2916 = vshrl.u32 %v2915, 7
    %v2917 = vsub.s32 0, %v2916
    %v2918 = vrot.slane %v2913, %v2917
    %v2921 = vsel %vm179, %v2907, 0
    %v2924 = vsel %vm179, %v2908, 0
    %2926 = vmatprep.subr.mxu0 0.0
    %2927 = vmatpush1.msra.mxu0 %v2909
    %2928 = vmatprep.subr.mxu0 0.0
    %2929 = vmatpush1.msra.mxu0 %v2910
    %2930 = vmatprep.subr.mxu0 0.0
    %2931 = vmatpush1.msra.mxu0 %v2911
    %2932 = vmatprep.subr.mxu0 0.0
    %2933 = vmatpush1.msra.mxu0 %v2912
    %2934 = vmatprep.subr.mxu0 0.0
    %2935 = vmatpush1.msra.mxu0 0.0
    %2936 = vmatprep.subr.mxu0 0.0
    %2937 = vmatpush1.msra.mxu0 0.0
    %2938 = vmatprep.subr.mxu0 0.0
    %2939 = vmatpush1.msra.mxu0 0.0
    %2940 = vmatprep.subr.mxu0 0.0
    %2941 = vmatpush1.msra.mxu0 0.0
    %2942 = vmatprep.subr.mxu0 0.0
    %2943 = vmatpush1.msra.mxu0 0.0
    %2944 = vmatprep.subr.mxu0 0.0
    %2945 = vmatpush1.msra.mxu0 0.0
    %2946 = vmatprep.subr.mxu0 0.0
    %2947 = vmatpush1.msra.mxu0 0.0
    %2948 = vmatprep.subr.mxu0 0.0
    %2949 = vmatpush1.msra.mxu0 0.0
    %2950 = vmatprep.subr.mxu0 0.0
    %2951 = vmatpush1.msra.mxu0 0.0
    %2952 = vmatprep.subr.mxu0 0.0
    %2953 = vmatpush1.msra.mxu0 0.0
    %2954 = vmatprep.subr.mxu0 0.0
    %2955 = vmatpush1.msra.mxu0 0.0
    %2956 = vmatprep.subr.mxu0 0.0
    %2957 = vmatpush1.msra.mxu0 0.0
    %2958 = vmatprep.subr.mxu0 0.0
    %2959 = vmatpush1.msra.mxu0 0.0
    %2960 = vmatprep.subr.mxu0 0.0
    %2961 = vmatpush1.msra.mxu0 0.0
    %2962 = vmatprep.subr.mxu0 0.0
    %2963 = vmatpush1.msra.mxu0 0.0
    %2964 = vmatprep.subr.mxu0 0.0
    %2965 = vmatpush1.msra.mxu0 0.0
    %2966 = vmatprep.subr.mxu0 0.0
    %2967 = vmatpush1.msra.mxu0 0.0
    %2968 = vmatprep.subr.mxu0 0.0
    %2969 = vmatpush1.msra.mxu0 0.0
    %2970 = vmatprep.subr.mxu0 0.0
    %2971 = vmatpush1.msra.mxu0 0.0
    %2972 = vmatprep.subr.mxu0 0.0
    %2973 = vmatpush1.msra.mxu0 0.0
    %2974 = vmatprep.subr.mxu0 0.0
    %2975 = vmatpush1.msra.mxu0 0.0
    %2976 = vmatprep.subr.mxu0 0.0
    %2977 = vmatpush1.msra.mxu0 0.0
    %2978 = vmatprep.subr.mxu0 0.0
    %2979 = vmatpush1.msra.mxu0 0.0
    %2980 = vmatprep.subr.mxu0 0.0
    %2981 = vmatpush1.msra.mxu0 0.0
    %2982 = vmatprep.subr.mxu0 0.0
    %2983 = vmatpush1.msra.mxu0 0.0
    %2984 = vmatprep.subr.mxu0 0.0
    %2985 = vmatpush1.msra.mxu0 0.0
    %2986 = vmatprep.subr.mxu0 0.0
    %2987 = vmatpush1.msra.mxu0 0.0
    %2988 = vmatprep.subr.mxu0 0.0
    %2989 = vmatpush1.msra.mxu0 0.0
    %2990 = vmatprep.mubr.f32.mxu0 0.0
    %2991 = vmatmul.mubr.f32.gmra.mrb[0].mxu0 %v2921
    %v2992 = vpop.f32.mrb[0].mxu0
    %v2993 = vadd.f32 %v2918, %v2992
    %v2994 = vpop.f32.mrb[0].mxu0
    %2995 = vmatprep.mubr.f32.mxu0 0.0
    %2996 = vmatmul.mubr.f32.gmra.mrb[0].mxu0 %v2924
    %v2997 = vpop.f32.mrb[0].mxu0
    %v2998 = vadd.f32 %v2918, %v2997
    %v2999 = vpop.f32.mrb[0].mxu0
    %3000 = vdwg.mxu0
    %v3001 = vmax.f32 %v2993, 0.0
    %v3002 = vmax.f32 %v2998, 0.0
    %v3003 = vld [vmem:[%s17] sm:$0xff]
    %v3004 = vld [vmem:[%s17 + $0x8] sm:$0xff]
    %v3005 = vld [vmem:[%s17 + $0x10] sm:$0xff]
    %v3006 = vld [vmem:[%s17 + $0x18] sm:$0xff]
    %v3007 = vld [vmem:[%s17 + $0x20] sm:$0xff]
    %v3008 = vld [vmem:[%s17 + $0x28] sm:$0xff]
    %v3009 = vld [vmem:[%s17 + $0x30] sm:$0xff]
    %v3010 = vld [vmem:[%s17 + $0x38] sm:$0xff]
    %v3011 = vld [vmem:[%s17 + $0x40] sm:$0xff]
    %v3012 = vld [vmem:[%s17 + $0x48] sm:$0xff]
    %v3013 = vld [vmem:[%s17 + $0x50] sm:$0xff]
    %v3014 = vld [vmem:[%s17 + $0x58] sm:$0xff]
    %v3015 = vld [vmem:[%s17 + $0x60] sm:$0xff]
    %v3016 = vld [vmem:[%s17 + $0x68] sm:$0xff]
    %v3017 = vld [vmem:[%s17 + $0x70] sm:$0xff]
    %v3018 = vld [vmem:[%s17 + $0x78] sm:$0xff]
    %v3019 = vld [vmem:[%s18] sm:$0x1]
    %v3021 = vlaneseq
    %v3022 = vshrl.u32 %v3021, 7
    %v3023 = vsub.s32 0, %v3022
    %v3024 = vrot.slane %v3019, %v3023
    %3026 = vmatprep.subr.mxu0 0.0
    %3027 = vmatpush1.msra.mxu0 %v3003
    %3028 = vmatprep.subr.mxu0 0.0
    %3029 = vmatpush1.msra.mxu0 %v3004
    %3030 = vmatprep.subr.mxu0 0.0
    %3031 = vmatpush1.msra.mxu0 %v3005
    %3032 = vmatprep.subr.mxu0 0.0
    %3033 = vmatpush1.msra.mxu0 %v3006
    %3034 = vmatprep.subr.mxu0 0.0
    %3035 = vmatpush1.msra.mxu0 %v3007
    %3036 = vmatprep.subr.mxu0 0.0
    %3037 = vmatpush1.msra.mxu0 %v3008
    %3038 = vmatprep.subr.mxu0 0.0
    %3039 = vmatpush1.msra.mxu0 %v3009
    %3040 = vmatprep.subr.mxu0 0.0
    %3041 = vmatpush1.msra.mxu0 %v3010
    %3042 = vmatprep.subr.mxu0 0.0
    %3043 = vmatpush1.msra.mxu0 %v3011
    %3044 = vmatprep.subr.mxu0 0.0
    %3045 = vmatpush1.msra.mxu0 %v3012
    %3046 = vmatprep.subr.mxu0 0.0
    %3047 = vmatpush1.msra.mxu0 %v3013
    %3048 = vmatprep.subr.mxu0 0.0
    %3049 = vmatpush1.msra.mxu0 %v3014
    %3050 = vmatprep.subr.mxu0 0.0
    %3051 = vmatpush1.msra.mxu0 %v3015
    %3052 = vmatprep.subr.mxu0 0.0
    %3053 = vmatpush1.msra.mxu0 %v3016
    %3054 = vmatprep.subr.mxu0 0.0
    %3055 = vmatpush1.msra.mxu0 %v3017
    %3056 = vmatprep.subr.mxu0 0.0
    %3057 = vmatpush1.msra.mxu0 %v3018
    %3058 = vmatprep.subr.mxu0 0.0
    %3059 = vmatpush1.msra.mxu0 0.0
    %3060 = vmatprep.subr.mxu0 0.0
    %3061 = vmatpush1.msra.mxu0 0.0
    %3062 = vmatprep.subr.mxu0 0.0
    %3063 = vmatpush1.msra.mxu0 0.0
    %3064 = vmatprep.subr.mxu0 0.0
    %3065 = vmatpush1.msra.mxu0 0.0
    %3066 = vmatprep.subr.mxu0 0.0
    %3067 = vmatpush1.msra.mxu0 0.0
    %3068 = vmatprep.subr.mxu0 0.0
    %3069 = vmatpush1.msra.mxu0 0.0
    %3070 = vmatprep.subr.mxu0 0.0
    %3071 = vmatpush1.msra.mxu0 0.0
    %3072 = vmatprep.subr.mxu0 0.0
    %3073 = vmatpush1.msra.mxu0 0.0
    %3074 = vmatprep.subr.mxu0 0.0
    %3075 = vmatpush1.msra.mxu0 0.0
    %3076 = vmatprep.subr.mxu0 0.0
    %3077 = vmatpush1.msra.mxu0 0.0
    %3078 = vmatprep.subr.mxu0 0.0
    %3079 = vmatpush1.msra.mxu0 0.0
    %3080 = vmatprep.subr.mxu0 0.0
    %3081 = vmatpush1.msra.mxu0 0.0
    %3082 = vmatprep.subr.mxu0 0.0
    %3083 = vmatpush1.msra.mxu0 0.0
    %3084 = vmatprep.subr.mxu0 0.0
    %3085 = vmatpush1.msra.mxu0 0.0
    %3086 = vmatprep.subr.mxu0 0.0
    %3087 = vmatpush1.msra.mxu0 0.0
    %3088 = vmatprep.subr.mxu0 0.0
    %3089 = vmatpush1.msra.mxu0 0.0
    %3090 = vmatprep.mubr.f32.mxu0 0.0
    %3091 = vmatmul.mubr.f32.gmra.mrb[0].mxu0 %v3001
    %v3092 = vpop.f32.mrb[0].mxu0
    %v3093 = vadd.f32 %v3024, %v3092
    %v3094 = vpop.f32.mrb[0].mxu0
    %3095 = vmatprep.mubr.f32.mxu0 0.0
    %3096 = vmatmul.mubr.f32.gmra.mrb[0].mxu0 %v3002
    %v3097 = vpop.f32.mrb[0].mxu0
    %v3098 = vadd.f32 %v3024, %v3097
    %v3099 = vpop.f32.mrb[0].mxu0
    %3100 = vdwg.mxu0
    %v3101 = vadd.f32 %v2907, %v3093
    %v3102 = vadd.f32 %v2908, %v3098
    %v3103 = vld [vmem:[%s19] sm:$0x1]
    %v3104 = vld [vmem:[%s20] sm:$0x1]
    %v3105 = vsel %vm179, %v3101, 0.0
    %3106 = vadd.xlane.f32.xlu0 %v3105
    %v3107 = vpop.xlane.xlu0 %3106
    %v3108 = vsel %vm179, %v3102, 0.0
    %3109 = vadd.xlane.f32.xlu0 %v3108
    %v3110 = vpop.xlane.xlu0 %3109
    %v3111 = vmul.f32 %v3107, %v2872
    %v3112 = vmul.f32 %v3110, %v2872
    %v3113 = vsub.f32 %v3101, %v3111
    %v3114 = vsub.f32 %v3102, %v3112
    %v3115 = vmul.f32 %v3113, %v3113
    %v3116 = vmul.f32 %v3114, %v3114
    %v3117 = vsel %vm179, %v3115, 0.0
    %3118 = vadd.xlane.f32.xlu0 %v3117
    %v3119 = vpop.xlane.xlu0 %3118
    %v3120 = vsel %vm179, %v3116, 0.0
    %3121 = vadd.xlane.f32.xlu0 %v3120
    %v3122 = vpop.xlane.xlu0 %3121
    %v3123 = vmul.f32 %v3119, %v2872
    %v3124 = vmul.f32 %v3122, %v2872
    %v3125 = vadd.f32 %v3123, 1e-05
    %v3126 = vadd.f32 %v3124, 1e-05
    %v3127 = vrsqrt.pop %v3125
    %v3128 = vrsqrt.pop %v3126
    %v3129 = vmul.f32 %v3113, %v3127
    %v3130 = vmul.f32 %v3114, %v3128
    %v3132 = vlaneseq
    %v3133 = vshrl.u32 %v3132, 7
    %v3134 = vsub.s32 0, %v3133
    %v3135 = vrot.slane %v3103, %v3134
    %v3137 = vmul.f32 %v3129, %v3135
    %v3138 = vmul.f32 %v3130, %v3135
    %v3140 = vlaneseq
    %v3141 = vshrl.u32 %v3140, 7
    %v3142 = vsub.s32 0, %v3141
    %v3143 = vrot.slane %v3104, %v3142
    %v3145 = vadd.f32 %v3137, %v3143
    %v3146 = vadd.f32 %v3138, %v3143
    %s3147 = scalar_lea.vmem %s5, 128
    %v3148 = vld [vmem:[%s3147] sm:$0xff]
    %v3149 = vld [vmem:[%s3147 + $0x8] sm:$0xff]
    %v3150 = vld [vmem:[%s3147 + $0x10] sm:$0xff]
    %v3151 = vld [vmem:[%s3147 + $0x18] sm:$0xff]
    %s3152 = scalar_lea.vmem %s6, 4
    %v3153 = vld [vmem:[%s3152] sm:$0x1]
    %v3155 = vlaneseq
    %v3156 = vshrl.u32 %v3155, 7
    %v3157 = vsub.s32 0, %v3156
    %v3158 = vrot.slane %v3153, %v3157
    %v3161 = vsel %vm179, %v3145, 0
    %v3164 = vsel %vm179, %v3146, 0
    %3166 = vmatprep.subr.mxu0 0.0
    %3167 = vmatpush1.msra.mxu0 %v3148
    %3168 = vmatprep.subr.mxu0 0.0
    %3169 = vmatpush1.msra.mxu0 %v3149
    %3170 = vmatprep.subr.mxu0 0.0
    %3171 = vmatpush1.msra.mxu0 %v3150
    %3172 = vmatprep.subr.mxu0 0.0
    %3173 = vmatpush1.msra.mxu0 %v3151
    %3174 = vmatprep.subr.mxu0 0.0
    %3175 = vmatpush1.msra.mxu0 0.0
    %3176 = vmatprep.subr.mxu0 0.0
    %3177 = vmatpush1.msra.mxu0 0.0
    %3178 = vmatprep.subr.mxu0 0.0
    %3179 = vmatpush1.msra.mxu0 0.0
    %3180 = vmatprep.subr.mxu0 0.0
    %3181 = vmatpush1.msra.mxu0 0.0
    %3182 = vmatprep.subr.mxu0 0.0
    %3183 = vmatpush1.msra.mxu0 0.0
    %3184 = vmatprep.subr.mxu0 0.0
    %3185 = vmatpush1.msra.mxu0 0.0
    %3186 = vmatprep.subr.mxu0 0.0
    %3187 = vmatpush1.msra.mxu0 0.0
    %3188 = vmatprep.subr.mxu0 0.0
    %3189 = vmatpush1.msra.mxu0 0.0
    %3190 = vmatprep.subr.mxu0 0.0
    %3191 = vmatpush1.msra.mxu0 0.0
    %3192 = vmatprep.subr.mxu0 0.0
    %3193 = vmatpush1.msra.mxu0 0.0
    %3194 = vmatprep.subr.mxu0 0.0
    %3195 = vmatpush1.msra.mxu0 0.0
    %3196 = vmatprep.subr.mxu0 0.0
    %3197 = vmatpush1.msra.mxu0 0.0
    %3198 = vmatprep.subr.mxu0 0.0
    %3199 = vmatpush1.msra.mxu0 0.0
    %3200 = vmatprep.subr.mxu0 0.0
    %3201 = vmatpush1.msra.mxu0 0.0
    %3202 = vmatprep.subr.mxu0 0.0
    %3203 = vmatpush1.msra.mxu0 0.0
    %3204 = vmatprep.subr.mxu0 0.0
    %3205 = vmatpush1.msra.mxu0 0.0
    %3206 = vmatprep.subr.mxu0 0.0
    %3207 = vmatpush1.msra.mxu0 0.0
    %3208 = vmatprep.subr.mxu0 0.0
    %3209 = vmatpush1.msra.mxu0 0.0
    %3210 = vmatprep.subr.mxu0 0.0
    %3211 = vmatpush1.msra.mxu0 0.0
    %3212 = vmatprep.subr.mxu0 0.0
    %3213 = vmatpush1.msra.mxu0 0.0
    %3214 = vmatprep.subr.mxu0 0.0
    %3215 = vmatpush1.msra.mxu0 0.0
    %3216 = vmatprep.subr.mxu0 0.0
    %3217 = vmatpush1.msra.mxu0 0.0
    %3218 = vmatprep.subr.mxu0 0.0
    %3219 = vmatpush1.msra.mxu0 0.0
    %3220 = vmatprep.subr.mxu0 0.0
    %3221 = vmatpush1.msra.mxu0 0.0
    %3222 = vmatprep.subr.mxu0 0.0
    %3223 = vmatpush1.msra.mxu0 0.0
    %3224 = vmatprep.subr.mxu0 0.0
    %3225 = vmatpush1.msra.mxu0 0.0
    %3226 = vmatprep.subr.mxu0 0.0
    %3227 = vmatpush1.msra.mxu0 0.0
    %3228 = vmatprep.subr.mxu0 0.0
    %3229 = vmatpush1.msra.mxu0 0.0
    %3230 = vmatprep.mubr.f32.mxu0 0.0
    %3231 = vmatmul.mubr.f32.gmra.mrb[0].mxu0 %v3161
    %v3232 = vpop.f32.mrb[0].mxu0
    %v3233 = vadd.f32 %v3158, %v3232
    %v3234 = vpop.f32.mrb[0].mxu0
    %3235 = vmatprep.mubr.f32.mxu0 0.0
    %3236 = vmatmul.mubr.f32.gmra.mrb[0].mxu0 %v3164
    %v3237 = vpop.f32.mrb[0].mxu0
    %v3238 = vadd.f32 %v3158, %v3237
    %v3239 = vpop.f32.mrb[0].mxu0
    %3240 = vdwg.mxu0
    %s3241 = scalar_lea.vmem %s7, 128
    %v3242 = vld [vmem:[%s3241] sm:$0xff]
    %v3243 = vld [vmem:[%s3241 + $0x8] sm:$0xff]
    %v3244 = vld [vmem:[%s3241 + $0x10] sm:$0xff]
    %v3245 = vld [vmem:[%s3241 + $0x18] sm:$0xff]
    %s3246 = scalar_lea.vmem %s8, 4
    %v3247 = vld [vmem:[%s3246] sm:$0x1]
    %v3249 = vlaneseq
    %v3250 = vshrl.u32 %v3249, 7
    %v3251 = vsub.s32 0, %v3250
    %v3252 = vrot.slane %v3247, %v3251
    %3254 = vmatprep.subr.mxu0 0.0
    %3255 = vmatpush1.msra.mxu0 %v3242
    %3256 = vmatprep.subr.mxu0 0.0
    %3257 = vmatpush1.msra.mxu0 %v3243
    %3258 = vmatprep.subr.mxu0 0.0
    %3259 = vmatpush1.msra.mxu0 %v3244
    %3260 = vmatprep.subr.mxu0 0.0
    %3261 = vmatpush1.msra.mxu0 %v3245
    %3262 = vmatprep.subr.mxu0 0.0
    %3263 = vmatpush1.msra.mxu0 0.0
    %3264 = vmatprep.subr.mxu0 0.0
    %3265 = vmatpush1.msra.mxu0 0.0
    %3266 = vmatprep.subr.mxu0 0.0
    %3267 = vmatpush1.msra.mxu0 0.0
    %3268 = vmatprep.subr.mxu0 0.0
    %3269 = vmatpush1.msra.mxu0 0.0
    %3270 = vmatprep.subr.mxu0 0.0
    %3271 = vmatpush1.msra.mxu0 0.0
    %3272 = vmatprep.subr.mxu0 0.0
    %3273 = vmatpush1.msra.mxu0 0.0
    %3274 = vmatprep.subr.mxu0 0.0
    %3275 = vmatpush1.msra.mxu0 0.0
    %3276 = vmatprep.subr.mxu0 0.0
    %3277 = vmatpush1.msra.mxu0 0.0
    %3278 = vmatprep.subr.mxu0 0.0
    %3279 = vmatpush1.msra.mxu0 0.0
    %3280 = vmatprep.subr.mxu0 0.0
    %3281 = vmatpush1.msra.mxu0 0.0
    %3282 = vmatprep.subr.mxu0 0.0
    %3283 = vmatpush1.msra.mxu0 0.0
    %3284 = vmatprep.subr.mxu0 0.0
    %3285 = vmatpush1.msra.mxu0 0.0
    %3286 = vmatprep.subr.mxu0 0.0
    %3287 = vmatpush1.msra.mxu0 0.0
    %3288 = vmatprep.subr.mxu0 0.0
    %3289 = vmatpush1.msra.mxu0 0.0
    %3290 = vmatprep.subr.mxu0 0.0
    %3291 = vmatpush1.msra.mxu0 0.0
    %3292 = vmatprep.subr.mxu0 0.0
    %3293 = vmatpush1.msra.mxu0 0.0
    %3294 = vmatprep.subr.mxu0 0.0
    %3295 = vmatpush1.msra.mxu0 0.0
    %3296 = vmatprep.subr.mxu0 0.0
    %3297 = vmatpush1.msra.mxu0 0.0
    %3298 = vmatprep.subr.mxu0 0.0
    %3299 = vmatpush1.msra.mxu0 0.0
    %3300 = vmatprep.subr.mxu0 0.0
    %3301 = vmatpush1.msra.mxu0 0.0
    %3302 = vmatprep.subr.mxu0 0.0
    %3303 = vmatpush1.msra.mxu0 0.0
    %3304 = vmatprep.subr.mxu0 0.0
    %3305 = vmatpush1.msra.mxu0 0.0
    %3306 = vmatprep.subr.mxu0 0.0
    %3307 = vmatpush1.msra.mxu0 0.0
    %3308 = vmatprep.subr.mxu0 0.0
    %3309 = vmatpush1.msra.mxu0 0.0
    %3310 = vmatprep.subr.mxu0 0.0
    %3311 = vmatpush1.msra.mxu0 0.0
    %3312 = vmatprep.subr.mxu0 0.0
    %3313 = vmatpush1.msra.mxu0 0.0
    %3314 = vmatprep.subr.mxu0 0.0
    %3315 = vmatpush1.msra.mxu0 0.0
    %3316 = vmatprep.subr.mxu0 0.0
    %3317 = vmatpush1.msra.mxu0 0.0
    %3318 = vmatprep.mubr.f32.mxu0 0.0
    %3319 = vmatmul.mubr.f32.gmra.mrb[0].mxu0 %v3161
    %v3320 = vpop.f32.mrb[0].mxu0
    %v3321 = vadd.f32 %v3252, %v3320
    %v3322 = vpop.f32.mrb[0].mxu0
    %3323 = vmatprep.mubr.f32.mxu0 0.0
    %3324 = vmatmul.mubr.f32.gmra.mrb[0].mxu0 %v3164
    %v3325 = vpop.f32.mrb[0].mxu0
    %v3326 = vadd.f32 %v3252, %v3325
    %v3327 = vpop.f32.mrb[0].mxu0
    %3328 = vdwg.mxu0
    %s3329 = scalar_lea.vmem %s9, 128
    %v3330 = vld [vmem:[%s3329] sm:$0xff]
    %v3331 = vld [vmem:[%s3329 + $0x8] sm:$0xff]
    %v3332 = vld [vmem:[%s3329 + $0x10] sm:$0xff]
    %v3333 = vld [vmem:[%s3329 + $0x18] sm:$0xff]
    %s3334 = scalar_lea.vmem %s10, 4
    %v3335 = vld [vmem:[%s3334] sm:$0x1]
    %v3337 = vlaneseq
    %v3338 = vshrl.u32 %v3337, 7
    %v3339 = vsub.s32 0, %v3338
    %v3340 = vrot.slane %v3335, %v3339
    %3342 = vmatprep.subr.mxu0 0.0
    %3343 = vmatpush1.msra.mxu0 %v3330
    %3344 = vmatprep.subr.mxu0 0.0
    %3345 = vmatpush1.msra.mxu0 %v3331
    %3346 = vmatprep.subr.mxu0 0.0
    %3347 = vmatpush1.msra.mxu0 %v3332
    %3348 = vmatprep.subr.mxu0 0.0
    %3349 = vmatpush1.msra.mxu0 %v3333
    %3350 = vmatprep.subr.mxu0 0.0
    %3351 = vmatpush1.msra.mxu0 0.0
    %3352 = vmatprep.subr.mxu0 0.0
    %3353 = vmatpush1.msra.mxu0 0.0
    %3354 = vmatprep.subr.mxu0 0.0
    %3355 = vmatpush1.msra.mxu0 0.0
    %3356 = vmatprep.subr.mxu0 0.0
    %3357 = vmatpush1.msra.mxu0 0.0
    %3358 = vmatprep.subr.mxu0 0.0
    %3359 = vmatpush1.msra.mxu0 0.0
    %3360 = vmatprep.subr.mxu0 0.0
    %3361 = vmatpush1.msra.mxu0 0.0
    %3362 = vmatprep.subr.mxu0 0.0
    %3363 = vmatpush1.msra.mxu0 0.0
    %3364 = vmatprep.subr.mxu0 0.0
    %3365 = vmatpush1.msra.mxu0 0.0
    %3366 = vmatprep.subr.mxu0 0.0
    %3367 = vmatpush1.msra.mxu0 0.0
    %3368 = vmatprep.subr.mxu0 0.0
    %3369 = vmatpush1.msra.mxu0 0.0
    %3370 = vmatprep.subr.mxu0 0.0
    %3371 = vmatpush1.msra.mxu0 0.0
    %3372 = vmatprep.subr.mxu0 0.0
    %3373 = vmatpush1.msra.mxu0 0.0
    %3374 = vmatprep.subr.mxu0 0.0
    %3375 = vmatpush1.msra.mxu0 0.0
    %3376 = vmatprep.subr.mxu0 0.0
    %3377 = vmatpush1.msra.mxu0 0.0
    %3378 = vmatprep.subr.mxu0 0.0
    %3379 = vmatpush1.msra.mxu0 0.0
    %3380 = vmatprep.subr.mxu0 0.0
    %3381 = vmatpush1.msra.mxu0 0.0
    %3382 = vmatprep.subr.mxu0 0.0
    %3383 = vmatpush1.msra.mxu0 0.0
    %3384 = vmatprep.subr.mxu0 0.0
    %3385 = vmatpush1.msra.mxu0 0.0
    %3386 = vmatprep.subr.mxu0 0.0
    %3387 = vmatpush1.msra.mxu0 0.0
    %3388 = vmatprep.subr.mxu0 0.0
    %3389 = vmatpush1.msra.mxu0 0.0
    %3390 = vmatprep.subr.mxu0 0.0
    %3391 = vmatpush1.msra.mxu0 0.0
    %3392 = vmatprep.subr.mxu0 0.0
    %3393 = vmatpush1.msra.mxu0 0.0
    %3394 = vmatprep.subr.mxu0 0.0
    %3395 = vmatpush1.msra.mxu0 0.0
    %3396 = vmatprep.subr.mxu0 0.0
    %3397 = vmatpush1.msra.mxu0 0.0
    %3398 = vmatprep.subr.mxu0 0.0
    %3399 = vmatpush1.msra.mxu0 0.0
    %3400 = vmatprep.subr.mxu0 0.0
    %3401 = vmatpush1.msra.mxu0 0.0
    %3402 = vmatprep.subr.mxu0 0.0
    %3403 = vmatpush1.msra.mxu0 0.0
    %3404 = vmatprep.subr.mxu0 0.0
    %3405 = vmatpush1.msra.mxu0 0.0
    %3406 = vmatprep.mubr.f32.mxu0 0.0
    %3407 = vmatmul.mubr.f32.gmra.mrb[0].mxu0 %v3161
    %v3408 = vpop.f32.mrb[0].mxu0
    %v3409 = vadd.f32 %v3340, %v3408
    %v3410 = vpop.f32.mrb[0].mxu0
    %3411 = vmatprep.mubr.f32.mxu0 0.0
    %3412 = vmatmul.mubr.f32.gmra.mrb[0].mxu0 %v3164
    %v3413 = vpop.f32.mrb[0].mxu0
    %v3414 = vadd.f32 %v3340, %v3413
    %v3415 = vpop.f32.mrb[0].mxu0
    %3416 = vdwg.mxu0
    %v3418 = vsel %vm445, %v3233, 0
    %v3421 = vsel %vm445, %v3321, 0
    %3423 = vmatprep.subr.mxu0 0.0
    %3424 = vmatpush1.xpose.msra.mxu0 %v3421
    %3425 = vmatprep.subr.mxu0 0.0
    %3426 = vmatpush1.xpose.msra.mxu0 0.0
    %3427 = vmatprep.subr.mxu0 0.0
    %3428 = vmatpush1.xpose.msra.mxu0 0.0
    %3429 = vmatprep.subr.mxu0 0.0
    %3430 = vmatpush1.xpose.msra.mxu0 0.0
    %3431 = vmatprep.subr.mxu0 0.0
    %3432 = vmatpush1.xpose.msra.mxu0 0.0
    %3433 = vmatprep.subr.mxu0 0.0
    %3434 = vmatpush1.xpose.msra.mxu0 0.0
    %3435 = vmatprep.subr.mxu0 0.0
    %3436 = vmatpush1.xpose.msra.mxu0 0.0
    %3437 = vmatprep.subr.mxu0 0.0
    %3438 = vmatpush1.xpose.msra.mxu0 0.0
    %3439 = vmatprep.subr.mxu0 0.0
    %3440 = vmatpush1.xpose.msra.mxu0 0.0
    %3441 = vmatprep.subr.mxu0 0.0
    %3442 = vmatpush1.xpose.msra.mxu0 0.0
    %3443 = vmatprep.subr.mxu0 0.0
    %3444 = vmatpush1.xpose.msra.mxu0 0.0
    %3445 = vmatprep.subr.mxu0 0.0
    %3446 = vmatpush1.xpose.msra.mxu0 0.0
    %3447 = vmatprep.subr.mxu0 0.0
    %3448 = vmatpush1.xpose.msra.mxu0 0.0
    %3449 = vmatprep.subr.mxu0 0.0
    %3450 = vmatpush1.xpose.msra.mxu0 0.0
    %3451 = vmatprep.subr.mxu0 0.0
    %3452 = vmatpush1.xpose.msra.mxu0 0.0
    %3453 = vmatprep.subr.mxu0 0.0
    %3454 = vmatpush1.xpose.msra.mxu0 0.0
    %3455 = vmatprep.subr.mxu0 0.0
    %3456 = vmatpush1.xpose.msra.mxu0 0.0
    %3457 = vmatprep.subr.mxu0 0.0
    %3458 = vmatpush1.xpose.msra.mxu0 0.0
    %3459 = vmatprep.subr.mxu0 0.0
    %3460 = vmatpush1.xpose.msra.mxu0 0.0
    %3461 = vmatprep.subr.mxu0 0.0
    %3462 = vmatpush1.xpose.msra.mxu0 0.0
    %3463 = vmatprep.subr.mxu0 0.0
    %3464 = vmatpush1.xpose.msra.mxu0 0.0
    %3465 = vmatprep.subr.mxu0 0.0
    %3466 = vmatpush1.xpose.msra.mxu0 0.0
    %3467 = vmatprep.subr.mxu0 0.0
    %3468 = vmatpush1.xpose.msra.mxu0 0.0
    %3469 = vmatprep.subr.mxu0 0.0
    %3470 = vmatpush1.xpose.msra.mxu0 0.0
    %3471 = vmatprep.subr.mxu0 0.0
    %3472 = vmatpush1.xpose.msra.mxu0 0.0
    %3473 = vmatprep.subr.mxu0 0.0
    %3474 = vmatpush1.xpose.msra.mxu0 0.0
    %3475 = vmatprep.subr.mxu0 0.0
    %3476 = vmatpush1.xpose.msra.mxu0 0.0
    %3477 = vmatprep.subr.mxu0 0.0
    %3478 = vmatpush1.xpose.msra.mxu0 0.0
    %3479 = vmatprep.subr.mxu0 0.0
    %3480 = vmatpush1.xpose.msra.mxu0 0.0
    %3481 = vmatprep.subr.mxu0 0.0
    %3482 = vmatpush1.xpose.msra.mxu0 0.0
    %3483 = vmatprep.subr.mxu0 0.0
    %3484 = vmatpush1.xpose.msra.mxu0 0.0
    %3485 = vmatprep.subr.mxu0 0.0
    %3486 = vmatpush1.xpose.msra.mxu0 0.0
    %3487 = vmatprep.mubr.f32.mxu0 0.0
    %3488 = vmatmul.mubr.f32.gmra.mrb[0].mxu0 %v3418
    %v3489 = vpop.f32.mrb[0].mxu0
    %v3490 = vadd.f32 %v438, %v3489
    %v3491 = vpop.f32.mrb[0].mxu0
    %3492 = vdwg.mxu0
    %v3494 = vsel %vm445, %v3238, 0
    %v3497 = vsel %vm445, %v3326, 0
    %3499 = vmatprep.subr.mxu0 0.0
    %3500 = vmatpush1.xpose.msra.mxu0 %v3497
    %3501 = vmatprep.subr.mxu0 0.0
    %3502 = vmatpush1.xpose.msra.mxu0 0.0
    %3503 = vmatprep.subr.mxu0 0.0
    %3504 = vmatpush1.xpose.msra.mxu0 0.0
    %3505 = vmatprep.subr.mxu0 0.0
    %3506 = vmatpush1.xpose.msra.mxu0 0.0
    %3507 = vmatprep.subr.mxu0 0.0
    %3508 = vmatpush1.xpose.msra.mxu0 0.0
    %3509 = vmatprep.subr.mxu0 0.0
    %3510 = vmatpush1.xpose.msra.mxu0 0.0
    %3511 = vmatprep.subr.mxu0 0.0
    %3512 = vmatpush1.xpose.msra.mxu0 0.0
    %3513 = vmatprep.subr.mxu0 0.0
    %3514 = vmatpush1.xpose.msra.mxu0 0.0
    %3515 = vmatprep.subr.mxu0 0.0
    %3516 = vmatpush1.xpose.msra.mxu0 0.0
    %3517 = vmatprep.subr.mxu0 0.0
    %3518 = vmatpush1.xpose.msra.mxu0 0.0
    %3519 = vmatprep.subr.mxu0 0.0
    %3520 = vmatpush1.xpose.msra.mxu0 0.0
    %3521 = vmatprep.subr.mxu0 0.0
    %3522 = vmatpush1.xpose.msra.mxu0 0.0
    %3523 = vmatprep.subr.mxu0 0.0
    %3524 = vmatpush1.xpose.msra.mxu0 0.0
    %3525 = vmatprep.subr.mxu0 0.0
    %3526 = vmatpush1.xpose.msra.mxu0 0.0
    %3527 = vmatprep.subr.mxu0 0.0
    %3528 = vmatpush1.xpose.msra.mxu0 0.0
    %3529 = vmatprep.subr.mxu0 0.0
    %3530 = vmatpush1.xpose.msra.mxu0 0.0
    %3531 = vmatprep.subr.mxu0 0.0
    %3532 = vmatpush1.xpose.msra.mxu0 0.0
    %3533 = vmatprep.subr.mxu0 0.0
    %3534 = vmatpush1.xpose.msra.mxu0 0.0
    %3535 = vmatprep.subr.mxu0 0.0
    %3536 = vmatpush1.xpose.msra.mxu0 0.0
    %3537 = vmatprep.subr.mxu0 0.0
    %3538 = vmatpush1.xpose.msra.mxu0 0.0
    %3539 = vmatprep.subr.mxu0 0.0
    %3540 = vmatpush1.xpose.msra.mxu0 0.0
    %3541 = vmatprep.subr.mxu0 0.0
    %3542 = vmatpush1.xpose.msra.mxu0 0.0
    %3543 = vmatprep.subr.mxu0 0.0
    %3544 = vmatpush1.xpose.msra.mxu0 0.0
    %3545 = vmatprep.subr.mxu0 0.0
    %3546 = vmatpush1.xpose.msra.mxu0 0.0
    %3547 = vmatprep.subr.mxu0 0.0
    %3548 = vmatpush1.xpose.msra.mxu0 0.0
    %3549 = vmatprep.subr.mxu0 0.0
    %3550 = vmatpush1.xpose.msra.mxu0 0.0
    %3551 = vmatprep.subr.mxu0 0.0
    %3552 = vmatpush1.xpose.msra.mxu0 0.0
    %3553 = vmatprep.subr.mxu0 0.0
    %3554 = vmatpush1.xpose.msra.mxu0 0.0
    %3555 = vmatprep.subr.mxu0 0.0
    %3556 = vmatpush1.xpose.msra.mxu0 0.0
    %3557 = vmatprep.subr.mxu0 0.0
    %3558 = vmatpush1.xpose.msra.mxu0 0.0
    %3559 = vmatprep.subr.mxu0 0.0
    %3560 = vmatpush1.xpose.msra.mxu0 0.0
    %3561 = vmatprep.subr.mxu0 0.0
    %3562 = vmatpush1.xpose.msra.mxu0 0.0
    %3563 = vmatprep.mubr.f32.mxu0 0.0
    %3564 = vmatmul.mubr.f32.gmra.mrb[0].mxu0 %v3494
    %v3565 = vpop.f32.mrb[0].mxu0
    %v3566 = vadd.f32 %v442, %v3565
    %v3567 = vpop.f32.mrb[0].mxu0
    %3568 = vdwg.mxu0
    %v3569 = vsel %vm445, %v3490, -inf
    %3570 = vmax.xlane.f32.xlu0 %v3569
    %v3571 = vpop.xlane.xlu0 %3570
    %v3572 = vsel %vm445, %v3566, -inf
    %3573 = vmax.xlane.f32.xlu0 %v3572
    %v3574 = vpop.xlane.xlu0 %3573
    %v3575 = vsub.f32 %v3490, %v3571
    %v3576 = vsub.f32 %v3566, %v3574
    %v3577 = vmul.f32 %v3575, 1.442695
    %v3578 = vpow.pop %v3577
    %v3579 = vmul.f32 %v3576, 1.442695
    %v3580 = vpow.pop %v3579
    %v3581 = vsel %vm445, %v3578, 0.0
    %3582 = vadd.xlane.f32.xlu0 %v3581
    %v3583 = vpop.xlane.xlu0 %3582
    %v3584 = vsel %vm445, %v3580, 0.0
    %3585 = vadd.xlane.f32.xlu0 %v3584
    %v3586 = vpop.xlane.xlu0 %3585
    %v3587 = vrcp.pop %v3583
    %v3588 = vrcp.pop %v3586
    %v3589 = vmul.f32 %v3578, %v3587
    %v3590 = vmul.f32 %v3580, %v3588
    %v3592 = vsel %vm445, %v3589, 0
    %3594 = vmatprep.subr.mxu0 0.0
    %3595 = vmatpush1.msra.mxu0 %v3409
    %3596 = vmatprep.subr.mxu0 0.0
    %3597 = vmatpush1.msra.mxu0 0.0
    %3598 = vmatprep.subr.mxu0 0.0
    %3599 = vmatpush1.msra.mxu0 0.0
    %3600 = vmatprep.subr.mxu0 0.0
    %3601 = vmatpush1.msra.mxu0 0.0
    %3602 = vmatprep.subr.mxu0 0.0
    %3603 = vmatpush1.msra.mxu0 0.0
    %3604 = vmatprep.subr.mxu0 0.0
    %3605 = vmatpush1.msra.mxu0 0.0
    %3606 = vmatprep.subr.mxu0 0.0
    %3607 = vmatpush1.msra.mxu0 0.0
    %3608 = vmatprep.subr.mxu0 0.0
    %3609 = vmatpush1.msra.mxu0 0.0
    %3610 = vmatprep.subr.mxu0 0.0
    %3611 = vmatpush1.msra.mxu0 0.0
    %3612 = vmatprep.subr.mxu0 0.0
    %3613 = vmatpush1.msra.mxu0 0.0
    %3614 = vmatprep.subr.mxu0 0.0
    %3615 = vmatpush1.msra.mxu0 0.0
    %3616 = vmatprep.subr.mxu0 0.0
    %3617 = vmatpush1.msra.mxu0 0.0
    %3618 = vmatprep.subr.mxu0 0.0
    %3619 = vmatpush1.msra.mxu0 0.0
    %3620 = vmatprep.subr.mxu0 0.0
    %3621 = vmatpush1.msra.mxu0 0.0
    %3622 = vmatprep.subr.mxu0 0.0
    %3623 = vmatpush1.msra.mxu0 0.0
    %3624 = vmatprep.subr.mxu0 0.0
    %3625 = vmatpush1.msra.mxu0 0.0
    %3626 = vmatprep.subr.mxu0 0.0
    %3627 = vmatpush1.msra.mxu0 0.0
    %3628 = vmatprep.subr.mxu0 0.0
    %3629 = vmatpush1.msra.mxu0 0.0
    %3630 = vmatprep.subr.mxu0 0.0
    %3631 = vmatpush1.msra.mxu0 0.0
    %3632 = vmatprep.subr.mxu0 0.0
    %3633 = vmatpush1.msra.mxu0 0.0
    %3634 = vmatprep.subr.mxu0 0.0
    %3635 = vmatpush1.msra.mxu0 0.0
    %3636 = vmatprep.subr.mxu0 0.0
    %3637 = vmatpush1.msra.mxu0 0.0
    %3638 = vmatprep.subr.mxu0 0.0
    %3639 = vmatpush1.msra.mxu0 0.0
    %3640 = vmatprep.subr.mxu0 0.0
    %3641 = vmatpush1.msra.mxu0 0.0
    %3642 = vmatprep.subr.mxu0 0.0
    %3643 = vmatpush1.msra.mxu0 0.0
    %3644 = vmatprep.subr.mxu0 0.0
    %3645 = vmatpush1.msra.mxu0 0.0
    %3646 = vmatprep.subr.mxu0 0.0
    %3647 = vmatpush1.msra.mxu0 0.0
    %3648 = vmatprep.subr.mxu0 0.0
    %3649 = vmatpush1.msra.mxu0 0.0
    %3650 = vmatprep.subr.mxu0 0.0
    %3651 = vmatpush1.msra.mxu0 0.0
    %3652 = vmatprep.subr.mxu0 0.0
    %3653 = vmatpush1.msra.mxu0 0.0
    %3654 = vmatprep.subr.mxu0 0.0
    %3655 = vmatpush1.msra.mxu0 0.0
    %3656 = vmatprep.subr.mxu0 0.0
    %3657 = vmatpush1.msra.mxu0 0.0
    %3658 = vmatprep.mubr.f32.mxu0 0.0
    %3659 = vmatmul.mubr.f32.gmra.mrb[0].mxu0 %v3592
    %v3660 = vpop.f32.mrb[0].mxu0
    %v3661 = vadd.f32 0.0, %v3660
    %v3662 = vpop.f32.mrb[0].mxu0
    %3663 = vdwg.mxu0
    %v3665 = vsel %vm445, %v3590, 0
    %3667 = vmatprep.subr.mxu0 0.0
    %3668 = vmatpush1.msra.mxu0 %v3414
    %3669 = vmatprep.subr.mxu0 0.0
    %3670 = vmatpush1.msra.mxu0 0.0
    %3671 = vmatprep.subr.mxu0 0.0
    %3672 = vmatpush1.msra.mxu0 0.0
    %3673 = vmatprep.subr.mxu0 0.0
    %3674 = vmatpush1.msra.mxu0 0.0
    %3675 = vmatprep.subr.mxu0 0.0
    %3676 = vmatpush1.msra.mxu0 0.0
    %3677 = vmatprep.subr.mxu0 0.0
    %3678 = vmatpush1.msra.mxu0 0.0
    %3679 = vmatprep.subr.mxu0 0.0
    %3680 = vmatpush1.msra.mxu0 0.0
    %3681 = vmatprep.subr.mxu0 0.0
    %3682 = vmatpush1.msra.mxu0 0.0
    %3683 = vmatprep.subr.mxu0 0.0
    %3684 = vmatpush1.msra.mxu0 0.0
    %3685 = vmatprep.subr.mxu0 0.0
    %3686 = vmatpush1.msra.mxu0 0.0
    %3687 = vmatprep.subr.mxu0 0.0
    %3688 = vmatpush1.msra.mxu0 0.0
    %3689 = vmatprep.subr.mxu0 0.0
    %3690 = vmatpush1.msra.mxu0 0.0
    %3691 = vmatprep.subr.mxu0 0.0
    %3692 = vmatpush1.msra.mxu0 0.0
    %3693 = vmatprep.subr.mxu0 0.0
    %3694 = vmatpush1.msra.mxu0 0.0
    %3695 = vmatprep.subr.mxu0 0.0
    %3696 = vmatpush1.msra.mxu0 0.0
    %3697 = vmatprep.subr.mxu0 0.0
    %3698 = vmatpush1.msra.mxu0 0.0
    %3699 = vmatprep.subr.mxu0 0.0
    %3700 = vmatpush1.msra.mxu0 0.0
    %3701 = vmatprep.subr.mxu0 0.0
    %3702 = vmatpush1.msra.mxu0 0.0
    %3703 = vmatprep.subr.mxu0 0.0
    %3704 = vmatpush1.msra.mxu0 0.0
    %3705 = vmatprep.subr.mxu0 0.0
    %3706 = vmatpush1.msra.mxu0 0.0
    %3707 = vmatprep.subr.mxu0 0.0
    %3708 = vmatpush1.msra.mxu0 0.0
    %3709 = vmatprep.subr.mxu0 0.0
    %3710 = vmatpush1.msra.mxu0 0.0
    %3711 = vmatprep.subr.mxu0 0.0
    %3712 = vmatpush1.msra.mxu0 0.0
    %3713 = vmatprep.subr.mxu0 0.0
    %3714 = vmatpush1.msra.mxu0 0.0
    %3715 = vmatprep.subr.mxu0 0.0
    %3716 = vmatpush1.msra.mxu0 0.0
    %3717 = vmatprep.subr.mxu0 0.0
    %3718 = vmatpush1.msra.mxu0 0.0
    %3719 = vmatprep.subr.mxu0 0.0
    %3720 = vmatpush1.msra.mxu0 0.0
    %3721 = vmatprep.subr.mxu0 0.0
    %3722 = vmatpush1.msra.mxu0 0.0
    %3723 = vmatprep.subr.mxu0 0.0
    %3724 = vmatpush1.msra.mxu0 0.0
    %3725 = vmatprep.subr.mxu0 0.0
    %3726 = vmatpush1.msra.mxu0 0.0
    %3727 = vmatprep.subr.mxu0 0.0
    %3728 = vmatpush1.msra.mxu0 0.0
    %3729 = vmatprep.subr.mxu0 0.0
    %3730 = vmatpush1.msra.mxu0 0.0
    %3731 = vmatprep.mubr.f32.mxu0 0.0
    %3732 = vmatmul.mubr.f32.gmra.mrb[0].mxu0 %v3665
    %v3733 = vpop.f32.mrb[0].mxu0
    %v3734 = vadd.f32 0.0, %v3733
    %v3735 = vpop.f32.mrb[0].mxu0
    %3736 = vdwg.mxu0
    %s3737 = scalar_lea.vmem %s11, 32
    %v3738 = vld [vmem:[%s3737] sm:$0xff]
    %s3739 = scalar_lea.vmem %s5, 160
    %v3740 = vld [vmem:[%s3739] sm:$0xff]
    %v3741 = vld [vmem:[%s3739 + $0x8] sm:$0xff]
    %v3742 = vld [vmem:[%s3739 + $0x10] sm:$0xff]
    %v3743 = vld [vmem:[%s3739 + $0x18] sm:$0xff]
    %s3744 = scalar_lea.vmem %s6, 5
    %v3745 = vld [vmem:[%s3744] sm:$0x1]
    %v3747 = vlaneseq
    %v3748 = vshrl.u32 %v3747, 7
    %v3749 = vsub.s32 0, %v3748
    %v3750 = vrot.slane %v3745, %v3749
    %3752 = vmatprep.subr.mxu0 0.0
    %3753 = vmatpush1.msra.mxu0 %v3740
    %3754 = vmatprep.subr.mxu0 0.0
    %3755 = vmatpush1.msra.mxu0 %v3741
    %3756 = vmatprep.subr.mxu0 0.0
    %3757 = vmatpush1.msra.mxu0 %v3742
    %3758 = vmatprep.subr.mxu0 0.0
    %3759 = vmatpush1.msra.mxu0 %v3743
    %3760 = vmatprep.subr.mxu0 0.0
    %3761 = vmatpush1.msra.mxu0 0.0
    %3762 = vmatprep.subr.mxu0 0.0
    %3763 = vmatpush1.msra.mxu0 0.0
    %3764 = vmatprep.subr.mxu0 0.0
    %3765 = vmatpush1.msra.mxu0 0.0
    %3766 = vmatprep.subr.mxu0 0.0
    %3767 = vmatpush1.msra.mxu0 0.0
    %3768 = vmatprep.subr.mxu0 0.0
    %3769 = vmatpush1.msra.mxu0 0.0
    %3770 = vmatprep.subr.mxu0 0.0
    %3771 = vmatpush1.msra.mxu0 0.0
    %3772 = vmatprep.subr.mxu0 0.0
    %3773 = vmatpush1.msra.mxu0 0.0
    %3774 = vmatprep.subr.mxu0 0.0
    %3775 = vmatpush1.msra.mxu0 0.0
    %3776 = vmatprep.subr.mxu0 0.0
    %3777 = vmatpush1.msra.mxu0 0.0
    %3778 = vmatprep.subr.mxu0 0.0
    %3779 = vmatpush1.msra.mxu0 0.0
    %3780 = vmatprep.subr.mxu0 0.0
    %3781 = vmatpush1.msra.mxu0 0.0
    %3782 = vmatprep.subr.mxu0 0.0
    %3783 = vmatpush1.msra.mxu0 0.0
    %3784 = vmatprep.subr.mxu0 0.0
    %3785 = vmatpush1.msra.mxu0 0.0
    %3786 = vmatprep.subr.mxu0 0.0
    %3787 = vmatpush1.msra.mxu0 0.0
    %3788 = vmatprep.subr.mxu0 0.0
    %3789 = vmatpush1.msra.mxu0 0.0
    %3790 = vmatprep.subr.mxu0 0.0
    %3791 = vmatpush1.msra.mxu0 0.0
    %3792 = vmatprep.subr.mxu0 0.0
    %3793 = vmatpush1.msra.mxu0 0.0
    %3794 = vmatprep.subr.mxu0 0.0
    %3795 = vmatpush1.msra.mxu0 0.0
    %3796 = vmatprep.subr.mxu0 0.0
    %3797 = vmatpush1.msra.mxu0 0.0
    %3798 = vmatprep.subr.mxu0 0.0
    %3799 = vmatpush1.msra.mxu0 0.0
    %3800 = vmatprep.subr.mxu0 0.0
    %3801 = vmatpush1.msra.mxu0 0.0
    %3802 = vmatprep.subr.mxu0 0.0
    %3803 = vmatpush1.msra.mxu0 0.0
    %3804 = vmatprep.subr.mxu0 0.0
    %3805 = vmatpush1.msra.mxu0 0.0
    %3806 = vmatprep.subr.mxu0 0.0
    %3807 = vmatpush1.msra.mxu0 0.0
    %3808 = vmatprep.subr.mxu0 0.0
    %3809 = vmatpush1.msra.mxu0 0.0
    %3810 = vmatprep.subr.mxu0 0.0
    %3811 = vmatpush1.msra.mxu0 0.0
    %3812 = vmatprep.subr.mxu0 0.0
    %3813 = vmatpush1.msra.mxu0 0.0
    %3814 = vmatprep.subr.mxu0 0.0
    %3815 = vmatpush1.msra.mxu0 0.0
    %3816 = vmatprep.mubr.f32.mxu0 0.0
    %3817 = vmatmul.mubr.f32.gmra.mrb[0].mxu0 %v3161
    %v3818 = vpop.f32.mrb[0].mxu0
    %v3819 = vadd.f32 %v3750, %v3818
    %v3820 = vpop.f32.mrb[0].mxu0
    %3821 = vmatprep.mubr.f32.mxu0 0.0
    %3822 = vmatmul.mubr.f32.gmra.mrb[0].mxu0 %v3164
    %v3823 = vpop.f32.mrb[0].mxu0
    %v3824 = vadd.f32 %v3750, %v3823
    %v3825 = vpop.f32.mrb[0].mxu0
    %3826 = vdwg.mxu0
    %s3827 = scalar_lea.vmem %s7, 160
    %v3828 = vld [vmem:[%s3827] sm:$0xff]
    %v3829 = vld [vmem:[%s3827 + $0x8] sm:$0xff]
    %v3830 = vld [vmem:[%s3827 + $0x10] sm:$0xff]
    %v3831 = vld [vmem:[%s3827 + $0x18] sm:$0xff]
    %s3832 = scalar_lea.vmem %s8, 5
    %v3833 = vld [vmem:[%s3832] sm:$0x1]
    %v3835 = vlaneseq
    %v3836 = vshrl.u32 %v3835, 7
    %v3837 = vsub.s32 0, %v3836
    %v3838 = vrot.slane %v3833, %v3837
    %3840 = vmatprep.subr.mxu0 0.0
    %3841 = vmatpush1.msra.mxu0 %v3828
    %3842 = vmatprep.subr.mxu0 0.0
    %3843 = vmatpush1.msra.mxu0 %v3829
    %3844 = vmatprep.subr.mxu0 0.0
    %3845 = vmatpush1.msra.mxu0 %v3830
    %3846 = vmatprep.subr.mxu0 0.0
    %3847 = vmatpush1.msra.mxu0 %v3831
    %3848 = vmatprep.subr.mxu0 0.0
    %3849 = vmatpush1.msra.mxu0 0.0
    %3850 = vmatprep.subr.mxu0 0.0
    %3851 = vmatpush1.msra.mxu0 0.0
    %3852 = vmatprep.subr.mxu0 0.0
    %3853 = vmatpush1.msra.mxu0 0.0
    %3854 = vmatprep.subr.mxu0 0.0
    %3855 = vmatpush1.msra.mxu0 0.0
    %3856 = vmatprep.subr.mxu0 0.0
    %3857 = vmatpush1.msra.mxu0 0.0
    %3858 = vmatprep.subr.mxu0 0.0
    %3859 = vmatpush1.msra.mxu0 0.0
    %3860 = vmatprep.subr.mxu0 0.0
    %3861 = vmatpush1.msra.mxu0 0.0
    %3862 = vmatprep.subr.mxu0 0.0
    %3863 = vmatpush1.msra.mxu0 0.0
    %3864 = vmatprep.subr.mxu0 0.0
    %3865 = vmatpush1.msra.mxu0 0.0
    %3866 = vmatprep.subr.mxu0 0.0
    %3867 = vmatpush1.msra.mxu0 0.0
    %3868 = vmatprep.subr.mxu0 0.0
    %3869 = vmatpush1.msra.mxu0 0.0
    %3870 = vmatprep.subr.mxu0 0.0
    %3871 = vmatpush1.msra.mxu0 0.0
    %3872 = vmatprep.subr.mxu0 0.0
    %3873 = vmatpush1.msra.mxu0 0.0
    %3874 = vmatprep.subr.mxu0 0.0
    %3875 = vmatpush1.msra.mxu0 0.0
    %3876 = vmatprep.subr.mxu0 0.0
    %3877 = vmatpush1.msra.mxu0 0.0
    %3878 = vmatprep.subr.mxu0 0.0
    %3879 = vmatpush1.msra.mxu0 0.0
    %3880 = vmatprep.subr.mxu0 0.0
    %3881 = vmatpush1.msra.mxu0 0.0
    %3882 = vmatprep.subr.mxu0 0.0
    %3883 = vmatpush1.msra.mxu0 0.0
    %3884 = vmatprep.subr.mxu0 0.0
    %3885 = vmatpush1.msra.mxu0 0.0
    %3886 = vmatprep.subr.mxu0 0.0
    %3887 = vmatpush1.msra.mxu0 0.0
    %3888 = vmatprep.subr.mxu0 0.0
    %3889 = vmatpush1.msra.mxu0 0.0
    %3890 = vmatprep.subr.mxu0 0.0
    %3891 = vmatpush1.msra.mxu0 0.0
    %3892 = vmatprep.subr.mxu0 0.0
    %3893 = vmatpush1.msra.mxu0 0.0
    %3894 = vmatprep.subr.mxu0 0.0
    %3895 = vmatpush1.msra.mxu0 0.0
    %3896 = vmatprep.subr.mxu0 0.0
    %3897 = vmatpush1.msra.mxu0 0.0
    %3898 = vmatprep.subr.mxu0 0.0
    %3899 = vmatpush1.msra.mxu0 0.0
    %3900 = vmatprep.subr.mxu0 0.0
    %3901 = vmatpush1.msra.mxu0 0.0
    %3902 = vmatprep.subr.mxu0 0.0
    %3903 = vmatpush1.msra.mxu0 0.0
    %3904 = vmatprep.mubr.f32.mxu0 0.0
    %3905 = vmatmul.mubr.f32.gmra.mrb[0].mxu0 %v3161
    %v3906 = vpop.f32.mrb[0].mxu0
    %v3907 = vadd.f32 %v3838, %v3906
    %v3908 = vpop.f32.mrb[0].mxu0
    %3909 = vmatprep.mubr.f32.mxu0 0.0
    %3910 = vmatmul.mubr.f32.gmra.mrb[0].mxu0 %v3164
    %v3911 = vpop.f32.mrb[0].mxu0
    %v3912 = vadd.f32 %v3838, %v3911
    %v3913 = vpop.f32.mrb[0].mxu0
    %3914 = vdwg.mxu0
    %s3915 = scalar_lea.vmem %s9, 160
    %v3916 = vld [vmem:[%s3915] sm:$0xff]
    %v3917 = vld [vmem:[%s3915 + $0x8] sm:$0xff]
    %v3918 = vld [vmem:[%s3915 + $0x10] sm:$0xff]
    %v3919 = vld [vmem:[%s3915 + $0x18] sm:$0xff]
    %s3920 = scalar_lea.vmem %s10, 5
    %v3921 = vld [vmem:[%s3920] sm:$0x1]
    %v3923 = vlaneseq
    %v3924 = vshrl.u32 %v3923, 7
    %v3925 = vsub.s32 0, %v3924
    %v3926 = vrot.slane %v3921, %v3925
    %3928 = vmatprep.subr.mxu0 0.0
    %3929 = vmatpush1.msra.mxu0 %v3916
    %3930 = vmatprep.subr.mxu0 0.0
    %3931 = vmatpush1.msra.mxu0 %v3917
    %3932 = vmatprep.subr.mxu0 0.0
    %3933 = vmatpush1.msra.mxu0 %v3918
    %3934 = vmatprep.subr.mxu0 0.0
    %3935 = vmatpush1.msra.mxu0 %v3919
    %3936 = vmatprep.subr.mxu0 0.0
    %3937 = vmatpush1.msra.mxu0 0.0
    %3938 = vmatprep.subr.mxu0 0.0
    %3939 = vmatpush1.msra.mxu0 0.0
    %3940 = vmatprep.subr.mxu0 0.0
    %3941 = vmatpush1.msra.mxu0 0.0
    %3942 = vmatprep.subr.mxu0 0.0
    %3943 = vmatpush1.msra.mxu0 0.0
    %3944 = vmatprep.subr.mxu0 0.0
    %3945 = vmatpush1.msra.mxu0 0.0
    %3946 = vmatprep.subr.mxu0 0.0
    %3947 = vmatpush1.msra.mxu0 0.0
    %3948 = vmatprep.subr.mxu0 0.0
    %3949 = vmatpush1.msra.mxu0 0.0
    %3950 = vmatprep.subr.mxu0 0.0
    %3951 = vmatpush1.msra.mxu0 0.0
    %3952 = vmatprep.subr.mxu0 0.0
    %3953 = vmatpush1.msra.mxu0 0.0
    %3954 = vmatprep.subr.mxu0 0.0
    %3955 = vmatpush1.msra.mxu0 0.0
    %3956 = vmatprep.subr.mxu0 0.0
    %3957 = vmatpush1.msra.mxu0 0.0
    %3958 = vmatprep.subr.mxu0 0.0
    %3959 = vmatpush1.msra.mxu0 0.0
    %3960 = vmatprep.subr.mxu0 0.0
    %3961 = vmatpush1.msra.mxu0 0.0
    %3962 = vmatprep.subr.mxu0 0.0
    %3963 = vmatpush1.msra.mxu0 0.0
    %3964 = vmatprep.subr.mxu0 0.0
    %3965 = vmatpush1.msra.mxu0 0.0
    %3966 = vmatprep.subr.mxu0 0.0
    %3967 = vmatpush1.msra.mxu0 0.0
    %3968 = vmatprep.subr.mxu0 0.0
    %3969 = vmatpush1.msra.mxu0 0.0
    %3970 = vmatprep.subr.mxu0 0.0
    %3971 = vmatpush1.msra.mxu0 0.0
    %3972 = vmatprep.subr.mxu0 0.0
    %3973 = vmatpush1.msra.mxu0 0.0
    %3974 = vmatprep.subr.mxu0 0.0
    %3975 = vmatpush1.msra.mxu0 0.0
    %3976 = vmatprep.subr.mxu0 0.0
    %3977 = vmatpush1.msra.mxu0 0.0
    %3978 = vmatprep.subr.mxu0 0.0
    %3979 = vmatpush1.msra.mxu0 0.0
    %3980 = vmatprep.subr.mxu0 0.0
    %3981 = vmatpush1.msra.mxu0 0.0
    %3982 = vmatprep.subr.mxu0 0.0
    %3983 = vmatpush1.msra.mxu0 0.0
    %3984 = vmatprep.subr.mxu0 0.0
    %3985 = vmatpush1.msra.mxu0 0.0
    %3986 = vmatprep.subr.mxu0 0.0
    %3987 = vmatpush1.msra.mxu0 0.0
    %3988 = vmatprep.subr.mxu0 0.0
    %3989 = vmatpush1.msra.mxu0 0.0
    %3990 = vmatprep.subr.mxu0 0.0
    %3991 = vmatpush1.msra.mxu0 0.0
    %3992 = vmatprep.mubr.f32.mxu0 0.0
    %3993 = vmatmul.mubr.f32.gmra.mrb[0].mxu0 %v3161
    %v3994 = vpop.f32.mrb[0].mxu0
    %v3995 = vadd.f32 %v3926, %v3994
    %v3996 = vpop.f32.mrb[0].mxu0
    %3997 = vmatprep.mubr.f32.mxu0 0.0
    %3998 = vmatmul.mubr.f32.gmra.mrb[0].mxu0 %v3164
    %v3999 = vpop.f32.mrb[0].mxu0
    %v4000 = vadd.f32 %v3926, %v3999
    %v4001 = vpop.f32.mrb[0].mxu0
    %4002 = vdwg.mxu0
    %v4004 = vsel %vm445, %v3819, 0
    %v4007 = vsel %vm445, %v3907, 0
    %4009 = vmatprep.subr.mxu0 0.0
    %4010 = vmatpush1.xpose.msra.mxu0 %v4007
    %4011 = vmatprep.subr.mxu0 0.0
    %4012 = vmatpush1.xpose.msra.mxu0 0.0
    %4013 = vmatprep.subr.mxu0 0.0
    %4014 = vmatpush1.xpose.msra.mxu0 0.0
    %4015 = vmatprep.subr.mxu0 0.0
    %4016 = vmatpush1.xpose.msra.mxu0 0.0
    %4017 = vmatprep.subr.mxu0 0.0
    %4018 = vmatpush1.xpose.msra.mxu0 0.0
    %4019 = vmatprep.subr.mxu0 0.0
    %4020 = vmatpush1.xpose.msra.mxu0 0.0
    %4021 = vmatprep.subr.mxu0 0.0
    %4022 = vmatpush1.xpose.msra.mxu0 0.0
    %4023 = vmatprep.subr.mxu0 0.0
    %4024 = vmatpush1.xpose.msra.mxu0 0.0
    %4025 = vmatprep.subr.mxu0 0.0
    %4026 = vmatpush1.xpose.msra.mxu0 0.0
    %4027 = vmatprep.subr.mxu0 0.0
    %4028 = vmatpush1.xpose.msra.mxu0 0.0
    %4029 = vmatprep.subr.mxu0 0.0
    %4030 = vmatpush1.xpose.msra.mxu0 0.0
    %4031 = vmatprep.subr.mxu0 0.0
    %4032 = vmatpush1.xpose.msra.mxu0 0.0
    %4033 = vmatprep.subr.mxu0 0.0
    %4034 = vmatpush1.xpose.msra.mxu0 0.0
    %4035 = vmatprep.subr.mxu0 0.0
    %4036 = vmatpush1.xpose.msra.mxu0 0.0
    %4037 = vmatprep.subr.mxu0 0.0
    %4038 = vmatpush1.xpose.msra.mxu0 0.0
    %4039 = vmatprep.subr.mxu0 0.0
    %4040 = vmatpush1.xpose.msra.mxu0 0.0
    %4041 = vmatprep.subr.mxu0 0.0
    %4042 = vmatpush1.xpose.msra.mxu0 0.0
    %4043 = vmatprep.subr.mxu0 0.0
    %4044 = vmatpush1.xpose.msra.mxu0 0.0
    %4045 = vmatprep.subr.mxu0 0.0
    %4046 = vmatpush1.xpose.msra.mxu0 0.0
    %4047 = vmatprep.subr.mxu0 0.0
    %4048 = vmatpush1.xpose.msra.mxu0 0.0
    %4049 = vmatprep.subr.mxu0 0.0
    %4050 = vmatpush1.xpose.msra.mxu0 0.0
    %4051 = vmatprep.subr.mxu0 0.0
    %4052 = vmatpush1.xpose.msra.mxu0 0.0
    %4053 = vmatprep.subr.mxu0 0.0
    %4054 = vmatpush1.xpose.msra.mxu0 0.0
    %4055 = vmatprep.subr.mxu0 0.0
    %4056 = vmatpush1.xpose.msra.mxu0 0.0
    %4057 = vmatprep.subr.mxu0 0.0
    %4058 = vmatpush1.xpose.msra.mxu0 0.0
    %4059 = vmatprep.subr.mxu0 0.0
    %4060 = vmatpush1.xpose.msra.mxu0 0.0
    %4061 = vmatprep.subr.mxu0 0.0
    %4062 = vmatpush1.xpose.msra.mxu0 0.0
    %4063 = vmatprep.subr.mxu0 0.0
    %4064 = vmatpush1.xpose.msra.mxu0 0.0
    %4065 = vmatprep.subr.mxu0 0.0
    %4066 = vmatpush1.xpose.msra.mxu0 0.0
    %4067 = vmatprep.subr.mxu0 0.0
    %4068 = vmatpush1.xpose.msra.mxu0 0.0
    %4069 = vmatprep.subr.mxu0 0.0
    %4070 = vmatpush1.xpose.msra.mxu0 0.0
    %4071 = vmatprep.subr.mxu0 0.0
    %4072 = vmatpush1.xpose.msra.mxu0 0.0
    %4073 = vmatprep.mubr.f32.mxu0 0.0
    %4074 = vmatmul.mubr.f32.gmra.mrb[0].mxu0 %v4004
    %v4075 = vpop.f32.mrb[0].mxu0
    %v4076 = vadd.f32 %v438, %v4075
    %v4077 = vpop.f32.mrb[0].mxu0
    %4078 = vdwg.mxu0
    %v4080 = vsel %vm445, %v3824, 0
    %v4083 = vsel %vm445, %v3912, 0
    %4085 = vmatprep.subr.mxu0 0.0
    %4086 = vmatpush1.xpose.msra.mxu0 %v4083
    %4087 = vmatprep.subr.mxu0 0.0
    %4088 = vmatpush1.xpose.msra.mxu0 0.0
    %4089 = vmatprep.subr.mxu0 0.0
    %4090 = vmatpush1.xpose.msra.mxu0 0.0
    %4091 = vmatprep.subr.mxu0 0.0
    %4092 = vmatpush1.xpose.msra.mxu0 0.0
    %4093 = vmatprep.subr.mxu0 0.0
    %4094 = vmatpush1.xpose.msra.mxu0 0.0
    %4095 = vmatprep.subr.mxu0 0.0
    %4096 = vmatpush1.xpose.msra.mxu0 0.0
    %4097 = vmatprep.subr.mxu0 0.0
    %4098 = vmatpush1.xpose.msra.mxu0 0.0
    %4099 = vmatprep.subr.mxu0 0.0
    %4100 = vmatpush1.xpose.msra.mxu0 0.0
    %4101 = vmatprep.subr.mxu0 0.0
    %4102 = vmatpush1.xpose.msra.mxu0 0.0
    %4103 = vmatprep.subr.mxu0 0.0
    %4104 = vmatpush1.xpose.msra.mxu0 0.0
    %4105 = vmatprep.subr.mxu0 0.0
    %4106 = vmatpush1.xpose.msra.mxu0 0.0
    %4107 = vmatprep.subr.mxu0 0.0
    %4108 = vmatpush1.xpose.msra.mxu0 0.0
    %4109 = vmatprep.subr.mxu0 0.0
    %4110 = vmatpush1.xpose.msra.mxu0 0.0
    %4111 = vmatprep.subr.mxu0 0.0
    %4112 = vmatpush1.xpose.msra.mxu0 0.0
    %4113 = vmatprep.subr.mxu0 0.0
    %4114 = vmatpush1.xpose.msra.mxu0 0.0
    %4115 = vmatprep.subr.mxu0 0.0
    %4116 = vmatpush1.xpose.msra.mxu0 0.0
    %4117 = vmatprep.subr.mxu0 0.0
    %4118 = vmatpush1.xpose.msra.mxu0 0.0
    %4119 = vmatprep.subr.mxu0 0.0
    %4120 = vmatpush1.xpose.msra.mxu0 0.0
    %4121 = vmatprep.subr.mxu0 0.0
    %4122 = vmatpush1.xpose.msra.mxu0 0.0
    %4123 = vmatprep.subr.mxu0 0.0
    %4124 = vmatpush1.xpose.msra.mxu0 0.0
    %4125 = vmatprep.subr.mxu0 0.0
    %4126 = vmatpush1.xpose.msra.mxu0 0.0
    %4127 = vmatprep.subr.mxu0 0.0
    %4128 = vmatpush1.xpose.msra.mxu0 0.0
    %4129 = vmatprep.subr.mxu0 0.0
    %4130 = vmatpush1.xpose.msra.mxu0 0.0
    %4131 = vmatprep.subr.mxu0 0.0
    %4132 = vmatpush1.xpose.msra.mxu0 0.0
    %4133 = vmatprep.subr.mxu0 0.0
    %4134 = vmatpush1.xpose.msra.mxu0 0.0
    %4135 = vmatprep.subr.mxu0 0.0
    %4136 = vmatpush1.xpose.msra.mxu0 0.0
    %4137 = vmatprep.subr.mxu0 0.0
    %4138 = vmatpush1.xpose.msra.mxu0 0.0
    %4139 = vmatprep.subr.mxu0 0.0
    %4140 = vmatpush1.xpose.msra.mxu0 0.0
    %4141 = vmatprep.subr.mxu0 0.0
    %4142 = vmatpush1.xpose.msra.mxu0 0.0
    %4143 = vmatprep.subr.mxu0 0.0
    %4144 = vmatpush1.xpose.msra.mxu0 0.0
    %4145 = vmatprep.subr.mxu0 0.0
    %4146 = vmatpush1.xpose.msra.mxu0 0.0
    %4147 = vmatprep.subr.mxu0 0.0
    %4148 = vmatpush1.xpose.msra.mxu0 0.0
    %4149 = vmatprep.mubr.f32.mxu0 0.0
    %4150 = vmatmul.mubr.f32.gmra.mrb[0].mxu0 %v4080
    %v4151 = vpop.f32.mrb[0].mxu0
    %v4152 = vadd.f32 %v442, %v4151
    %v4153 = vpop.f32.mrb[0].mxu0
    %4154 = vdwg.mxu0
    %v4155 = vsel %vm445, %v4076, -inf
    %4156 = vmax.xlane.f32.xlu0 %v4155
    %v4157 = vpop.xlane.xlu0 %4156
    %v4158 = vsel %vm445, %v4152, -inf
    %4159 = vmax.xlane.f32.xlu0 %v4158
    %v4160 = vpop.xlane.xlu0 %4159
    %v4161 = vsub.f32 %v4076, %v4157
    %v4162 = vsub.f32 %v4152, %v4160
    %v4163 = vmul.f32 %v4161, 1.442695
    %v4164 = vpow.pop %v4163
    %v4165 = vmul.f32 %v4162, 1.442695
    %v4166 = vpow.pop %v4165
    %v4167 = vsel %vm445, %v4164, 0.0
    %4168 = vadd.xlane.f32.xlu0 %v4167
    %v4169 = vpop.xlane.xlu0 %4168
    %v4170 = vsel %vm445, %v4166, 0.0
    %4171 = vadd.xlane.f32.xlu0 %v4170
    %v4172 = vpop.xlane.xlu0 %4171
    %v4173 = vrcp.pop %v4169
    %v4174 = vrcp.pop %v4172
    %v4175 = vmul.f32 %v4164, %v4173
    %v4176 = vmul.f32 %v4166, %v4174
    %v4178 = vsel %vm445, %v4175, 0
    %4180 = vmatprep.subr.mxu0 0.0
    %4181 = vmatpush1.msra.mxu0 %v3995
    %4182 = vmatprep.subr.mxu0 0.0
    %4183 = vmatpush1.msra.mxu0 0.0
    %4184 = vmatprep.subr.mxu0 0.0
    %4185 = vmatpush1.msra.mxu0 0.0
    %4186 = vmatprep.subr.mxu0 0.0
    %4187 = vmatpush1.msra.mxu0 0.0
    %4188 = vmatprep.subr.mxu0 0.0
    %4189 = vmatpush1.msra.mxu0 0.0
    %4190 = vmatprep.subr.mxu0 0.0
    %4191 = vmatpush1.msra.mxu0 0.0
    %4192 = vmatprep.subr.mxu0 0.0
    %4193 = vmatpush1.msra.mxu0 0.0
    %4194 = vmatprep.subr.mxu0 0.0
    %4195 = vmatpush1.msra.mxu0 0.0
    %4196 = vmatprep.subr.mxu0 0.0
    %4197 = vmatpush1.msra.mxu0 0.0
    %4198 = vmatprep.subr.mxu0 0.0
    %4199 = vmatpush1.msra.mxu0 0.0
    %4200 = vmatprep.subr.mxu0 0.0
    %4201 = vmatpush1.msra.mxu0 0.0
    %4202 = vmatprep.subr.mxu0 0.0
    %4203 = vmatpush1.msra.mxu0 0.0
    %4204 = vmatprep.subr.mxu0 0.0
    %4205 = vmatpush1.msra.mxu0 0.0
    %4206 = vmatprep.subr.mxu0 0.0
    %4207 = vmatpush1.msra.mxu0 0.0
    %4208 = vmatprep.subr.mxu0 0.0
    %4209 = vmatpush1.msra.mxu0 0.0
    %4210 = vmatprep.subr.mxu0 0.0
    %4211 = vmatpush1.msra.mxu0 0.0
    %4212 = vmatprep.subr.mxu0 0.0
    %4213 = vmatpush1.msra.mxu0 0.0
    %4214 = vmatprep.subr.mxu0 0.0
    %4215 = vmatpush1.msra.mxu0 0.0
    %4216 = vmatprep.subr.mxu0 0.0
    %4217 = vmatpush1.msra.mxu0 0.0
    %4218 = vmatprep.subr.mxu0 0.0
    %4219 = vmatpush1.msra.mxu0 0.0
    %4220 = vmatprep.subr.mxu0 0.0
    %4221 = vmatpush1.msra.mxu0 0.0
    %4222 = vmatprep.subr.mxu0 0.0
    %4223 = vmatpush1.msra.mxu0 0.0
    %4224 = vmatprep.subr.mxu0 0.0
    %4225 = vmatpush1.msra.mxu0 0.0
    %4226 = vmatprep.subr.mxu0 0.0
    %4227 = vmatpush1.msra.mxu0 0.0
    %4228 = vmatprep.subr.mxu0 0.0
    %4229 = vmatpush1.msra.mxu0 0.0
    %4230 = vmatprep.subr.mxu0 0.0
    %4231 = vmatpush1.msra.mxu0 0.0
    %4232 = vmatprep.subr.mxu0 0.0
    %4233 = vmatpush1.msra.mxu0 0.0
    %4234 = vmatprep.subr.mxu0 0.0
    %4235 = vmatpush1.msra.mxu0 0.0
    %4236 = vmatprep.subr.mxu0 0.0
    %4237 = vmatpush1.msra.mxu0 0.0
    %4238 = vmatprep.subr.mxu0 0.0
    %4239 = vmatpush1.msra.mxu0 0.0
    %4240 = vmatprep.subr.mxu0 0.0
    %4241 = vmatpush1.msra.mxu0 0.0
    %4242 = vmatprep.subr.mxu0 0.0
    %4243 = vmatpush1.msra.mxu0 0.0
    %4244 = vmatprep.mubr.f32.mxu0 0.0
    %4245 = vmatmul.mubr.f32.gmra.mrb[0].mxu0 %v4178
    %v4246 = vpop.f32.mrb[0].mxu0
    %v4247 = vadd.f32 0.0, %v4246
    %v4248 = vpop.f32.mrb[0].mxu0
    %4249 = vdwg.mxu0
    %v4251 = vsel %vm445, %v4176, 0
    %4253 = vmatprep.subr.mxu0 0.0
    %4254 = vmatpush1.msra.mxu0 %v4000
    %4255 = vmatprep.subr.mxu0 0.0
    %4256 = vmatpush1.msra.mxu0 0.0
    %4257 = vmatprep.subr.mxu0 0.0
    %4258 = vmatpush1.msra.mxu0 0.0
    %4259 = vmatprep.subr.mxu0 0.0
    %4260 = vmatpush1.msra.mxu0 0.0
    %4261 = vmatprep.subr.mxu0 0.0
    %4262 = vmatpush1.msra.mxu0 0.0
    %4263 = vmatprep.subr.mxu0 0.0
    %4264 = vmatpush1.msra.mxu0 0.0
    %4265 = vmatprep.subr.mxu0 0.0
    %4266 = vmatpush1.msra.mxu0 0.0
    %4267 = vmatprep.subr.mxu0 0.0
    %4268 = vmatpush1.msra.mxu0 0.0
    %4269 = vmatprep.subr.mxu0 0.0
    %4270 = vmatpush1.msra.mxu0 0.0
    %4271 = vmatprep.subr.mxu0 0.0
    %4272 = vmatpush1.msra.mxu0 0.0
    %4273 = vmatprep.subr.mxu0 0.0
    %4274 = vmatpush1.msra.mxu0 0.0
    %4275 = vmatprep.subr.mxu0 0.0
    %4276 = vmatpush1.msra.mxu0 0.0
    %4277 = vmatprep.subr.mxu0 0.0
    %4278 = vmatpush1.msra.mxu0 0.0
    %4279 = vmatprep.subr.mxu0 0.0
    %4280 = vmatpush1.msra.mxu0 0.0
    %4281 = vmatprep.subr.mxu0 0.0
    %4282 = vmatpush1.msra.mxu0 0.0
    %4283 = vmatprep.subr.mxu0 0.0
    %4284 = vmatpush1.msra.mxu0 0.0
    %4285 = vmatprep.subr.mxu0 0.0
    %4286 = vmatpush1.msra.mxu0 0.0
    %4287 = vmatprep.subr.mxu0 0.0
    %4288 = vmatpush1.msra.mxu0 0.0
    %4289 = vmatprep.subr.mxu0 0.0
    %4290 = vmatpush1.msra.mxu0 0.0
    %4291 = vmatprep.subr.mxu0 0.0
    %4292 = vmatpush1.msra.mxu0 0.0
    %4293 = vmatprep.subr.mxu0 0.0
    %4294 = vmatpush1.msra.mxu0 0.0
    %4295 = vmatprep.subr.mxu0 0.0
    %4296 = vmatpush1.msra.mxu0 0.0
    %4297 = vmatprep.subr.mxu0 0.0
    %4298 = vmatpush1.msra.mxu0 0.0
    %4299 = vmatprep.subr.mxu0 0.0
    %4300 = vmatpush1.msra.mxu0 0.0
    %4301 = vmatprep.subr.mxu0 0.0
    %4302 = vmatpush1.msra.mxu0 0.0
    %4303 = vmatprep.subr.mxu0 0.0
    %4304 = vmatpush1.msra.mxu0 0.0
    %4305 = vmatprep.subr.mxu0 0.0
    %4306 = vmatpush1.msra.mxu0 0.0
    %4307 = vmatprep.subr.mxu0 0.0
    %4308 = vmatpush1.msra.mxu0 0.0
    %4309 = vmatprep.subr.mxu0 0.0
    %4310 = vmatpush1.msra.mxu0 0.0
    %4311 = vmatprep.subr.mxu0 0.0
    %4312 = vmatpush1.msra.mxu0 0.0
    %4313 = vmatprep.subr.mxu0 0.0
    %4314 = vmatpush1.msra.mxu0 0.0
    %4315 = vmatprep.subr.mxu0 0.0
    %4316 = vmatpush1.msra.mxu0 0.0
    %4317 = vmatprep.mubr.f32.mxu0 0.0
    %4318 = vmatmul.mubr.f32.gmra.mrb[0].mxu0 %v4251
    %v4319 = vpop.f32.mrb[0].mxu0
    %v4320 = vadd.f32 0.0, %v4319
    %v4321 = vpop.f32.mrb[0].mxu0
    %4322 = vdwg.mxu0
    %s4323 = scalar_lea.vmem %s11, 40
    %v4324 = vld [vmem:[%s4323] sm:$0xff]
    %v4326 = vsel %vm445, %v4247, 0
    %v4329 = vsel %vm445, %v4320, 0
    %4331 = vmatprep.subr.mxu0 0.0
    %4332 = vmatpush1.msra.mxu0 %v4324
    %4333 = vmatprep.subr.mxu0 0.0
    %4334 = vmatpush1.msra.mxu0 0.0
    %4335 = vmatprep.subr.mxu0 0.0
    %4336 = vmatpush1.msra.mxu0 0.0
    %4337 = vmatprep.subr.mxu0 0.0
    %4338 = vmatpush1.msra.mxu0 0.0
    %4339 = vmatprep.subr.mxu0 0.0
    %4340 = vmatpush1.msra.mxu0 0.0
    %4341 = vmatprep.subr.mxu0 0.0
    %4342 = vmatpush1.msra.mxu0 0.0
    %4343 = vmatprep.subr.mxu0 0.0
    %4344 = vmatpush1.msra.mxu0 0.0
    %4345 = vmatprep.subr.mxu0 0.0
    %4346 = vmatpush1.msra.mxu0 0.0
    %4347 = vmatprep.subr.mxu0 0.0
    %4348 = vmatpush1.msra.mxu0 0.0
    %4349 = vmatprep.subr.mxu0 0.0
    %4350 = vmatpush1.msra.mxu0 0.0
    %4351 = vmatprep.subr.mxu0 0.0
    %4352 = vmatpush1.msra.mxu0 0.0
    %4353 = vmatprep.subr.mxu0 0.0
    %4354 = vmatpush1.msra.mxu0 0.0
    %4355 = vmatprep.subr.mxu0 0.0
    %4356 = vmatpush1.msra.mxu0 0.0
    %4357 = vmatprep.subr.mxu0 0.0
    %4358 = vmatpush1.msra.mxu0 0.0
    %4359 = vmatprep.subr.mxu0 0.0
    %4360 = vmatpush1.msra.mxu0 0.0
    %4361 = vmatprep.subr.mxu0 0.0
    %4362 = vmatpush1.msra.mxu0 0.0
    %4363 = vmatprep.subr.mxu0 0.0
    %4364 = vmatpush1.msra.mxu0 0.0
    %4365 = vmatprep.subr.mxu0 0.0
    %4366 = vmatpush1.msra.mxu0 0.0
    %4367 = vmatprep.subr.mxu0 0.0
    %4368 = vmatpush1.msra.mxu0 0.0
    %4369 = vmatprep.subr.mxu0 0.0
    %4370 = vmatpush1.msra.mxu0 0.0
    %4371 = vmatprep.subr.mxu0 0.0
    %4372 = vmatpush1.msra.mxu0 0.0
    %4373 = vmatprep.subr.mxu0 0.0
    %4374 = vmatpush1.msra.mxu0 0.0
    %4375 = vmatprep.subr.mxu0 0.0
    %4376 = vmatpush1.msra.mxu0 0.0
    %4377 = vmatprep.subr.mxu0 0.0
    %4378 = vmatpush1.msra.mxu0 0.0
    %4379 = vmatprep.subr.mxu0 0.0
    %4380 = vmatpush1.msra.mxu0 0.0
    %4381 = vmatprep.subr.mxu0 0.0
    %4382 = vmatpush1.msra.mxu0 0.0
    %4383 = vmatprep.subr.mxu0 0.0
    %4384 = vmatpush1.msra.mxu0 0.0
    %4385 = vmatprep.subr.mxu0 0.0
    %4386 = vmatpush1.msra.mxu0 0.0
    %4387 = vmatprep.subr.mxu0 0.0
    %4388 = vmatpush1.msra.mxu0 0.0
    %4389 = vmatprep.subr.mxu0 0.0
    %4390 = vmatpush1.msra.mxu0 0.0
    %4391 = vmatprep.subr.mxu0 0.0
    %4392 = vmatpush1.msra.mxu0 0.0
    %4393 = vmatprep.subr.mxu0 0.0
    %4394 = vmatpush1.msra.mxu0 0.0
    %4395 = vmatprep.mubr.f32.mxu0 0.0
    %4396 = vmatmul.mubr.f32.gmra.mrb[0].mxu0 %v4326
    %v4397 = vpop.f32.mrb[0].mxu0
    %v4398 = vadd.f32 0.0, %v4397
    %v4399 = vpop.f32.mrb[0].mxu0
    %4400 = vmatprep.mubr.f32.mxu0 0.0
    %4401 = vmatmul.mubr.f32.gmra.mrb[0].mxu0 %v4329
    %v4402 = vpop.f32.mrb[0].mxu0
    %v4403 = vadd.f32 0.0, %v4402
    %v4404 = vpop.f32.mrb[0].mxu0
    %4405 = vdwg.mxu0
    %v4407 = vsel %vm445, %v3661, 0
    %v4410 = vsel %vm445, %v3734, 0
    %4412 = vmatprep.subr.mxu0 0.0
    %4413 = vmatpush1.msra.mxu0 %v3738
    %4414 = vmatprep.subr.mxu0 0.0
    %4415 = vmatpush1.msra.mxu0 0.0
    %4416 = vmatprep.subr.mxu0 0.0
    %4417 = vmatpush1.msra.mxu0 0.0
    %4418 = vmatprep.subr.mxu0 0.0
    %4419 = vmatpush1.msra.mxu0 0.0
    %4420 = vmatprep.subr.mxu0 0.0
    %4421 = vmatpush1.msra.mxu0 0.0
    %4422 = vmatprep.subr.mxu0 0.0
    %4423 = vmatpush1.msra.mxu0 0.0
    %4424 = vmatprep.subr.mxu0 0.0
    %4425 = vmatpush1.msra.mxu0 0.0
    %4426 = vmatprep.subr.mxu0 0.0
    %4427 = vmatpush1.msra.mxu0 0.0
    %4428 = vmatprep.subr.mxu0 0.0
    %4429 = vmatpush1.msra.mxu0 0.0
    %4430 = vmatprep.subr.mxu0 0.0
    %4431 = vmatpush1.msra.mxu0 0.0
    %4432 = vmatprep.subr.mxu0 0.0
    %4433 = vmatpush1.msra.mxu0 0.0
    %4434 = vmatprep.subr.mxu0 0.0
    %4435 = vmatpush1.msra.mxu0 0.0
    %4436 = vmatprep.subr.mxu0 0.0
    %4437 = vmatpush1.msra.mxu0 0.0
    %4438 = vmatprep.subr.mxu0 0.0
    %4439 = vmatpush1.msra.mxu0 0.0
    %4440 = vmatprep.subr.mxu0 0.0
    %4441 = vmatpush1.msra.mxu0 0.0
    %4442 = vmatprep.subr.mxu0 0.0
    %4443 = vmatpush1.msra.mxu0 0.0
    %4444 = vmatprep.subr.mxu0 0.0
    %4445 = vmatpush1.msra.mxu0 0.0
    %4446 = vmatprep.subr.mxu0 0.0
    %4447 = vmatpush1.msra.mxu0 0.0
    %4448 = vmatprep.subr.mxu0 0.0
    %4449 = vmatpush1.msra.mxu0 0.0
    %4450 = vmatprep.subr.mxu0 0.0
    %4451 = vmatpush1.msra.mxu0 0.0
    %4452 = vmatprep.subr.mxu0 0.0
    %4453 = vmatpush1.msra.mxu0 0.0
    %4454 = vmatprep.subr.mxu0 0.0
    %4455 = vmatpush1.msra.mxu0 0.0
    %4456 = vmatprep.subr.mxu0 0.0
    %4457 = vmatpush1.msra.mxu0 0.0
    %4458 = vmatprep.subr.mxu0 0.0
    %4459 = vmatpush1.msra.mxu0 0.0
    %4460 = vmatprep.subr.mxu0 0.0
    %4461 = vmatpush1.msra.mxu0 0.0
    %4462 = vmatprep.subr.mxu0 0.0
    %4463 = vmatpush1.msra.mxu0 0.0
    %4464 = vmatprep.subr.mxu0 0.0
    %4465 = vmatpush1.msra.mxu0 0.0
    %4466 = vmatprep.subr.mxu0 0.0
    %4467 = vmatpush1.msra.mxu0 0.0
    %4468 = vmatprep.subr.mxu0 0.0
    %4469 = vmatpush1.msra.mxu0 0.0
    %4470 = vmatprep.subr.mxu0 0.0
    %4471 = vmatpush1.msra.mxu0 0.0
    %4472 = vmatprep.subr.mxu0 0.0
    %4473 = vmatpush1.msra.mxu0 0.0
    %4474 = vmatprep.subr.mxu0 0.0
    %4475 = vmatpush1.msra.mxu0 0.0
    %4476 = vmatprep.mubr.f32.mxu0 0.0
    %4477 = vmatmul.mubr.f32.gmra.mrb[0].mxu0 %v4407
    %v4478 = vpop.f32.mrb[0].mxu0
    %v4479 = vadd.f32 %v4398, %v4478
    %v4480 = vpop.f32.mrb[0].mxu0
    %4481 = vmatprep.mubr.f32.mxu0 0.0
    %4482 = vmatmul.mubr.f32.gmra.mrb[0].mxu0 %v4410
    %v4483 = vpop.f32.mrb[0].mxu0
    %v4484 = vadd.f32 %v4403, %v4483
    %v4485 = vpop.f32.mrb[0].mxu0
    %4486 = vdwg.mxu0
    %s4487 = scalar_lea.vmem %s5, 192
    %v4488 = vld [vmem:[%s4487] sm:$0xff]
    %v4489 = vld [vmem:[%s4487 + $0x8] sm:$0xff]
    %v4490 = vld [vmem:[%s4487 + $0x10] sm:$0xff]
    %v4491 = vld [vmem:[%s4487 + $0x18] sm:$0xff]
    %s4492 = scalar_lea.vmem %s6, 6
    %v4493 = vld [vmem:[%s4492] sm:$0x1]
    %v4495 = vlaneseq
    %v4496 = vshrl.u32 %v4495, 7
    %v4497 = vsub.s32 0, %v4496
    %v4498 = vrot.slane %v4493, %v4497
    %4500 = vmatprep.subr.mxu0 0.0
    %4501 = vmatpush1.msra.mxu0 %v4488
    %4502 = vmatprep.subr.mxu0 0.0
    %4503 = vmatpush1.msra.mxu0 %v4489
    %4504 = vmatprep.subr.mxu0 0.0
    %4505 = vmatpush1.msra.mxu0 %v4490
    %4506 = vmatprep.subr.mxu0 0.0
    %4507 = vmatpush1.msra.mxu0 %v4491
    %4508 = vmatprep.subr.mxu0 0.0
    %4509 = vmatpush1.msra.mxu0 0.0
    %4510 = vmatprep.subr.mxu0 0.0
    %4511 = vmatpush1.msra.mxu0 0.0
    %4512 = vmatprep.subr.mxu0 0.0
    %4513 = vmatpush1.msra.mxu0 0.0
    %4514 = vmatprep.subr.mxu0 0.0
    %4515 = vmatpush1.msra.mxu0 0.0
    %4516 = vmatprep.subr.mxu0 0.0
    %4517 = vmatpush1.msra.mxu0 0.0
    %4518 = vmatprep.subr.mxu0 0.0
    %4519 = vmatpush1.msra.mxu0 0.0
    %4520 = vmatprep.subr.mxu0 0.0
    %4521 = vmatpush1.msra.mxu0 0.0
    %4522 = vmatprep.subr.mxu0 0.0
    %4523 = vmatpush1.msra.mxu0 0.0
    %4524 = vmatprep.subr.mxu0 0.0
    %4525 = vmatpush1.msra.mxu0 0.0
    %4526 = vmatprep.subr.mxu0 0.0
    %4527 = vmatpush1.msra.mxu0 0.0
    %4528 = vmatprep.subr.mxu0 0.0
    %4529 = vmatpush1.msra.mxu0 0.0
    %4530 = vmatprep.subr.mxu0 0.0
    %4531 = vmatpush1.msra.mxu0 0.0
    %4532 = vmatprep.subr.mxu0 0.0
    %4533 = vmatpush1.msra.mxu0 0.0
    %4534 = vmatprep.subr.mxu0 0.0
    %4535 = vmatpush1.msra.mxu0 0.0
    %4536 = vmatprep.subr.mxu0 0.0
    %4537 = vmatpush1.msra.mxu0 0.0
    %4538 = vmatprep.subr.mxu0 0.0
    %4539 = vmatpush1.msra.mxu0 0.0
    %4540 = vmatprep.subr.mxu0 0.0
    %4541 = vmatpush1.msra.mxu0 0.0
    %4542 = vmatprep.subr.mxu0 0.0
    %4543 = vmatpush1.msra.mxu0 0.0
    %4544 = vmatprep.subr.mxu0 0.0
    %4545 = vmatpush1.msra.mxu0 0.0
    %4546 = vmatprep.subr.mxu0 0.0
    %4547 = vmatpush1.msra.mxu0 0.0
    %4548 = vmatprep.subr.mxu0 0.0
    %4549 = vmatpush1.msra.mxu0 0.0
    %4550 = vmatprep.subr.mxu0 0.0
    %4551 = vmatpush1.msra.mxu0 0.0
    %4552 = vmatprep.subr.mxu0 0.0
    %4553 = vmatpush1.msra.mxu0 0.0
    %4554 = vmatprep.subr.mxu0 0.0
    %4555 = vmatpush1.msra.mxu0 0.0
    %4556 = vmatprep.subr.mxu0 0.0
    %4557 = vmatpush1.msra.mxu0 0.0
    %4558 = vmatprep.subr.mxu0 0.0
    %4559 = vmatpush1.msra.mxu0 0.0
    %4560 = vmatprep.subr.mxu0 0.0
    %4561 = vmatpush1.msra.mxu0 0.0
    %4562 = vmatprep.subr.mxu0 0.0
    %4563 = vmatpush1.msra.mxu0 0.0
    %4564 = vmatprep.mubr.f32.mxu0 0.0
    %4565 = vmatmul.mubr.f32.gmra.mrb[0].mxu0 %v3161
    %v4566 = vpop.f32.mrb[0].mxu0
    %v4567 = vadd.f32 %v4498, %v4566
    %v4568 = vpop.f32.mrb[0].mxu0
    %4569 = vmatprep.mubr.f32.mxu0 0.0
    %4570 = vmatmul.mubr.f32.gmra.mrb[0].mxu0 %v3164
    %v4571 = vpop.f32.mrb[0].mxu0
    %v4572 = vadd.f32 %v4498, %v4571
    %v4573 = vpop.f32.mrb[0].mxu0
    %4574 = vdwg.mxu0
    %s4575 = scalar_lea.vmem %s7, 192
    %v4576 = vld [vmem:[%s4575] sm:$0xff]
    %v4577 = vld [vmem:[%s4575 + $0x8] sm:$0xff]
    %v4578 = vld [vmem:[%s4575 + $0x10] sm:$0xff]
    %v4579 = vld [vmem:[%s4575 + $0x18] sm:$0xff]
    %s4580 = scalar_lea.vmem %s8, 6
    %v4581 = vld [vmem:[%s4580] sm:$0x1]
    %v4583 = vlaneseq
    %v4584 = vshrl.u32 %v4583, 7
    %v4585 = vsub.s32 0, %v4584
    %v4586 = vrot.slane %v4581, %v4585
    %4588 = vmatprep.subr.mxu0 0.0
    %4589 = vmatpush1.msra.mxu0 %v4576
    %4590 = vmatprep.subr.mxu0 0.0
    %4591 = vmatpush1.msra.mxu0 %v4577
    %4592 = vmatprep.subr.mxu0 0.0
    %4593 = vmatpush1.msra.mxu0 %v4578
    %4594 = vmatprep.subr.mxu0 0.0
    %4595 = vmatpush1.msra.mxu0 %v4579
    %4596 = vmatprep.subr.mxu0 0.0
    %4597 = vmatpush1.msra.mxu0 0.0
    %4598 = vmatprep.subr.mxu0 0.0
    %4599 = vmatpush1.msra.mxu0 0.0
    %4600 = vmatprep.subr.mxu0 0.0
    %4601 = vmatpush1.msra.mxu0 0.0
    %4602 = vmatprep.subr.mxu0 0.0
    %4603 = vmatpush1.msra.mxu0 0.0
    %4604 = vmatprep.subr.mxu0 0.0
    %4605 = vmatpush1.msra.mxu0 0.0
    %4606 = vmatprep.subr.mxu0 0.0
    %4607 = vmatpush1.msra.mxu0 0.0
    %4608 = vmatprep.subr.mxu0 0.0
    %4609 = vmatpush1.msra.mxu0 0.0
    %4610 = vmatprep.subr.mxu0 0.0
    %4611 = vmatpush1.msra.mxu0 0.0
    %4612 = vmatprep.subr.mxu0 0.0
    %4613 = vmatpush1.msra.mxu0 0.0
    %4614 = vmatprep.subr.mxu0 0.0
    %4615 = vmatpush1.msra.mxu0 0.0
    %4616 = vmatprep.subr.mxu0 0.0
    %4617 = vmatpush1.msra.mxu0 0.0
    %4618 = vmatprep.subr.mxu0 0.0
    %4619 = vmatpush1.msra.mxu0 0.0
    %4620 = vmatprep.subr.mxu0 0.0
    %4621 = vmatpush1.msra.mxu0 0.0
    %4622 = vmatprep.subr.mxu0 0.0
    %4623 = vmatpush1.msra.mxu0 0.0
    %4624 = vmatprep.subr.mxu0 0.0
    %4625 = vmatpush1.msra.mxu0 0.0
    %4626 = vmatprep.subr.mxu0 0.0
    %4627 = vmatpush1.msra.mxu0 0.0
    %4628 = vmatprep.subr.mxu0 0.0
    %4629 = vmatpush1.msra.mxu0 0.0
    %4630 = vmatprep.subr.mxu0 0.0
    %4631 = vmatpush1.msra.mxu0 0.0
    %4632 = vmatprep.subr.mxu0 0.0
    %4633 = vmatpush1.msra.mxu0 0.0
    %4634 = vmatprep.subr.mxu0 0.0
    %4635 = vmatpush1.msra.mxu0 0.0
    %4636 = vmatprep.subr.mxu0 0.0
    %4637 = vmatpush1.msra.mxu0 0.0
    %4638 = vmatprep.subr.mxu0 0.0
    %4639 = vmatpush1.msra.mxu0 0.0
    %4640 = vmatprep.subr.mxu0 0.0
    %4641 = vmatpush1.msra.mxu0 0.0
    %4642 = vmatprep.subr.mxu0 0.0
    %4643 = vmatpush1.msra.mxu0 0.0
    %4644 = vmatprep.subr.mxu0 0.0
    %4645 = vmatpush1.msra.mxu0 0.0
    %4646 = vmatprep.subr.mxu0 0.0
    %4647 = vmatpush1.msra.mxu0 0.0
    %4648 = vmatprep.subr.mxu0 0.0
    %4649 = vmatpush1.msra.mxu0 0.0
    %4650 = vmatprep.subr.mxu0 0.0
    %4651 = vmatpush1.msra.mxu0 0.0
    %4652 = vmatprep.mubr.f32.mxu0 0.0
    %4653 = vmatmul.mubr.f32.gmra.mrb[0].mxu0 %v3161
    %v4654 = vpop.f32.mrb[0].mxu0
    %v4655 = vadd.f32 %v4586, %v4654
    %v4656 = vpop.f32.mrb[0].mxu0
    %4657 = vmatprep.mubr.f32.mxu0 0.0
    %4658 = vmatmul.mubr.f32.gmra.mrb[0].mxu0 %v3164
    %v4659 = vpop.f32.mrb[0].mxu0
    %v4660 = vadd.f32 %v4586, %v4659
    %v4661 = vpop.f32.mrb[0].mxu0
    %4662 = vdwg.mxu0
    %s4663 = scalar_lea.vmem %s9, 192
    %v4664 = vld [vmem:[%s4663] sm:$0xff]
    %v4665 = vld [vmem:[%s4663 + $0x8] sm:$0xff]
    %v4666 = vld [vmem:[%s4663 + $0x10] sm:$0xff]
    %v4667 = vld [vmem:[%s4663 + $0x18] sm:$0xff]
    %s4668 = scalar_lea.vmem %s10, 6
    %v4669 = vld [vmem:[%s4668] sm:$0x1]
    %v4671 = vlaneseq
    %v4672 = vshrl.u32 %v4671, 7
    %v4673 = vsub.s32 0, %v4672
    %v4674 = vrot.slane %v4669, %v4673
    %4676 = vmatprep.subr.mxu0 0.0
    %4677 = vmatpush1.msra.mxu0 %v4664
    %4678 = vmatprep.subr.mxu0 0.0
    %4679 = vmatpush1.msra.mxu0 %v4665
    %4680 = vmatprep.subr.mxu0 0.0
    %4681 = vmatpush1.msra.mxu0 %v4666
    %4682 = vmatprep.subr.mxu0 0.0
    %4683 = vmatpush1.msra.mxu0 %v4667
    %4684 = vmatprep.subr.mxu0 0.0
    %4685 = vmatpush1.msra.mxu0 0.0
    %4686 = vmatprep.subr.mxu0 0.0
    %4687 = vmatpush1.msra.mxu0 0.0
    %4688 = vmatprep.subr.mxu0 0.0
    %4689 = vmatpush1.msra.mxu0 0.0
    %4690 = vmatprep.subr.mxu0 0.0
    %4691 = vmatpush1.msra.mxu0 0.0
    %4692 = vmatprep.subr.mxu0 0.0
    %4693 = vmatpush1.msra.mxu0 0.0
    %4694 = vmatprep.subr.mxu0 0.0
    %4695 = vmatpush1.msra.mxu0 0.0
    %4696 = vmatprep.subr.mxu0 0.0
    %4697 = vmatpush1.msra.mxu0 0.0
    %4698 = vmatprep.subr.mxu0 0.0
    %4699 = vmatpush1.msra.mxu0 0.0
    %4700 = vmatprep.subr.mxu0 0.0
    %4701 = vmatpush1.msra.mxu0 0.0
    %4702 = vmatprep.subr.mxu0 0.0
    %4703 = vmatpush1.msra.mxu0 0.0
    %4704 = vmatprep.subr.mxu0 0.0
    %4705 = vmatpush1.msra.mxu0 0.0
    %4706 = vmatprep.subr.mxu0 0.0
    %4707 = vmatpush1.msra.mxu0 0.0
    %4708 = vmatprep.subr.mxu0 0.0
    %4709 = vmatpush1.msra.mxu0 0.0
    %4710 = vmatprep.subr.mxu0 0.0
    %4711 = vmatpush1.msra.mxu0 0.0
    %4712 = vmatprep.subr.mxu0 0.0
    %4713 = vmatpush1.msra.mxu0 0.0
    %4714 = vmatprep.subr.mxu0 0.0
    %4715 = vmatpush1.msra.mxu0 0.0
    %4716 = vmatprep.subr.mxu0 0.0
    %4717 = vmatpush1.msra.mxu0 0.0
    %4718 = vmatprep.subr.mxu0 0.0
    %4719 = vmatpush1.msra.mxu0 0.0
    %4720 = vmatprep.subr.mxu0 0.0
    %4721 = vmatpush1.msra.mxu0 0.0
    %4722 = vmatprep.subr.mxu0 0.0
    %4723 = vmatpush1.msra.mxu0 0.0
    %4724 = vmatprep.subr.mxu0 0.0
    %4725 = vmatpush1.msra.mxu0 0.0
    %4726 = vmatprep.subr.mxu0 0.0
    %4727 = vmatpush1.msra.mxu0 0.0
    %4728 = vmatprep.subr.mxu0 0.0
    %4729 = vmatpush1.msra.mxu0 0.0
    %4730 = vmatprep.subr.mxu0 0.0
    %4731 = vmatpush1.msra.mxu0 0.0
    %4732 = vmatprep.subr.mxu0 0.0
    %4733 = vmatpush1.msra.mxu0 0.0
    %4734 = vmatprep.subr.mxu0 0.0
    %4735 = vmatpush1.msra.mxu0 0.0
    %4736 = vmatprep.subr.mxu0 0.0
    %4737 = vmatpush1.msra.mxu0 0.0
    %4738 = vmatprep.subr.mxu0 0.0
    %4739 = vmatpush1.msra.mxu0 0.0
    %4740 = vmatprep.mubr.f32.mxu0 0.0
    %4741 = vmatmul.mubr.f32.gmra.mrb[0].mxu0 %v3161
    %v4742 = vpop.f32.mrb[0].mxu0
    %v4743 = vadd.f32 %v4674, %v4742
    %v4744 = vpop.f32.mrb[0].mxu0
    %4745 = vmatprep.mubr.f32.mxu0 0.0
    %4746 = vmatmul.mubr.f32.gmra.mrb[0].mxu0 %v3164
    %v4747 = vpop.f32.mrb[0].mxu0
    %v4748 = vadd.f32 %v4674, %v4747
    %v4749 = vpop.f32.mrb[0].mxu0
    %4750 = vdwg.mxu0
    %v4752 = vsel %vm445, %v4567, 0
    %v4755 = vsel %vm445, %v4655, 0
    %4757 = vmatprep.subr.mxu0 0.0
    %4758 = vmatpush1.xpose.msra.mxu0 %v4755
    %4759 = vmatprep.subr.mxu0 0.0
    %4760 = vmatpush1.xpose.msra.mxu0 0.0
    %4761 = vmatprep.subr.mxu0 0.0
    %4762 = vmatpush1.xpose.msra.mxu0 0.0
    %4763 = vmatprep.subr.mxu0 0.0
    %4764 = vmatpush1.xpose.msra.mxu0 0.0
    %4765 = vmatprep.subr.mxu0 0.0
    %4766 = vmatpush1.xpose.msra.mxu0 0.0
    %4767 = vmatprep.subr.mxu0 0.0
    %4768 = vmatpush1.xpose.msra.mxu0 0.0
    %4769 = vmatprep.subr.mxu0 0.0
    %4770 = vmatpush1.xpose.msra.mxu0 0.0
    %4771 = vmatprep.subr.mxu0 0.0
    %4772 = vmatpush1.xpose.msra.mxu0 0.0
    %4773 = vmatprep.subr.mxu0 0.0
    %4774 = vmatpush1.xpose.msra.mxu0 0.0
    %4775 = vmatprep.subr.mxu0 0.0
    %4776 = vmatpush1.xpose.msra.mxu0 0.0
    %4777 = vmatprep.subr.mxu0 0.0
    %4778 = vmatpush1.xpose.msra.mxu0 0.0
    %4779 = vmatprep.subr.mxu0 0.0
    %4780 = vmatpush1.xpose.msra.mxu0 0.0
    %4781 = vmatprep.subr.mxu0 0.0
    %4782 = vmatpush1.xpose.msra.mxu0 0.0
    %4783 = vmatprep.subr.mxu0 0.0
    %4784 = vmatpush1.xpose.msra.mxu0 0.0
    %4785 = vmatprep.subr.mxu0 0.0
    %4786 = vmatpush1.xpose.msra.mxu0 0.0
    %4787 = vmatprep.subr.mxu0 0.0
    %4788 = vmatpush1.xpose.msra.mxu0 0.0
    %4789 = vmatprep.subr.mxu0 0.0
    %4790 = vmatpush1.xpose.msra.mxu0 0.0
    %4791 = vmatprep.subr.mxu0 0.0
    %4792 = vmatpush1.xpose.msra.mxu0 0.0
    %4793 = vmatprep.subr.mxu0 0.0
    %4794 = vmatpush1.xpose.msra.mxu0 0.0
    %4795 = vmatprep.subr.mxu0 0.0
    %4796 = vmatpush1.xpose.msra.mxu0 0.0
    %4797 = vmatprep.subr.mxu0 0.0
    %4798 = vmatpush1.xpose.msra.mxu0 0.0
    %4799 = vmatprep.subr.mxu0 0.0
    %4800 = vmatpush1.xpose.msra.mxu0 0.0
    %4801 = vmatprep.subr.mxu0 0.0
    %4802 = vmatpush1.xpose.msra.mxu0 0.0
    %4803 = vmatprep.subr.mxu0 0.0
    %4804 = vmatpush1.xpose.msra.mxu0 0.0
    %4805 = vmatprep.subr.mxu0 0.0
    %4806 = vmatpush1.xpose.msra.mxu0 0.0
    %4807 = vmatprep.subr.mxu0 0.0
    %4808 = vmatpush1.xpose.msra.mxu0 0.0
    %4809 = vmatprep.subr.mxu0 0.0
    %4810 = vmatpush1.xpose.msra.mxu0 0.0
    %4811 = vmatprep.subr.mxu0 0.0
    %4812 = vmatpush1.xpose.msra.mxu0 0.0
    %4813 = vmatprep.subr.mxu0 0.0
    %4814 = vmatpush1.xpose.msra.mxu0 0.0
    %4815 = vmatprep.subr.mxu0 0.0
    %4816 = vmatpush1.xpose.msra.mxu0 0.0
    %4817 = vmatprep.subr.mxu0 0.0
    %4818 = vmatpush1.xpose.msra.mxu0 0.0
    %4819 = vmatprep.subr.mxu0 0.0
    %4820 = vmatpush1.xpose.msra.mxu0 0.0
    %4821 = vmatprep.mubr.f32.mxu0 0.0
    %4822 = vmatmul.mubr.f32.gmra.mrb[0].mxu0 %v4752
    %v4823 = vpop.f32.mrb[0].mxu0
    %v4824 = vadd.f32 %v438, %v4823
    %v4825 = vpop.f32.mrb[0].mxu0
    %4826 = vdwg.mxu0
    %v4828 = vsel %vm445, %v4572, 0
    %v4831 = vsel %vm445, %v4660, 0
    %4833 = vmatprep.subr.mxu0 0.0
    %4834 = vmatpush1.xpose.msra.mxu0 %v4831
    %4835 = vmatprep.subr.mxu0 0.0
    %4836 = vmatpush1.xpose.msra.mxu0 0.0
    %4837 = vmatprep.subr.mxu0 0.0
    %4838 = vmatpush1.xpose.msra.mxu0 0.0
    %4839 = vmatprep.subr.mxu0 0.0
    %4840 = vmatpush1.xpose.msra.mxu0 0.0
    %4841 = vmatprep.subr.mxu0 0.0
    %4842 = vmatpush1.xpose.msra.mxu0 0.0
    %4843 = vmatprep.subr.mxu0 0.0
    %4844 = vmatpush1.xpose.msra.mxu0 0.0
    %4845 = vmatprep.subr.mxu0 0.0
    %4846 = vmatpush1.xpose.msra.mxu0 0.0
    %4847 = vmatprep.subr.mxu0 0.0
    %4848 = vmatpush1.xpose.msra.mxu0 0.0
    %4849 = vmatprep.subr.mxu0 0.0
    %4850 = vmatpush1.xpose.msra.mxu0 0.0
    %4851 = vmatprep.subr.mxu0 0.0
    %4852 = vmatpush1.xpose.msra.mxu0 0.0
    %4853 = vmatprep.subr.mxu0 0.0
    %4854 = vmatpush1.xpose.msra.mxu0 0.0
    %4855 = vmatprep.subr.mxu0 0.0
    %4856 = vmatpush1.xpose.msra.mxu0 0.0
    %4857 = vmatprep.subr.mxu0 0.0
    %4858 = vmatpush1.xpose.msra.mxu0 0.0
    %4859 = vmatprep.subr.mxu0 0.0
    %4860 = vmatpush1.xpose.msra.mxu0 0.0
    %4861 = vmatprep.subr.mxu0 0.0
    %4862 = vmatpush1.xpose.msra.mxu0 0.0
    %4863 = vmatprep.subr.mxu0 0.0
    %4864 = vmatpush1.xpose.msra.mxu0 0.0
    %4865 = vmatprep.subr.mxu0 0.0
    %4866 = vmatpush1.xpose.msra.mxu0 0.0
    %4867 = vmatprep.subr.mxu0 0.0
    %4868 = vmatpush1.xpose.msra.mxu0 0.0
    %4869 = vmatprep.subr.mxu0 0.0
    %4870 = vmatpush1.xpose.msra.mxu0 0.0
    %4871 = vmatprep.subr.mxu0 0.0
    %4872 = vmatpush1.xpose.msra.mxu0 0.0
    %4873 = vmatprep.subr.mxu0 0.0
    %4874 = vmatpush1.xpose.msra.mxu0 0.0
    %4875 = vmatprep.subr.mxu0 0.0
    %4876 = vmatpush1.xpose.msra.mxu0 0.0
    %4877 = vmatprep.subr.mxu0 0.0
    %4878 = vmatpush1.xpose.msra.mxu0 0.0
    %4879 = vmatprep.subr.mxu0 0.0
    %4880 = vmatpush1.xpose.msra.mxu0 0.0
    %4881 = vmatprep.subr.mxu0 0.0
    %4882 = vmatpush1.xpose.msra.mxu0 0.0
    %4883 = vmatprep.subr.mxu0 0.0
    %4884 = vmatpush1.xpose.msra.mxu0 0.0
    %4885 = vmatprep.subr.mxu0 0.0
    %4886 = vmatpush1.xpose.msra.mxu0 0.0
    %4887 = vmatprep.subr.mxu0 0.0
    %4888 = vmatpush1.xpose.msra.mxu0 0.0
    %4889 = vmatprep.subr.mxu0 0.0
    %4890 = vmatpush1.xpose.msra.mxu0 0.0
    %4891 = vmatprep.subr.mxu0 0.0
    %4892 = vmatpush1.xpose.msra.mxu0 0.0
    %4893 = vmatprep.subr.mxu0 0.0
    %4894 = vmatpush1.xpose.msra.mxu0 0.0
    %4895 = vmatprep.subr.mxu0 0.0
    %4896 = vmatpush1.xpose.msra.mxu0 0.0
    %4897 = vmatprep.mubr.f32.mxu0 0.0
    %4898 = vmatmul.mubr.f32.gmra.mrb[0].mxu0 %v4828
    %v4899 = vpop.f32.mrb[0].mxu0
    %v4900 = vadd.f32 %v442, %v4899
    %v4901 = vpop.f32.mrb[0].mxu0
    %4902 = vdwg.mxu0
    %v4903 = vsel %vm445, %v4824, -inf
    %4904 = vmax.xlane.f32.xlu0 %v4903
    %v4905 = vpop.xlane.xlu0 %4904
    %v4906 = vsel %vm445, %v4900, -inf
    %4907 = vmax.xlane.f32.xlu0 %v4906
    %v4908 = vpop.xlane.xlu0 %4907
    %v4909 = vsub.f32 %v4824, %v4905
    %v4910 = vsub.f32 %v4900, %v4908
    %v4911 = vmul.f32 %v4909, 1.442695
    %v4912 = vpow.pop %v4911
    %v4913 = vmul.f32 %v4910, 1.442695
    %v4914 = vpow.pop %v4913
    %v4915 = vsel %vm445, %v4912, 0.0
    %4916 = vadd.xlane.f32.xlu0 %v4915
    %v4917 = vpop.xlane.xlu0 %4916
    %v4918 = vsel %vm445, %v4914, 0.0
    %4919 = vadd.xlane.f32.xlu0 %v4918
    %v4920 = vpop.xlane.xlu0 %4919
    %v4921 = vrcp.pop %v4917
    %v4922 = vrcp.pop %v4920
    %v4923 = vmul.f32 %v4912, %v4921
    %v4924 = vmul.f32 %v4914, %v4922
    %v4926 = vsel %vm445, %v4923, 0
    %4928 = vmatprep.subr.mxu0 0.0
    %4929 = vmatpush1.msra.mxu0 %v4743
    %4930 = vmatprep.subr.mxu0 0.0
    %4931 = vmatpush1.msra.mxu0 0.0
    %4932 = vmatprep.subr.mxu0 0.0
    %4933 = vmatpush1.msra.mxu0 0.0
    %4934 = vmatprep.subr.mxu0 0.0
    %4935 = vmatpush1.msra.mxu0 0.0
    %4936 = vmatprep.subr.mxu0 0.0
    %4937 = vmatpush1.msra.mxu0 0.0
    %4938 = vmatprep.subr.mxu0 0.0
    %4939 = vmatpush1.msra.mxu0 0.0
    %4940 = vmatprep.subr.mxu0 0.0
    %4941 = vmatpush1.msra.mxu0 0.0
    %4942 = vmatprep.subr.mxu0 0.0
    %4943 = vmatpush1.msra.mxu0 0.0
    %4944 = vmatprep.subr.mxu0 0.0
    %4945 = vmatpush1.msra.mxu0 0.0
    %4946 = vmatprep.subr.mxu0 0.0
    %4947 = vmatpush1.msra.mxu0 0.0
    %4948 = vmatprep.subr.mxu0 0.0
    %4949 = vmatpush1.msra.mxu0 0.0
    %4950 = vmatprep.subr.mxu0 0.0
    %4951 = vmatpush1.msra.mxu0 0.0
    %4952 = vmatprep.subr.mxu0 0.0
    %4953 = vmatpush1.msra.mxu0 0.0
    %4954 = vmatprep.subr.mxu0 0.0
    %4955 = vmatpush1.msra.mxu0 0.0
    %4956 = vmatprep.subr.mxu0 0.0
    %4957 = vmatpush1.msra.mxu0 0.0
    %4958 = vmatprep.subr.mxu0 0.0
    %4959 = vmatpush1.msra.mxu0 0.0
    %4960 = vmatprep.subr.mxu0 0.0
    %4961 = vmatpush1.msra.mxu0 0.0
    %4962 = vmatprep.subr.mxu0 0.0
    %4963 = vmatpush1.msra.mxu0 0.0
    %4964 = vmatprep.subr.mxu0 0.0
    %4965 = vmatpush1.msra.mxu0 0.0
    %4966 = vmatprep.subr.mxu0 0.0
    %4967 = vmatpush1.msra.mxu0 0.0
    %4968 = vmatprep.subr.mxu0 0.0
    %4969 = vmatpush1.msra.mxu0 0.0
    %4970 = vmatprep.subr.mxu0 0.0
    %4971 = vmatpush1.msra.mxu0 0.0
    %4972 = vmatprep.subr.mxu0 0.0
    %4973 = vmatpush1.msra.mxu0 0.0
    %4974 = vmatprep.subr.mxu0 0.0
    %4975 = vmatpush1.msra.mxu0 0.0
    %4976 = vmatprep.subr.mxu0 0.0
    %4977 = vmatpush1.msra.mxu0 0.0
    %4978 = vmatprep.subr.mxu0 0.0
    %4979 = vmatpush1.msra.mxu0 0.0
    %4980 = vmatprep.subr.mxu0 0.0
    %4981 = vmatpush1.msra.mxu0 0.0
    %4982 = vmatprep.subr.mxu0 0.0
    %4983 = vmatpush1.msra.mxu0 0.0
    %4984 = vmatprep.subr.mxu0 0.0
    %4985 = vmatpush1.msra.mxu0 0.0
    %4986 = vmatprep.subr.mxu0 0.0
    %4987 = vmatpush1.msra.mxu0 0.0
    %4988 = vmatprep.subr.mxu0 0.0
    %4989 = vmatpush1.msra.mxu0 0.0
    %4990 = vmatprep.subr.mxu0 0.0
    %4991 = vmatpush1.msra.mxu0 0.0
    %4992 = vmatprep.mubr.f32.mxu0 0.0
    %4993 = vmatmul.mubr.f32.gmra.mrb[0].mxu0 %v4926
    %v4994 = vpop.f32.mrb[0].mxu0
    %v4995 = vadd.f32 0.0, %v4994
    %v4996 = vpop.f32.mrb[0].mxu0
    %4997 = vdwg.mxu0
    %v4999 = vsel %vm445, %v4924, 0
    %5001 = vmatprep.subr.mxu0 0.0
    %5002 = vmatpush1.msra.mxu0 %v4748
    %5003 = vmatprep.subr.mxu0 0.0
    %5004 = vmatpush1.msra.mxu0 0.0
    %5005 = vmatprep.subr.mxu0 0.0
    %5006 = vmatpush1.msra.mxu0 0.0
    %5007 = vmatprep.subr.mxu0 0.0
    %5008 = vmatpush1.msra.mxu0 0.0
    %5009 = vmatprep.subr.mxu0 0.0
    %5010 = vmatpush1.msra.mxu0 0.0
    %5011 = vmatprep.subr.mxu0 0.0
    %5012 = vmatpush1.msra.mxu0 0.0
    %5013 = vmatprep.subr.mxu0 0.0
    %5014 = vmatpush1.msra.mxu0 0.0
    %5015 = vmatprep.subr.mxu0 0.0
    %5016 = vmatpush1.msra.mxu0 0.0
    %5017 = vmatprep.subr.mxu0 0.0
    %5018 = vmatpush1.msra.mxu0 0.0
    %5019 = vmatprep.subr.mxu0 0.0
    %5020 = vmatpush1.msra.mxu0 0.0
    %5021 = vmatprep.subr.mxu0 0.0
    %5022 = vmatpush1.msra.mxu0 0.0
    %5023 = vmatprep.subr.mxu0 0.0
    %5024 = vmatpush1.msra.mxu0 0.0
    %5025 = vmatprep.subr.mxu0 0.0
    %5026 = vmatpush1.msra.mxu0 0.0
    %5027 = vmatprep.subr.mxu0 0.0
    %5028 = vmatpush1.msra.mxu0 0.0
    %5029 = vmatprep.subr.mxu0 0.0
    %5030 = vmatpush1.msra.mxu0 0.0
    %5031 = vmatprep.subr.mxu0 0.0
    %5032 = vmatpush1.msra.mxu0 0.0
    %5033 = vmatprep.subr.mxu0 0.0
    %5034 = vmatpush1.msra.mxu0 0.0
    %5035 = vmatprep.subr.mxu0 0.0
    %5036 = vmatpush1.msra.mxu0 0.0
    %5037 = vmatprep.subr.mxu0 0.0
    %5038 = vmatpush1.msra.mxu0 0.0
    %5039 = vmatprep.subr.mxu0 0.0
    %5040 = vmatpush1.msra.mxu0 0.0
    %5041 = vmatprep.subr.mxu0 0.0
    %5042 = vmatpush1.msra.mxu0 0.0
    %5043 = vmatprep.subr.mxu0 0.0
    %5044 = vmatpush1.msra.mxu0 0.0
    %5045 = vmatprep.subr.mxu0 0.0
    %5046 = vmatpush1.msra.mxu0 0.0
    %5047 = vmatprep.subr.mxu0 0.0
    %5048 = vmatpush1.msra.mxu0 0.0
    %5049 = vmatprep.subr.mxu0 0.0
    %5050 = vmatpush1.msra.mxu0 0.0
    %5051 = vmatprep.subr.mxu0 0.0
    %5052 = vmatpush1.msra.mxu0 0.0
    %5053 = vmatprep.subr.mxu0 0.0
    %5054 = vmatpush1.msra.mxu0 0.0
    %5055 = vmatprep.subr.mxu0 0.0
    %5056 = vmatpush1.msra.mxu0 0.0
    %5057 = vmatprep.subr.mxu0 0.0
    %5058 = vmatpush1.msra.mxu0 0.0
    %5059 = vmatprep.subr.mxu0 0.0
    %5060 = vmatpush1.msra.mxu0 0.0
    %5061 = vmatprep.subr.mxu0 0.0
    %5062 = vmatpush1.msra.mxu0 0.0
    %5063 = vmatprep.subr.mxu0 0.0
    %5064 = vmatpush1.msra.mxu0 0.0
    %5065 = vmatprep.mubr.f32.mxu0 0.0
    %5066 = vmatmul.mubr.f32.gmra.mrb[0].mxu0 %v4999
    %v5067 = vpop.f32.mrb[0].mxu0
    %v5068 = vadd.f32 0.0, %v5067
    %v5069 = vpop.f32.mrb[0].mxu0
    %5070 = vdwg.mxu0
    %s5071 = scalar_lea.vmem %s11, 48
    %v5072 = vld [vmem:[%s5071] sm:$0xff]
    %v5074 = vsel %vm445, %v4995, 0
    %v5077 = vsel %vm445, %v5068, 0
    %5079 = vmatprep.subr.mxu0 0.0
    %5080 = vmatpush1.msra.mxu0 %v5072
    %5081 = vmatprep.subr.mxu0 0.0
    %5082 = vmatpush1.msra.mxu0 0.0
    %5083 = vmatprep.subr.mxu0 0.0
    %5084 = vmatpush1.msra.mxu0 0.0
    %5085 = vmatprep.subr.mxu0 0.0
    %5086 = vmatpush1.msra.mxu0 0.0
    %5087 = vmatprep.subr.mxu0 0.0
    %5088 = vmatpush1.msra.mxu0 0.0
    %5089 = vmatprep.subr.mxu0 0.0
    %5090 = vmatpush1.msra.mxu0 0.0
    %5091 = vmatprep.subr.mxu0 0.0
    %5092 = vmatpush1.msra.mxu0 0.0
    %5093 = vmatprep.subr.mxu0 0.0
    %5094 = vmatpush1.msra.mxu0 0.0
    %5095 = vmatprep.subr.mxu0 0.0
    %5096 = vmatpush1.msra.mxu0 0.0
    %5097 = vmatprep.subr.mxu0 0.0
    %5098 = vmatpush1.msra.mxu0 0.0
    %5099 = vmatprep.subr.mxu0 0.0
    %5100 = vmatpush1.msra.mxu0 0.0
    %5101 = vmatprep.subr.mxu0 0.0
    %5102 = vmatpush1.msra.mxu0 0.0
    %5103 = vmatprep.subr.mxu0 0.0
    %5104 = vmatpush1.msra.mxu0 0.0
    %5105 = vmatprep.subr.mxu0 0.0
    %5106 = vmatpush1.msra.mxu0 0.0
    %5107 = vmatprep.subr.mxu0 0.0
    %5108 = vmatpush1.msra.mxu0 0.0
    %5109 = vmatprep.subr.mxu0 0.0
    %5110 = vmatpush1.msra.mxu0 0.0
    %5111 = vmatprep.subr.mxu0 0.0
    %5112 = vmatpush1.msra.mxu0 0.0
    %5113 = vmatprep.subr.mxu0 0.0
    %5114 = vmatpush1.msra.mxu0 0.0
    %5115 = vmatprep.subr.mxu0 0.0
    %5116 = vmatpush1.msra.mxu0 0.0
    %5117 = vmatprep.subr.mxu0 0.0
    %5118 = vmatpush1.msra.mxu0 0.0
    %5119 = vmatprep.subr.mxu0 0.0
    %5120 = vmatpush1.msra.mxu0 0.0
    %5121 = vmatprep.subr.mxu0 0.0
    %5122 = vmatpush1.msra.mxu0 0.0
    %5123 = vmatprep.subr.mxu0 0.0
    %5124 = vmatpush1.msra.mxu0 0.0
    %5125 = vmatprep.subr.mxu0 0.0
    %5126 = vmatpush1.msra.mxu0 0.0
    %5127 = vmatprep.subr.mxu0 0.0
    %5128 = vmatpush1.msra.mxu0 0.0
    %5129 = vmatprep.subr.mxu0 0.0
    %5130 = vmatpush1.msra.mxu0 0.0
    %5131 = vmatprep.subr.mxu0 0.0
    %5132 = vmatpush1.msra.mxu0 0.0
    %5133 = vmatprep.subr.mxu0 0.0
    %5134 = vmatpush1.msra.mxu0 0.0
    %5135 = vmatprep.subr.mxu0 0.0
    %5136 = vmatpush1.msra.mxu0 0.0
    %5137 = vmatprep.subr.mxu0 0.0
    %5138 = vmatpush1.msra.mxu0 0.0
    %5139 = vmatprep.subr.mxu0 0.0
    %5140 = vmatpush1.msra.mxu0 0.0
    %5141 = vmatprep.subr.mxu0 0.0
    %5142 = vmatpush1.msra.mxu0 0.0
    %5143 = vmatprep.mubr.f32.mxu0 0.0
    %5144 = vmatmul.mubr.f32.gmra.mrb[0].mxu0 %v5074
    %v5145 = vpop.f32.mrb[0].mxu0
    %v5146 = vadd.f32 0.0, %v5145
    %v5147 = vpop.f32.mrb[0].mxu0
    %5148 = vmatprep.mubr.f32.mxu0 0.0
    %5149 = vmatmul.mubr.f32.gmra.mrb[0].mxu0 %v5077
    %v5150 = vpop.f32.mrb[0].mxu0
    %v5151 = vadd.f32 0.0, %v5150
    %v5152 = vpop.f32.mrb[0].mxu0
    %5153 = vdwg.mxu0
    %v5154 = vadd.f32 %v4479, %v5146
    %v5155 = vadd.f32 %v4484, %v5151
    %s5156 = scalar_lea.vmem %s5, 224
    %v5157 = vld [vmem:[%s5156] sm:$0xff]
    %v5158 = vld [vmem:[%s5156 + $0x8] sm:$0xff]
    %v5159 = vld [vmem:[%s5156 + $0x10] sm:$0xff]
    %v5160 = vld [vmem:[%s5156 + $0x18] sm:$0xff]
    %s5161 = scalar_lea.vmem %s6, 7
    %v5162 = vld [vmem:[%s5161] sm:$0x1]
    %v5164 = vlaneseq
    %v5165 = vshrl.u32 %v5164, 7
    %v5166 = vsub.s32 0, %v5165
    %v5167 = vrot.slane %v5162, %v5166
    %5169 = vmatprep.subr.mxu0 0.0
    %5170 = vmatpush1.msra.mxu0 %v5157
    %5171 = vmatprep.subr.mxu0 0.0
    %5172 = vmatpush1.msra.mxu0 %v5158
    %5173 = vmatprep.subr.mxu0 0.0
    %5174 = vmatpush1.msra.mxu0 %v5159
    %5175 = vmatprep.subr.mxu0 0.0
    %5176 = vmatpush1.msra.mxu0 %v5160
    %5177 = vmatprep.subr.mxu0 0.0
    %5178 = vmatpush1.msra.mxu0 0.0
    %5179 = vmatprep.subr.mxu0 0.0
    %5180 = vmatpush1.msra.mxu0 0.0
    %5181 = vmatprep.subr.mxu0 0.0
    %5182 = vmatpush1.msra.mxu0 0.0
    %5183 = vmatprep.subr.mxu0 0.0
    %5184 = vmatpush1.msra.mxu0 0.0
    %5185 = vmatprep.subr.mxu0 0.0
    %5186 = vmatpush1.msra.mxu0 0.0
    %5187 = vmatprep.subr.mxu0 0.0
    %5188 = vmatpush1.msra.mxu0 0.0
    %5189 = vmatprep.subr.mxu0 0.0
    %5190 = vmatpush1.msra.mxu0 0.0
    %5191 = vmatprep.subr.mxu0 0.0
    %5192 = vmatpush1.msra.mxu0 0.0
    %5193 = vmatprep.subr.mxu0 0.0
    %5194 = vmatpush1.msra.mxu0 0.0
    %5195 = vmatprep.subr.mxu0 0.0
    %5196 = vmatpush1.msra.mxu0 0.0
    %5197 = vmatprep.subr.mxu0 0.0
    %5198 = vmatpush1.msra.mxu0 0.0
    %5199 = vmatprep.subr.mxu0 0.0
    %5200 = vmatpush1.msra.mxu0 0.0
    %5201 = vmatprep.subr.mxu0 0.0
    %5202 = vmatpush1.msra.mxu0 0.0
    %5203 = vmatprep.subr.mxu0 0.0
    %5204 = vmatpush1.msra.mxu0 0.0
    %5205 = vmatprep.subr.mxu0 0.0
    %5206 = vmatpush1.msra.mxu0 0.0
    %5207 = vmatprep.subr.mxu0 0.0
    %5208 = vmatpush1.msra.mxu0 0.0
    %5209 = vmatprep.subr.mxu0 0.0
    %5210 = vmatpush1.msra.mxu0 0.0
    %5211 = vmatprep.subr.mxu0 0.0
    %5212 = vmatpush1.msra.mxu0 0.0
    %5213 = vmatprep.subr.mxu0 0.0
    %5214 = vmatpush1.msra.mxu0 0.0
    %5215 = vmatprep.subr.mxu0 0.0
    %5216 = vmatpush1.msra.mxu0 0.0
    %5217 = vmatprep.subr.mxu0 0.0
    %5218 = vmatpush1.msra.mxu0 0.0
    %5219 = vmatprep.subr.mxu0 0.0
    %5220 = vmatpush1.msra.mxu0 0.0
    %5221 = vmatprep.subr.mxu0 0.0
    %5222 = vmatpush1.msra.mxu0 0.0
    %5223 = vmatprep.subr.mxu0 0.0
    %5224 = vmatpush1.msra.mxu0 0.0
    %5225 = vmatprep.subr.mxu0 0.0
    %5226 = vmatpush1.msra.mxu0 0.0
    %5227 = vmatprep.subr.mxu0 0.0
    %5228 = vmatpush1.msra.mxu0 0.0
    %5229 = vmatprep.subr.mxu0 0.0
    %5230 = vmatpush1.msra.mxu0 0.0
    %5231 = vmatprep.subr.mxu0 0.0
    %5232 = vmatpush1.msra.mxu0 0.0
    %5233 = vmatprep.mubr.f32.mxu0 0.0
    %5234 = vmatmul.mubr.f32.gmra.mrb[0].mxu0 %v3161
    %v5235 = vpop.f32.mrb[0].mxu0
    %v5236 = vadd.f32 %v5167, %v5235
    %v5237 = vpop.f32.mrb[0].mxu0
    %5238 = vmatprep.mubr.f32.mxu0 0.0
    %5239 = vmatmul.mubr.f32.gmra.mrb[0].mxu0 %v3164
    %v5240 = vpop.f32.mrb[0].mxu0
    %v5241 = vadd.f32 %v5167, %v5240
    %v5242 = vpop.f32.mrb[0].mxu0
    %5243 = vdwg.mxu0
    %s5244 = scalar_lea.vmem %s7, 224
    %v5245 = vld [vmem:[%s5244] sm:$0xff]
    %v5246 = vld [vmem:[%s5244 + $0x8] sm:$0xff]
    %v5247 = vld [vmem:[%s5244 + $0x10] sm:$0xff]
    %v5248 = vld [vmem:[%s5244 + $0x18] sm:$0xff]
    %s5249 = scalar_lea.vmem %s8, 7
    %v5250 = vld [vmem:[%s5249] sm:$0x1]
    %v5252 = vlaneseq
    %v5253 = vshrl.u32 %v5252, 7
    %v5254 = vsub.s32 0, %v5253
    %v5255 = vrot.slane %v5250, %v5254
    %5257 = vmatprep.subr.mxu0 0.0
    %5258 = vmatpush1.msra.mxu0 %v5245
    %5259 = vmatprep.subr.mxu0 0.0
    %5260 = vmatpush1.msra.mxu0 %v5246
    %5261 = vmatprep.subr.mxu0 0.0
    %5262 = vmatpush1.msra.mxu0 %v5247
    %5263 = vmatprep.subr.mxu0 0.0
    %5264 = vmatpush1.msra.mxu0 %v5248
    %5265 = vmatprep.subr.mxu0 0.0
    %5266 = vmatpush1.msra.mxu0 0.0
    %5267 = vmatprep.subr.mxu0 0.0
    %5268 = vmatpush1.msra.mxu0 0.0
    %5269 = vmatprep.subr.mxu0 0.0
    %5270 = vmatpush1.msra.mxu0 0.0
    %5271 = vmatprep.subr.mxu0 0.0
    %5272 = vmatpush1.msra.mxu0 0.0
    %5273 = vmatprep.subr.mxu0 0.0
    %5274 = vmatpush1.msra.mxu0 0.0
    %5275 = vmatprep.subr.mxu0 0.0
    %5276 = vmatpush1.msra.mxu0 0.0
    %5277 = vmatprep.subr.mxu0 0.0
    %5278 = vmatpush1.msra.mxu0 0.0
    %5279 = vmatprep.subr.mxu0 0.0
    %5280 = vmatpush1.msra.mxu0 0.0
    %5281 = vmatprep.subr.mxu0 0.0
    %5282 = vmatpush1.msra.mxu0 0.0
    %5283 = vmatprep.subr.mxu0 0.0
    %5284 = vmatpush1.msra.mxu0 0.0
    %5285 = vmatprep.subr.mxu0 0.0
    %5286 = vmatpush1.msra.mxu0 0.0
    %5287 = vmatprep.subr.mxu0 0.0
    %5288 = vmatpush1.msra.mxu0 0.0
    %5289 = vmatprep.subr.mxu0 0.0
    %5290 = vmatpush1.msra.mxu0 0.0
    %5291 = vmatprep.subr.mxu0 0.0
    %5292 = vmatpush1.msra.mxu0 0.0
    %5293 = vmatprep.subr.mxu0 0.0
    %5294 = vmatpush1.msra.mxu0 0.0
    %5295 = vmatprep.subr.mxu0 0.0
    %5296 = vmatpush1.msra.mxu0 0.0
    %5297 = vmatprep.subr.mxu0 0.0
    %5298 = vmatpush1.msra.mxu0 0.0
    %5299 = vmatprep.subr.mxu0 0.0
    %5300 = vmatpush1.msra.mxu0 0.0
    %5301 = vmatprep.subr.mxu0 0.0
    %5302 = vmatpush1.msra.mxu0 0.0
    %5303 = vmatprep.subr.mxu0 0.0
    %5304 = vmatpush1.msra.mxu0 0.0
    %5305 = vmatprep.subr.mxu0 0.0
    %5306 = vmatpush1.msra.mxu0 0.0
    %5307 = vmatprep.subr.mxu0 0.0
    %5308 = vmatpush1.msra.mxu0 0.0
    %5309 = vmatprep.subr.mxu0 0.0
    %5310 = vmatpush1.msra.mxu0 0.0
    %5311 = vmatprep.subr.mxu0 0.0
    %5312 = vmatpush1.msra.mxu0 0.0
    %5313 = vmatprep.subr.mxu0 0.0
    %5314 = vmatpush1.msra.mxu0 0.0
    %5315 = vmatprep.subr.mxu0 0.0
    %5316 = vmatpush1.msra.mxu0 0.0
    %5317 = vmatprep.subr.mxu0 0.0
    %5318 = vmatpush1.msra.mxu0 0.0
    %5319 = vmatprep.subr.mxu0 0.0
    %5320 = vmatpush1.msra.mxu0 0.0
    %5321 = vmatprep.mubr.f32.mxu0 0.0
    %5322 = vmatmul.mubr.f32.gmra.mrb[0].mxu0 %v3161
    %v5323 = vpop.f32.mrb[0].mxu0
    %v5324 = vadd.f32 %v5255, %v5323
    %v5325 = vpop.f32.mrb[0].mxu0
    %5326 = vmatprep.mubr.f32.mxu0 0.0
    %5327 = vmatmul.mubr.f32.gmra.mrb[0].mxu0 %v3164
    %v5328 = vpop.f32.mrb[0].mxu0
    %v5329 = vadd.f32 %v5255, %v5328
    %v5330 = vpop.f32.mrb[0].mxu0
    %5331 = vdwg.mxu0
    %s5332 = scalar_lea.vmem %s9, 224
    %v5333 = vld [vmem:[%s5332] sm:$0xff]
    %v5334 = vld [vmem:[%s5332 + $0x8] sm:$0xff]
    %v5335 = vld [vmem:[%s5332 + $0x10] sm:$0xff]
    %v5336 = vld [vmem:[%s5332 + $0x18] sm:$0xff]
    %s5337 = scalar_lea.vmem %s10, 7
    %v5338 = vld [vmem:[%s5337] sm:$0x1]
    %v5340 = vlaneseq
    %v5341 = vshrl.u32 %v5340, 7
    %v5342 = vsub.s32 0, %v5341
    %v5343 = vrot.slane %v5338, %v5342
    %5345 = vmatprep.subr.mxu0 0.0
    %5346 = vmatpush1.msra.mxu0 %v5333
    %5347 = vmatprep.subr.mxu0 0.0
    %5348 = vmatpush1.msra.mxu0 %v5334
    %5349 = vmatprep.subr.mxu0 0.0
    %5350 = vmatpush1.msra.mxu0 %v5335
    %5351 = vmatprep.subr.mxu0 0.0
    %5352 = vmatpush1.msra.mxu0 %v5336
    %5353 = vmatprep.subr.mxu0 0.0
    %5354 = vmatpush1.msra.mxu0 0.0
    %5355 = vmatprep.subr.mxu0 0.0
    %5356 = vmatpush1.msra.mxu0 0.0
    %5357 = vmatprep.subr.mxu0 0.0
    %5358 = vmatpush1.msra.mxu0 0.0
    %5359 = vmatprep.subr.mxu0 0.0
    %5360 = vmatpush1.msra.mxu0 0.0
    %5361 = vmatprep.subr.mxu0 0.0
    %5362 = vmatpush1.msra.mxu0 0.0
    %5363 = vmatprep.subr.mxu0 0.0
    %5364 = vmatpush1.msra.mxu0 0.0
    %5365 = vmatprep.subr.mxu0 0.0
    %5366 = vmatpush1.msra.mxu0 0.0
    %5367 = vmatprep.subr.mxu0 0.0
    %5368 = vmatpush1.msra.mxu0 0.0
    %5369 = vmatprep.subr.mxu0 0.0
    %5370 = vmatpush1.msra.mxu0 0.0
    %5371 = vmatprep.subr.mxu0 0.0
    %5372 = vmatpush1.msra.mxu0 0.0
    %5373 = vmatprep.subr.mxu0 0.0
    %5374 = vmatpush1.msra.mxu0 0.0
    %5375 = vmatprep.subr.mxu0 0.0
    %5376 = vmatpush1.msra.mxu0 0.0
    %5377 = vmatprep.subr.mxu0 0.0
    %5378 = vmatpush1.msra.mxu0 0.0
    %5379 = vmatprep.subr.mxu0 0.0
    %5380 = vmatpush1.msra.mxu0 0.0
    %5381 = vmatprep.subr.mxu0 0.0
    %5382 = vmatpush1.msra.mxu0 0.0
    %5383 = vmatprep.subr.mxu0 0.0
    %5384 = vmatpush1.msra.mxu0 0.0
    %5385 = vmatprep.subr.mxu0 0.0
    %5386 = vmatpush1.msra.mxu0 0.0
    %5387 = vmatprep.subr.mxu0 0.0
    %5388 = vmatpush1.msra.mxu0 0.0
    %5389 = vmatprep.subr.mxu0 0.0
    %5390 = vmatpush1.msra.mxu0 0.0
    %5391 = vmatprep.subr.mxu0 0.0
    %5392 = vmatpush1.msra.mxu0 0.0
    %5393 = vmatprep.subr.mxu0 0.0
    %5394 = vmatpush1.msra.mxu0 0.0
    %5395 = vmatprep.subr.mxu0 0.0
    %5396 = vmatpush1.msra.mxu0 0.0
    %5397 = vmatprep.subr.mxu0 0.0
    %5398 = vmatpush1.msra.mxu0 0.0
    %5399 = vmatprep.subr.mxu0 0.0
    %5400 = vmatpush1.msra.mxu0 0.0
    %5401 = vmatprep.subr.mxu0 0.0
    %5402 = vmatpush1.msra.mxu0 0.0
    %5403 = vmatprep.subr.mxu0 0.0
    %5404 = vmatpush1.msra.mxu0 0.0
    %5405 = vmatprep.subr.mxu0 0.0
    %5406 = vmatpush1.msra.mxu0 0.0
    %5407 = vmatprep.subr.mxu0 0.0
    %5408 = vmatpush1.msra.mxu0 0.0
    %5409 = vmatprep.mubr.f32.mxu0 0.0
    %5410 = vmatmul.mubr.f32.gmra.mrb[0].mxu0 %v3161
    %v5411 = vpop.f32.mrb[0].mxu0
    %v5412 = vadd.f32 %v5343, %v5411
    %v5413 = vpop.f32.mrb[0].mxu0
    %5414 = vmatprep.mubr.f32.mxu0 0.0
    %5415 = vmatmul.mubr.f32.gmra.mrb[0].mxu0 %v3164
    %v5416 = vpop.f32.mrb[0].mxu0
    %v5417 = vadd.f32 %v5343, %v5416
    %v5418 = vpop.f32.mrb[0].mxu0
    %5419 = vdwg.mxu0
    %v5421 = vsel %vm445, %v5236, 0
    %v5424 = vsel %vm445, %v5324, 0
    %5426 = vmatprep.subr.mxu0 0.0
    %5427 = vmatpush1.xpose.msra.mxu0 %v5424
    %5428 = vmatprep.subr.mxu0 0.0
    %5429 = vmatpush1.xpose.msra.mxu0 0.0
    %5430 = vmatprep.subr.mxu0 0.0
    %5431 = vmatpush1.xpose.msra.mxu0 0.0
    %5432 = vmatprep.subr.mxu0 0.0
    %5433 = vmatpush1.xpose.msra.mxu0 0.0
    %5434 = vmatprep.subr.mxu0 0.0
    %5435 = vmatpush1.xpose.msra.mxu0 0.0
    %5436 = vmatprep.subr.mxu0 0.0
    %5437 = vmatpush1.xpose.msra.mxu0 0.0
    %5438 = vmatprep.subr.mxu0 0.0
    %5439 = vmatpush1.xpose.msra.mxu0 0.0
    %5440 = vmatprep.subr.mxu0 0.0
    %5441 = vmatpush1.xpose.msra.mxu0 0.0
    %5442 = vmatprep.subr.mxu0 0.0
    %5443 = vmatpush1.xpose.msra.mxu0 0.0
    %5444 = vmatprep.subr.mxu0 0.0
    %5445 = vmatpush1.xpose.msra.mxu0 0.0
    %5446 = vmatprep.subr.mxu0 0.0
    %5447 = vmatpush1.xpose.msra.mxu0 0.0
    %5448 = vmatprep.subr.mxu0 0.0
    %5449 = vmatpush1.xpose.msra.mxu0 0.0
    %5450 = vmatprep.subr.mxu0 0.0
    %5451 = vmatpush1.xpose.msra.mxu0 0.0
    %5452 = vmatprep.subr.mxu0 0.0
    %5453 = vmatpush1.xpose.msra.mxu0 0.0
    %5454 = vmatprep.subr.mxu0 0.0
    %5455 = vmatpush1.xpose.msra.mxu0 0.0
    %5456 = vmatprep.subr.mxu0 0.0
    %5457 = vmatpush1.xpose.msra.mxu0 0.0
    %5458 = vmatprep.subr.mxu0 0.0
    %5459 = vmatpush1.xpose.msra.mxu0 0.0
    %5460 = vmatprep.subr.mxu0 0.0
    %5461 = vmatpush1.xpose.msra.mxu0 0.0
    %5462 = vmatprep.subr.mxu0 0.0
    %5463 = vmatpush1.xpose.msra.mxu0 0.0
    %5464 = vmatprep.subr.mxu0 0.0
    %5465 = vmatpush1.xpose.msra.mxu0 0.0
    %5466 = vmatprep.subr.mxu0 0.0
    %5467 = vmatpush1.xpose.msra.mxu0 0.0
    %5468 = vmatprep.subr.mxu0 0.0
    %5469 = vmatpush1.xpose.msra.mxu0 0.0
    %5470 = vmatprep.subr.mxu0 0.0
    %5471 = vmatpush1.xpose.msra.mxu0 0.0
    %5472 = vmatprep.subr.mxu0 0.0
    %5473 = vmatpush1.xpose.msra.mxu0 0.0
    %5474 = vmatprep.subr.mxu0 0.0
    %5475 = vmatpush1.xpose.msra.mxu0 0.0
    %5476 = vmatprep.subr.mxu0 0.0
    %5477 = vmatpush1.xpose.msra.mxu0 0.0
    %5478 = vmatprep.subr.mxu0 0.0
    %5479 = vmatpush1.xpose.msra.mxu0 0.0
    %5480 = vmatprep.subr.mxu0 0.0
    %5481 = vmatpush1.xpose.msra.mxu0 0.0
    %5482 = vmatprep.subr.mxu0 0.0
    %5483 = vmatpush1.xpose.msra.mxu0 0.0
    %5484 = vmatprep.subr.mxu0 0.0
    %5485 = vmatpush1.xpose.msra.mxu0 0.0
    %5486 = vmatprep.subr.mxu0 0.0
    %5487 = vmatpush1.xpose.msra.mxu0 0.0
    %5488 = vmatprep.subr.mxu0 0.0
    %5489 = vmatpush1.xpose.msra.mxu0 0.0
    %5490 = vmatprep.mubr.f32.mxu0 0.0
    %5491 = vmatmul.mubr.f32.gmra.mrb[0].mxu0 %v5421
    %v5492 = vpop.f32.mrb[0].mxu0
    %v5493 = vadd.f32 %v438, %v5492
    %v5494 = vpop.f32.mrb[0].mxu0
    %5495 = vdwg.mxu0
    %v5497 = vsel %vm445, %v5241, 0
    %v5500 = vsel %vm445, %v5329, 0
    %5502 = vmatprep.subr.mxu0 0.0
    %5503 = vmatpush1.xpose.msra.mxu0 %v5500
    %5504 = vmatprep.subr.mxu0 0.0
    %5505 = vmatpush1.xpose.msra.mxu0 0.0
    %5506 = vmatprep.subr.mxu0 0.0
    %5507 = vmatpush1.xpose.msra.mxu0 0.0
    %5508 = vmatprep.subr.mxu0 0.0
    %5509 = vmatpush1.xpose.msra.mxu0 0.0
    %5510 = vmatprep.subr.mxu0 0.0
    %5511 = vmatpush1.xpose.msra.mxu0 0.0
    %5512 = vmatprep.subr.mxu0 0.0
    %5513 = vmatpush1.xpose.msra.mxu0 0.0
    %5514 = vmatprep.subr.mxu0 0.0
    %5515 = vmatpush1.xpose.msra.mxu0 0.0
    %5516 = vmatprep.subr.mxu0 0.0
    %5517 = vmatpush1.xpose.msra.mxu0 0.0
    %5518 = vmatprep.subr.mxu0 0.0
    %5519 = vmatpush1.xpose.msra.mxu0 0.0
    %5520 = vmatprep.subr.mxu0 0.0
    %5521 = vmatpush1.xpose.msra.mxu0 0.0
    %5522 = vmatprep.subr.mxu0 0.0
    %5523 = vmatpush1.xpose.msra.mxu0 0.0
    %5524 = vmatprep.subr.mxu0 0.0
    %5525 = vmatpush1.xpose.msra.mxu0 0.0
    %5526 = vmatprep.subr.mxu0 0.0
    %5527 = vmatpush1.xpose.msra.mxu0 0.0
    %5528 = vmatprep.subr.mxu0 0.0
    %5529 = vmatpush1.xpose.msra.mxu0 0.0
    %5530 = vmatprep.subr.mxu0 0.0
    %5531 = vmatpush1.xpose.msra.mxu0 0.0
    %5532 = vmatprep.subr.mxu0 0.0
    %5533 = vmatpush1.xpose.msra.mxu0 0.0
    %5534 = vmatprep.subr.mxu0 0.0
    %5535 = vmatpush1.xpose.msra.mxu0 0.0
    %5536 = vmatprep.subr.mxu0 0.0
    %5537 = vmatpush1.xpose.msra.mxu0 0.0
    %5538 = vmatprep.subr.mxu0 0.0
    %5539 = vmatpush1.xpose.msra.mxu0 0.0
    %5540 = vmatprep.subr.mxu0 0.0
    %5541 = vmatpush1.xpose.msra.mxu0 0.0
    %5542 = vmatprep.subr.mxu0 0.0
    %5543 = vmatpush1.xpose.msra.mxu0 0.0
    %5544 = vmatprep.subr.mxu0 0.0
    %5545 = vmatpush1.xpose.msra.mxu0 0.0
    %5546 = vmatprep.subr.mxu0 0.0
    %5547 = vmatpush1.xpose.msra.mxu0 0.0
    %5548 = vmatprep.subr.mxu0 0.0
    %5549 = vmatpush1.xpose.msra.mxu0 0.0
    %5550 = vmatprep.subr.mxu0 0.0
    %5551 = vmatpush1.xpose.msra.mxu0 0.0
    %5552 = vmatprep.subr.mxu0 0.0
    %5553 = vmatpush1.xpose.msra.mxu0 0.0
    %5554 = vmatprep.subr.mxu0 0.0
    %5555 = vmatpush1.xpose.msra.mxu0 0.0
    %5556 = vmatprep.subr.mxu0 0.0
    %5557 = vmatpush1.xpose.msra.mxu0 0.0
    %5558 = vmatprep.subr.mxu0 0.0
    %5559 = vmatpush1.xpose.msra.mxu0 0.0
    %5560 = vmatprep.subr.mxu0 0.0
    %5561 = vmatpush1.xpose.msra.mxu0 0.0
    %5562 = vmatprep.subr.mxu0 0.0
    %5563 = vmatpush1.xpose.msra.mxu0 0.0
    %5564 = vmatprep.subr.mxu0 0.0
    %5565 = vmatpush1.xpose.msra.mxu0 0.0
    %5566 = vmatprep.mubr.f32.mxu0 0.0
    %5567 = vmatmul.mubr.f32.gmra.mrb[0].mxu0 %v5497
    %v5568 = vpop.f32.mrb[0].mxu0
    %v5569 = vadd.f32 %v442, %v5568
    %v5570 = vpop.f32.mrb[0].mxu0
    %5571 = vdwg.mxu0
    %v5572 = vsel %vm445, %v5493, -inf
    %5573 = vmax.xlane.f32.xlu0 %v5572
    %v5574 = vpop.xlane.xlu0 %5573
    %v5575 = vsel %vm445, %v5569, -inf
    %5576 = vmax.xlane.f32.xlu0 %v5575
    %v5577 = vpop.xlane.xlu0 %5576
    %v5578 = vsub.f32 %v5493, %v5574
    %v5579 = vsub.f32 %v5569, %v5577
    %v5580 = vmul.f32 %v5578, 1.442695
    %v5581 = vpow.pop %v5580
    %v5582 = vmul.f32 %v5579, 1.442695
    %v5583 = vpow.pop %v5582
    %v5584 = vsel %vm445, %v5581, 0.0
    %5585 = vadd.xlane.f32.xlu0 %v5584
    %v5586 = vpop.xlane.xlu0 %5585
    %v5587 = vsel %vm445, %v5583, 0.0
    %5588 = vadd.xlane.f32.xlu0 %v5587
    %v5589 = vpop.xlane.xlu0 %5588
    %v5590 = vrcp.pop %v5586
    %v5591 = vrcp.pop %v5589
    %v5592 = vmul.f32 %v5581, %v5590
    %v5593 = vmul.f32 %v5583, %v5591
    %v5595 = vsel %vm445, %v5592, 0
    %5597 = vmatprep.subr.mxu0 0.0
    %5598 = vmatpush1.msra.mxu0 %v5412
    %5599 = vmatprep.subr.mxu0 0.0
    %5600 = vmatpush1.msra.mxu0 0.0
    %5601 = vmatprep.subr.mxu0 0.0
    %5602 = vmatpush1.msra.mxu0 0.0
    %5603 = vmatprep.subr.mxu0 0.0
    %5604 = vmatpush1.msra.mxu0 0.0
    %5605 = vmatprep.subr.mxu0 0.0
    %5606 = vmatpush1.msra.mxu0 0.0
    %5607 = vmatprep.subr.mxu0 0.0
    %5608 = vmatpush1.msra.mxu0 0.0
    %5609 = vmatprep.subr.mxu0 0.0
    %5610 = vmatpush1.msra.mxu0 0.0
    %5611 = vmatprep.subr.mxu0 0.0
    %5612 = vmatpush1.msra.mxu0 0.0
    %5613 = vmatprep.subr.mxu0 0.0
    %5614 = vmatpush1.msra.mxu0 0.0
    %5615 = vmatprep.subr.mxu0 0.0
    %5616 = vmatpush1.msra.mxu0 0.0
    %5617 = vmatprep.subr.mxu0 0.0
    %5618 = vmatpush1.msra.mxu0 0.0
    %5619 = vmatprep.subr.mxu0 0.0
    %5620 = vmatpush1.msra.mxu0 0.0
    %5621 = vmatprep.subr.mxu0 0.0
    %5622 = vmatpush1.msra.mxu0 0.0
    %5623 = vmatprep.subr.mxu0 0.0
    %5624 = vmatpush1.msra.mxu0 0.0
    %5625 = vmatprep.subr.mxu0 0.0
    %5626 = vmatpush1.msra.mxu0 0.0
    %5627 = vmatprep.subr.mxu0 0.0
    %5628 = vmatpush1.msra.mxu0 0.0
    %5629 = vmatprep.subr.mxu0 0.0
    %5630 = vmatpush1.msra.mxu0 0.0
    %5631 = vmatprep.subr.mxu0 0.0
    %5632 = vmatpush1.msra.mxu0 0.0
    %5633 = vmatprep.subr.mxu0 0.0
    %5634 = vmatpush1.msra.mxu0 0.0
    %5635 = vmatprep.subr.mxu0 0.0
    %5636 = vmatpush1.msra.mxu0 0.0
    %5637 = vmatprep.subr.mxu0 0.0
    %5638 = vmatpush1.msra.mxu0 0.0
    %5639 = vmatprep.subr.mxu0 0.0
    %5640 = vmatpush1.msra.mxu0 0.0
    %5641 = vmatprep.subr.mxu0 0.0
    %5642 = vmatpush1.msra.mxu0 0.0
    %5643 = vmatprep.subr.mxu0 0.0
    %5644 = vmatpush1.msra.mxu0 0.0
    %5645 = vmatprep.subr.mxu0 0.0
    %5646 = vmatpush1.msra.mxu0 0.0
    %5647 = vmatprep.subr.mxu0 0.0
    %5648 = vmatpush1.msra.mxu0 0.0
    %5649 = vmatprep.subr.mxu0 0.0
    %5650 = vmatpush1.msra.mxu0 0.0
    %5651 = vmatprep.subr.mxu0 0.0
    %5652 = vmatpush1.msra.mxu0 0.0
    %5653 = vmatprep.subr.mxu0 0.0
    %5654 = vmatpush1.msra.mxu0 0.0
    %5655 = vmatprep.subr.mxu0 0.0
    %5656 = vmatpush1.msra.mxu0 0.0
    %5657 = vmatprep.subr.mxu0 0.0
    %5658 = vmatpush1.msra.mxu0 0.0
    %5659 = vmatprep.subr.mxu0 0.0
    %5660 = vmatpush1.msra.mxu0 0.0
    %5661 = vmatprep.mubr.f32.mxu0 0.0
    %5662 = vmatmul.mubr.f32.gmra.mrb[0].mxu0 %v5595
    %v5663 = vpop.f32.mrb[0].mxu0
    %v5664 = vadd.f32 0.0, %v5663
    %v5665 = vpop.f32.mrb[0].mxu0
    %5666 = vdwg.mxu0
    %v5668 = vsel %vm445, %v5593, 0
    %5670 = vmatprep.subr.mxu0 0.0
    %5671 = vmatpush1.msra.mxu0 %v5417
    %5672 = vmatprep.subr.mxu0 0.0
    %5673 = vmatpush1.msra.mxu0 0.0
    %5674 = vmatprep.subr.mxu0 0.0
    %5675 = vmatpush1.msra.mxu0 0.0
    %5676 = vmatprep.subr.mxu0 0.0
    %5677 = vmatpush1.msra.mxu0 0.0
    %5678 = vmatprep.subr.mxu0 0.0
    %5679 = vmatpush1.msra.mxu0 0.0
    %5680 = vmatprep.subr.mxu0 0.0
    %5681 = vmatpush1.msra.mxu0 0.0
    %5682 = vmatprep.subr.mxu0 0.0
    %5683 = vmatpush1.msra.mxu0 0.0
    %5684 = vmatprep.subr.mxu0 0.0
    %5685 = vmatpush1.msra.mxu0 0.0
    %5686 = vmatprep.subr.mxu0 0.0
    %5687 = vmatpush1.msra.mxu0 0.0
    %5688 = vmatprep.subr.mxu0 0.0
    %5689 = vmatpush1.msra.mxu0 0.0
    %5690 = vmatprep.subr.mxu0 0.0
    %5691 = vmatpush1.msra.mxu0 0.0
    %5692 = vmatprep.subr.mxu0 0.0
    %5693 = vmatpush1.msra.mxu0 0.0
    %5694 = vmatprep.subr.mxu0 0.0
    %5695 = vmatpush1.msra.mxu0 0.0
    %5696 = vmatprep.subr.mxu0 0.0
    %5697 = vmatpush1.msra.mxu0 0.0
    %5698 = vmatprep.subr.mxu0 0.0
    %5699 = vmatpush1.msra.mxu0 0.0
    %5700 = vmatprep.subr.mxu0 0.0
    %5701 = vmatpush1.msra.mxu0 0.0
    %5702 = vmatprep.subr.mxu0 0.0
    %5703 = vmatpush1.msra.mxu0 0.0
    %5704 = vmatprep.subr.mxu0 0.0
    %5705 = vmatpush1.msra.mxu0 0.0
    %5706 = vmatprep.subr.mxu0 0.0
    %5707 = vmatpush1.msra.mxu0 0.0
    %5708 = vmatprep.subr.mxu0 0.0
    %5709 = vmatpush1.msra.mxu0 0.0
    %5710 = vmatprep.subr.mxu0 0.0
    %5711 = vmatpush1.msra.mxu0 0.0
    %5712 = vmatprep.subr.mxu0 0.0
    %5713 = vmatpush1.msra.mxu0 0.0
    %5714 = vmatprep.subr.mxu0 0.0
    %5715 = vmatpush1.msra.mxu0 0.0
    %5716 = vmatprep.subr.mxu0 0.0
    %5717 = vmatpush1.msra.mxu0 0.0
    %5718 = vmatprep.subr.mxu0 0.0
    %5719 = vmatpush1.msra.mxu0 0.0
    %5720 = vmatprep.subr.mxu0 0.0
    %5721 = vmatpush1.msra.mxu0 0.0
    %5722 = vmatprep.subr.mxu0 0.0
    %5723 = vmatpush1.msra.mxu0 0.0
    %5724 = vmatprep.subr.mxu0 0.0
    %5725 = vmatpush1.msra.mxu0 0.0
    %5726 = vmatprep.subr.mxu0 0.0
    %5727 = vmatpush1.msra.mxu0 0.0
    %5728 = vmatprep.subr.mxu0 0.0
    %5729 = vmatpush1.msra.mxu0 0.0
    %5730 = vmatprep.subr.mxu0 0.0
    %5731 = vmatpush1.msra.mxu0 0.0
    %5732 = vmatprep.subr.mxu0 0.0
    %5733 = vmatpush1.msra.mxu0 0.0
    %5734 = vmatprep.mubr.f32.mxu0 0.0
    %5735 = vmatmul.mubr.f32.gmra.mrb[0].mxu0 %v5668
    %v5736 = vpop.f32.mrb[0].mxu0
    %v5737 = vadd.f32 0.0, %v5736
    %v5738 = vpop.f32.mrb[0].mxu0
    %5739 = vdwg.mxu0
    %s5740 = scalar_lea.vmem %s11, 56
    %v5741 = vld [vmem:[%s5740] sm:$0xff]
    %v5743 = vsel %vm445, %v5664, 0
    %v5746 = vsel %vm445, %v5737, 0
    %5748 = vmatprep.subr.mxu0 0.0
    %5749 = vmatpush1.msra.mxu0 %v5741
    %5750 = vmatprep.subr.mxu0 0.0
    %5751 = vmatpush1.msra.mxu0 0.0
    %5752 = vmatprep.subr.mxu0 0.0
    %5753 = vmatpush1.msra.mxu0 0.0
    %5754 = vmatprep.subr.mxu0 0.0
    %5755 = vmatpush1.msra.mxu0 0.0
    %5756 = vmatprep.subr.mxu0 0.0
    %5757 = vmatpush1.msra.mxu0 0.0
    %5758 = vmatprep.subr.mxu0 0.0
    %5759 = vmatpush1.msra.mxu0 0.0
    %5760 = vmatprep.subr.mxu0 0.0
    %5761 = vmatpush1.msra.mxu0 0.0
    %5762 = vmatprep.subr.mxu0 0.0
    %5763 = vmatpush1.msra.mxu0 0.0
    %5764 = vmatprep.subr.mxu0 0.0
    %5765 = vmatpush1.msra.mxu0 0.0
    %5766 = vmatprep.subr.mxu0 0.0
    %5767 = vmatpush1.msra.mxu0 0.0
    %5768 = vmatprep.subr.mxu0 0.0
    %5769 = vmatpush1.msra.mxu0 0.0
    %5770 = vmatprep.subr.mxu0 0.0
    %5771 = vmatpush1.msra.mxu0 0.0
    %5772 = vmatprep.subr.mxu0 0.0
    %5773 = vmatpush1.msra.mxu0 0.0
    %5774 = vmatprep.subr.mxu0 0.0
    %5775 = vmatpush1.msra.mxu0 0.0
    %5776 = vmatprep.subr.mxu0 0.0
    %5777 = vmatpush1.msra.mxu0 0.0
    %5778 = vmatprep.subr.mxu0 0.0
    %5779 = vmatpush1.msra.mxu0 0.0
    %5780 = vmatprep.subr.mxu0 0.0
    %5781 = vmatpush1.msra.mxu0 0.0
    %5782 = vmatprep.subr.mxu0 0.0
    %5783 = vmatpush1.msra.mxu0 0.0
    %5784 = vmatprep.subr.mxu0 0.0
    %5785 = vmatpush1.msra.mxu0 0.0
    %5786 = vmatprep.subr.mxu0 0.0
    %5787 = vmatpush1.msra.mxu0 0.0
    %5788 = vmatprep.subr.mxu0 0.0
    %5789 = vmatpush1.msra.mxu0 0.0
    %5790 = vmatprep.subr.mxu0 0.0
    %5791 = vmatpush1.msra.mxu0 0.0
    %5792 = vmatprep.subr.mxu0 0.0
    %5793 = vmatpush1.msra.mxu0 0.0
    %5794 = vmatprep.subr.mxu0 0.0
    %5795 = vmatpush1.msra.mxu0 0.0
    %5796 = vmatprep.subr.mxu0 0.0
    %5797 = vmatpush1.msra.mxu0 0.0
    %5798 = vmatprep.subr.mxu0 0.0
    %5799 = vmatpush1.msra.mxu0 0.0
    %5800 = vmatprep.subr.mxu0 0.0
    %5801 = vmatpush1.msra.mxu0 0.0
    %5802 = vmatprep.subr.mxu0 0.0
    %5803 = vmatpush1.msra.mxu0 0.0
    %5804 = vmatprep.subr.mxu0 0.0
    %5805 = vmatpush1.msra.mxu0 0.0
    %5806 = vmatprep.subr.mxu0 0.0
    %5807 = vmatpush1.msra.mxu0 0.0
    %5808 = vmatprep.subr.mxu0 0.0
    %5809 = vmatpush1.msra.mxu0 0.0
    %5810 = vmatprep.subr.mxu0 0.0
    %5811 = vmatpush1.msra.mxu0 0.0
    %5812 = vmatprep.mubr.f32.mxu0 0.0
    %5813 = vmatmul.mubr.f32.gmra.mrb[0].mxu0 %v5743
    %v5814 = vpop.f32.mrb[0].mxu0
    %v5815 = vadd.f32 0.0, %v5814
    %v5816 = vpop.f32.mrb[0].mxu0
    %5817 = vmatprep.mubr.f32.mxu0 0.0
    %5818 = vmatmul.mubr.f32.gmra.mrb[0].mxu0 %v5746
    %v5819 = vpop.f32.mrb[0].mxu0
    %v5820 = vadd.f32 0.0, %v5819
    %v5821 = vpop.f32.mrb[0].mxu0
    %5822 = vdwg.mxu0
    %v5823 = vadd.f32 %v5154, %v5815
    %v5824 = vadd.f32 %v5155, %v5820
    %s5825 = scalar_lea.vmem %s12, 1
    %v5826 = vld [vmem:[%s5825] sm:$0x1]
    %v5828 = vlaneseq
    %v5829 = vshrl.u32 %v5828, 7
    %v5830 = vsub.s32 0, %v5829
    %v5831 = vrot.slane %v5826, %v5830
    %v5833 = vadd.f32 %v5823, %v5831
    %v5834 = vadd.f32 %v5824, %v5831
    %v5835 = vadd.f32 %v3145, %v5833
    %v5836 = vadd.f32 %v3146, %v5834
    %s5837 = scalar_lea.vmem %s13, 1
    %v5838 = vld [vmem:[%s5837] sm:$0x1]
    %s5839 = scalar_lea.vmem %s14, 1
    %v5840 = vld [vmem:[%s5839] sm:$0x1]
    %v5841 = vsel %vm179, %v5835, 0.0
    %5842 = vadd.xlane.f32.xlu0 %v5841
    %v5843 = vpop.xlane.xlu0 %5842
    %v5844 = vsel %vm179, %v5836, 0.0
    %5845 = vadd.xlane.f32.xlu0 %v5844
    %v5846 = vpop.xlane.xlu0 %5845
    %v5847 = vmul.f32 %v5843, %v2872
    %v5848 = vmul.f32 %v5846, %v2872
    %v5849 = vsub.f32 %v5835, %v5847
    %v5850 = vsub.f32 %v5836, %v5848
    %v5851 = vmul.f32 %v5849, %v5849
    %v5852 = vmul.f32 %v5850, %v5850
    %v5853 = vsel %vm179, %v5851, 0.0
    %5854 = vadd.xlane.f32.xlu0 %v5853
    %v5855 = vpop.xlane.xlu0 %5854
    %v5856 = vsel %vm179, %v5852, 0.0
    %5857 = vadd.xlane.f32.xlu0 %v5856
    %v5858 = vpop.xlane.xlu0 %5857
    %v5859 = vmul.f32 %v5855, %v2872
    %v5860 = vmul.f32 %v5858, %v2872
    %v5861 = vadd.f32 %v5859, 1e-05
    %v5862 = vadd.f32 %v5860, 1e-05
    %v5863 = vrsqrt.pop %v5861
    %v5864 = vrsqrt.pop %v5862
    %v5865 = vmul.f32 %v5849, %v5863
    %v5866 = vmul.f32 %v5850, %v5864
    %v5868 = vlaneseq
    %v5869 = vshrl.u32 %v5868, 7
    %v5870 = vsub.s32 0, %v5869
    %v5871 = vrot.slane %v5838, %v5870
    %v5873 = vmul.f32 %v5865, %v5871
    %v5874 = vmul.f32 %v5866, %v5871
    %v5876 = vlaneseq
    %v5877 = vshrl.u32 %v5876, 7
    %v5878 = vsub.s32 0, %v5877
    %v5879 = vrot.slane %v5840, %v5878
    %v5881 = vadd.f32 %v5873, %v5879
    %v5882 = vadd.f32 %v5874, %v5879
    %s5883 = scalar_lea.vmem %s15, 32
    %v5884 = vld [vmem:[%s5883] sm:$0xff]
    %v5885 = vld [vmem:[%s5883 + $0x8] sm:$0xff]
    %v5886 = vld [vmem:[%s5883 + $0x10] sm:$0xff]
    %v5887 = vld [vmem:[%s5883 + $0x18] sm:$0xff]
    %s5888 = scalar_lea.vmem %s16, 1
    %v5889 = vld [vmem:[%s5888] sm:$0x1]
    %v5891 = vlaneseq
    %v5892 = vshrl.u32 %v5891, 7
    %v5893 = vsub.s32 0, %v5892
    %v5894 = vrot.slane %v5889, %v5893
    %v5897 = vsel %vm179, %v5881, 0
    %v5900 = vsel %vm179, %v5882, 0
    %5902 = vmatprep.subr.mxu0 0.0
    %5903 = vmatpush1.msra.mxu0 %v5884
    %5904 = vmatprep.subr.mxu0 0.0
    %5905 = vmatpush1.msra.mxu0 %v5885
    %5906 = vmatprep.subr.mxu0 0.0
    %5907 = vmatpush1.msra.mxu0 %v5886
    %5908 = vmatprep.subr.mxu0 0.0
    %5909 = vmatpush1.msra.mxu0 %v5887
    %5910 = vmatprep.subr.mxu0 0.0
    %5911 = vmatpush1.msra.mxu0 0.0
    %5912 = vmatprep.subr.mxu0 0.0
    %5913 = vmatpush1.msra.mxu0 0.0
    %5914 = vmatprep.subr.mxu0 0.0
    %5915 = vmatpush1.msra.mxu0 0.0
    %5916 = vmatprep.subr.mxu0 0.0
    %5917 = vmatpush1.msra.mxu0 0.0
    %5918 = vmatprep.subr.mxu0 0.0
    %5919 = vmatpush1.msra.mxu0 0.0
    %5920 = vmatprep.subr.mxu0 0.0
    %5921 = vmatpush1.msra.mxu0 0.0
    %5922 = vmatprep.subr.mxu0 0.0
    %5923 = vmatpush1.msra.mxu0 0.0
    %5924 = vmatprep.subr.mxu0 0.0
    %5925 = vmatpush1.msra.mxu0 0.0
    %5926 = vmatprep.subr.mxu0 0.0
    %5927 = vmatpush1.msra.mxu0 0.0
    %5928 = vmatprep.subr.mxu0 0.0
    %5929 = vmatpush1.msra.mxu0 0.0
    %5930 = vmatprep.subr.mxu0 0.0
    %5931 = vmatpush1.msra.mxu0 0.0
    %5932 = vmatprep.subr.mxu0 0.0
    %5933 = vmatpush1.msra.mxu0 0.0
    %5934 = vmatprep.subr.mxu0 0.0
    %5935 = vmatpush1.msra.mxu0 0.0
    %5936 = vmatprep.subr.mxu0 0.0
    %5937 = vmatpush1.msra.mxu0 0.0
    %5938 = vmatprep.subr.mxu0 0.0
    %5939 = vmatpush1.msra.mxu0 0.0
    %5940 = vmatprep.subr.mxu0 0.0
    %5941 = vmatpush1.msra.mxu0 0.0
    %5942 = vmatprep.subr.mxu0 0.0
    %5943 = vmatpush1.msra.mxu0 0.0
    %5944 = vmatprep.subr.mxu0 0.0
    %5945 = vmatpush1.msra.mxu0 0.0
    %5946 = vmatprep.subr.mxu0 0.0
    %5947 = vmatpush1.msra.mxu0 0.0
    %5948 = vmatprep.subr.mxu0 0.0
    %5949 = vmatpush1.msra.mxu0 0.0
    %5950 = vmatprep.subr.mxu0 0.0
    %5951 = vmatpush1.msra.mxu0 0.0
    %5952 = vmatprep.subr.mxu0 0.0
    %5953 = vmatpush1.msra.mxu0 0.0
    %5954 = vmatprep.subr.mxu0 0.0
    %5955 = vmatpush1.msra.mxu0 0.0
    %5956 = vmatprep.subr.mxu0 0.0
    %5957 = vmatpush1.msra.mxu0 0.0
    %5958 = vmatprep.subr.mxu0 0.0
    %5959 = vmatpush1.msra.mxu0 0.0
    %5960 = vmatprep.subr.mxu0 0.0
    %5961 = vmatpush1.msra.mxu0 0.0
    %5962 = vmatprep.subr.mxu0 0.0
    %5963 = vmatpush1.msra.mxu0 0.0
    %5964 = vmatprep.subr.mxu0 0.0
    %5965 = vmatpush1.msra.mxu0 0.0
    %5966 = vmatprep.mubr.f32.mxu0 0.0
    %5967 = vmatmul.mubr.f32.gmra.mrb[0].mxu0 %v5897
    %v5968 = vpop.f32.mrb[0].mxu0
    %v5969 = vadd.f32 %v5894, %v5968
    %v5970 = vpop.f32.mrb[0].mxu0
    %5971 = vmatprep.mubr.f32.mxu0 0.0
    %5972 = vmatmul.mubr.f32.gmra.mrb[0].mxu0 %v5900
    %v5973 = vpop.f32.mrb[0].mxu0
    %v5974 = vadd.f32 %v5894, %v5973
    %v5975 = vpop.f32.mrb[0].mxu0
    %5976 = vdwg.mxu0
    %v5977 = vmax.f32 %v5969, 0.0
    %v5978 = vmax.f32 %v5974, 0.0
    %s5979 = scalar_lea.vmem %s17, 128
    %v5980 = vld [vmem:[%s5979] sm:$0xff]
    %v5981 = vld [vmem:[%s5979 + $0x8] sm:$0xff]
    %v5982 = vld [vmem:[%s5979 + $0x10] sm:$0xff]
    %v5983 = vld [vmem:[%s5979 + $0x18] sm:$0xff]
    %v5984 = vld [vmem:[%s5979 + $0x20] sm:$0xff]
    %v5985 = vld [vmem:[%s5979 + $0x28] sm:$0xff]
    %v5986 = vld [vmem:[%s5979 + $0x30] sm:$0xff]
    %v5987 = vld [vmem:[%s5979 + $0x38] sm:$0xff]
    %v5988 = vld [vmem:[%s5979 + $0x40] sm:$0xff]
    %v5989 = vld [vmem:[%s5979 + $0x48] sm:$0xff]
    %v5990 = vld [vmem:[%s5979 + $0x50] sm:$0xff]
    %v5991 = vld [vmem:[%s5979 + $0x58] sm:$0xff]
    %v5992 = vld [vmem:[%s5979 + $0x60] sm:$0xff]
    %v5993 = vld [vmem:[%s5979 + $0x68] sm:$0xff]
    %v5994 = vld [vmem:[%s5979 + $0x70] sm:$0xff]
    %v5995 = vld [vmem:[%s5979 + $0x78] sm:$0xff]
    %s5996 = scalar_lea.vmem %s18, 1
    %v5997 = vld [vmem:[%s5996] sm:$0x1]
    %v5999 = vlaneseq
    %v6000 = vshrl.u32 %v5999, 7
    %v6001 = vsub.s32 0, %v6000
    %v6002 = vrot.slane %v5997, %v6001
    %6004 = vmatprep.subr.mxu0 0.0
    %6005 = vmatpush1.msra.mxu0 %v5980
    %6006 = vmatprep.subr.mxu0 0.0
    %6007 = vmatpush1.msra.mxu0 %v5981
    %6008 = vmatprep.subr.mxu0 0.0
    %6009 = vmatpush1.msra.mxu0 %v5982
    %6010 = vmatprep.subr.mxu0 0.0
    %6011 = vmatpush1.msra.mxu0 %v5983
    %6012 = vmatprep.subr.mxu0 0.0
    %6013 = vmatpush1.msra.mxu0 %v5984
    %6014 = vmatprep.subr.mxu0 0.0
    %6015 = vmatpush1.msra.mxu0 %v5985
    %6016 = vmatprep.subr.mxu0 0.0
    %6017 = vmatpush1.msra.mxu0 %v5986
    %6018 = vmatprep.subr.mxu0 0.0
    %6019 = vmatpush1.msra.mxu0 %v5987
    %6020 = vmatprep.subr.mxu0 0.0
    %6021 = vmatpush1.msra.mxu0 %v5988
    %6022 = vmatprep.subr.mxu0 0.0
    %6023 = vmatpush1.msra.mxu0 %v5989
    %6024 = vmatprep.subr.mxu0 0.0
    %6025 = vmatpush1.msra.mxu0 %v5990
    %6026 = vmatprep.subr.mxu0 0.0
    %6027 = vmatpush1.msra.mxu0 %v5991
    %6028 = vmatprep.subr.mxu0 0.0
    %6029 = vmatpush1.msra.mxu0 %v5992
    %6030 = vmatprep.subr.mxu0 0.0
    %6031 = vmatpush1.msra.mxu0 %v5993
    %6032 = vmatprep.subr.mxu0 0.0
    %6033 = vmatpush1.msra.mxu0 %v5994
    %6034 = vmatprep.subr.mxu0 0.0
    %6035 = vmatpush1.msra.mxu0 %v5995
    %6036 = vmatprep.subr.mxu0 0.0
    %6037 = vmatpush1.msra.mxu0 0.0
    %6038 = vmatprep.subr.mxu0 0.0
    %6039 = vmatpush1.msra.mxu0 0.0
    %6040 = vmatprep.subr.mxu0 0.0
    %6041 = vmatpush1.msra.mxu0 0.0
    %6042 = vmatprep.subr.mxu0 0.0
    %6043 = vmatpush1.msra.mxu0 0.0
    %6044 = vmatprep.subr.mxu0 0.0
    %6045 = vmatpush1.msra.mxu0 0.0
    %6046 = vmatprep.subr.mxu0 0.0
    %6047 = vmatpush1.msra.mxu0 0.0
    %6048 = vmatprep.subr.mxu0 0.0
    %6049 = vmatpush1.msra.mxu0 0.0
    %6050 = vmatprep.subr.mxu0 0.0
    %6051 = vmatpush1.msra.mxu0 0.0
    %6052 = vmatprep.subr.mxu0 0.0
    %6053 = vmatpush1.msra.mxu0 0.0
    %6054 = vmatprep.subr.mxu0 0.0
    %6055 = vmatpush1.msra.mxu0 0.0
    %6056 = vmatprep.subr.mxu0 0.0
    %6057 = vmatpush1.msra.mxu0 0.0
    %6058 = vmatprep.subr.mxu0 0.0
    %6059 = vmatpush1.msra.mxu0 0.0
    %6060 = vmatprep.subr.mxu0 0.0
    %6061 = vmatpush1.msra.mxu0 0.0
    %6062 = vmatprep.subr.mxu0 0.0
    %6063 = vmatpush1.msra.mxu0 0.0
    %6064 = vmatprep.subr.mxu0 0.0
    %6065 = vmatpush1.msra.mxu0 0.0
    %6066 = vmatprep.subr.mxu0 0.0
    %6067 = vmatpush1.msra.mxu0 0.0
    %6068 = vmatprep.mubr.f32.mxu0 0.0
    %6069 = vmatmul.mubr.f32.gmra.mrb[0].mxu0 %v5977
    %v6070 = vpop.f32.mrb[0].mxu0
    %v6071 = vadd.f32 %v6002, %v6070
    %v6072 = vpop.f32.mrb[0].mxu0
    %6073 = vmatprep.mubr.f32.mxu0 0.0
    %6074 = vmatmul.mubr.f32.gmra.mrb[0].mxu0 %v5978
    %v6075 = vpop.f32.mrb[0].mxu0
    %v6076 = vadd.f32 %v6002, %v6075
    %v6077 = vpop.f32.mrb[0].mxu0
    %6078 = vdwg.mxu0
    %v6079 = vadd.f32 %v5881, %v6071
    %v6080 = vadd.f32 %v5882, %v6076
    %s6081 = scalar_lea.vmem %s19, 1
    %v6082 = vld [vmem:[%s6081] sm:$0x1]
    %s6083 = scalar_lea.vmem %s20, 1
    %v6084 = vld [vmem:[%s6083] sm:$0x1]
    %v6085 = vsel %vm179, %v6079, 0.0
    %6086 = vadd.xlane.f32.xlu0 %v6085
    %v6087 = vpop.xlane.xlu0 %6086
    %v6088 = vsel %vm179, %v6080, 0.0
    %6089 = vadd.xlane.f32.xlu0 %v6088
    %v6090 = vpop.xlane.xlu0 %6089
    %v6091 = vmul.f32 %v6087, %v2872
    %v6092 = vmul.f32 %v6090, %v2872
    %v6093 = vsub.f32 %v6079, %v6091
    %v6094 = vsub.f32 %v6080, %v6092
    %v6095 = vmul.f32 %v6093, %v6093
    %v6096 = vmul.f32 %v6094, %v6094
    %v6097 = vsel %vm179, %v6095, 0.0
    %6098 = vadd.xlane.f32.xlu0 %v6097
    %v6099 = vpop.xlane.xlu0 %6098
    %v6100 = vsel %vm179, %v6096, 0.0
    %6101 = vadd.xlane.f32.xlu0 %v6100
    %v6102 = vpop.xlane.xlu0 %6101
    %v6103 = vmul.f32 %v6099, %v2872
    %v6104 = vmul.f32 %v6102, %v2872
    %v6105 = vadd.f32 %v6103, 1e-05
    %v6106 = vadd.f32 %v6104, 1e-05
    %v6107 = vrsqrt.pop %v6105
    %v6108 = vrsqrt.pop %v6106
    %v6109 = vmul.f32 %v6093, %v6107
    %v6110 = vmul.f32 %v6094, %v6108
    %v6112 = vlaneseq
    %v6113 = vshrl.u32 %v6112, 7
    %v6114 = vsub.s32 0, %v6113
    %v6115 = vrot.slane %v6082, %v6114
    %v6117 = vmul.f32 %v6109, %v6115
    %v6118 = vmul.f32 %v6110, %v6115
    %v6120 = vlaneseq
    %v6121 = vshrl.u32 %v6120, 7
    %v6122 = vsub.s32 0, %v6121
    %v6123 = vrot.slane %v6084, %v6122
    %v6125 = vadd.f32 %v6117, %v6123
    %v6126 = vadd.f32 %v6118, %v6123
    %6127 = vst.msk [vmem:[#allocation2] sm:$0xff] %vm179, %v6125
    %6128 = vst.msk [vmem:[#allocation2 + $0x8] sm:$0xff] %vm179, %v6126
    // Predicated region
    $region86: #{tpu_custom_call.1} parent=1 // pred_check
      _
    $region87: #{tpu_custom_call.1} parent=1 // pred_check_branch
      %6130 = sbr.rel (0) target = $region89
    $region88: #{tpu_custom_call.1} parent=1 // pred_region
      %s6132 = ssub.s32 256, 256
      %6133 = vsyncadd [#allocation3], %s6132
      %s6134 = sshll.u32 [#allocation2], 4
      %s6135 = int_to_ptr.vmem [resolvable:$true] %s6134
      %6140 = dma.vmem_to_hbm [thread:$0]  %s6135, 256, %s21, [#allocation3], 128, 128, 8
    $region89: #{tpu_custom_call.1} parent=1 // pred_fallthru
      _
    // Predicated region
    $region90: #{tpu_custom_call.1} parent=1 // pred_check
      _
    $region91: #{tpu_custom_call.1} parent=1 // pred_check_branch
      %6142 = sbr.rel (0) target = $region93
    $region92: #{tpu_custom_call.1} parent=1 // pred_region
      %6143 = dma.done [#allocation3], 256
    $region93: #{tpu_custom_call.1} parent=1 // pred_fallthru
      _
    %6144 = vsyncpa [#allocation3], 1

</llo_original>
